<compile_context>
chip_gen: v7x
topology: tpu7x:2x2x1
jax: 0.10.0
libtpu: 0.0.40
codegen_flags: <defaults>
</compile_context>

<pallas_src>
import jax
import jax.numpy as jnp
from jax.experimental import pallas as pl
from jax.experimental.pallas import tpu as pltpu


# ----------------------------- Stage 1: fc1..fc3 ----------------------------------- #
def _fc123_kernel(x_ref, w1_ref, b1_ref, w2_ref, b2_ref, w3_ref, b3_ref, h3_ref):
    """h3 = relu(fc3(relu(fc2(relu(fc1(x)))))), emitted in bf16 (feeds the fc4 MXU)."""

    def layer(h, w_ref, b_ref):
        # bf16 operands on the MXU, f32 accumulation, f32 bias add + relu.
        z = jnp.dot(h, w_ref[...], preferred_element_type=jnp.float32) + b_ref[...]
        return jnp.maximum(z, 0.0).astype(jnp.bfloat16)

    h = layer(x_ref[...], w1_ref, b1_ref)
    h = layer(h, w2_ref, b2_ref)
    h = layer(h, w3_ref, b3_ref)
    h3_ref[...] = h


# ----------------------------- Stage 2: streamed fc4 -------------------------------- #
def _fc4_stream_kernel(h3_ref, w4_ref, b4_ref, o_ref):
    """One lane-dense N tile of sigmoid(h3 @ w4 + b4); w4_ref is a contiguous packed tile."""
    j = pl.program_id(0)
    z = jnp.dot(h3_ref[...], w4_ref[...], preferred_element_type=jnp.float32)
    z = z + b4_ref[pl.ds(j, 1), :]                       # resident packed bias, row j
    o_ref[...] = jax.nn.sigmoid(z).astype(o_ref.dtype)


# ----------------------------------- Wrapper ---------------------------------------- #
def structure_generator_forward(x, packed_params, *, vmem_limit_bytes=32 << 20):
    """Forward pass. x: (M, input_dim) f32. packed_params from pack_params()."""
    (w1, b1), (w2, b2), (w3, b3), (w4p, b4p) = packed_params
    M = x.shape[0]
    n_tiles, K4, tn4 = w4p.shape
    N4 = n_tiles * tn4

    x = x.astype(jnp.bfloat16)  # cast once here, not inside the kernel per grid step

    def full(arr):
        # Full-array block, grid-invariant -> DMA'd once, resident in VMEM.
        return pl.BlockSpec(arr.shape, lambda i, _nd=arr.ndim: (0,) * _nd)

    # Stage 1: everything (x + fc1-3 weights, ~5 MB bf16) fits VMEM; single grid step.
    h3 = pl.pallas_call(
        _fc123_kernel,
        out_shape=jax.ShapeDtypeStruct((M, K4), jnp.bfloat16),
        grid_spec=pltpu.PrefetchScalarGridSpec(
            num_scalar_prefetch=0,
            grid=(1,),
            in_specs=[full(x), full(w1), full(b1), full(w2), full(b2),
                      full(w3), full(b3)],
            out_specs=pl.BlockSpec((M, K4), lambda i: (0, 0)),
        ),
        compiler_params=pltpu.CompilerParams(
            dimension_semantics=("arbitrary",),
            vmem_limit_bytes=vmem_limit_bytes,
        ),
    )(x, w1, b1, w2, b2, w3, b3)

    # Stage 2: stream pre-packed contiguous w4 tiles; h3 (32 KB) and b4 are resident.
    out = pl.pallas_call(
        _fc4_stream_kernel,
        out_shape=jax.ShapeDtypeStruct((M, N4), jnp.float32),
        grid_spec=pltpu.PrefetchScalarGridSpec(
            num_scalar_prefetch=0,
            grid=(n_tiles,),
            in_specs=[
                pl.BlockSpec((M, K4), lambda j: (0, 0)),             # h3: resident
                pl.BlockSpec((None, K4, tn4), lambda j: (j, 0, 0)),  # w4: contiguous tile j
                pl.BlockSpec((n_tiles, tn4), lambda j: (0, 0)),      # b4: resident, packed
            ],
            out_specs=pl.BlockSpec((M, tn4), lambda j: (0, j)),      # lane-dense out tile
        ),
        compiler_params=pltpu.CompilerParams(
            dimension_semantics=("parallel",),  # v7x: each TC streams n_tiles/2 tiles
            vmem_limit_bytes=vmem_limit_bytes,
        ),
    )(h3, w4p, b4p)
    return out


# ------------------------------- Params & packing ----------------------------------- #
def init_params(key, input_dim):
    """PyTorch-style uniform init, f32, weights stored (in_features, out_features)."""
    dims = [input_dim, 512, 1024, 2048, 4096]
    params = []
    for i in range(4):
        key, kw, kb = jax.random.split(key, 3)
        fan_in, fan_out = dims[i], dims[i + 1]
        bound = 1.0 / jnp.sqrt(jnp.float32(fan_in))
        w = jax.random.uniform(kw, (fan_in, fan_out), jnp.float32, -bound, bound)
        b = jax.random.uniform(kb, (1, fan_out), jnp.float32, -bound, bound)
        params.append((w, b))
    return params


def pack_params(params_f32, *, tn4=1024):
    """Cast weights to bf16 and pre-pack fc4 into contiguous (n_tiles, K4, tn4) tiles.

    tn4=1024 splits evenly across v7x's two TensorCores; tn4=2048 is slightly better
    on single-core v5e/v6e (fewer grid steps).
    """
    (w1, b1), (w2, b2), (w3, b3), (w4, b4) = params_f32
    K4, N4 = w4.shape
    assert N4 % tn4 == 0 and tn4 % 128 == 0
    n_tiles = N4 // tn4
    w4p = (w4.astype(jnp.bfloat16)
              .reshape(K4, n_tiles, tn4)
              .transpose(1, 0, 2))            # tile j == w4[:, j*tn4:(j+1)*tn4]
    b4p = b4.reshape(n_tiles, tn4)
    return ((w1.astype(jnp.bfloat16), b1),
            (w2.astype(jnp.bfloat16), b2),
            (w3.astype(jnp.bfloat16), b3),
            (w4p, b4p))


# -------------------------------- Pure-JAX references ------------------------------- #
def _reference_forward(x, params_f32, *, weight_dtype):
    """weight_dtype=bf16 mirrors the kernel's math; f32 mirrors the PyTorch module."""
    (w1, b1), (w2, b2), (w3, b3), (w4, b4) = params_f32
    h = x
    for w, b in ((w1, b1), (w2, b2), (w3, b3)):
        z = jnp.dot(h.astype(weight_dtype), w.astype(weight_dtype),
                    preferred_element_type=jnp.float32) + b
        h = jnp.maximum(z, 0.0)
    z = jnp.dot(h.astype(weight_dtype), w4.astype(weight_dtype),
                preferred_element_type=jnp.float32) + b4
    return jax.nn.sigmoid(z)


if __name__ == "__main__":
    key = jax.random.PRNGKey(0)
    k_x, k_p = jax.random.split(key)

    batch, input_dim = 8, 32
    x = jax.random.normal(k_x, (batch, input_dim), jnp.float32)
    params_f32 = init_params(k_p, input_dim)
    params = pack_params(params_f32, tn4=1024)

    out = jax.block_until_ready(structure_generator_forward(x, params))

    assert out.shape == (batch, 4096), out.shape
    assert bool(jnp.all((out >= 0.0) & (out <= 1.0)))  # sigmoid output range

    # Same-precision (bf16-weight) reference: catches tiling/packing/indexing bugs.
    ref_bf16 = _reference_forward(x, params_f32, weight_dtype=jnp.bfloat16)
    err_bf16 = float(jnp.max(jnp.abs(out - ref_bf16)))
    assert err_bf16 < 1e-3, f"bf16-reference mismatch: {err_bf16}"

    # Full-f32 PyTorch-semantics reference: bounds the bf16 weight drift.
    ref_f32 = _reference_forward(x, params_f32, weight_dtype=jnp.float32)
    err_f32 = float(jnp.max(jnp.abs(out - ref_f32)))
    assert err_f32 < 3e-2, f"f32-reference drift too large: {err_f32}"

    print("KERNEL_OK")
</pallas_src>

<mosaic_0001>
module attributes {stable_mosaic.version = 11 : i64} {
  func.func @_fc123_kernel(%arg0: i32, %arg1: memref<8x32xbf16, #tpu.memory_space<vmem>>, %arg2: memref<32x512xbf16, #tpu.memory_space<vmem>>, %arg3: memref<1x512xf32, #tpu.memory_space<vmem>>, %arg4: memref<512x1024xbf16, #tpu.memory_space<vmem>>, %arg5: memref<1x1024xf32, #tpu.memory_space<vmem>>, %arg6: memref<1024x2048xbf16, #tpu.memory_space<vmem>>, %arg7: memref<1x2048xf32, #tpu.memory_space<vmem>>, %arg8: memref<8x2048xbf16, #tpu.memory_space<vmem>>) attributes {dimension_semantics = [#tpu.dimension_semantics<arbitrary>], iteration_bounds = array<i64: 1>, scalar_prefetch = 0 : i64, scratch_operands = 0 : i64, tpu.core_type = #tpu.core_type<tc>, window_params = [{pipeline_mode = #tpu.pipeline_mode<synchronous>, transform_indices = @transform_0, window_bounds = array<i64: 8, 32>}, {pipeline_mode = #tpu.pipeline_mode<synchronous>, transform_indices = @transform_1, window_bounds = array<i64: 32, 512>}, {pipeline_mode = #tpu.pipeline_mode<synchronous>, transform_indices = @transform_2, window_bounds = array<i64: 1, 512>}, {pipeline_mode = #tpu.pipeline_mode<synchronous>, transform_indices = @transform_3, window_bounds = array<i64: 512, 1024>}, {pipeline_mode = #tpu.pipeline_mode<synchronous>, transform_indices = @transform_4, window_bounds = array<i64: 1, 1024>}, {pipeline_mode = #tpu.pipeline_mode<synchronous>, transform_indices = @transform_5, window_bounds = array<i64: 1024, 2048>}, {pipeline_mode = #tpu.pipeline_mode<synchronous>, transform_indices = @transform_6, window_bounds = array<i64: 1, 2048>}, {pipeline_mode = #tpu.pipeline_mode<synchronous>, transform_indices = @transform_7, window_bounds = array<i64: 8, 2048>}]} {
    %c0 = arith.constant 0 : index
    %c0_0 = arith.constant 0 : index
    %0 = vector.load %arg1[%c0, %c0_0] : memref<8x32xbf16, #tpu.memory_space<vmem>>, vector<8x32xbf16>
    %c0_1 = arith.constant 0 : index
    %c0_2 = arith.constant 0 : index
    %1 = vector.load %arg2[%c0_1, %c0_2] : memref<32x512xbf16, #tpu.memory_space<vmem>>, vector<32x512xbf16>
    %cst = arith.constant dense<0.000000e+00> : vector<8x512xf32>
    %2 = tpu.matmul %0, %1, %cst {dimension_numbers = #tpu.dot_dimension_numbers<[1], [0], [0], [1], [0, 0, 1, 1], [], []>} : vector<8x32xbf16>, vector<32x512xbf16>, vector<8x512xf32> -> vector<8x512xf32>
    %c0_3 = arith.constant 0 : index
    %c0_4 = arith.constant 0 : index
    %3 = vector.load %arg3[%c0_3, %c0_4] : memref<1x512xf32, #tpu.memory_space<vmem>>, vector<1x512xf32>
    %4 = vector.broadcast %3 : vector<1x512xf32> to vector<8x512xf32>
    %5 = arith.addf %2, %4 : vector<8x512xf32>
    %cst_5 = arith.constant 0.000000e+00 : f32
    %6 = vector.broadcast %cst_5 : f32 to vector<8x512xf32>
    %7 = arith.maximumf %5, %6 : vector<8x512xf32>
    %8 = arith.truncf %7 : vector<8x512xf32> to vector<8x512xbf16>
    %c0_6 = arith.constant 0 : index
    %c0_7 = arith.constant 0 : index
    %9 = vector.load %arg4[%c0_6, %c0_7] : memref<512x1024xbf16, #tpu.memory_space<vmem>>, vector<512x1024xbf16>
    %cst_8 = arith.constant dense<0.000000e+00> : vector<8x1024xf32>
    %10 = tpu.matmul %8, %9, %cst_8 {dimension_numbers = #tpu.dot_dimension_numbers<[1], [0], [0], [1], [0, 0, 1, 1], [], []>} : vector<8x512xbf16>, vector<512x1024xbf16>, vector<8x1024xf32> -> vector<8x1024xf32>
    %c0_9 = arith.constant 0 : index
    %c0_10 = arith.constant 0 : index
    %11 = vector.load %arg5[%c0_9, %c0_10] : memref<1x1024xf32, #tpu.memory_space<vmem>>, vector<1x1024xf32>
    %12 = vector.broadcast %11 : vector<1x1024xf32> to vector<8x1024xf32>
    %13 = arith.addf %10, %12 : vector<8x1024xf32>
    %cst_11 = arith.constant 0.000000e+00 : f32
    %14 = vector.broadcast %cst_11 : f32 to vector<8x1024xf32>
    %15 = arith.maximumf %13, %14 : vector<8x1024xf32>
    %16 = arith.truncf %15 : vector<8x1024xf32> to vector<8x1024xbf16>
    %c0_12 = arith.constant 0 : index
    %c0_13 = arith.constant 0 : index
    %17 = vector.load %arg6[%c0_12, %c0_13] : memref<1024x2048xbf16, #tpu.memory_space<vmem>>, vector<1024x2048xbf16>
    %cst_14 = arith.constant dense<0.000000e+00> : vector<8x2048xf32>
    %18 = tpu.matmul %16, %17, %cst_14 {dimension_numbers = #tpu.dot_dimension_numbers<[1], [0], [0], [1], [0, 0, 1, 1], [], []>} : vector<8x1024xbf16>, vector<1024x2048xbf16>, vector<8x2048xf32> -> vector<8x2048xf32>
    %c0_15 = arith.constant 0 : index
    %c0_16 = arith.constant 0 : index
    %19 = vector.load %arg7[%c0_15, %c0_16] : memref<1x2048xf32, #tpu.memory_space<vmem>>, vector<1x2048xf32>
    %20 = vector.broadcast %19 : vector<1x2048xf32> to vector<8x2048xf32>
    %21 = arith.addf %18, %20 : vector<8x2048xf32>
    %cst_17 = arith.constant 0.000000e+00 : f32
    %22 = vector.broadcast %cst_17 : f32 to vector<8x2048xf32>
    %23 = arith.maximumf %21, %22 : vector<8x2048xf32>
    %24 = arith.truncf %23 : vector<8x2048xf32> to vector<8x2048xbf16>
    %c0_18 = arith.constant 0 : index
    %c0_19 = arith.constant 0 : index
    %25 = vector.load %arg8[%c0_18, %c0_19] : memref<8x2048xbf16, #tpu.memory_space<vmem>>, vector<8x2048xbf16>
    tpu.vector_store %arg8[%c0_18, %c0_19], %24 {strides = array<i32>} : memref<8x2048xbf16, #tpu.memory_space<vmem>>, vector<8x2048xbf16>,
    return
  }
  func.func @transform_0(%arg0: i32) -> (i32, i32) {
    %c0_i32 = arith.constant 0 : i32
    %c0_i32_0 = arith.constant 0 : i32
    %c0_i32_1 = arith.constant 0 : i32
    return %c0_i32, %c0_i32_0 : i32, i32
  }
  func.func @transform_1(%arg0: i32) -> (i32, i32) {
    %c0_i32 = arith.constant 0 : i32
    %c0_i32_0 = arith.constant 0 : i32
    %c0_i32_1 = arith.constant 0 : i32
    return %c0_i32, %c0_i32_0 : i32, i32
  }
  func.func @transform_2(%arg0: i32) -> (i32, i32) {
    %c0_i32 = arith.constant 0 : i32
    %c0_i32_0 = arith.constant 0 : i32
    %c0_i32_1 = arith.constant 0 : i32
    return %c0_i32, %c0_i32_0 : i32, i32
  }
  func.func @transform_3(%arg0: i32) -> (i32, i32) {
    %c0_i32 = arith.constant 0 : i32
    %c0_i32_0 = arith.constant 0 : i32
    %c0_i32_1 = arith.constant 0 : i32
    return %c0_i32, %c0_i32_0 : i32, i32
  }
  func.func @transform_4(%arg0: i32) -> (i32, i32) {
    %c0_i32 = arith.constant 0 : i32
    %c0_i32_0 = arith.constant 0 : i32
    %c0_i32_1 = arith.constant 0 : i32
    return %c0_i32, %c0_i32_0 : i32, i32
  }
  func.func @transform_5(%arg0: i32) -> (i32, i32) {
    %c0_i32 = arith.constant 0 : i32
    %c0_i32_0 = arith.constant 0 : i32
    %c0_i32_1 = arith.constant 0 : i32
    return %c0_i32, %c0_i32_0 : i32, i32
  }
  func.func @transform_6(%arg0: i32) -> (i32, i32) {
    %c0_i32 = arith.constant 0 : i32
    %c0_i32_0 = arith.constant 0 : i32
    %c0_i32_1 = arith.constant 0 : i32
    return %c0_i32, %c0_i32_0 : i32, i32
  }
  func.func @transform_7(%arg0: i32) -> (i32, i32) {
    %c0_i32 = arith.constant 0 : i32
    %c0_i32_0 = arith.constant 0 : i32
    %c0_i32_1 = arith.constant 0 : i32
    return %c0_i32, %c0_i32_0 : i32, i32
  }
}

</mosaic_0001>

<llo_original>
// kernel: tpu_custom_call.1
$region0: #{tpu_custom_call.1}
  #allocation0 [shape = 'u32[]', space=smem, size = 0x4, offset = 0x4, fixed_abs, tag = 'smem constant byte address 0x4 - core index']
  #allocation1 [shape = 'u32[144,128]{1,0:T(1,128)}', space=vmem, size = 0x12000, scoped, tag = 'internal scratch']
  %s0 = inlined_call_operand.hbm [shape: bf16[8,32], index: 0, kind: input, shape index: {}]
  %s1 = inlined_call_operand.hbm [shape: bf16[32,512], index: 1, kind: input, shape index: {}]
  %s2 = inlined_call_operand.hbm [shape: f32[1,512], index: 2, kind: input, shape index: {}]
  %s3 = inlined_call_operand.hbm [shape: bf16[512,1024], index: 3, kind: input, shape index: {}]
  %s4 = inlined_call_operand.hbm [shape: f32[1,1024], index: 4, kind: input, shape index: {}]
  %s5 = inlined_call_operand.hbm [shape: bf16[1024,2048], index: 5, kind: input, shape index: {}]
  %s6 = inlined_call_operand.hbm [shape: f32[1,2048], index: 6, kind: input, shape index: {}]
  %s7 = inlined_call_operand.hbm [shape: bf16[8,2048], index: 7, kind: output, shape index: {}]
  %s8 = sld [smem:[#allocation0]]
  $region66: #{tpu_custom_call.1} parent=0
    _
  %s10 = ssub.s32 1, %s8
  %s11 = scalar_select 0, %s10, %s8
  $region1: #{tpu_custom_call.1} parent=0
    #allocation2 [shape = 'u8[2048]{0}', space=vmem, size = 0x800, scoped, tag = 'input window, operand 0, single buffered']
    #allocation3 [shape = 's32[1]{0}', space=sflag, size = 0x4, scoped, tag = 'scoped memory for tpu_custom_call.1']
    #allocation4 [shape = 's32[1]{0}', space=sflag, size = 0x4, scoped, tag = 'scoped memory for tpu_custom_call.1']
    #allocation5 [shape = 'u8[32768]{0}', space=vmem, size = 0x8000, scoped, tag = 'input window, operand 1, single buffered']
    #allocation6 [shape = 's32[1]{0}', space=sflag, size = 0x4, scoped, tag = 'scoped memory for tpu_custom_call.1']
    #allocation7 [shape = 'u8[2048]{0}', space=vmem, size = 0x800, scoped, tag = 'input window, operand 2, single buffered']
    #allocation8 [shape = 'u8[1048576]{0}', space=vmem, size = 0x100000, scoped, tag = 'input window, operand 3, single buffered']
    #allocation9 [shape = 's32[1]{0}', space=sflag, size = 0x4, scoped, tag = 'scoped memory for tpu_custom_call.1']
    #allocation10 [shape = 'u8[4096]{0}', space=vmem, size = 0x1000, scoped, tag = 'input window, operand 4, single buffered']
    #allocation11 [shape = 'u8[4194304]{0}', space=vmem, size = 0x400000, scoped, tag = 'input window, operand 5, single buffered']
    #allocation12 [shape = 's32[1]{0}', space=sflag, size = 0x4, scoped, tag = 'scoped memory for tpu_custom_call.1']
    #allocation13 [shape = 'u8[8192]{0}', space=vmem, size = 0x2000, scoped, tag = 'input window, operand 6, single buffered']
    #allocation14 [shape = 'u8[32768]{0}', space=vmem, size = 0x8000, scoped, tag = 'output window, operand 0, single buffered']
    %12 = vsyncpa [#allocation3], 0
    %13 = vsyncpa [#allocation6], 0
    %14 = vsyncpa [#allocation9], 0
    %15 = vsyncpa [#allocation12], 0
    %16 = vsyncpa [#allocation4], 0
    // Predicated region
    $region2: #{tpu_custom_call.1} parent=1 // pred_check
      _
    $region3: #{tpu_custom_call.1} parent=1 // pred_check_branch
      %18 = sbr.rel (0) target = $region5
    $region4: #{tpu_custom_call.1} parent=1 // pred_region
      %s20 = ssub.s32 64, 64
      %21 = vsyncadd [#allocation3], %s20
      %s23 = sshll.u32 [#allocation2], 4
      %s24 = int_to_ptr.vmem [resolvable:$true] %s23
      %26 = dma.hbm_to_vmem [thread:$0]  %s0, 64, %s24, [#allocation3]
    $region5: #{tpu_custom_call.1} parent=1 // pred_fallthru
      _
    // Predicated region
    $region6: #{tpu_custom_call.1} parent=1 // pred_check
      _
    $region7: #{tpu_custom_call.1} parent=1 // pred_check_branch
      %28 = sbr.rel (0) target = $region9
    $region8: #{tpu_custom_call.1} parent=1 // pred_region
      %s30 = ssub.s32 1024, 1024
      %31 = vsyncadd [#allocation6], %s30
      %s32 = sshll.u32 [#allocation5], 4
      %s33 = int_to_ptr.vmem [resolvable:$true] %s32
      %38 = dma.hbm_to_vmem [thread:$0]  %s1, 1024, %s33, [#allocation6], 256, 256, 16
    $region9: #{tpu_custom_call.1} parent=1 // pred_fallthru
      _
    // Predicated region
    $region10: #{tpu_custom_call.1} parent=1 // pred_check
      _
    $region11: #{tpu_custom_call.1} parent=1 // pred_check_branch
      %40 = sbr.rel (0) target = $region13
    $region12: #{tpu_custom_call.1} parent=1 // pred_region
      %s42 = ssub.s32 64, 64
      %43 = vsyncadd [#allocation6], %s42
      %s45 = sshll.u32 [#allocation7], 4
      %s46 = int_to_ptr.vmem [resolvable:$true] %s45
      %48 = dma.hbm_to_vmem [thread:$0]  %s2, 64, %s46, [#allocation6]
    $region13: #{tpu_custom_call.1} parent=1 // pred_fallthru
      _
    // Predicated region
    $region14: #{tpu_custom_call.1} parent=1 // pred_check
      _
    $region15: #{tpu_custom_call.1} parent=1 // pred_check_branch
      %50 = sbr.rel (0) target = $region17
    $region16: #{tpu_custom_call.1} parent=1 // pred_region
      %s52 = ssub.s32 32768, 32768
      %53 = vsyncadd [#allocation9], %s52
      %s54 = sshll.u32 [#allocation8], 4
      %s55 = int_to_ptr.vmem [resolvable:$true] %s54
      %60 = dma.hbm_to_vmem [thread:$0]  %s3, 32768, %s55, [#allocation9], 512, 512, 32
    $region17: #{tpu_custom_call.1} parent=1 // pred_fallthru
      _
    // Predicated region
    $region18: #{tpu_custom_call.1} parent=1 // pred_check
      _
    $region19: #{tpu_custom_call.1} parent=1 // pred_check_branch
      %62 = sbr.rel (0) target = $region21
    $region20: #{tpu_custom_call.1} parent=1 // pred_region
      %s64 = ssub.s32 128, 128
      %65 = vsyncadd [#allocation9], %s64
      %s67 = sshll.u32 [#allocation10], 4
      %s68 = int_to_ptr.vmem [resolvable:$true] %s67
      %70 = dma.hbm_to_vmem [thread:$0]  %s4, 128, %s68, [#allocation9]
    $region21: #{tpu_custom_call.1} parent=1 // pred_fallthru
      _
    // Predicated region
    $region22: #{tpu_custom_call.1} parent=1 // pred_check
      _
    $region23: #{tpu_custom_call.1} parent=1 // pred_check_branch
      %72 = sbr.rel (0) target = $region25
    $region24: #{tpu_custom_call.1} parent=1 // pred_region
      %s74 = ssub.s32 131072, 131072
      %75 = vsyncadd [#allocation12], %s74
      %s76 = sshll.u32 [#allocation11], 4
      %s77 = int_to_ptr.vmem [resolvable:$true] %s76
      %82 = dma.hbm_to_vmem [thread:$0]  %s5, 131072, %s77, [#allocation12], 1024, 1024, 64
    $region25: #{tpu_custom_call.1} parent=1 // pred_fallthru
      _
    // Predicated region
    $region26: #{tpu_custom_call.1} parent=1 // pred_check
      _
    $region27: #{tpu_custom_call.1} parent=1 // pred_check_branch
      %84 = sbr.rel (0) target = $region29
    $region28: #{tpu_custom_call.1} parent=1 // pred_region
      %s86 = ssub.s32 256, 256
      %87 = vsyncadd [#allocation12], %s86
      %s89 = sshll.u32 [#allocation13], 4
      %s90 = int_to_ptr.vmem [resolvable:$true] %s89
      %92 = dma.hbm_to_vmem [thread:$0]  %s6, 256, %s90, [#allocation12]
    $region29: #{tpu_custom_call.1} parent=1 // pred_fallthru
      _
    // Predicated region
    $region30: #{tpu_custom_call.1} parent=1 // pred_check
      _
    $region31: #{tpu_custom_call.1} parent=1 // pred_check_branch
      %94 = sbr.rel (0) target = $region33
    $region32: #{tpu_custom_call.1} parent=1 // pred_region
      %95 = dma.done [#allocation3], 64
    $region33: #{tpu_custom_call.1} parent=1 // pred_fallthru
      _
    // Predicated region
    $region34: #{tpu_custom_call.1} parent=1 // pred_check
      _
    $region35: #{tpu_custom_call.1} parent=1 // pred_check_branch
      %97 = sbr.rel (0) target = $region37
    $region36: #{tpu_custom_call.1} parent=1 // pred_region
      %98 = dma.done [#allocation6], 1024
    $region37: #{tpu_custom_call.1} parent=1 // pred_fallthru
      _
    // Predicated region
    $region38: #{tpu_custom_call.1} parent=1 // pred_check
      _
    $region39: #{tpu_custom_call.1} parent=1 // pred_check_branch
      %100 = sbr.rel (0) target = $region41
    $region40: #{tpu_custom_call.1} parent=1 // pred_region
      %101 = dma.done [#allocation6], 64
    $region41: #{tpu_custom_call.1} parent=1 // pred_fallthru
      _
    // Predicated region
    $region42: #{tpu_custom_call.1} parent=1 // pred_check
      _
    $region43: #{tpu_custom_call.1} parent=1 // pred_check_branch
      %103 = sbr.rel (0) target = $region45
    $region44: #{tpu_custom_call.1} parent=1 // pred_region
      %104 = dma.done [#allocation9], 32768
    $region45: #{tpu_custom_call.1} parent=1 // pred_fallthru
      _
    // Predicated region
    $region46: #{tpu_custom_call.1} parent=1 // pred_check
      _
    $region47: #{tpu_custom_call.1} parent=1 // pred_check_branch
      %106 = sbr.rel (0) target = $region49
    $region48: #{tpu_custom_call.1} parent=1 // pred_region
      %107 = dma.done [#allocation9], 128
    $region49: #{tpu_custom_call.1} parent=1 // pred_fallthru
      _
    // Predicated region
    $region50: #{tpu_custom_call.1} parent=1 // pred_check
      _
    $region51: #{tpu_custom_call.1} parent=1 // pred_check_branch
      %109 = sbr.rel (0) target = $region53
    $region52: #{tpu_custom_call.1} parent=1 // pred_region
      %110 = dma.done [#allocation12], 131072
    $region53: #{tpu_custom_call.1} parent=1 // pred_fallthru
      _
    // Predicated region
    $region54: #{tpu_custom_call.1} parent=1 // pred_check
      _
    $region55: #{tpu_custom_call.1} parent=1 // pred_check_branch
      %112 = sbr.rel (0) target = $region57
    $region56: #{tpu_custom_call.1} parent=1 // pred_region
      %113 = dma.done [#allocation12], 256
    $region57: #{tpu_custom_call.1} parent=1 // pred_fallthru
      _
    %v115 = vld [vmem:[#allocation2] sm:$0xf]
    %v116 = vld [vmem:[#allocation5] sm:$0xff]
    %v117 = vld [vmem:[#allocation5 + $0x8] sm:$0xff]
    %v118 = vld [vmem:[#allocation5 + $0x10] sm:$0xff]
    %v119 = vld [vmem:[#allocation5 + $0x18] sm:$0xff]
    %v120 = vld [vmem:[#allocation5 + $0x20] sm:$0xff]
    %v121 = vld [vmem:[#allocation5 + $0x28] sm:$0xff]
    %v122 = vld [vmem:[#allocation5 + $0x30] sm:$0xff]
    %v123 = vld [vmem:[#allocation5 + $0x38] sm:$0xff]
    %v124 = vld [vmem:[#allocation7] sm:$0xf]
    %v126 = vlaneseq
    %v127 = vshrl.u32 %v126, 7
    %v128 = vsub.s32 0, %v127
    %v129 = vrot.slane %v124, %v128
    %v130 = vlaneseq
    %v131 = vshrl.u32 %v130, 7
    %v132 = vsub.s32 1, %v131
    %v133 = vrot.slane %v124, %v132
    %v134 = vlaneseq
    %v135 = vshrl.u32 %v134, 7
    %v136 = vsub.s32 2, %v135
    %v137 = vrot.slane %v124, %v136
    %v138 = vlaneseq
    %v139 = vshrl.u32 %v138, 7
    %v140 = vsub.s32 3, %v139
    %v141 = vrot.slane %v124, %v140
    %v154 = vunpack.c.l.b16 %v116
    %v155 = vunpack.c.h.b16 %v116
    %v156 = vunpack.c.l.b16 %v117
    %v157 = vunpack.c.h.b16 %v117
    %v158 = vunpack.c.l.b16 %v118
    %v159 = vunpack.c.h.b16 %v118
    %v160 = vunpack.c.l.b16 %v119
    %v161 = vunpack.c.h.b16 %v119
    %v162 = vunpack.c.l.b16 %v120
    %v163 = vunpack.c.h.b16 %v120
    %v164 = vunpack.c.l.b16 %v121
    %v165 = vunpack.c.h.b16 %v121
    %v166 = vunpack.c.l.b16 %v122
    %v167 = vunpack.c.h.b16 %v122
    %v168 = vunpack.c.l.b16 %v123
    %v169 = vunpack.c.h.b16 %v123
    %v170 = vpack.c.b16 %v158, %v154
    %v171 = vpack.c.b16 %v159, %v155
    %v172 = vpack.c.b16 %v160, %v156
    %v173 = vpack.c.b16 %v161, %v157
    %v174 = vpack.c.b16 %v166, %v162
    %v175 = vpack.c.b16 %v167, %v163
    %v176 = vpack.c.b16 %v168, %v164
    %v177 = vpack.c.b16 %v169, %v165
    %vm186 = vcmask 261120
    %v188 = vsel %vm186, %v115, 0
    %190 = vmatprep.subr.bf16.mxu0 %v171
    %191 = vmatpush1.bf16.msra.mxu0 %v170
    %192 = vmatprep.subr.bf16.mxu0 %v175
    %193 = vmatpush1.bf16.msra.mxu0 %v174
    %194 = vmatprep.subr.bf16.mxu0 0
    %195 = vmatpush1.bf16.msra.mxu0 0
    %196 = vmatprep.subr.bf16.mxu0 0
    %197 = vmatpush1.bf16.msra.mxu0 0
    %198 = vmatprep.subr.bf16.mxu0 0
    %199 = vmatpush1.bf16.msra.mxu0 0
    %200 = vmatprep.subr.bf16.mxu0 0
    %201 = vmatpush1.bf16.msra.mxu0 0
    %202 = vmatprep.subr.bf16.mxu0 0
    %203 = vmatpush1.bf16.msra.mxu0 0
    %204 = vmatprep.subr.bf16.mxu0 0
    %205 = vmatpush1.bf16.msra.mxu0 0
    %206 = vmatprep.subr.bf16.mxu0 0
    %207 = vmatpush1.bf16.msra.mxu0 0
    %208 = vmatprep.subr.bf16.mxu0 0
    %209 = vmatpush1.bf16.msra.mxu0 0
    %210 = vmatprep.subr.bf16.mxu0 0
    %211 = vmatpush1.bf16.msra.mxu0 0
    %212 = vmatprep.subr.bf16.mxu0 0
    %213 = vmatpush1.bf16.msra.mxu0 0
    %214 = vmatprep.subr.bf16.mxu0 0
    %215 = vmatpush1.bf16.msra.mxu0 0
    %216 = vmatprep.subr.bf16.mxu0 0
    %217 = vmatpush1.bf16.msra.mxu0 0
    %218 = vmatprep.subr.bf16.mxu0 0
    %219 = vmatpush1.bf16.msra.mxu0 0
    %220 = vmatprep.subr.bf16.mxu0 0
    %221 = vmatpush1.bf16.msra.mxu0 0
    %222 = vmatprep.mubr.bf16.mxu0 0
    %223 = vmatmul.mubr.bf16.gmra.mrb[0].mxu0 %v188
    %v224 = vpop.f32.mrb[0].mxu0
    %v225 = vadd.f32 %v129, %v224
    %v226 = vpop.f32.mrb[0].mxu0
    %v227 = vadd.f32 %v133, %v226
    %v228 = vpop.f32.mrb[0].mxu0
    %v229 = vpop.f32.mrb[0].mxu0
    %230 = vdwg.mxu0
    %231 = vmatprep.subr.bf16.mxu0 %v173
    %232 = vmatpush1.bf16.msra.mxu0 %v172
    %233 = vmatprep.subr.bf16.mxu0 %v177
    %234 = vmatpush1.bf16.msra.mxu0 %v176
    %235 = vmatprep.subr.bf16.mxu0 0
    %236 = vmatpush1.bf16.msra.mxu0 0
    %237 = vmatprep.subr.bf16.mxu0 0
    %238 = vmatpush1.bf16.msra.mxu0 0
    %239 = vmatprep.subr.bf16.mxu0 0
    %240 = vmatpush1.bf16.msra.mxu0 0
    %241 = vmatprep.subr.bf16.mxu0 0
    %242 = vmatpush1.bf16.msra.mxu0 0
    %243 = vmatprep.subr.bf16.mxu0 0
    %244 = vmatpush1.bf16.msra.mxu0 0
    %245 = vmatprep.subr.bf16.mxu0 0
    %246 = vmatpush1.bf16.msra.mxu0 0
    %247 = vmatprep.subr.bf16.mxu0 0
    %248 = vmatpush1.bf16.msra.mxu0 0
    %249 = vmatprep.subr.bf16.mxu0 0
    %250 = vmatpush1.bf16.msra.mxu0 0
    %251 = vmatprep.subr.bf16.mxu0 0
    %252 = vmatpush1.bf16.msra.mxu0 0
    %253 = vmatprep.subr.bf16.mxu0 0
    %254 = vmatpush1.bf16.msra.mxu0 0
    %255 = vmatprep.subr.bf16.mxu0 0
    %256 = vmatpush1.bf16.msra.mxu0 0
    %257 = vmatprep.subr.bf16.mxu0 0
    %258 = vmatpush1.bf16.msra.mxu0 0
    %259 = vmatprep.subr.bf16.mxu0 0
    %260 = vmatpush1.bf16.msra.mxu0 0
    %261 = vmatprep.subr.bf16.mxu0 0
    %262 = vmatpush1.bf16.msra.mxu0 0
    %263 = vmatprep.mubr.bf16.mxu0 0
    %264 = vmatmul.mubr.bf16.gmra.mrb[0].mxu0 %v188
    %v265 = vpop.f32.mrb[0].mxu0
    %v266 = vadd.f32 %v137, %v265
    %v267 = vpop.f32.mrb[0].mxu0
    %v268 = vadd.f32 %v141, %v267
    %v269 = vpop.f32.mrb[0].mxu0
    %v270 = vpop.f32.mrb[0].mxu0
    %271 = vdwg.mxu0
    %v272 = vmax.f32 %v225, 0.0
    %v273 = vmax.f32 %v227, 0.0
    %v274 = vmax.f32 %v266, 0.0
    %v275 = vmax.f32 %v268, 0.0
    %v276 = vpack.c.bf16 %v272, %v272
    %v277 = vpack.c.bf16 %v273, %v273
    %v278 = vpack.c.bf16 %v274, %v274
    %v279 = vpack.c.bf16 %v275, %v275
    %v280 = vld [vmem:[#allocation8] sm:$0xff]
    %v281 = vld [vmem:[#allocation8 + $0x8] sm:$0xff]
    %v282 = vld [vmem:[#allocation8 + $0x10] sm:$0xff]
    %v283 = vld [vmem:[#allocation8 + $0x18] sm:$0xff]
    %v284 = vld [vmem:[#allocation8 + $0x20] sm:$0xff]
    %v285 = vld [vmem:[#allocation8 + $0x28] sm:$0xff]
    %v286 = vld [vmem:[#allocation8 + $0x30] sm:$0xff]
    %v287 = vld [vmem:[#allocation8 + $0x38] sm:$0xff]
    %v288 = vld [vmem:[#allocation8 + $0x40] sm:$0xff]
    %v289 = vld [vmem:[#allocation8 + $0x48] sm:$0xff]
    %v290 = vld [vmem:[#allocation8 + $0x50] sm:$0xff]
    %v291 = vld [vmem:[#allocation8 + $0x58] sm:$0xff]
    %v292 = vld [vmem:[#allocation8 + $0x60] sm:$0xff]
    %v293 = vld [vmem:[#allocation8 + $0x68] sm:$0xff]
    %v294 = vld [vmem:[#allocation8 + $0x70] sm:$0xff]
    %v295 = vld [vmem:[#allocation8 + $0x78] sm:$0xff]
    %v296 = vld [vmem:[#allocation8 + $0x80] sm:$0xff]
    %v297 = vld [vmem:[#allocation8 + $0x88] sm:$0xff]
    %v298 = vld [vmem:[#allocation8 + $0x90] sm:$0xff]
    %v299 = vld [vmem:[#allocation8 + $0x98] sm:$0xff]
    %v300 = vld [vmem:[#allocation8 + $0xa0] sm:$0xff]
    %v301 = vld [vmem:[#allocation8 + $0xa8] sm:$0xff]
    %v302 = vld [vmem:[#allocation8 + $0xb0] sm:$0xff]
    %v303 = vld [vmem:[#allocation8 + $0xb8] sm:$0xff]
    %v304 = vld [vmem:[#allocation8 + $0xc0] sm:$0xff]
    %v305 = vld [vmem:[#allocation8 + $0xc8] sm:$0xff]
    %v306 = vld [vmem:[#allocation8 + $0xd0] sm:$0xff]
    %v307 = vld [vmem:[#allocation8 + $0xd8] sm:$0xff]
    %v308 = vld [vmem:[#allocation8 + $0xe0] sm:$0xff]
    %v309 = vld [vmem:[#allocation8 + $0xe8] sm:$0xff]
    %v310 = vld [vmem:[#allocation8 + $0xf0] sm:$0xff]
    %v311 = vld [vmem:[#allocation8 + $0xf8] sm:$0xff]
    %v312 = vld [vmem:[#allocation8 + $0x100] sm:$0xff]
    %v313 = vld [vmem:[#allocation8 + $0x108] sm:$0xff]
    %v314 = vld [vmem:[#allocation8 + $0x110] sm:$0xff]
    %v315 = vld [vmem:[#allocation8 + $0x118] sm:$0xff]
    %v316 = vld [vmem:[#allocation8 + $0x120] sm:$0xff]
    %v317 = vld [vmem:[#allocation8 + $0x128] sm:$0xff]
    %v318 = vld [vmem:[#allocation8 + $0x130] sm:$0xff]
    %v319 = vld [vmem:[#allocation8 + $0x138] sm:$0xff]
    %v320 = vld [vmem:[#allocation8 + $0x140] sm:$0xff]
    %v321 = vld [vmem:[#allocation8 + $0x148] sm:$0xff]
    %v322 = vld [vmem:[#allocation8 + $0x150] sm:$0xff]
    %v323 = vld [vmem:[#allocation8 + $0x158] sm:$0xff]
    %v324 = vld [vmem:[#allocation8 + $0x160] sm:$0xff]
    %v325 = vld [vmem:[#allocation8 + $0x168] sm:$0xff]
    %v326 = vld [vmem:[#allocation8 + $0x170] sm:$0xff]
    %v327 = vld [vmem:[#allocation8 + $0x178] sm:$0xff]
    %v328 = vld [vmem:[#allocation8 + $0x180] sm:$0xff]
    %v329 = vld [vmem:[#allocation8 + $0x188] sm:$0xff]
    %v330 = vld [vmem:[#allocation8 + $0x190] sm:$0xff]
    %v331 = vld [vmem:[#allocation8 + $0x198] sm:$0xff]
    %v332 = vld [vmem:[#allocation8 + $0x1a0] sm:$0xff]
    %v333 = vld [vmem:[#allocation8 + $0x1a8] sm:$0xff]
    %v334 = vld [vmem:[#allocation8 + $0x1b0] sm:$0xff]
    %v335 = vld [vmem:[#allocation8 + $0x1b8] sm:$0xff]
    %v336 = vld [vmem:[#allocation8 + $0x1c0] sm:$0xff]
    %v337 = vld [vmem:[#allocation8 + $0x1c8] sm:$0xff]
    %v338 = vld [vmem:[#allocation8 + $0x1d0] sm:$0xff]
    %v339 = vld [vmem:[#allocation8 + $0x1d8] sm:$0xff]
    %v340 = vld [vmem:[#allocation8 + $0x1e0] sm:$0xff]
    %v341 = vld [vmem:[#allocation8 + $0x1e8] sm:$0xff]
    %v342 = vld [vmem:[#allocation8 + $0x1f0] sm:$0xff]
    %v343 = vld [vmem:[#allocation8 + $0x1f8] sm:$0xff]
    %v344 = vld [vmem:[#allocation8 + $0x200] sm:$0xff]
    %v345 = vld [vmem:[#allocation8 + $0x208] sm:$0xff]
    %v346 = vld [vmem:[#allocation8 + $0x210] sm:$0xff]
    %v347 = vld [vmem:[#allocation8 + $0x218] sm:$0xff]
    %v348 = vld [vmem:[#allocation8 + $0x220] sm:$0xff]
    %v349 = vld [vmem:[#allocation8 + $0x228] sm:$0xff]
    %v350 = vld [vmem:[#allocation8 + $0x230] sm:$0xff]
    %v351 = vld [vmem:[#allocation8 + $0x238] sm:$0xff]
    %v352 = vld [vmem:[#allocation8 + $0x240] sm:$0xff]
    %v353 = vld [vmem:[#allocation8 + $0x248] sm:$0xff]
    %v354 = vld [vmem:[#allocation8 + $0x250] sm:$0xff]
    %v355 = vld [vmem:[#allocation8 + $0x258] sm:$0xff]
    %v356 = vld [vmem:[#allocation8 + $0x260] sm:$0xff]
    %v357 = vld [vmem:[#allocation8 + $0x268] sm:$0xff]
    %v358 = vld [vmem:[#allocation8 + $0x270] sm:$0xff]
    %v359 = vld [vmem:[#allocation8 + $0x278] sm:$0xff]
    %v360 = vld [vmem:[#allocation8 + $0x280] sm:$0xff]
    %v361 = vld [vmem:[#allocation8 + $0x288] sm:$0xff]
    %v362 = vld [vmem:[#allocation8 + $0x290] sm:$0xff]
    %v363 = vld [vmem:[#allocation8 + $0x298] sm:$0xff]
    %v364 = vld [vmem:[#allocation8 + $0x2a0] sm:$0xff]
    %v365 = vld [vmem:[#allocation8 + $0x2a8] sm:$0xff]
    %v366 = vld [vmem:[#allocation8 + $0x2b0] sm:$0xff]
    %v367 = vld [vmem:[#allocation8 + $0x2b8] sm:$0xff]
    %v368 = vld [vmem:[#allocation8 + $0x2c0] sm:$0xff]
    %v369 = vld [vmem:[#allocation8 + $0x2c8] sm:$0xff]
    %v370 = vld [vmem:[#allocation8 + $0x2d0] sm:$0xff]
    %v371 = vld [vmem:[#allocation8 + $0x2d8] sm:$0xff]
    %v372 = vld [vmem:[#allocation8 + $0x2e0] sm:$0xff]
    %v373 = vld [vmem:[#allocation8 + $0x2e8] sm:$0xff]
    %v374 = vld [vmem:[#allocation8 + $0x2f0] sm:$0xff]
    %v375 = vld [vmem:[#allocation8 + $0x2f8] sm:$0xff]
    %v376 = vld [vmem:[#allocation8 + $0x300] sm:$0xff]
    %v377 = vld [vmem:[#allocation8 + $0x308] sm:$0xff]
    %v378 = vld [vmem:[#allocation8 + $0x310] sm:$0xff]
    %v379 = vld [vmem:[#allocation8 + $0x318] sm:$0xff]
    %v380 = vld [vmem:[#allocation8 + $0x320] sm:$0xff]
    %v381 = vld [vmem:[#allocation8 + $0x328] sm:$0xff]
    %v382 = vld [vmem:[#allocation8 + $0x330] sm:$0xff]
    %v383 = vld [vmem:[#allocation8 + $0x338] sm:$0xff]
    %v384 = vld [vmem:[#allocation8 + $0x340] sm:$0xff]
    %v385 = vld [vmem:[#allocation8 + $0x348] sm:$0xff]
    %v386 = vld [vmem:[#allocation8 + $0x350] sm:$0xff]
    %v387 = vld [vmem:[#allocation8 + $0x358] sm:$0xff]
    %v388 = vld [vmem:[#allocation8 + $0x360] sm:$0xff]
    %v389 = vld [vmem:[#allocation8 + $0x368] sm:$0xff]
    %v390 = vld [vmem:[#allocation8 + $0x370] sm:$0xff]
    %v391 = vld [vmem:[#allocation8 + $0x378] sm:$0xff]
    %v392 = vld [vmem:[#allocation8 + $0x380] sm:$0xff]
    %v393 = vld [vmem:[#allocation8 + $0x388] sm:$0xff]
    %v394 = vld [vmem:[#allocation8 + $0x390] sm:$0xff]
    %v395 = vld [vmem:[#allocation8 + $0x398] sm:$0xff]
    %v396 = vld [vmem:[#allocation8 + $0x3a0] sm:$0xff]
    %v397 = vld [vmem:[#allocation8 + $0x3a8] sm:$0xff]
    %v398 = vld [vmem:[#allocation8 + $0x3b0] sm:$0xff]
    %v399 = vld [vmem:[#allocation8 + $0x3b8] sm:$0xff]
    %v400 = vld [vmem:[#allocation8 + $0x3c0] sm:$0xff]
    %v401 = vld [vmem:[#allocation8 + $0x3c8] sm:$0xff]
    %v402 = vld [vmem:[#allocation8 + $0x3d0] sm:$0xff]
    %v403 = vld [vmem:[#allocation8 + $0x3d8] sm:$0xff]
    %v404 = vld [vmem:[#allocation8 + $0x3e0] sm:$0xff]
    %v405 = vld [vmem:[#allocation8 + $0x3e8] sm:$0xff]
    %v406 = vld [vmem:[#allocation8 + $0x3f0] sm:$0xff]
    %v407 = vld [vmem:[#allocation8 + $0x3f8] sm:$0xff]
    %v408 = vld [vmem:[#allocation8 + $0x400] sm:$0xff]
    %v409 = vld [vmem:[#allocation8 + $0x408] sm:$0xff]
    %v410 = vld [vmem:[#allocation8 + $0x410] sm:$0xff]
    %v411 = vld [vmem:[#allocation8 + $0x418] sm:$0xff]
    %v412 = vld [vmem:[#allocation8 + $0x420] sm:$0xff]
    %v413 = vld [vmem:[#allocation8 + $0x428] sm:$0xff]
    %v414 = vld [vmem:[#allocation8 + $0x430] sm:$0xff]
    %v415 = vld [vmem:[#allocation8 + $0x438] sm:$0xff]
    %v416 = vld [vmem:[#allocation8 + $0x440] sm:$0xff]
    %v417 = vld [vmem:[#allocation8 + $0x448] sm:$0xff]
    %v418 = vld [vmem:[#allocation8 + $0x450] sm:$0xff]
    %v419 = vld [vmem:[#allocation8 + $0x458] sm:$0xff]
    %v420 = vld [vmem:[#allocation8 + $0x460] sm:$0xff]
    %v421 = vld [vmem:[#allocation8 + $0x468] sm:$0xff]
    %v422 = vld [vmem:[#allocation8 + $0x470] sm:$0xff]
    %v423 = vld [vmem:[#allocation8 + $0x478] sm:$0xff]
    %v424 = vld [vmem:[#allocation8 + $0x480] sm:$0xff]
    %v425 = vld [vmem:[#allocation8 + $0x488] sm:$0xff]
    %v426 = vld [vmem:[#allocation8 + $0x490] sm:$0xff]
    %v427 = vld [vmem:[#allocation8 + $0x498] sm:$0xff]
    %v428 = vld [vmem:[#allocation8 + $0x4a0] sm:$0xff]
    %v429 = vld [vmem:[#allocation8 + $0x4a8] sm:$0xff]
    %v430 = vld [vmem:[#allocation8 + $0x4b0] sm:$0xff]
    %v431 = vld [vmem:[#allocation8 + $0x4b8] sm:$0xff]
    %v432 = vld [vmem:[#allocation8 + $0x4c0] sm:$0xff]
    %v433 = vld [vmem:[#allocation8 + $0x4c8] sm:$0xff]
    %v434 = vld [vmem:[#allocation8 + $0x4d0] sm:$0xff]
    %v435 = vld [vmem:[#allocation8 + $0x4d8] sm:$0xff]
    %v436 = vld [vmem:[#allocation8 + $0x4e0] sm:$0xff]
    %v437 = vld [vmem:[#allocation8 + $0x4e8] sm:$0xff]
    %v438 = vld [vmem:[#allocation8 + $0x4f0] sm:$0xff]
    %v439 = vld [vmem:[#allocation8 + $0x4f8] sm:$0xff]
    %v440 = vld [vmem:[#allocation8 + $0x500] sm:$0xff]
    %v441 = vld [vmem:[#allocation8 + $0x508] sm:$0xff]
    %v442 = vld [vmem:[#allocation8 + $0x510] sm:$0xff]
    %v443 = vld [vmem:[#allocation8 + $0x518] sm:$0xff]
    %v444 = vld [vmem:[#allocation8 + $0x520] sm:$0xff]
    %v445 = vld [vmem:[#allocation8 + $0x528] sm:$0xff]
    %v446 = vld [vmem:[#allocation8 + $0x530] sm:$0xff]
    %v447 = vld [vmem:[#allocation8 + $0x538] sm:$0xff]
    %v448 = vld [vmem:[#allocation8 + $0x540] sm:$0xff]
    %v449 = vld [vmem:[#allocation8 + $0x548] sm:$0xff]
    %v450 = vld [vmem:[#allocation8 + $0x550] sm:$0xff]
    %v451 = vld [vmem:[#allocation8 + $0x558] sm:$0xff]
    %v452 = vld [vmem:[#allocation8 + $0x560] sm:$0xff]
    %v453 = vld [vmem:[#allocation8 + $0x568] sm:$0xff]
    %v454 = vld [vmem:[#allocation8 + $0x570] sm:$0xff]
    %v455 = vld [vmem:[#allocation8 + $0x578] sm:$0xff]
    %v456 = vld [vmem:[#allocation8 + $0x580] sm:$0xff]
    %v457 = vld [vmem:[#allocation8 + $0x588] sm:$0xff]
    %v458 = vld [vmem:[#allocation8 + $0x590] sm:$0xff]
    %v459 = vld [vmem:[#allocation8 + $0x598] sm:$0xff]
    %v460 = vld [vmem:[#allocation8 + $0x5a0] sm:$0xff]
    %v461 = vld [vmem:[#allocation8 + $0x5a8] sm:$0xff]
    %v462 = vld [vmem:[#allocation8 + $0x5b0] sm:$0xff]
    %v463 = vld [vmem:[#allocation8 + $0x5b8] sm:$0xff]
    %v464 = vld [vmem:[#allocation8 + $0x5c0] sm:$0xff]
    %v465 = vld [vmem:[#allocation8 + $0x5c8] sm:$0xff]
    %v466 = vld [vmem:[#allocation8 + $0x5d0] sm:$0xff]
    %v467 = vld [vmem:[#allocation8 + $0x5d8] sm:$0xff]
    %v468 = vld [vmem:[#allocation8 + $0x5e0] sm:$0xff]
    %v469 = vld [vmem:[#allocation8 + $0x5e8] sm:$0xff]
    %v470 = vld [vmem:[#allocation8 + $0x5f0] sm:$0xff]
    %v471 = vld [vmem:[#allocation8 + $0x5f8] sm:$0xff]
    %v472 = vld [vmem:[#allocation8 + $0x600] sm:$0xff]
    %v473 = vld [vmem:[#allocation8 + $0x608] sm:$0xff]
    %v474 = vld [vmem:[#allocation8 + $0x610] sm:$0xff]
    %v475 = vld [vmem:[#allocation8 + $0x618] sm:$0xff]
    %v476 = vld [vmem:[#allocation8 + $0x620] sm:$0xff]
    %v477 = vld [vmem:[#allocation8 + $0x628] sm:$0xff]
    %v478 = vld [vmem:[#allocation8 + $0x630] sm:$0xff]
    %v479 = vld [vmem:[#allocation8 + $0x638] sm:$0xff]
    %v480 = vld [vmem:[#allocation8 + $0x640] sm:$0xff]
    %v481 = vld [vmem:[#allocation8 + $0x648] sm:$0xff]
    %v482 = vld [vmem:[#allocation8 + $0x650] sm:$0xff]
    %v483 = vld [vmem:[#allocation8 + $0x658] sm:$0xff]
    %v484 = vld [vmem:[#allocation8 + $0x660] sm:$0xff]
    %v485 = vld [vmem:[#allocation8 + $0x668] sm:$0xff]
    %v486 = vld [vmem:[#allocation8 + $0x670] sm:$0xff]
    %v487 = vld [vmem:[#allocation8 + $0x678] sm:$0xff]
    %v488 = vld [vmem:[#allocation8 + $0x680] sm:$0xff]
    %v489 = vld [vmem:[#allocation8 + $0x688] sm:$0xff]
    %v490 = vld [vmem:[#allocation8 + $0x690] sm:$0xff]
    %v491 = vld [vmem:[#allocation8 + $0x698] sm:$0xff]
    %v492 = vld [vmem:[#allocation8 + $0x6a0] sm:$0xff]
    %v493 = vld [vmem:[#allocation8 + $0x6a8] sm:$0xff]
    %v494 = vld [vmem:[#allocation8 + $0x6b0] sm:$0xff]
    %v495 = vld [vmem:[#allocation8 + $0x6b8] sm:$0xff]
    %v496 = vld [vmem:[#allocation8 + $0x6c0] sm:$0xff]
    %v497 = vld [vmem:[#allocation8 + $0x6c8] sm:$0xff]
    %v498 = vld [vmem:[#allocation8 + $0x6d0] sm:$0xff]
    %v499 = vld [vmem:[#allocation8 + $0x6d8] sm:$0xff]
    %v500 = vld [vmem:[#allocation8 + $0x6e0] sm:$0xff]
    %v501 = vld [vmem:[#allocation8 + $0x6e8] sm:$0xff]
    %v502 = vld [vmem:[#allocation8 + $0x6f0] sm:$0xff]
    %v503 = vld [vmem:[#allocation8 + $0x6f8] sm:$0xff]
    %v504 = vld [vmem:[#allocation8 + $0x700] sm:$0xff]
    %v505 = vld [vmem:[#allocation8 + $0x708] sm:$0xff]
    %v506 = vld [vmem:[#allocation8 + $0x710] sm:$0xff]
    %v507 = vld [vmem:[#allocation8 + $0x718] sm:$0xff]
    %v508 = vld [vmem:[#allocation8 + $0x720] sm:$0xff]
    %v509 = vld [vmem:[#allocation8 + $0x728] sm:$0xff]
    %v510 = vld [vmem:[#allocation8 + $0x730] sm:$0xff]
    %v511 = vld [vmem:[#allocation8 + $0x738] sm:$0xff]
    %v512 = vld [vmem:[#allocation8 + $0x740] sm:$0xff]
    %v513 = vld [vmem:[#allocation8 + $0x748] sm:$0xff]
    %v514 = vld [vmem:[#allocation8 + $0x750] sm:$0xff]
    %v515 = vld [vmem:[#allocation8 + $0x758] sm:$0xff]
    %v516 = vld [vmem:[#allocation8 + $0x760] sm:$0xff]
    %v517 = vld [vmem:[#allocation8 + $0x768] sm:$0xff]
    %v518 = vld [vmem:[#allocation8 + $0x770] sm:$0xff]
    %v519 = vld [vmem:[#allocation8 + $0x778] sm:$0xff]
    %v520 = vld [vmem:[#allocation8 + $0x780] sm:$0xff]
    %v521 = vld [vmem:[#allocation8 + $0x788] sm:$0xff]
    %v522 = vld [vmem:[#allocation8 + $0x790] sm:$0xff]
    %v523 = vld [vmem:[#allocation8 + $0x798] sm:$0xff]
    %v524 = vld [vmem:[#allocation8 + $0x7a0] sm:$0xff]
    %v525 = vld [vmem:[#allocation8 + $0x7a8] sm:$0xff]
    %v526 = vld [vmem:[#allocation8 + $0x7b0] sm:$0xff]
    %v527 = vld [vmem:[#allocation8 + $0x7b8] sm:$0xff]
    %v528 = vld [vmem:[#allocation8 + $0x7c0] sm:$0xff]
    %v529 = vld [vmem:[#allocation8 + $0x7c8] sm:$0xff]
    %v530 = vld [vmem:[#allocation8 + $0x7d0] sm:$0xff]
    %v531 = vld [vmem:[#allocation8 + $0x7d8] sm:$0xff]
    %v532 = vld [vmem:[#allocation8 + $0x7e0] sm:$0xff]
    %v533 = vld [vmem:[#allocation8 + $0x7e8] sm:$0xff]
    %v534 = vld [vmem:[#allocation8 + $0x7f0] sm:$0xff]
    %v535 = vld [vmem:[#allocation8 + $0x7f8] sm:$0xff]
    %v536 = vld [vmem:[#allocation10] sm:$0xff]
    %v538 = vlaneseq
    %v539 = vshrl.u32 %v538, 7
    %v540 = vsub.s32 0, %v539
    %v541 = vrot.slane %v536, %v540
    %v542 = vlaneseq
    %v543 = vshrl.u32 %v542, 7
    %v544 = vsub.s32 1, %v543
    %v545 = vrot.slane %v536, %v544
    %v546 = vlaneseq
    %v547 = vshrl.u32 %v546, 7
    %v548 = vsub.s32 2, %v547
    %v549 = vrot.slane %v536, %v548
    %v550 = vlaneseq
    %v551 = vshrl.u32 %v550, 7
    %v552 = vsub.s32 3, %v551
    %v553 = vrot.slane %v536, %v552
    %v554 = vlaneseq
    %v555 = vshrl.u32 %v554, 7
    %v556 = vsub.s32 4, %v555
    %v557 = vrot.slane %v536, %v556
    %v558 = vlaneseq
    %v559 = vshrl.u32 %v558, 7
    %v560 = vsub.s32 5, %v559
    %v561 = vrot.slane %v536, %v560
    %v562 = vlaneseq
    %v563 = vshrl.u32 %v562, 7
    %v564 = vsub.s32 6, %v563
    %v565 = vrot.slane %v536, %v564
    %v566 = vlaneseq
    %v567 = vshrl.u32 %v566, 7
    %v568 = vsub.s32 7, %v567
    %v569 = vrot.slane %v536, %v568
    %v834 = vunpack.c.l.b16 %v280
    %v835 = vunpack.c.h.b16 %v280
    %v836 = vunpack.c.l.b16 %v281
    %v837 = vunpack.c.h.b16 %v281
    %v838 = vunpack.c.l.b16 %v282
    %v839 = vunpack.c.h.b16 %v282
    %v840 = vunpack.c.l.b16 %v283
    %v841 = vunpack.c.h.b16 %v283
    %v842 = vunpack.c.l.b16 %v284
    %v843 = vunpack.c.h.b16 %v284
    %v844 = vunpack.c.l.b16 %v285
    %v845 = vunpack.c.h.b16 %v285
    %v846 = vunpack.c.l.b16 %v286
    %v847 = vunpack.c.h.b16 %v286
    %v848 = vunpack.c.l.b16 %v287
    %v849 = vunpack.c.h.b16 %v287
    %v850 = vunpack.c.l.b16 %v288
    %v851 = vunpack.c.h.b16 %v288
    %v852 = vunpack.c.l.b16 %v289
    %v853 = vunpack.c.h.b16 %v289
    %v854 = vunpack.c.l.b16 %v290
    %v855 = vunpack.c.h.b16 %v290
    %v856 = vunpack.c.l.b16 %v291
    %v857 = vunpack.c.h.b16 %v291
    %v858 = vunpack.c.l.b16 %v292
    %v859 = vunpack.c.h.b16 %v292
    %v860 = vunpack.c.l.b16 %v293
    %v861 = vunpack.c.h.b16 %v293
    %v862 = vunpack.c.l.b16 %v294
    %v863 = vunpack.c.h.b16 %v294
    %v864 = vunpack.c.l.b16 %v295
    %v865 = vunpack.c.h.b16 %v295
    %v866 = vunpack.c.l.b16 %v296
    %v867 = vunpack.c.h.b16 %v296
    %v868 = vunpack.c.l.b16 %v297
    %v869 = vunpack.c.h.b16 %v297
    %v870 = vunpack.c.l.b16 %v298
    %v871 = vunpack.c.h.b16 %v298
    %v872 = vunpack.c.l.b16 %v299
    %v873 = vunpack.c.h.b16 %v299
    %v874 = vunpack.c.l.b16 %v300
    %v875 = vunpack.c.h.b16 %v300
    %v876 = vunpack.c.l.b16 %v301
    %v877 = vunpack.c.h.b16 %v301
    %v878 = vunpack.c.l.b16 %v302
    %v879 = vunpack.c.h.b16 %v302
    %v880 = vunpack.c.l.b16 %v303
    %v881 = vunpack.c.h.b16 %v303
    %v882 = vunpack.c.l.b16 %v304
    %v883 = vunpack.c.h.b16 %v304
    %v884 = vunpack.c.l.b16 %v305
    %v885 = vunpack.c.h.b16 %v305
    %v886 = vunpack.c.l.b16 %v306
    %v887 = vunpack.c.h.b16 %v306
    %v888 = vunpack.c.l.b16 %v307
    %v889 = vunpack.c.h.b16 %v307
    %v890 = vunpack.c.l.b16 %v308
    %v891 = vunpack.c.h.b16 %v308
    %v892 = vunpack.c.l.b16 %v309
    %v893 = vunpack.c.h.b16 %v309
    %v894 = vunpack.c.l.b16 %v310
    %v895 = vunpack.c.h.b16 %v310
    %v896 = vunpack.c.l.b16 %v311
    %v897 = vunpack.c.h.b16 %v311
    %v898 = vunpack.c.l.b16 %v312
    %v899 = vunpack.c.h.b16 %v312
    %v900 = vunpack.c.l.b16 %v313
    %v901 = vunpack.c.h.b16 %v313
    %v902 = vunpack.c.l.b16 %v314
    %v903 = vunpack.c.h.b16 %v314
    %v904 = vunpack.c.l.b16 %v315
    %v905 = vunpack.c.h.b16 %v315
    %v906 = vunpack.c.l.b16 %v316
    %v907 = vunpack.c.h.b16 %v316
    %v908 = vunpack.c.l.b16 %v317
    %v909 = vunpack.c.h.b16 %v317
    %v910 = vunpack.c.l.b16 %v318
    %v911 = vunpack.c.h.b16 %v318
    %v912 = vunpack.c.l.b16 %v319
    %v913 = vunpack.c.h.b16 %v319
    %v914 = vunpack.c.l.b16 %v320
    %v915 = vunpack.c.h.b16 %v320
    %v916 = vunpack.c.l.b16 %v321
    %v917 = vunpack.c.h.b16 %v321
    %v918 = vunpack.c.l.b16 %v322
    %v919 = vunpack.c.h.b16 %v322
    %v920 = vunpack.c.l.b16 %v323
    %v921 = vunpack.c.h.b16 %v323
    %v922 = vunpack.c.l.b16 %v324
    %v923 = vunpack.c.h.b16 %v324
    %v924 = vunpack.c.l.b16 %v325
    %v925 = vunpack.c.h.b16 %v325
    %v926 = vunpack.c.l.b16 %v326
    %v927 = vunpack.c.h.b16 %v326
    %v928 = vunpack.c.l.b16 %v327
    %v929 = vunpack.c.h.b16 %v327
    %v930 = vunpack.c.l.b16 %v328
    %v931 = vunpack.c.h.b16 %v328
    %v932 = vunpack.c.l.b16 %v329
    %v933 = vunpack.c.h.b16 %v329
    %v934 = vunpack.c.l.b16 %v330
    %v935 = vunpack.c.h.b16 %v330
    %v936 = vunpack.c.l.b16 %v331
    %v937 = vunpack.c.h.b16 %v331
    %v938 = vunpack.c.l.b16 %v332
    %v939 = vunpack.c.h.b16 %v332
    %v940 = vunpack.c.l.b16 %v333
    %v941 = vunpack.c.h.b16 %v333
    %v942 = vunpack.c.l.b16 %v334
    %v943 = vunpack.c.h.b16 %v334
    %v944 = vunpack.c.l.b16 %v335
    %v945 = vunpack.c.h.b16 %v335
    %v946 = vunpack.c.l.b16 %v336
    %v947 = vunpack.c.h.b16 %v336
    %v948 = vunpack.c.l.b16 %v337
    %v949 = vunpack.c.h.b16 %v337
    %v950 = vunpack.c.l.b16 %v338
    %v951 = vunpack.c.h.b16 %v338
    %v952 = vunpack.c.l.b16 %v339
    %v953 = vunpack.c.h.b16 %v339
    %v954 = vunpack.c.l.b16 %v340
    %v955 = vunpack.c.h.b16 %v340
    %v956 = vunpack.c.l.b16 %v341
    %v957 = vunpack.c.h.b16 %v341
    %v958 = vunpack.c.l.b16 %v342
    %v959 = vunpack.c.h.b16 %v342
    %v960 = vunpack.c.l.b16 %v343
    %v961 = vunpack.c.h.b16 %v343
    %v962 = vunpack.c.l.b16 %v344
    %v963 = vunpack.c.h.b16 %v344
    %v964 = vunpack.c.l.b16 %v345
    %v965 = vunpack.c.h.b16 %v345
    %v966 = vunpack.c.l.b16 %v346
    %v967 = vunpack.c.h.b16 %v346
    %v968 = vunpack.c.l.b16 %v347
    %v969 = vunpack.c.h.b16 %v347
    %v970 = vunpack.c.l.b16 %v348
    %v971 = vunpack.c.h.b16 %v348
    %v972 = vunpack.c.l.b16 %v349
    %v973 = vunpack.c.h.b16 %v349
    %v974 = vunpack.c.l.b16 %v350
    %v975 = vunpack.c.h.b16 %v350
    %v976 = vunpack.c.l.b16 %v351
    %v977 = vunpack.c.h.b16 %v351
    %v978 = vunpack.c.l.b16 %v352
    %v979 = vunpack.c.h.b16 %v352
    %v980 = vunpack.c.l.b16 %v353
    %v981 = vunpack.c.h.b16 %v353
    %v982 = vunpack.c.l.b16 %v354
    %v983 = vunpack.c.h.b16 %v354
    %v984 = vunpack.c.l.b16 %v355
    %v985 = vunpack.c.h.b16 %v355
    %v986 = vunpack.c.l.b16 %v356
    %v987 = vunpack.c.h.b16 %v356
    %v988 = vunpack.c.l.b16 %v357
    %v989 = vunpack.c.h.b16 %v357
    %v990 = vunpack.c.l.b16 %v358
    %v991 = vunpack.c.h.b16 %v358
    %v992 = vunpack.c.l.b16 %v359
    %v993 = vunpack.c.h.b16 %v359
    %v994 = vunpack.c.l.b16 %v360
    %v995 = vunpack.c.h.b16 %v360
    %v996 = vunpack.c.l.b16 %v361
    %v997 = vunpack.c.h.b16 %v361
    %v998 = vunpack.c.l.b16 %v362
    %v999 = vunpack.c.h.b16 %v362
    %v1000 = vunpack.c.l.b16 %v363
    %v1001 = vunpack.c.h.b16 %v363
    %v1002 = vunpack.c.l.b16 %v364
    %v1003 = vunpack.c.h.b16 %v364
    %v1004 = vunpack.c.l.b16 %v365
    %v1005 = vunpack.c.h.b16 %v365
    %v1006 = vunpack.c.l.b16 %v366
    %v1007 = vunpack.c.h.b16 %v366
    %v1008 = vunpack.c.l.b16 %v367
    %v1009 = vunpack.c.h.b16 %v367
    %v1010 = vunpack.c.l.b16 %v368
    %v1011 = vunpack.c.h.b16 %v368
    %v1012 = vunpack.c.l.b16 %v369
    %v1013 = vunpack.c.h.b16 %v369
    %v1014 = vunpack.c.l.b16 %v370
    %v1015 = vunpack.c.h.b16 %v370
    %v1016 = vunpack.c.l.b16 %v371
    %v1017 = vunpack.c.h.b16 %v371
    %v1018 = vunpack.c.l.b16 %v372
    %v1019 = vunpack.c.h.b16 %v372
    %v1020 = vunpack.c.l.b16 %v373
    %v1021 = vunpack.c.h.b16 %v373
    %v1022 = vunpack.c.l.b16 %v374
    %v1023 = vunpack.c.h.b16 %v374
    %v1024 = vunpack.c.l.b16 %v375
    %v1025 = vunpack.c.h.b16 %v375
    %v1026 = vunpack.c.l.b16 %v376
    %v1027 = vunpack.c.h.b16 %v376
    %v1028 = vunpack.c.l.b16 %v377
    %v1029 = vunpack.c.h.b16 %v377
    %v1030 = vunpack.c.l.b16 %v378
    %v1031 = vunpack.c.h.b16 %v378
    %v1032 = vunpack.c.l.b16 %v379
    %v1033 = vunpack.c.h.b16 %v379
    %v1034 = vunpack.c.l.b16 %v380
    %v1035 = vunpack.c.h.b16 %v380
    %v1036 = vunpack.c.l.b16 %v381
    %v1037 = vunpack.c.h.b16 %v381
    %v1038 = vunpack.c.l.b16 %v382
    %v1039 = vunpack.c.h.b16 %v382
    %v1040 = vunpack.c.l.b16 %v383
    %v1041 = vunpack.c.h.b16 %v383
    %v1042 = vunpack.c.l.b16 %v384
    %v1043 = vunpack.c.h.b16 %v384
    %v1044 = vunpack.c.l.b16 %v385
    %v1045 = vunpack.c.h.b16 %v385
    %v1046 = vunpack.c.l.b16 %v386
    %v1047 = vunpack.c.h.b16 %v386
    %v1048 = vunpack.c.l.b16 %v387
    %v1049 = vunpack.c.h.b16 %v387
    %v1050 = vunpack.c.l.b16 %v388
    %v1051 = vunpack.c.h.b16 %v388
    %v1052 = vunpack.c.l.b16 %v389
    %v1053 = vunpack.c.h.b16 %v389
    %v1054 = vunpack.c.l.b16 %v390
    %v1055 = vunpack.c.h.b16 %v390
    %v1056 = vunpack.c.l.b16 %v391
    %v1057 = vunpack.c.h.b16 %v391
    %v1058 = vunpack.c.l.b16 %v392
    %v1059 = vunpack.c.h.b16 %v392
    %v1060 = vunpack.c.l.b16 %v393
    %v1061 = vunpack.c.h.b16 %v393
    %v1062 = vunpack.c.l.b16 %v394
    %v1063 = vunpack.c.h.b16 %v394
    %v1064 = vunpack.c.l.b16 %v395
    %v1065 = vunpack.c.h.b16 %v395
    %v1066 = vunpack.c.l.b16 %v396
    %v1067 = vunpack.c.h.b16 %v396
    %v1068 = vunpack.c.l.b16 %v397
    %v1069 = vunpack.c.h.b16 %v397
    %v1070 = vunpack.c.l.b16 %v398
    %v1071 = vunpack.c.h.b16 %v398
    %v1072 = vunpack.c.l.b16 %v399
    %v1073 = vunpack.c.h.b16 %v399
    %v1074 = vunpack.c.l.b16 %v400
    %v1075 = vunpack.c.h.b16 %v400
    %v1076 = vunpack.c.l.b16 %v401
    %v1077 = vunpack.c.h.b16 %v401
    %v1078 = vunpack.c.l.b16 %v402
    %v1079 = vunpack.c.h.b16 %v402
    %v1080 = vunpack.c.l.b16 %v403
    %v1081 = vunpack.c.h.b16 %v403
    %v1082 = vunpack.c.l.b16 %v404
    %v1083 = vunpack.c.h.b16 %v404
    %v1084 = vunpack.c.l.b16 %v405
    %v1085 = vunpack.c.h.b16 %v405
    %v1086 = vunpack.c.l.b16 %v406
    %v1087 = vunpack.c.h.b16 %v406
    %v1088 = vunpack.c.l.b16 %v407
    %v1089 = vunpack.c.h.b16 %v407
    %v1090 = vunpack.c.l.b16 %v408
    %v1091 = vunpack.c.h.b16 %v408
    %v1092 = vunpack.c.l.b16 %v409
    %v1093 = vunpack.c.h.b16 %v409
    %v1094 = vunpack.c.l.b16 %v410
    %v1095 = vunpack.c.h.b16 %v410
    %v1096 = vunpack.c.l.b16 %v411
    %v1097 = vunpack.c.h.b16 %v411
    %v1098 = vunpack.c.l.b16 %v412
    %v1099 = vunpack.c.h.b16 %v412
    %v1100 = vunpack.c.l.b16 %v413
    %v1101 = vunpack.c.h.b16 %v413
    %v1102 = vunpack.c.l.b16 %v414
    %v1103 = vunpack.c.h.b16 %v414
    %v1104 = vunpack.c.l.b16 %v415
    %v1105 = vunpack.c.h.b16 %v415
    %v1106 = vunpack.c.l.b16 %v416
    %v1107 = vunpack.c.h.b16 %v416
    %v1108 = vunpack.c.l.b16 %v417
    %v1109 = vunpack.c.h.b16 %v417
    %v1110 = vunpack.c.l.b16 %v418
    %v1111 = vunpack.c.h.b16 %v418
    %v1112 = vunpack.c.l.b16 %v419
    %v1113 = vunpack.c.h.b16 %v419
    %v1114 = vunpack.c.l.b16 %v420
    %v1115 = vunpack.c.h.b16 %v420
    %v1116 = vunpack.c.l.b16 %v421
    %v1117 = vunpack.c.h.b16 %v421
    %v1118 = vunpack.c.l.b16 %v422
    %v1119 = vunpack.c.h.b16 %v422
    %v1120 = vunpack.c.l.b16 %v423
    %v1121 = vunpack.c.h.b16 %v423
    %v1122 = vunpack.c.l.b16 %v424
    %v1123 = vunpack.c.h.b16 %v424
    %v1124 = vunpack.c.l.b16 %v425
    %v1125 = vunpack.c.h.b16 %v425
    %v1126 = vunpack.c.l.b16 %v426
    %v1127 = vunpack.c.h.b16 %v426
    %v1128 = vunpack.c.l.b16 %v427
    %v1129 = vunpack.c.h.b16 %v427
    %v1130 = vunpack.c.l.b16 %v428
    %v1131 = vunpack.c.h.b16 %v428
    %v1132 = vunpack.c.l.b16 %v429
    %v1133 = vunpack.c.h.b16 %v429
    %v1134 = vunpack.c.l.b16 %v430
    %v1135 = vunpack.c.h.b16 %v430
    %v1136 = vunpack.c.l.b16 %v431
    %v1137 = vunpack.c.h.b16 %v431
    %v1138 = vunpack.c.l.b16 %v432
    %v1139 = vunpack.c.h.b16 %v432
    %v1140 = vunpack.c.l.b16 %v433
    %v1141 = vunpack.c.h.b16 %v433
    %v1142 = vunpack.c.l.b16 %v434
    %v1143 = vunpack.c.h.b16 %v434
    %v1144 = vunpack.c.l.b16 %v435
    %v1145 = vunpack.c.h.b16 %v435
    %v1146 = vunpack.c.l.b16 %v436
    %v1147 = vunpack.c.h.b16 %v436
    %v1148 = vunpack.c.l.b16 %v437
    %v1149 = vunpack.c.h.b16 %v437
    %v1150 = vunpack.c.l.b16 %v438
    %v1151 = vunpack.c.h.b16 %v438
    %v1152 = vunpack.c.l.b16 %v439
    %v1153 = vunpack.c.h.b16 %v439
    %v1154 = vunpack.c.l.b16 %v440
    %v1155 = vunpack.c.h.b16 %v440
    %v1156 = vunpack.c.l.b16 %v441
    %v1157 = vunpack.c.h.b16 %v441
    %v1158 = vunpack.c.l.b16 %v442
    %v1159 = vunpack.c.h.b16 %v442
    %v1160 = vunpack.c.l.b16 %v443
    %v1161 = vunpack.c.h.b16 %v443
    %v1162 = vunpack.c.l.b16 %v444
    %v1163 = vunpack.c.h.b16 %v444
    %v1164 = vunpack.c.l.b16 %v445
    %v1165 = vunpack.c.h.b16 %v445
    %v1166 = vunpack.c.l.b16 %v446
    %v1167 = vunpack.c.h.b16 %v446
    %v1168 = vunpack.c.l.b16 %v447
    %v1169 = vunpack.c.h.b16 %v447
    %v1170 = vunpack.c.l.b16 %v448
    %v1171 = vunpack.c.h.b16 %v448
    %v1172 = vunpack.c.l.b16 %v449
    %v1173 = vunpack.c.h.b16 %v449
    %v1174 = vunpack.c.l.b16 %v450
    %v1175 = vunpack.c.h.b16 %v450
    %v1176 = vunpack.c.l.b16 %v451
    %v1177 = vunpack.c.h.b16 %v451
    %v1178 = vunpack.c.l.b16 %v452
    %v1179 = vunpack.c.h.b16 %v452
    %v1180 = vunpack.c.l.b16 %v453
    %v1181 = vunpack.c.h.b16 %v453
    %v1182 = vunpack.c.l.b16 %v454
    %v1183 = vunpack.c.h.b16 %v454
    %v1184 = vunpack.c.l.b16 %v455
    %v1185 = vunpack.c.h.b16 %v455
    %v1186 = vunpack.c.l.b16 %v456
    %v1187 = vunpack.c.h.b16 %v456
    %v1188 = vunpack.c.l.b16 %v457
    %v1189 = vunpack.c.h.b16 %v457
    %v1190 = vunpack.c.l.b16 %v458
    %v1191 = vunpack.c.h.b16 %v458
    %v1192 = vunpack.c.l.b16 %v459
    %v1193 = vunpack.c.h.b16 %v459
    %v1194 = vunpack.c.l.b16 %v460
    %v1195 = vunpack.c.h.b16 %v460
    %v1196 = vunpack.c.l.b16 %v461
    %v1197 = vunpack.c.h.b16 %v461
    %v1198 = vunpack.c.l.b16 %v462
    %v1199 = vunpack.c.h.b16 %v462
    %v1200 = vunpack.c.l.b16 %v463
    %v1201 = vunpack.c.h.b16 %v463
    %v1202 = vunpack.c.l.b16 %v464
    %v1203 = vunpack.c.h.b16 %v464
    %v1204 = vunpack.c.l.b16 %v465
    %v1205 = vunpack.c.h.b16 %v465
    %v1206 = vunpack.c.l.b16 %v466
    %v1207 = vunpack.c.h.b16 %v466
    %v1208 = vunpack.c.l.b16 %v467
    %v1209 = vunpack.c.h.b16 %v467
    %v1210 = vunpack.c.l.b16 %v468
    %v1211 = vunpack.c.h.b16 %v468
    %v1212 = vunpack.c.l.b16 %v469
    %v1213 = vunpack.c.h.b16 %v469
    %v1214 = vunpack.c.l.b16 %v470
    %v1215 = vunpack.c.h.b16 %v470
    %v1216 = vunpack.c.l.b16 %v471
    %v1217 = vunpack.c.h.b16 %v471
    %v1218 = vunpack.c.l.b16 %v472
    %v1219 = vunpack.c.h.b16 %v472
    %v1220 = vunpack.c.l.b16 %v473
    %v1221 = vunpack.c.h.b16 %v473
    %v1222 = vunpack.c.l.b16 %v474
    %v1223 = vunpack.c.h.b16 %v474
    %v1224 = vunpack.c.l.b16 %v475
    %v1225 = vunpack.c.h.b16 %v475
    %v1226 = vunpack.c.l.b16 %v476
    %v1227 = vunpack.c.h.b16 %v476
    %v1228 = vunpack.c.l.b16 %v477
    %v1229 = vunpack.c.h.b16 %v477
    %v1230 = vunpack.c.l.b16 %v478
    %v1231 = vunpack.c.h.b16 %v478
    %v1232 = vunpack.c.l.b16 %v479
    %v1233 = vunpack.c.h.b16 %v479
    %v1234 = vunpack.c.l.b16 %v480
    %v1235 = vunpack.c.h.b16 %v480
    %v1236 = vunpack.c.l.b16 %v481
    %v1237 = vunpack.c.h.b16 %v481
    %v1238 = vunpack.c.l.b16 %v482
    %v1239 = vunpack.c.h.b16 %v482
    %v1240 = vunpack.c.l.b16 %v483
    %v1241 = vunpack.c.h.b16 %v483
    %v1242 = vunpack.c.l.b16 %v484
    %v1243 = vunpack.c.h.b16 %v484
    %v1244 = vunpack.c.l.b16 %v485
    %v1245 = vunpack.c.h.b16 %v485
    %v1246 = vunpack.c.l.b16 %v486
    %v1247 = vunpack.c.h.b16 %v486
    %v1248 = vunpack.c.l.b16 %v487
    %v1249 = vunpack.c.h.b16 %v487
    %v1250 = vunpack.c.l.b16 %v488
    %v1251 = vunpack.c.h.b16 %v488
    %v1252 = vunpack.c.l.b16 %v489
    %v1253 = vunpack.c.h.b16 %v489
    %v1254 = vunpack.c.l.b16 %v490
    %v1255 = vunpack.c.h.b16 %v490
    %v1256 = vunpack.c.l.b16 %v491
    %v1257 = vunpack.c.h.b16 %v491
    %v1258 = vunpack.c.l.b16 %v492
    %v1259 = vunpack.c.h.b16 %v492
    %v1260 = vunpack.c.l.b16 %v493
    %v1261 = vunpack.c.h.b16 %v493
    %v1262 = vunpack.c.l.b16 %v494
    %v1263 = vunpack.c.h.b16 %v494
    %v1264 = vunpack.c.l.b16 %v495
    %v1265 = vunpack.c.h.b16 %v495
    %v1266 = vunpack.c.l.b16 %v496
    %v1267 = vunpack.c.h.b16 %v496
    %v1268 = vunpack.c.l.b16 %v497
    %v1269 = vunpack.c.h.b16 %v497
    %v1270 = vunpack.c.l.b16 %v498
    %v1271 = vunpack.c.h.b16 %v498
    %v1272 = vunpack.c.l.b16 %v499
    %v1273 = vunpack.c.h.b16 %v499
    %v1274 = vunpack.c.l.b16 %v500
    %v1275 = vunpack.c.h.b16 %v500
    %v1276 = vunpack.c.l.b16 %v501
    %v1277 = vunpack.c.h.b16 %v501
    %v1278 = vunpack.c.l.b16 %v502
    %v1279 = vunpack.c.h.b16 %v502
    %v1280 = vunpack.c.l.b16 %v503
    %v1281 = vunpack.c.h.b16 %v503
    %v1282 = vunpack.c.l.b16 %v504
    %v1283 = vunpack.c.h.b16 %v504
    %v1284 = vunpack.c.l.b16 %v505
    %v1285 = vunpack.c.h.b16 %v505
    %v1286 = vunpack.c.l.b16 %v506
    %v1287 = vunpack.c.h.b16 %v506
    %v1288 = vunpack.c.l.b16 %v507
    %v1289 = vunpack.c.h.b16 %v507
    %v1290 = vunpack.c.l.b16 %v508
    %v1291 = vunpack.c.h.b16 %v508
    %v1292 = vunpack.c.l.b16 %v509
    %v1293 = vunpack.c.h.b16 %v509
    %v1294 = vunpack.c.l.b16 %v510
    %v1295 = vunpack.c.h.b16 %v510
    %v1296 = vunpack.c.l.b16 %v511
    %v1297 = vunpack.c.h.b16 %v511
    %v1298 = vunpack.c.l.b16 %v512
    %v1299 = vunpack.c.h.b16 %v512
    %v1300 = vunpack.c.l.b16 %v513
    %v1301 = vunpack.c.h.b16 %v513
    %v1302 = vunpack.c.l.b16 %v514
    %v1303 = vunpack.c.h.b16 %v514
    %v1304 = vunpack.c.l.b16 %v515
    %v1305 = vunpack.c.h.b16 %v515
    %v1306 = vunpack.c.l.b16 %v516
    %v1307 = vunpack.c.h.b16 %v516
    %v1308 = vunpack.c.l.b16 %v517
    %v1309 = vunpack.c.h.b16 %v517
    %v1310 = vunpack.c.l.b16 %v518
    %v1311 = vunpack.c.h.b16 %v518
    %v1312 = vunpack.c.l.b16 %v519
    %v1313 = vunpack.c.h.b16 %v519
    %v1314 = vunpack.c.l.b16 %v520
    %v1315 = vunpack.c.h.b16 %v520
    %v1316 = vunpack.c.l.b16 %v521
    %v1317 = vunpack.c.h.b16 %v521
    %v1318 = vunpack.c.l.b16 %v522
    %v1319 = vunpack.c.h.b16 %v522
    %v1320 = vunpack.c.l.b16 %v523
    %v1321 = vunpack.c.h.b16 %v523
    %v1322 = vunpack.c.l.b16 %v524
    %v1323 = vunpack.c.h.b16 %v524
    %v1324 = vunpack.c.l.b16 %v525
    %v1325 = vunpack.c.h.b16 %v525
    %v1326 = vunpack.c.l.b16 %v526
    %v1327 = vunpack.c.h.b16 %v526
    %v1328 = vunpack.c.l.b16 %v527
    %v1329 = vunpack.c.h.b16 %v527
    %v1330 = vunpack.c.l.b16 %v528
    %v1331 = vunpack.c.h.b16 %v528
    %v1332 = vunpack.c.l.b16 %v529
    %v1333 = vunpack.c.h.b16 %v529
    %v1334 = vunpack.c.l.b16 %v530
    %v1335 = vunpack.c.h.b16 %v530
    %v1336 = vunpack.c.l.b16 %v531
    %v1337 = vunpack.c.h.b16 %v531
    %v1338 = vunpack.c.l.b16 %v532
    %v1339 = vunpack.c.h.b16 %v532
    %v1340 = vunpack.c.l.b16 %v533
    %v1341 = vunpack.c.h.b16 %v533
    %v1342 = vunpack.c.l.b16 %v534
    %v1343 = vunpack.c.h.b16 %v534
    %v1344 = vunpack.c.l.b16 %v535
    %v1345 = vunpack.c.h.b16 %v535
    %v1346 = vpack.c.b16 %v842, %v834
    %v1347 = vpack.c.b16 %v843, %v835
    %v1348 = vpack.c.b16 %v844, %v836
    %v1349 = vpack.c.b16 %v845, %v837
    %v1350 = vpack.c.b16 %v846, %v838
    %v1351 = vpack.c.b16 %v847, %v839
    %v1352 = vpack.c.b16 %v848, %v840
    %v1353 = vpack.c.b16 %v849, %v841
    %v1354 = vpack.c.b16 %v858, %v850
    %v1355 = vpack.c.b16 %v859, %v851
    %v1356 = vpack.c.b16 %v860, %v852
    %v1357 = vpack.c.b16 %v861, %v853
    %v1358 = vpack.c.b16 %v862, %v854
    %v1359 = vpack.c.b16 %v863, %v855
    %v1360 = vpack.c.b16 %v864, %v856
    %v1361 = vpack.c.b16 %v865, %v857
    %v1362 = vpack.c.b16 %v874, %v866
    %v1363 = vpack.c.b16 %v875, %v867
    %v1364 = vpack.c.b16 %v876, %v868
    %v1365 = vpack.c.b16 %v877, %v869
    %v1366 = vpack.c.b16 %v878, %v870
    %v1367 = vpack.c.b16 %v879, %v871
    %v1368 = vpack.c.b16 %v880, %v872
    %v1369 = vpack.c.b16 %v881, %v873
    %v1370 = vpack.c.b16 %v890, %v882
    %v1371 = vpack.c.b16 %v891, %v883
    %v1372 = vpack.c.b16 %v892, %v884
    %v1373 = vpack.c.b16 %v893, %v885
    %v1374 = vpack.c.b16 %v894, %v886
    %v1375 = vpack.c.b16 %v895, %v887
    %v1376 = vpack.c.b16 %v896, %v888
    %v1377 = vpack.c.b16 %v897, %v889
    %v1378 = vpack.c.b16 %v906, %v898
    %v1379 = vpack.c.b16 %v907, %v899
    %v1380 = vpack.c.b16 %v908, %v900
    %v1381 = vpack.c.b16 %v909, %v901
    %v1382 = vpack.c.b16 %v910, %v902
    %v1383 = vpack.c.b16 %v911, %v903
    %v1384 = vpack.c.b16 %v912, %v904
    %v1385 = vpack.c.b16 %v913, %v905
    %v1386 = vpack.c.b16 %v922, %v914
    %v1387 = vpack.c.b16 %v923, %v915
    %v1388 = vpack.c.b16 %v924, %v916
    %v1389 = vpack.c.b16 %v925, %v917
    %v1390 = vpack.c.b16 %v926, %v918
    %v1391 = vpack.c.b16 %v927, %v919
    %v1392 = vpack.c.b16 %v928, %v920
    %v1393 = vpack.c.b16 %v929, %v921
    %v1394 = vpack.c.b16 %v938, %v930
    %v1395 = vpack.c.b16 %v939, %v931
    %v1396 = vpack.c.b16 %v940, %v932
    %v1397 = vpack.c.b16 %v941, %v933
    %v1398 = vpack.c.b16 %v942, %v934
    %v1399 = vpack.c.b16 %v943, %v935
    %v1400 = vpack.c.b16 %v944, %v936
    %v1401 = vpack.c.b16 %v945, %v937
    %v1402 = vpack.c.b16 %v954, %v946
    %v1403 = vpack.c.b16 %v955, %v947
    %v1404 = vpack.c.b16 %v956, %v948
    %v1405 = vpack.c.b16 %v957, %v949
    %v1406 = vpack.c.b16 %v958, %v950
    %v1407 = vpack.c.b16 %v959, %v951
    %v1408 = vpack.c.b16 %v960, %v952
    %v1409 = vpack.c.b16 %v961, %v953
    %v1410 = vpack.c.b16 %v970, %v962
    %v1411 = vpack.c.b16 %v971, %v963
    %v1412 = vpack.c.b16 %v972, %v964
    %v1413 = vpack.c.b16 %v973, %v965
    %v1414 = vpack.c.b16 %v974, %v966
    %v1415 = vpack.c.b16 %v975, %v967
    %v1416 = vpack.c.b16 %v976, %v968
    %v1417 = vpack.c.b16 %v977, %v969
    %v1418 = vpack.c.b16 %v986, %v978
    %v1419 = vpack.c.b16 %v987, %v979
    %v1420 = vpack.c.b16 %v988, %v980
    %v1421 = vpack.c.b16 %v989, %v981
    %v1422 = vpack.c.b16 %v990, %v982
    %v1423 = vpack.c.b16 %v991, %v983
    %v1424 = vpack.c.b16 %v992, %v984
    %v1425 = vpack.c.b16 %v993, %v985
    %v1426 = vpack.c.b16 %v1002, %v994
    %v1427 = vpack.c.b16 %v1003, %v995
    %v1428 = vpack.c.b16 %v1004, %v996
    %v1429 = vpack.c.b16 %v1005, %v997
    %v1430 = vpack.c.b16 %v1006, %v998
    %v1431 = vpack.c.b16 %v1007, %v999
    %v1432 = vpack.c.b16 %v1008, %v1000
    %v1433 = vpack.c.b16 %v1009, %v1001
    %v1434 = vpack.c.b16 %v1018, %v1010
    %v1435 = vpack.c.b16 %v1019, %v1011
    %v1436 = vpack.c.b16 %v1020, %v1012
    %v1437 = vpack.c.b16 %v1021, %v1013
    %v1438 = vpack.c.b16 %v1022, %v1014
    %v1439 = vpack.c.b16 %v1023, %v1015
    %v1440 = vpack.c.b16 %v1024, %v1016
    %v1441 = vpack.c.b16 %v1025, %v1017
    %v1442 = vpack.c.b16 %v1034, %v1026
    %v1443 = vpack.c.b16 %v1035, %v1027
    %v1444 = vpack.c.b16 %v1036, %v1028
    %v1445 = vpack.c.b16 %v1037, %v1029
    %v1446 = vpack.c.b16 %v1038, %v1030
    %v1447 = vpack.c.b16 %v1039, %v1031
    %v1448 = vpack.c.b16 %v1040, %v1032
    %v1449 = vpack.c.b16 %v1041, %v1033
    %v1450 = vpack.c.b16 %v1050, %v1042
    %v1451 = vpack.c.b16 %v1051, %v1043
    %v1452 = vpack.c.b16 %v1052, %v1044
    %v1453 = vpack.c.b16 %v1053, %v1045
    %v1454 = vpack.c.b16 %v1054, %v1046
    %v1455 = vpack.c.b16 %v1055, %v1047
    %v1456 = vpack.c.b16 %v1056, %v1048
    %v1457 = vpack.c.b16 %v1057, %v1049
    %v1458 = vpack.c.b16 %v1066, %v1058
    %v1459 = vpack.c.b16 %v1067, %v1059
    %v1460 = vpack.c.b16 %v1068, %v1060
    %v1461 = vpack.c.b16 %v1069, %v1061
    %v1462 = vpack.c.b16 %v1070, %v1062
    %v1463 = vpack.c.b16 %v1071, %v1063
    %v1464 = vpack.c.b16 %v1072, %v1064
    %v1465 = vpack.c.b16 %v1073, %v1065
    %v1466 = vpack.c.b16 %v1082, %v1074
    %v1467 = vpack.c.b16 %v1083, %v1075
    %v1468 = vpack.c.b16 %v1084, %v1076
    %v1469 = vpack.c.b16 %v1085, %v1077
    %v1470 = vpack.c.b16 %v1086, %v1078
    %v1471 = vpack.c.b16 %v1087, %v1079
    %v1472 = vpack.c.b16 %v1088, %v1080
    %v1473 = vpack.c.b16 %v1089, %v1081
    %v1474 = vpack.c.b16 %v1098, %v1090
    %v1475 = vpack.c.b16 %v1099, %v1091
    %v1476 = vpack.c.b16 %v1100, %v1092
    %v1477 = vpack.c.b16 %v1101, %v1093
    %v1478 = vpack.c.b16 %v1102, %v1094
    %v1479 = vpack.c.b16 %v1103, %v1095
    %v1480 = vpack.c.b16 %v1104, %v1096
    %v1481 = vpack.c.b16 %v1105, %v1097
    %v1482 = vpack.c.b16 %v1114, %v1106
    %v1483 = vpack.c.b16 %v1115, %v1107
    %v1484 = vpack.c.b16 %v1116, %v1108
    %v1485 = vpack.c.b16 %v1117, %v1109
    %v1486 = vpack.c.b16 %v1118, %v1110
    %v1487 = vpack.c.b16 %v1119, %v1111
    %v1488 = vpack.c.b16 %v1120, %v1112
    %v1489 = vpack.c.b16 %v1121, %v1113
    %v1490 = vpack.c.b16 %v1130, %v1122
    %v1491 = vpack.c.b16 %v1131, %v1123
    %v1492 = vpack.c.b16 %v1132, %v1124
    %v1493 = vpack.c.b16 %v1133, %v1125
    %v1494 = vpack.c.b16 %v1134, %v1126
    %v1495 = vpack.c.b16 %v1135, %v1127
    %v1496 = vpack.c.b16 %v1136, %v1128
    %v1497 = vpack.c.b16 %v1137, %v1129
    %v1498 = vpack.c.b16 %v1146, %v1138
    %v1499 = vpack.c.b16 %v1147, %v1139
    %v1500 = vpack.c.b16 %v1148, %v1140
    %v1501 = vpack.c.b16 %v1149, %v1141
    %v1502 = vpack.c.b16 %v1150, %v1142
    %v1503 = vpack.c.b16 %v1151, %v1143
    %v1504 = vpack.c.b16 %v1152, %v1144
    %v1505 = vpack.c.b16 %v1153, %v1145
    %v1506 = vpack.c.b16 %v1162, %v1154
    %v1507 = vpack.c.b16 %v1163, %v1155
    %v1508 = vpack.c.b16 %v1164, %v1156
    %v1509 = vpack.c.b16 %v1165, %v1157
    %v1510 = vpack.c.b16 %v1166, %v1158
    %v1511 = vpack.c.b16 %v1167, %v1159
    %v1512 = vpack.c.b16 %v1168, %v1160
    %v1513 = vpack.c.b16 %v1169, %v1161
    %v1514 = vpack.c.b16 %v1178, %v1170
    %v1515 = vpack.c.b16 %v1179, %v1171
    %v1516 = vpack.c.b16 %v1180, %v1172
    %v1517 = vpack.c.b16 %v1181, %v1173
    %v1518 = vpack.c.b16 %v1182, %v1174
    %v1519 = vpack.c.b16 %v1183, %v1175
    %v1520 = vpack.c.b16 %v1184, %v1176
    %v1521 = vpack.c.b16 %v1185, %v1177
    %v1522 = vpack.c.b16 %v1194, %v1186
    %v1523 = vpack.c.b16 %v1195, %v1187
    %v1524 = vpack.c.b16 %v1196, %v1188
    %v1525 = vpack.c.b16 %v1197, %v1189
    %v1526 = vpack.c.b16 %v1198, %v1190
    %v1527 = vpack.c.b16 %v1199, %v1191
    %v1528 = vpack.c.b16 %v1200, %v1192
    %v1529 = vpack.c.b16 %v1201, %v1193
    %v1530 = vpack.c.b16 %v1210, %v1202
    %v1531 = vpack.c.b16 %v1211, %v1203
    %v1532 = vpack.c.b16 %v1212, %v1204
    %v1533 = vpack.c.b16 %v1213, %v1205
    %v1534 = vpack.c.b16 %v1214, %v1206
    %v1535 = vpack.c.b16 %v1215, %v1207
    %v1536 = vpack.c.b16 %v1216, %v1208
    %v1537 = vpack.c.b16 %v1217, %v1209
    %v1538 = vpack.c.b16 %v1226, %v1218
    %v1539 = vpack.c.b16 %v1227, %v1219
    %v1540 = vpack.c.b16 %v1228, %v1220
    %v1541 = vpack.c.b16 %v1229, %v1221
    %v1542 = vpack.c.b16 %v1230, %v1222
    %v1543 = vpack.c.b16 %v1231, %v1223
    %v1544 = vpack.c.b16 %v1232, %v1224
    %v1545 = vpack.c.b16 %v1233, %v1225
    %v1546 = vpack.c.b16 %v1242, %v1234
    %v1547 = vpack.c.b16 %v1243, %v1235
    %v1548 = vpack.c.b16 %v1244, %v1236
    %v1549 = vpack.c.b16 %v1245, %v1237
    %v1550 = vpack.c.b16 %v1246, %v1238
    %v1551 = vpack.c.b16 %v1247, %v1239
    %v1552 = vpack.c.b16 %v1248, %v1240
    %v1553 = vpack.c.b16 %v1249, %v1241
    %v1554 = vpack.c.b16 %v1258, %v1250
    %v1555 = vpack.c.b16 %v1259, %v1251
    %v1556 = vpack.c.b16 %v1260, %v1252
    %v1557 = vpack.c.b16 %v1261, %v1253
    %v1558 = vpack.c.b16 %v1262, %v1254
    %v1559 = vpack.c.b16 %v1263, %v1255
    %v1560 = vpack.c.b16 %v1264, %v1256
    %v1561 = vpack.c.b16 %v1265, %v1257
    %v1562 = vpack.c.b16 %v1274, %v1266
    %v1563 = vpack.c.b16 %v1275, %v1267
    %v1564 = vpack.c.b16 %v1276, %v1268
    %v1565 = vpack.c.b16 %v1277, %v1269
    %v1566 = vpack.c.b16 %v1278, %v1270
    %v1567 = vpack.c.b16 %v1279, %v1271
    %v1568 = vpack.c.b16 %v1280, %v1272
    %v1569 = vpack.c.b16 %v1281, %v1273
    %v1570 = vpack.c.b16 %v1290, %v1282
    %v1571 = vpack.c.b16 %v1291, %v1283
    %v1572 = vpack.c.b16 %v1292, %v1284
    %v1573 = vpack.c.b16 %v1293, %v1285
    %v1574 = vpack.c.b16 %v1294, %v1286
    %v1575 = vpack.c.b16 %v1295, %v1287
    %v1576 = vpack.c.b16 %v1296, %v1288
    %v1577 = vpack.c.b16 %v1297, %v1289
    %v1578 = vpack.c.b16 %v1306, %v1298
    %v1579 = vpack.c.b16 %v1307, %v1299
    %v1580 = vpack.c.b16 %v1308, %v1300
    %v1581 = vpack.c.b16 %v1309, %v1301
    %v1582 = vpack.c.b16 %v1310, %v1302
    %v1583 = vpack.c.b16 %v1311, %v1303
    %v1584 = vpack.c.b16 %v1312, %v1304
    %v1585 = vpack.c.b16 %v1313, %v1305
    %v1586 = vpack.c.b16 %v1322, %v1314
    %v1587 = vpack.c.b16 %v1323, %v1315
    %v1588 = vpack.c.b16 %v1324, %v1316
    %v1589 = vpack.c.b16 %v1325, %v1317
    %v1590 = vpack.c.b16 %v1326, %v1318
    %v1591 = vpack.c.b16 %v1327, %v1319
    %v1592 = vpack.c.b16 %v1328, %v1320
    %v1593 = vpack.c.b16 %v1329, %v1321
    %v1594 = vpack.c.b16 %v1338, %v1330
    %v1595 = vpack.c.b16 %v1339, %v1331
    %v1596 = vpack.c.b16 %v1340, %v1332
    %v1597 = vpack.c.b16 %v1341, %v1333
    %v1598 = vpack.c.b16 %v1342, %v1334
    %v1599 = vpack.c.b16 %v1343, %v1335
    %v1600 = vpack.c.b16 %v1344, %v1336
    %v1601 = vpack.c.b16 %v1345, %v1337
    %1858 = vmatprep.subr.bf16.mxu0 %v1347
    %1859 = vmatpush1.bf16.msra.mxu0 %v1346
    %1860 = vmatprep.subr.bf16.mxu0 %v1355
    %1861 = vmatpush1.bf16.msra.mxu0 %v1354
    %1862 = vmatprep.subr.bf16.mxu0 %v1363
    %1863 = vmatpush1.bf16.msra.mxu0 %v1362
    %1864 = vmatprep.subr.bf16.mxu0 %v1371
    %1865 = vmatpush1.bf16.msra.mxu0 %v1370
    %1866 = vmatprep.subr.bf16.mxu0 %v1379
    %1867 = vmatpush1.bf16.msra.mxu0 %v1378
    %1868 = vmatprep.subr.bf16.mxu0 %v1387
    %1869 = vmatpush1.bf16.msra.mxu0 %v1386
    %1870 = vmatprep.subr.bf16.mxu0 %v1395
    %1871 = vmatpush1.bf16.msra.mxu0 %v1394
    %1872 = vmatprep.subr.bf16.mxu0 %v1403
    %1873 = vmatpush1.bf16.msra.mxu0 %v1402
    %1874 = vmatprep.subr.bf16.mxu0 %v1411
    %1875 = vmatpush1.bf16.msra.mxu0 %v1410
    %1876 = vmatprep.subr.bf16.mxu0 %v1419
    %1877 = vmatpush1.bf16.msra.mxu0 %v1418
    %1878 = vmatprep.subr.bf16.mxu0 %v1427
    %1879 = vmatpush1.bf16.msra.mxu0 %v1426
    %1880 = vmatprep.subr.bf16.mxu0 %v1435
    %1881 = vmatpush1.bf16.msra.mxu0 %v1434
    %1882 = vmatprep.subr.bf16.mxu0 %v1443
    %1883 = vmatpush1.bf16.msra.mxu0 %v1442
    %1884 = vmatprep.subr.bf16.mxu0 %v1451
    %1885 = vmatpush1.bf16.msra.mxu0 %v1450
    %1886 = vmatprep.subr.bf16.mxu0 %v1459
    %1887 = vmatpush1.bf16.msra.mxu0 %v1458
    %1888 = vmatprep.subr.bf16.mxu0 %v1467
    %1889 = vmatpush1.bf16.msra.mxu0 %v1466
    %1890 = vmatprep.mubr.bf16.mxu0 %v277
    %1891 = vmatmul.mubr.bf16.gmra.mrb[0].mxu0 %v276
    %v1892 = vpop.f32.mrb[0].mxu0
    %v1893 = vadd.f32 %v541, %v1892
    %v1894 = vpop.f32.mrb[0].mxu0
    %v1895 = vadd.f32 %v545, %v1894
    %v1896 = vpop.f32.mrb[0].mxu0
    %v1897 = vpop.f32.mrb[0].mxu0
    %1898 = vdwg.mxu0
    %1899 = vmatprep.subr.bf16.mxu0 %v1475
    %1900 = vmatpush1.bf16.msra.mxu0 %v1474
    %1901 = vmatprep.subr.bf16.mxu0 %v1483
    %1902 = vmatpush1.bf16.msra.mxu0 %v1482
    %1903 = vmatprep.subr.bf16.mxu0 %v1491
    %1904 = vmatpush1.bf16.msra.mxu0 %v1490
    %1905 = vmatprep.subr.bf16.mxu0 %v1499
    %1906 = vmatpush1.bf16.msra.mxu0 %v1498
    %1907 = vmatprep.subr.bf16.mxu0 %v1507
    %1908 = vmatpush1.bf16.msra.mxu0 %v1506
    %1909 = vmatprep.subr.bf16.mxu0 %v1515
    %1910 = vmatpush1.bf16.msra.mxu0 %v1514
    %1911 = vmatprep.subr.bf16.mxu0 %v1523
    %1912 = vmatpush1.bf16.msra.mxu0 %v1522
    %1913 = vmatprep.subr.bf16.mxu0 %v1531
    %1914 = vmatpush1.bf16.msra.mxu0 %v1530
    %1915 = vmatprep.subr.bf16.mxu0 %v1539
    %1916 = vmatpush1.bf16.msra.mxu0 %v1538
    %1917 = vmatprep.subr.bf16.mxu0 %v1547
    %1918 = vmatpush1.bf16.msra.mxu0 %v1546
    %1919 = vmatprep.subr.bf16.mxu0 %v1555
    %1920 = vmatpush1.bf16.msra.mxu0 %v1554
    %1921 = vmatprep.subr.bf16.mxu0 %v1563
    %1922 = vmatpush1.bf16.msra.mxu0 %v1562
    %1923 = vmatprep.subr.bf16.mxu0 %v1571
    %1924 = vmatpush1.bf16.msra.mxu0 %v1570
    %1925 = vmatprep.subr.bf16.mxu0 %v1579
    %1926 = vmatpush1.bf16.msra.mxu0 %v1578
    %1927 = vmatprep.subr.bf16.mxu0 %v1587
    %1928 = vmatpush1.bf16.msra.mxu0 %v1586
    %1929 = vmatprep.subr.bf16.mxu0 %v1595
    %1930 = vmatpush1.bf16.msra.mxu0 %v1594
    %1931 = vmatprep.mubr.bf16.mxu0 %v279
    %1932 = vmatmul.mubr.bf16.gmra.mrb[0].mxu0 %v278
    %v1933 = vpop.f32.mrb[0].mxu0
    %v1934 = vadd.f32 %v1893, %v1933
    %v1935 = vpop.f32.mrb[0].mxu0
    %v1936 = vadd.f32 %v1895, %v1935
    %v1937 = vpop.f32.mrb[0].mxu0
    %v1938 = vpop.f32.mrb[0].mxu0
    %1939 = vdwg.mxu0
    %1940 = vmatprep.subr.bf16.mxu0 %v1349
    %1941 = vmatpush1.bf16.msra.mxu0 %v1348
    %1942 = vmatprep.subr.bf16.mxu0 %v1357
    %1943 = vmatpush1.bf16.msra.mxu0 %v1356
    %1944 = vmatprep.subr.bf16.mxu0 %v1365
    %1945 = vmatpush1.bf16.msra.mxu0 %v1364
    %1946 = vmatprep.subr.bf16.mxu0 %v1373
    %1947 = vmatpush1.bf16.msra.mxu0 %v1372
    %1948 = vmatprep.subr.bf16.mxu0 %v1381
    %1949 = vmatpush1.bf16.msra.mxu0 %v1380
    %1950 = vmatprep.subr.bf16.mxu0 %v1389
    %1951 = vmatpush1.bf16.msra.mxu0 %v1388
    %1952 = vmatprep.subr.bf16.mxu0 %v1397
    %1953 = vmatpush1.bf16.msra.mxu0 %v1396
    %1954 = vmatprep.subr.bf16.mxu0 %v1405
    %1955 = vmatpush1.bf16.msra.mxu0 %v1404
    %1956 = vmatprep.subr.bf16.mxu0 %v1413
    %1957 = vmatpush1.bf16.msra.mxu0 %v1412
    %1958 = vmatprep.subr.bf16.mxu0 %v1421
    %1959 = vmatpush1.bf16.msra.mxu0 %v1420
    %1960 = vmatprep.subr.bf16.mxu0 %v1429
    %1961 = vmatpush1.bf16.msra.mxu0 %v1428
    %1962 = vmatprep.subr.bf16.mxu0 %v1437
    %1963 = vmatpush1.bf16.msra.mxu0 %v1436
    %1964 = vmatprep.subr.bf16.mxu0 %v1445
    %1965 = vmatpush1.bf16.msra.mxu0 %v1444
    %1966 = vmatprep.subr.bf16.mxu0 %v1453
    %1967 = vmatpush1.bf16.msra.mxu0 %v1452
    %1968 = vmatprep.subr.bf16.mxu0 %v1461
    %1969 = vmatpush1.bf16.msra.mxu0 %v1460
    %1970 = vmatprep.subr.bf16.mxu0 %v1469
    %1971 = vmatpush1.bf16.msra.mxu0 %v1468
    %1972 = vmatprep.mubr.bf16.mxu0 %v277
    %1973 = vmatmul.mubr.bf16.gmra.mrb[0].mxu0 %v276
    %v1974 = vpop.f32.mrb[0].mxu0
    %v1975 = vadd.f32 %v549, %v1974
    %v1976 = vpop.f32.mrb[0].mxu0
    %v1977 = vadd.f32 %v553, %v1976
    %v1978 = vpop.f32.mrb[0].mxu0
    %v1979 = vpop.f32.mrb[0].mxu0
    %1980 = vdwg.mxu0
    %1981 = vmatprep.subr.bf16.mxu0 %v1477
    %1982 = vmatpush1.bf16.msra.mxu0 %v1476
    %1983 = vmatprep.subr.bf16.mxu0 %v1485
    %1984 = vmatpush1.bf16.msra.mxu0 %v1484
    %1985 = vmatprep.subr.bf16.mxu0 %v1493
    %1986 = vmatpush1.bf16.msra.mxu0 %v1492
    %1987 = vmatprep.subr.bf16.mxu0 %v1501
    %1988 = vmatpush1.bf16.msra.mxu0 %v1500
    %1989 = vmatprep.subr.bf16.mxu0 %v1509
    %1990 = vmatpush1.bf16.msra.mxu0 %v1508
    %1991 = vmatprep.subr.bf16.mxu0 %v1517
    %1992 = vmatpush1.bf16.msra.mxu0 %v1516
    %1993 = vmatprep.subr.bf16.mxu0 %v1525
    %1994 = vmatpush1.bf16.msra.mxu0 %v1524
    %1995 = vmatprep.subr.bf16.mxu0 %v1533
    %1996 = vmatpush1.bf16.msra.mxu0 %v1532
    %1997 = vmatprep.subr.bf16.mxu0 %v1541
    %1998 = vmatpush1.bf16.msra.mxu0 %v1540
    %1999 = vmatprep.subr.bf16.mxu0 %v1549
    %2000 = vmatpush1.bf16.msra.mxu0 %v1548
    %2001 = vmatprep.subr.bf16.mxu0 %v1557
    %2002 = vmatpush1.bf16.msra.mxu0 %v1556
    %2003 = vmatprep.subr.bf16.mxu0 %v1565
    %2004 = vmatpush1.bf16.msra.mxu0 %v1564
    %2005 = vmatprep.subr.bf16.mxu0 %v1573
    %2006 = vmatpush1.bf16.msra.mxu0 %v1572
    %2007 = vmatprep.subr.bf16.mxu0 %v1581
    %2008 = vmatpush1.bf16.msra.mxu0 %v1580
    %2009 = vmatprep.subr.bf16.mxu0 %v1589
    %2010 = vmatpush1.bf16.msra.mxu0 %v1588
    %2011 = vmatprep.subr.bf16.mxu0 %v1597
    %2012 = vmatpush1.bf16.msra.mxu0 %v1596
    %2013 = vmatprep.mubr.bf16.mxu0 %v279
    %2014 = vmatmul.mubr.bf16.gmra.mrb[0].mxu0 %v278
    %v2015 = vpop.f32.mrb[0].mxu0
    %v2016 = vadd.f32 %v1975, %v2015
    %v2017 = vpop.f32.mrb[0].mxu0
    %v2018 = vadd.f32 %v1977, %v2017
    %v2019 = vpop.f32.mrb[0].mxu0
    %v2020 = vpop.f32.mrb[0].mxu0
    %2021 = vdwg.mxu0
    %2022 = vmatprep.subr.bf16.mxu0 %v1351
    %2023 = vmatpush1.bf16.msra.mxu0 %v1350
    %2024 = vmatprep.subr.bf16.mxu0 %v1359
    %2025 = vmatpush1.bf16.msra.mxu0 %v1358
    %2026 = vmatprep.subr.bf16.mxu0 %v1367
    %2027 = vmatpush1.bf16.msra.mxu0 %v1366
    %2028 = vmatprep.subr.bf16.mxu0 %v1375
    %2029 = vmatpush1.bf16.msra.mxu0 %v1374
    %2030 = vmatprep.subr.bf16.mxu0 %v1383
    %2031 = vmatpush1.bf16.msra.mxu0 %v1382
    %2032 = vmatprep.subr.bf16.mxu0 %v1391
    %2033 = vmatpush1.bf16.msra.mxu0 %v1390
    %2034 = vmatprep.subr.bf16.mxu0 %v1399
    %2035 = vmatpush1.bf16.msra.mxu0 %v1398
    %2036 = vmatprep.subr.bf16.mxu0 %v1407
    %2037 = vmatpush1.bf16.msra.mxu0 %v1406
    %2038 = vmatprep.subr.bf16.mxu0 %v1415
    %2039 = vmatpush1.bf16.msra.mxu0 %v1414
    %2040 = vmatprep.subr.bf16.mxu0 %v1423
    %2041 = vmatpush1.bf16.msra.mxu0 %v1422
    %2042 = vmatprep.subr.bf16.mxu0 %v1431
    %2043 = vmatpush1.bf16.msra.mxu0 %v1430
    %2044 = vmatprep.subr.bf16.mxu0 %v1439
    %2045 = vmatpush1.bf16.msra.mxu0 %v1438
    %2046 = vmatprep.subr.bf16.mxu0 %v1447
    %2047 = vmatpush1.bf16.msra.mxu0 %v1446
    %2048 = vmatprep.subr.bf16.mxu0 %v1455
    %2049 = vmatpush1.bf16.msra.mxu0 %v1454
    %2050 = vmatprep.subr.bf16.mxu0 %v1463
    %2051 = vmatpush1.bf16.msra.mxu0 %v1462
    %2052 = vmatprep.subr.bf16.mxu0 %v1471
    %2053 = vmatpush1.bf16.msra.mxu0 %v1470
    %2054 = vmatprep.mubr.bf16.mxu0 %v277
    %2055 = vmatmul.mubr.bf16.gmra.mrb[0].mxu0 %v276
    %v2056 = vpop.f32.mrb[0].mxu0
    %v2057 = vadd.f32 %v557, %v2056
    %v2058 = vpop.f32.mrb[0].mxu0
    %v2059 = vadd.f32 %v561, %v2058
    %v2060 = vpop.f32.mrb[0].mxu0
    %v2061 = vpop.f32.mrb[0].mxu0
    %2062 = vdwg.mxu0
    %2063 = vmatprep.subr.bf16.mxu0 %v1479
    %2064 = vmatpush1.bf16.msra.mxu0 %v1478
    %2065 = vmatprep.subr.bf16.mxu0 %v1487
    %2066 = vmatpush1.bf16.msra.mxu0 %v1486
    %2067 = vmatprep.subr.bf16.mxu0 %v1495
    %2068 = vmatpush1.bf16.msra.mxu0 %v1494
    %2069 = vmatprep.subr.bf16.mxu0 %v1503
    %2070 = vmatpush1.bf16.msra.mxu0 %v1502
    %2071 = vmatprep.subr.bf16.mxu0 %v1511
    %2072 = vmatpush1.bf16.msra.mxu0 %v1510
    %2073 = vmatprep.subr.bf16.mxu0 %v1519
    %2074 = vmatpush1.bf16.msra.mxu0 %v1518
    %2075 = vmatprep.subr.bf16.mxu0 %v1527
    %2076 = vmatpush1.bf16.msra.mxu0 %v1526
    %2077 = vmatprep.subr.bf16.mxu0 %v1535
    %2078 = vmatpush1.bf16.msra.mxu0 %v1534
    %2079 = vmatprep.subr.bf16.mxu0 %v1543
    %2080 = vmatpush1.bf16.msra.mxu0 %v1542
    %2081 = vmatprep.subr.bf16.mxu0 %v1551
    %2082 = vmatpush1.bf16.msra.mxu0 %v1550
    %2083 = vmatprep.subr.bf16.mxu0 %v1559
    %2084 = vmatpush1.bf16.msra.mxu0 %v1558
    %2085 = vmatprep.subr.bf16.mxu0 %v1567
    %2086 = vmatpush1.bf16.msra.mxu0 %v1566
    %2087 = vmatprep.subr.bf16.mxu0 %v1575
    %2088 = vmatpush1.bf16.msra.mxu0 %v1574
    %2089 = vmatprep.subr.bf16.mxu0 %v1583
    %2090 = vmatpush1.bf16.msra.mxu0 %v1582
    %2091 = vmatprep.subr.bf16.mxu0 %v1591
    %2092 = vmatpush1.bf16.msra.mxu0 %v1590
    %2093 = vmatprep.subr.bf16.mxu0 %v1599
    %2094 = vmatpush1.bf16.msra.mxu0 %v1598
    %2095 = vmatprep.mubr.bf16.mxu0 %v279
    %2096 = vmatmul.mubr.bf16.gmra.mrb[0].mxu0 %v278
    %v2097 = vpop.f32.mrb[0].mxu0
    %v2098 = vadd.f32 %v2057, %v2097
    %v2099 = vpop.f32.mrb[0].mxu0
    %v2100 = vadd.f32 %v2059, %v2099
    %v2101 = vpop.f32.mrb[0].mxu0
    %v2102 = vpop.f32.mrb[0].mxu0
    %2103 = vdwg.mxu0
    %2104 = vmatprep.subr.bf16.mxu0 %v1353
    %2105 = vmatpush1.bf16.msra.mxu0 %v1352
    %2106 = vmatprep.subr.bf16.mxu0 %v1361
    %2107 = vmatpush1.bf16.msra.mxu0 %v1360
    %2108 = vmatprep.subr.bf16.mxu0 %v1369
    %2109 = vmatpush1.bf16.msra.mxu0 %v1368
    %2110 = vmatprep.subr.bf16.mxu0 %v1377
    %2111 = vmatpush1.bf16.msra.mxu0 %v1376
    %2112 = vmatprep.subr.bf16.mxu0 %v1385
    %2113 = vmatpush1.bf16.msra.mxu0 %v1384
    %2114 = vmatprep.subr.bf16.mxu0 %v1393
    %2115 = vmatpush1.bf16.msra.mxu0 %v1392
    %2116 = vmatprep.subr.bf16.mxu0 %v1401
    %2117 = vmatpush1.bf16.msra.mxu0 %v1400
    %2118 = vmatprep.subr.bf16.mxu0 %v1409
    %2119 = vmatpush1.bf16.msra.mxu0 %v1408
    %2120 = vmatprep.subr.bf16.mxu0 %v1417
    %2121 = vmatpush1.bf16.msra.mxu0 %v1416
    %2122 = vmatprep.subr.bf16.mxu0 %v1425
    %2123 = vmatpush1.bf16.msra.mxu0 %v1424
    %2124 = vmatprep.subr.bf16.mxu0 %v1433
    %2125 = vmatpush1.bf16.msra.mxu0 %v1432
    %2126 = vmatprep.subr.bf16.mxu0 %v1441
    %2127 = vmatpush1.bf16.msra.mxu0 %v1440
    %2128 = vmatprep.subr.bf16.mxu0 %v1449
    %2129 = vmatpush1.bf16.msra.mxu0 %v1448
    %2130 = vmatprep.subr.bf16.mxu0 %v1457
    %2131 = vmatpush1.bf16.msra.mxu0 %v1456
    %2132 = vmatprep.subr.bf16.mxu0 %v1465
    %2133 = vmatpush1.bf16.msra.mxu0 %v1464
    %2134 = vmatprep.subr.bf16.mxu0 %v1473
    %2135 = vmatpush1.bf16.msra.mxu0 %v1472
    %2136 = vmatprep.mubr.bf16.mxu0 %v277
    %2137 = vmatmul.mubr.bf16.gmra.mrb[0].mxu0 %v276
    %v2138 = vpop.f32.mrb[0].mxu0
    %v2139 = vadd.f32 %v565, %v2138
    %v2140 = vpop.f32.mrb[0].mxu0
    %v2141 = vadd.f32 %v569, %v2140
    %v2142 = vpop.f32.mrb[0].mxu0
    %v2143 = vpop.f32.mrb[0].mxu0
    %2144 = vdwg.mxu0
    %2145 = vmatprep.subr.bf16.mxu0 %v1481
    %2146 = vmatpush1.bf16.msra.mxu0 %v1480
    %2147 = vmatprep.subr.bf16.mxu0 %v1489
    %2148 = vmatpush1.bf16.msra.mxu0 %v1488
    %2149 = vmatprep.subr.bf16.mxu0 %v1497
    %2150 = vmatpush1.bf16.msra.mxu0 %v1496
    %2151 = vmatprep.subr.bf16.mxu0 %v1505
    %2152 = vmatpush1.bf16.msra.mxu0 %v1504
    %2153 = vmatprep.subr.bf16.mxu0 %v1513
    %2154 = vmatpush1.bf16.msra.mxu0 %v1512
    %2155 = vmatprep.subr.bf16.mxu0 %v1521
    %2156 = vmatpush1.bf16.msra.mxu0 %v1520
    %2157 = vmatprep.subr.bf16.mxu0 %v1529
    %2158 = vmatpush1.bf16.msra.mxu0 %v1528
    %2159 = vmatprep.subr.bf16.mxu0 %v1537
    %2160 = vmatpush1.bf16.msra.mxu0 %v1536
    %2161 = vmatprep.subr.bf16.mxu0 %v1545
    %2162 = vmatpush1.bf16.msra.mxu0 %v1544
    %2163 = vmatprep.subr.bf16.mxu0 %v1553
    %2164 = vmatpush1.bf16.msra.mxu0 %v1552
    %2165 = vmatprep.subr.bf16.mxu0 %v1561
    %2166 = vmatpush1.bf16.msra.mxu0 %v1560
    %2167 = vmatprep.subr.bf16.mxu0 %v1569
    %2168 = vmatpush1.bf16.msra.mxu0 %v1568
    %2169 = vmatprep.subr.bf16.mxu0 %v1577
    %2170 = vmatpush1.bf16.msra.mxu0 %v1576
    %2171 = vmatprep.subr.bf16.mxu0 %v1585
    %2172 = vmatpush1.bf16.msra.mxu0 %v1584
    %2173 = vmatprep.subr.bf16.mxu0 %v1593
    %2174 = vmatpush1.bf16.msra.mxu0 %v1592
    %2175 = vmatprep.subr.bf16.mxu0 %v1601
    %2176 = vmatpush1.bf16.msra.mxu0 %v1600
    %2177 = vmatprep.mubr.bf16.mxu0 %v279
    %2178 = vmatmul.mubr.bf16.gmra.mrb[0].mxu0 %v278
    %v2179 = vpop.f32.mrb[0].mxu0
    %v2180 = vadd.f32 %v2139, %v2179
    %v2181 = vpop.f32.mrb[0].mxu0
    %v2182 = vadd.f32 %v2141, %v2181
    %v2183 = vpop.f32.mrb[0].mxu0
    %v2184 = vpop.f32.mrb[0].mxu0
    %2185 = vdwg.mxu0
    %v2186 = vmax.f32 %v1934, 0.0
    %v2187 = vmax.f32 %v1936, 0.0
    %v2188 = vmax.f32 %v2016, 0.0
    %v2189 = vmax.f32 %v2018, 0.0
    %v2190 = vmax.f32 %v2098, 0.0
    %v2191 = vmax.f32 %v2100, 0.0
    %v2192 = vmax.f32 %v2180, 0.0
    %v2193 = vmax.f32 %v2182, 0.0
    %v2194 = vpack.c.bf16 %v2186, %v2186
    %v2195 = vpack.c.bf16 %v2187, %v2187
    %v2196 = vpack.c.bf16 %v2188, %v2188
    %v2197 = vpack.c.bf16 %v2189, %v2189
    %v2198 = vpack.c.bf16 %v2190, %v2190
    %v2199 = vpack.c.bf16 %v2191, %v2191
    %v2200 = vpack.c.bf16 %v2192, %v2192
    %v2201 = vpack.c.bf16 %v2193, %v2193
    %v2202 = vld [vmem:[#allocation11] sm:$0xff]
    %v2203 = vld [vmem:[#allocation11 + $0x8] sm:$0xff]
    %v2204 = vld [vmem:[#allocation11 + $0x10] sm:$0xff]
    %v2205 = vld [vmem:[#allocation11 + $0x18] sm:$0xff]
    %v2206 = vld [vmem:[#allocation11 + $0x20] sm:$0xff]
    %v2207 = vld [vmem:[#allocation11 + $0x28] sm:$0xff]
    %v2208 = vld [vmem:[#allocation11 + $0x30] sm:$0xff]
    %v2209 = vld [vmem:[#allocation11 + $0x38] sm:$0xff]
    %v2210 = vld [vmem:[#allocation11 + $0x40] sm:$0xff]
    %v2211 = vld [vmem:[#allocation11 + $0x48] sm:$0xff]
    %v2212 = vld [vmem:[#allocation11 + $0x50] sm:$0xff]
    %v2213 = vld [vmem:[#allocation11 + $0x58] sm:$0xff]
    %v2214 = vld [vmem:[#allocation11 + $0x60] sm:$0xff]
    %v2215 = vld [vmem:[#allocation11 + $0x68] sm:$0xff]
    %v2216 = vld [vmem:[#allocation11 + $0x70] sm:$0xff]
    %v2217 = vld [vmem:[#allocation11 + $0x78] sm:$0xff]
    %v2218 = vld [vmem:[#allocation11 + $0x80] sm:$0xff]
    %v2219 = vld [vmem:[#allocation11 + $0x88] sm:$0xff]
    %v2220 = vld [vmem:[#allocation11 + $0x90] sm:$0xff]
    %v2221 = vld [vmem:[#allocation11 + $0x98] sm:$0xff]
    %v2222 = vld [vmem:[#allocation11 + $0xa0] sm:$0xff]
    %v2223 = vld [vmem:[#allocation11 + $0xa8] sm:$0xff]
    %v2224 = vld [vmem:[#allocation11 + $0xb0] sm:$0xff]
    %v2225 = vld [vmem:[#allocation11 + $0xb8] sm:$0xff]
    %v2226 = vld [vmem:[#allocation11 + $0xc0] sm:$0xff]
    %v2227 = vld [vmem:[#allocation11 + $0xc8] sm:$0xff]
    %v2228 = vld [vmem:[#allocation11 + $0xd0] sm:$0xff]
    %v2229 = vld [vmem:[#allocation11 + $0xd8] sm:$0xff]
    %v2230 = vld [vmem:[#allocation11 + $0xe0] sm:$0xff]
    %v2231 = vld [vmem:[#allocation11 + $0xe8] sm:$0xff]
    %v2232 = vld [vmem:[#allocation11 + $0xf0] sm:$0xff]
    %v2233 = vld [vmem:[#allocation11 + $0xf8] sm:$0xff]
    %v2234 = vld [vmem:[#allocation11 + $0x100] sm:$0xff]
    %v2235 = vld [vmem:[#allocation11 + $0x108] sm:$0xff]
    %v2236 = vld [vmem:[#allocation11 + $0x110] sm:$0xff]
    %v2237 = vld [vmem:[#allocation11 + $0x118] sm:$0xff]
    %v2238 = vld [vmem:[#allocation11 + $0x120] sm:$0xff]
    %v2239 = vld [vmem:[#allocation11 + $0x128] sm:$0xff]
    %v2240 = vld [vmem:[#allocation11 + $0x130] sm:$0xff]
    %v2241 = vld [vmem:[#allocation11 + $0x138] sm:$0xff]
    %v2242 = vld [vmem:[#allocation11 + $0x140] sm:$0xff]
    %v2243 = vld [vmem:[#allocation11 + $0x148] sm:$0xff]
    %v2244 = vld [vmem:[#allocation11 + $0x150] sm:$0xff]
    %v2245 = vld [vmem:[#allocation11 + $0x158] sm:$0xff]
    %v2246 = vld [vmem:[#allocation11 + $0x160] sm:$0xff]
    %v2247 = vld [vmem:[#allocation11 + $0x168] sm:$0xff]
    %v2248 = vld [vmem:[#allocation11 + $0x170] sm:$0xff]
    %v2249 = vld [vmem:[#allocation11 + $0x178] sm:$0xff]
    %v2250 = vld [vmem:[#allocation11 + $0x180] sm:$0xff]
    %v2251 = vld [vmem:[#allocation11 + $0x188] sm:$0xff]
    %v2252 = vld [vmem:[#allocation11 + $0x190] sm:$0xff]
    %v2253 = vld [vmem:[#allocation11 + $0x198] sm:$0xff]
    %v2254 = vld [vmem:[#allocation11 + $0x1a0] sm:$0xff]
    %v2255 = vld [vmem:[#allocation11 + $0x1a8] sm:$0xff]
    %v2256 = vld [vmem:[#allocation11 + $0x1b0] sm:$0xff]
    %v2257 = vld [vmem:[#allocation11 + $0x1b8] sm:$0xff]
    %v2258 = vld [vmem:[#allocation11 + $0x1c0] sm:$0xff]
    %v2259 = vld [vmem:[#allocation11 + $0x1c8] sm:$0xff]
    %v2260 = vld [vmem:[#allocation11 + $0x1d0] sm:$0xff]
    %v2261 = vld [vmem:[#allocation11 + $0x1d8] sm:$0xff]
    %v2262 = vld [vmem:[#allocation11 + $0x1e0] sm:$0xff]
    %v2263 = vld [vmem:[#allocation11 + $0x1e8] sm:$0xff]
    %v2264 = vld [vmem:[#allocation11 + $0x1f0] sm:$0xff]
    %v2265 = vld [vmem:[#allocation11 + $0x1f8] sm:$0xff]
    %v2266 = vld [vmem:[#allocation11 + $0x200] sm:$0xff]
    %v2267 = vld [vmem:[#allocation11 + $0x208] sm:$0xff]
    %v2268 = vld [vmem:[#allocation11 + $0x210] sm:$0xff]
    %v2269 = vld [vmem:[#allocation11 + $0x218] sm:$0xff]
    %v2270 = vld [vmem:[#allocation11 + $0x220] sm:$0xff]
    %v2271 = vld [vmem:[#allocation11 + $0x228] sm:$0xff]
    %v2272 = vld [vmem:[#allocation11 + $0x230] sm:$0xff]
    %v2273 = vld [vmem:[#allocation11 + $0x238] sm:$0xff]
    %v2274 = vld [vmem:[#allocation11 + $0x240] sm:$0xff]
    %v2275 = vld [vmem:[#allocation11 + $0x248] sm:$0xff]
    %v2276 = vld [vmem:[#allocation11 + $0x250] sm:$0xff]
    %v2277 = vld [vmem:[#allocation11 + $0x258] sm:$0xff]
    %v2278 = vld [vmem:[#allocation11 + $0x260] sm:$0xff]
    %v2279 = vld [vmem:[#allocation11 + $0x268] sm:$0xff]
    %v2280 = vld [vmem:[#allocation11 + $0x270] sm:$0xff]
    %v2281 = vld [vmem:[#allocation11 + $0x278] sm:$0xff]
    %v2282 = vld [vmem:[#allocation11 + $0x280] sm:$0xff]
    %v2283 = vld [vmem:[#allocation11 + $0x288] sm:$0xff]
    %v2284 = vld [vmem:[#allocation11 + $0x290] sm:$0xff]
    %v2285 = vld [vmem:[#allocation11 + $0x298] sm:$0xff]
    %v2286 = vld [vmem:[#allocation11 + $0x2a0] sm:$0xff]
    %v2287 = vld [vmem:[#allocation11 + $0x2a8] sm:$0xff]
    %v2288 = vld [vmem:[#allocation11 + $0x2b0] sm:$0xff]
    %v2289 = vld [vmem:[#allocation11 + $0x2b8] sm:$0xff]
    %v2290 = vld [vmem:[#allocation11 + $0x2c0] sm:$0xff]
    %v2291 = vld [vmem:[#allocation11 + $0x2c8] sm:$0xff]
    %v2292 = vld [vmem:[#allocation11 + $0x2d0] sm:$0xff]
    %v2293 = vld [vmem:[#allocation11 + $0x2d8] sm:$0xff]
    %v2294 = vld [vmem:[#allocation11 + $0x2e0] sm:$0xff]
    %v2295 = vld [vmem:[#allocation11 + $0x2e8] sm:$0xff]
    %v2296 = vld [vmem:[#allocation11 + $0x2f0] sm:$0xff]
    %v2297 = vld [vmem:[#allocation11 + $0x2f8] sm:$0xff]
    %v2298 = vld [vmem:[#allocation11 + $0x300] sm:$0xff]
    %v2299 = vld [vmem:[#allocation11 + $0x308] sm:$0xff]
    %v2300 = vld [vmem:[#allocation11 + $0x310] sm:$0xff]
    %v2301 = vld [vmem:[#allocation11 + $0x318] sm:$0xff]
    %v2302 = vld [vmem:[#allocation11 + $0x320] sm:$0xff]
    %v2303 = vld [vmem:[#allocation11 + $0x328] sm:$0xff]
    %v2304 = vld [vmem:[#allocation11 + $0x330] sm:$0xff]
    %v2305 = vld [vmem:[#allocation11 + $0x338] sm:$0xff]
    %v2306 = vld [vmem:[#allocation11 + $0x340] sm:$0xff]
    %v2307 = vld [vmem:[#allocation11 + $0x348] sm:$0xff]
    %v2308 = vld [vmem:[#allocation11 + $0x350] sm:$0xff]
    %v2309 = vld [vmem:[#allocation11 + $0x358] sm:$0xff]
    %v2310 = vld [vmem:[#allocation11 + $0x360] sm:$0xff]
    %v2311 = vld [vmem:[#allocation11 + $0x368] sm:$0xff]
    %v2312 = vld [vmem:[#allocation11 + $0x370] sm:$0xff]
    %v2313 = vld [vmem:[#allocation11 + $0x378] sm:$0xff]
    %v2314 = vld [vmem:[#allocation11 + $0x380] sm:$0xff]
    %v2315 = vld [vmem:[#allocation11 + $0x388] sm:$0xff]
    %v2316 = vld [vmem:[#allocation11 + $0x390] sm:$0xff]
    %v2317 = vld [vmem:[#allocation11 + $0x398] sm:$0xff]
    %v2318 = vld [vmem:[#allocation11 + $0x3a0] sm:$0xff]
    %v2319 = vld [vmem:[#allocation11 + $0x3a8] sm:$0xff]
    %v2320 = vld [vmem:[#allocation11 + $0x3b0] sm:$0xff]
    %v2321 = vld [vmem:[#allocation11 + $0x3b8] sm:$0xff]
    %v2322 = vld [vmem:[#allocation11 + $0x3c0] sm:$0xff]
    %v2323 = vld [vmem:[#allocation11 + $0x3c8] sm:$0xff]
    %v2324 = vld [vmem:[#allocation11 + $0x3d0] sm:$0xff]
    %v2325 = vld [vmem:[#allocation11 + $0x3d8] sm:$0xff]
    %v2326 = vld [vmem:[#allocation11 + $0x3e0] sm:$0xff]
    %v2327 = vld [vmem:[#allocation11 + $0x3e8] sm:$0xff]
    %v2328 = vld [vmem:[#allocation11 + $0x3f0] sm:$0xff]
    %v2329 = vld [vmem:[#allocation11 + $0x3f8] sm:$0xff]
    %v2330 = vld [vmem:[#allocation11 + $0x400] sm:$0xff]
    %v2331 = vld [vmem:[#allocation11 + $0x408] sm:$0xff]
    %v2332 = vld [vmem:[#allocation11 + $0x410] sm:$0xff]
    %v2333 = vld [vmem:[#allocation11 + $0x418] sm:$0xff]
    %v2334 = vld [vmem:[#allocation11 + $0x420] sm:$0xff]
    %v2335 = vld [vmem:[#allocation11 + $0x428] sm:$0xff]
    %v2336 = vld [vmem:[#allocation11 + $0x430] sm:$0xff]
    %v2337 = vld [vmem:[#allocation11 + $0x438] sm:$0xff]
    %v2338 = vld [vmem:[#allocation11 + $0x440] sm:$0xff]
    %v2339 = vld [vmem:[#allocation11 + $0x448] sm:$0xff]
    %v2340 = vld [vmem:[#allocation11 + $0x450] sm:$0xff]
    %v2341 = vld [vmem:[#allocation11 + $0x458] sm:$0xff]
    %v2342 = vld [vmem:[#allocation11 + $0x460] sm:$0xff]
    %v2343 = vld [vmem:[#allocation11 + $0x468] sm:$0xff]
    %v2344 = vld [vmem:[#allocation11 + $0x470] sm:$0xff]
    %v2345 = vld [vmem:[#allocation11 + $0x478] sm:$0xff]
    %v2346 = vld [vmem:[#allocation11 + $0x480] sm:$0xff]
    %v2347 = vld [vmem:[#allocation11 + $0x488] sm:$0xff]
    %v2348 = vld [vmem:[#allocation11 + $0x490] sm:$0xff]
    %v2349 = vld [vmem:[#allocation11 + $0x498] sm:$0xff]
    %v2350 = vld [vmem:[#allocation11 + $0x4a0] sm:$0xff]
    %v2351 = vld [vmem:[#allocation11 + $0x4a8] sm:$0xff]
    %v2352 = vld [vmem:[#allocation11 + $0x4b0] sm:$0xff]
    %v2353 = vld [vmem:[#allocation11 + $0x4b8] sm:$0xff]
    %v2354 = vld [vmem:[#allocation11 + $0x4c0] sm:$0xff]
    %v2355 = vld [vmem:[#allocation11 + $0x4c8] sm:$0xff]
    %v2356 = vld [vmem:[#allocation11 + $0x4d0] sm:$0xff]
    %v2357 = vld [vmem:[#allocation11 + $0x4d8] sm:$0xff]
    %v2358 = vld [vmem:[#allocation11 + $0x4e0] sm:$0xff]
    %v2359 = vld [vmem:[#allocation11 + $0x4e8] sm:$0xff]
    %v2360 = vld [vmem:[#allocation11 + $0x4f0] sm:$0xff]
    %v2361 = vld [vmem:[#allocation11 + $0x4f8] sm:$0xff]
    %v2362 = vld [vmem:[#allocation11 + $0x500] sm:$0xff]
    %v2363 = vld [vmem:[#allocation11 + $0x508] sm:$0xff]
    %v2364 = vld [vmem:[#allocation11 + $0x510] sm:$0xff]
    %v2365 = vld [vmem:[#allocation11 + $0x518] sm:$0xff]
    %v2366 = vld [vmem:[#allocation11 + $0x520] sm:$0xff]
    %v2367 = vld [vmem:[#allocation11 + $0x528] sm:$0xff]
    %v2368 = vld [vmem:[#allocation11 + $0x530] sm:$0xff]
    %v2369 = vld [vmem:[#allocation11 + $0x538] sm:$0xff]
    %v2370 = vld [vmem:[#allocation11 + $0x540] sm:$0xff]
    %v2371 = vld [vmem:[#allocation11 + $0x548] sm:$0xff]
    %v2372 = vld [vmem:[#allocation11 + $0x550] sm:$0xff]
    %v2373 = vld [vmem:[#allocation11 + $0x558] sm:$0xff]
    %v2374 = vld [vmem:[#allocation11 + $0x560] sm:$0xff]
    %v2375 = vld [vmem:[#allocation11 + $0x568] sm:$0xff]
    %v2376 = vld [vmem:[#allocation11 + $0x570] sm:$0xff]
    %v2377 = vld [vmem:[#allocation11 + $0x578] sm:$0xff]
    %v2378 = vld [vmem:[#allocation11 + $0x580] sm:$0xff]
    %v2379 = vld [vmem:[#allocation11 + $0x588] sm:$0xff]
    %v2380 = vld [vmem:[#allocation11 + $0x590] sm:$0xff]
    %v2381 = vld [vmem:[#allocation11 + $0x598] sm:$0xff]
    %v2382 = vld [vmem:[#allocation11 + $0x5a0] sm:$0xff]
    %v2383 = vld [vmem:[#allocation11 + $0x5a8] sm:$0xff]
    %v2384 = vld [vmem:[#allocation11 + $0x5b0] sm:$0xff]
    %v2385 = vld [vmem:[#allocation11 + $0x5b8] sm:$0xff]
    %v2386 = vld [vmem:[#allocation11 + $0x5c0] sm:$0xff]
    %v2387 = vld [vmem:[#allocation11 + $0x5c8] sm:$0xff]
    %v2388 = vld [vmem:[#allocation11 + $0x5d0] sm:$0xff]
    %v2389 = vld [vmem:[#allocation11 + $0x5d8] sm:$0xff]
    %v2390 = vld [vmem:[#allocation11 + $0x5e0] sm:$0xff]
    %v2391 = vld [vmem:[#allocation11 + $0x5e8] sm:$0xff]
    %v2392 = vld [vmem:[#allocation11 + $0x5f0] sm:$0xff]
    %v2393 = vld [vmem:[#allocation11 + $0x5f8] sm:$0xff]
    %v2394 = vld [vmem:[#allocation11 + $0x600] sm:$0xff]
    %v2395 = vld [vmem:[#allocation11 + $0x608] sm:$0xff]
    %v2396 = vld [vmem:[#allocation11 + $0x610] sm:$0xff]
    %v2397 = vld [vmem:[#allocation11 + $0x618] sm:$0xff]
    %v2398 = vld [vmem:[#allocation11 + $0x620] sm:$0xff]
    %v2399 = vld [vmem:[#allocation11 + $0x628] sm:$0xff]
    %v2400 = vld [vmem:[#allocation11 + $0x630] sm:$0xff]
    %v2401 = vld [vmem:[#allocation11 + $0x638] sm:$0xff]
    %v2402 = vld [vmem:[#allocation11 + $0x640] sm:$0xff]
    %v2403 = vld [vmem:[#allocation11 + $0x648] sm:$0xff]
    %v2404 = vld [vmem:[#allocation11 + $0x650] sm:$0xff]
    %v2405 = vld [vmem:[#allocation11 + $0x658] sm:$0xff]
    %v2406 = vld [vmem:[#allocation11 + $0x660] sm:$0xff]
    %v2407 = vld [vmem:[#allocation11 + $0x668] sm:$0xff]
    %v2408 = vld [vmem:[#allocation11 + $0x670] sm:$0xff]
    %v2409 = vld [vmem:[#allocation11 + $0x678] sm:$0xff]
    %v2410 = vld [vmem:[#allocation11 + $0x680] sm:$0xff]
    %v2411 = vld [vmem:[#allocation11 + $0x688] sm:$0xff]
    %v2412 = vld [vmem:[#allocation11 + $0x690] sm:$0xff]
    %v2413 = vld [vmem:[#allocation11 + $0x698] sm:$0xff]
    %v2414 = vld [vmem:[#allocation11 + $0x6a0] sm:$0xff]
    %v2415 = vld [vmem:[#allocation11 + $0x6a8] sm:$0xff]
    %v2416 = vld [vmem:[#allocation11 + $0x6b0] sm:$0xff]
    %v2417 = vld [vmem:[#allocation11 + $0x6b8] sm:$0xff]
    %v2418 = vld [vmem:[#allocation11 + $0x6c0] sm:$0xff]
    %v2419 = vld [vmem:[#allocation11 + $0x6c8] sm:$0xff]
    %v2420 = vld [vmem:[#allocation11 + $0x6d0] sm:$0xff]
    %v2421 = vld [vmem:[#allocation11 + $0x6d8] sm:$0xff]
    %v2422 = vld [vmem:[#allocation11 + $0x6e0] sm:$0xff]
    %v2423 = vld [vmem:[#allocation11 + $0x6e8] sm:$0xff]
    %v2424 = vld [vmem:[#allocation11 + $0x6f0] sm:$0xff]
    %v2425 = vld [vmem:[#allocation11 + $0x6f8] sm:$0xff]
    %v2426 = vld [vmem:[#allocation11 + $0x700] sm:$0xff]
    %v2427 = vld [vmem:[#allocation11 + $0x708] sm:$0xff]
    %v2428 = vld [vmem:[#allocation11 + $0x710] sm:$0xff]
    %v2429 = vld [vmem:[#allocation11 + $0x718] sm:$0xff]
    %v2430 = vld [vmem:[#allocation11 + $0x720] sm:$0xff]
    %v2431 = vld [vmem:[#allocation11 + $0x728] sm:$0xff]
    %v2432 = vld [vmem:[#allocation11 + $0x730] sm:$0xff]
    %v2433 = vld [vmem:[#allocation11 + $0x738] sm:$0xff]
    %v2434 = vld [vmem:[#allocation11 + $0x740] sm:$0xff]
    %v2435 = vld [vmem:[#allocation11 + $0x748] sm:$0xff]
    %v2436 = vld [vmem:[#allocation11 + $0x750] sm:$0xff]
    %v2437 = vld [vmem:[#allocation11 + $0x758] sm:$0xff]
    %v2438 = vld [vmem:[#allocation11 + $0x760] sm:$0xff]
    %v2439 = vld [vmem:[#allocation11 + $0x768] sm:$0xff]
    %v2440 = vld [vmem:[#allocation11 + $0x770] sm:$0xff]
    %v2441 = vld [vmem:[#allocation11 + $0x778] sm:$0xff]
    %v2442 = vld [vmem:[#allocation11 + $0x780] sm:$0xff]
    %v2443 = vld [vmem:[#allocation11 + $0x788] sm:$0xff]
    %v2444 = vld [vmem:[#allocation11 + $0x790] sm:$0xff]
    %v2445 = vld [vmem:[#allocation11 + $0x798] sm:$0xff]
    %v2446 = vld [vmem:[#allocation11 + $0x7a0] sm:$0xff]
    %v2447 = vld [vmem:[#allocation11 + $0x7a8] sm:$0xff]
    %v2448 = vld [vmem:[#allocation11 + $0x7b0] sm:$0xff]
    %v2449 = vld [vmem:[#allocation11 + $0x7b8] sm:$0xff]
    %v2450 = vld [vmem:[#allocation11 + $0x7c0] sm:$0xff]
    %v2451 = vld [vmem:[#allocation11 + $0x7c8] sm:$0xff]
    %v2452 = vld [vmem:[#allocation11 + $0x7d0] sm:$0xff]
    %v2453 = vld [vmem:[#allocation11 + $0x7d8] sm:$0xff]
    %v2454 = vld [vmem:[#allocation11 + $0x7e0] sm:$0xff]
    %v2455 = vld [vmem:[#allocation11 + $0x7e8] sm:$0xff]
    %v2456 = vld [vmem:[#allocation11 + $0x7f0] sm:$0xff]
    %v2457 = vld [vmem:[#allocation11 + $0x7f8] sm:$0xff]
    %v2458 = vld [vmem:[#allocation11 + $0x800] sm:$0xff]
    %v2459 = vld [vmem:[#allocation11 + $0x808] sm:$0xff]
    %v2460 = vld [vmem:[#allocation11 + $0x810] sm:$0xff]
    %v2461 = vld [vmem:[#allocation11 + $0x818] sm:$0xff]
    %v2462 = vld [vmem:[#allocation11 + $0x820] sm:$0xff]
    %v2463 = vld [vmem:[#allocation11 + $0x828] sm:$0xff]
    %v2464 = vld [vmem:[#allocation11 + $0x830] sm:$0xff]
    %v2465 = vld [vmem:[#allocation11 + $0x838] sm:$0xff]
    %v2466 = vld [vmem:[#allocation11 + $0x840] sm:$0xff]
    %v2467 = vld [vmem:[#allocation11 + $0x848] sm:$0xff]
    %v2468 = vld [vmem:[#allocation11 + $0x850] sm:$0xff]
    %v2469 = vld [vmem:[#allocation11 + $0x858] sm:$0xff]
    %v2470 = vld [vmem:[#allocation11 + $0x860] sm:$0xff]
    %v2471 = vld [vmem:[#allocation11 + $0x868] sm:$0xff]
    %v2472 = vld [vmem:[#allocation11 + $0x870] sm:$0xff]
    %v2473 = vld [vmem:[#allocation11 + $0x878] sm:$0xff]
    %v2474 = vld [vmem:[#allocation11 + $0x880] sm:$0xff]
    %v2475 = vld [vmem:[#allocation11 + $0x888] sm:$0xff]
    %v2476 = vld [vmem:[#allocation11 + $0x890] sm:$0xff]
    %v2477 = vld [vmem:[#allocation11 + $0x898] sm:$0xff]
    %v2478 = vld [vmem:[#allocation11 + $0x8a0] sm:$0xff]
    %v2479 = vld [vmem:[#allocation11 + $0x8a8] sm:$0xff]
    %v2480 = vld [vmem:[#allocation11 + $0x8b0] sm:$0xff]
    %v2481 = vld [vmem:[#allocation11 + $0x8b8] sm:$0xff]
    %v2482 = vld [vmem:[#allocation11 + $0x8c0] sm:$0xff]
    %v2483 = vld [vmem:[#allocation11 + $0x8c8] sm:$0xff]
    %v2484 = vld [vmem:[#allocation11 + $0x8d0] sm:$0xff]
    %v2485 = vld [vmem:[#allocation11 + $0x8d8] sm:$0xff]
    %v2486 = vld [vmem:[#allocation11 + $0x8e0] sm:$0xff]
    %v2487 = vld [vmem:[#allocation11 + $0x8e8] sm:$0xff]
    %v2488 = vld [vmem:[#allocation11 + $0x8f0] sm:$0xff]
    %v2489 = vld [vmem:[#allocation11 + $0x8f8] sm:$0xff]
    %v2490 = vld [vmem:[#allocation11 + $0x900] sm:$0xff]
    %v2491 = vld [vmem:[#allocation11 + $0x908] sm:$0xff]
    %v2492 = vld [vmem:[#allocation11 + $0x910] sm:$0xff]
    %v2493 = vld [vmem:[#allocation11 + $0x918] sm:$0xff]
    %v2494 = vld [vmem:[#allocation11 + $0x920] sm:$0xff]
    %v2495 = vld [vmem:[#allocation11 + $0x928] sm:$0xff]
    %v2496 = vld [vmem:[#allocation11 + $0x930] sm:$0xff]
    %v2497 = vld [vmem:[#allocation11 + $0x938] sm:$0xff]
    %v2498 = vld [vmem:[#allocation11 + $0x940] sm:$0xff]
    %v2499 = vld [vmem:[#allocation11 + $0x948] sm:$0xff]
    %v2500 = vld [vmem:[#allocation11 + $0x950] sm:$0xff]
    %v2501 = vld [vmem:[#allocation11 + $0x958] sm:$0xff]
    %v2502 = vld [vmem:[#allocation11 + $0x960] sm:$0xff]
    %v2503 = vld [vmem:[#allocation11 + $0x968] sm:$0xff]
    %v2504 = vld [vmem:[#allocation11 + $0x970] sm:$0xff]
    %v2505 = vld [vmem:[#allocation11 + $0x978] sm:$0xff]
    %v2506 = vld [vmem:[#allocation11 + $0x980] sm:$0xff]
    %v2507 = vld [vmem:[#allocation11 + $0x988] sm:$0xff]
    %v2508 = vld [vmem:[#allocation11 + $0x990] sm:$0xff]
    %v2509 = vld [vmem:[#allocation11 + $0x998] sm:$0xff]
    %v2510 = vld [vmem:[#allocation11 + $0x9a0] sm:$0xff]
    %v2511 = vld [vmem:[#allocation11 + $0x9a8] sm:$0xff]
    %v2512 = vld [vmem:[#allocation11 + $0x9b0] sm:$0xff]
    %v2513 = vld [vmem:[#allocation11 + $0x9b8] sm:$0xff]
    %v2514 = vld [vmem:[#allocation11 + $0x9c0] sm:$0xff]
    %v2515 = vld [vmem:[#allocation11 + $0x9c8] sm:$0xff]
    %v2516 = vld [vmem:[#allocation11 + $0x9d0] sm:$0xff]
    %v2517 = vld [vmem:[#allocation11 + $0x9d8] sm:$0xff]
    %v2518 = vld [vmem:[#allocation11 + $0x9e0] sm:$0xff]
    %v2519 = vld [vmem:[#allocation11 + $0x9e8] sm:$0xff]
    %v2520 = vld [vmem:[#allocation11 + $0x9f0] sm:$0xff]
    %v2521 = vld [vmem:[#allocation11 + $0x9f8] sm:$0xff]
    %v2522 = vld [vmem:[#allocation11 + $0xa00] sm:$0xff]
    %v2523 = vld [vmem:[#allocation11 + $0xa08] sm:$0xff]
    %v2524 = vld [vmem:[#allocation11 + $0xa10] sm:$0xff]
    %v2525 = vld [vmem:[#allocation11 + $0xa18] sm:$0xff]
    %v2526 = vld [vmem:[#allocation11 + $0xa20] sm:$0xff]
    %v2527 = vld [vmem:[#allocation11 + $0xa28] sm:$0xff]
    %v2528 = vld [vmem:[#allocation11 + $0xa30] sm:$0xff]
    %v2529 = vld [vmem:[#allocation11 + $0xa38] sm:$0xff]
    %v2530 = vld [vmem:[#allocation11 + $0xa40] sm:$0xff]
    %v2531 = vld [vmem:[#allocation11 + $0xa48] sm:$0xff]
    %v2532 = vld [vmem:[#allocation11 + $0xa50] sm:$0xff]
    %v2533 = vld [vmem:[#allocation11 + $0xa58] sm:$0xff]
    %v2534 = vld [vmem:[#allocation11 + $0xa60] sm:$0xff]
    %v2535 = vld [vmem:[#allocation11 + $0xa68] sm:$0xff]
    %v2536 = vld [vmem:[#allocation11 + $0xa70] sm:$0xff]
    %v2537 = vld [vmem:[#allocation11 + $0xa78] sm:$0xff]
    %v2538 = vld [vmem:[#allocation11 + $0xa80] sm:$0xff]
    %v2539 = vld [vmem:[#allocation11 + $0xa88] sm:$0xff]
    %v2540 = vld [vmem:[#allocation11 + $0xa90] sm:$0xff]
    %v2541 = vld [vmem:[#allocation11 + $0xa98] sm:$0xff]
    %v2542 = vld [vmem:[#allocation11 + $0xaa0] sm:$0xff]
    %v2543 = vld [vmem:[#allocation11 + $0xaa8] sm:$0xff]
    %v2544 = vld [vmem:[#allocation11 + $0xab0] sm:$0xff]
    %v2545 = vld [vmem:[#allocation11 + $0xab8] sm:$0xff]
    %v2546 = vld [vmem:[#allocation11 + $0xac0] sm:$0xff]
    %v2547 = vld [vmem:[#allocation11 + $0xac8] sm:$0xff]
    %v2548 = vld [vmem:[#allocation11 + $0xad0] sm:$0xff]
    %v2549 = vld [vmem:[#allocation11 + $0xad8] sm:$0xff]
    %v2550 = vld [vmem:[#allocation11 + $0xae0] sm:$0xff]
    %v2551 = vld [vmem:[#allocation11 + $0xae8] sm:$0xff]
    %v2552 = vld [vmem:[#allocation11 + $0xaf0] sm:$0xff]
    %v2553 = vld [vmem:[#allocation11 + $0xaf8] sm:$0xff]
    %v2554 = vld [vmem:[#allocation11 + $0xb00] sm:$0xff]
    %v2555 = vld [vmem:[#allocation11 + $0xb08] sm:$0xff]
    %v2556 = vld [vmem:[#allocation11 + $0xb10] sm:$0xff]
    %v2557 = vld [vmem:[#allocation11 + $0xb18] sm:$0xff]
    %v2558 = vld [vmem:[#allocation11 + $0xb20] sm:$0xff]
    %v2559 = vld [vmem:[#allocation11 + $0xb28] sm:$0xff]
    %v2560 = vld [vmem:[#allocation11 + $0xb30] sm:$0xff]
    %v2561 = vld [vmem:[#allocation11 + $0xb38] sm:$0xff]
    %v2562 = vld [vmem:[#allocation11 + $0xb40] sm:$0xff]
    %v2563 = vld [vmem:[#allocation11 + $0xb48] sm:$0xff]
    %v2564 = vld [vmem:[#allocation11 + $0xb50] sm:$0xff]
    %v2565 = vld [vmem:[#allocation11 + $0xb58] sm:$0xff]
    %v2566 = vld [vmem:[#allocation11 + $0xb60] sm:$0xff]
    %v2567 = vld [vmem:[#allocation11 + $0xb68] sm:$0xff]
    %v2568 = vld [vmem:[#allocation11 + $0xb70] sm:$0xff]
    %v2569 = vld [vmem:[#allocation11 + $0xb78] sm:$0xff]
    %v2570 = vld [vmem:[#allocation11 + $0xb80] sm:$0xff]
    %v2571 = vld [vmem:[#allocation11 + $0xb88] sm:$0xff]
    %v2572 = vld [vmem:[#allocation11 + $0xb90] sm:$0xff]
    %v2573 = vld [vmem:[#allocation11 + $0xb98] sm:$0xff]
    %v2574 = vld [vmem:[#allocation11 + $0xba0] sm:$0xff]
    %v2575 = vld [vmem:[#allocation11 + $0xba8] sm:$0xff]
    %v2576 = vld [vmem:[#allocation11 + $0xbb0] sm:$0xff]
    %v2577 = vld [vmem:[#allocation11 + $0xbb8] sm:$0xff]
    %v2578 = vld [vmem:[#allocation11 + $0xbc0] sm:$0xff]
    %v2579 = vld [vmem:[#allocation11 + $0xbc8] sm:$0xff]
    %v2580 = vld [vmem:[#allocation11 + $0xbd0] sm:$0xff]
    %v2581 = vld [vmem:[#allocation11 + $0xbd8] sm:$0xff]
    %v2582 = vld [vmem:[#allocation11 + $0xbe0] sm:$0xff]
    %v2583 = vld [vmem:[#allocation11 + $0xbe8] sm:$0xff]
    %v2584 = vld [vmem:[#allocation11 + $0xbf0] sm:$0xff]
    %v2585 = vld [vmem:[#allocation11 + $0xbf8] sm:$0xff]
    %v2586 = vld [vmem:[#allocation11 + $0xc00] sm:$0xff]
    %v2587 = vld [vmem:[#allocation11 + $0xc08] sm:$0xff]
    %v2588 = vld [vmem:[#allocation11 + $0xc10] sm:$0xff]
    %v2589 = vld [vmem:[#allocation11 + $0xc18] sm:$0xff]
    %v2590 = vld [vmem:[#allocation11 + $0xc20] sm:$0xff]
    %v2591 = vld [vmem:[#allocation11 + $0xc28] sm:$0xff]
    %v2592 = vld [vmem:[#allocation11 + $0xc30] sm:$0xff]
    %v2593 = vld [vmem:[#allocation11 + $0xc38] sm:$0xff]
    %v2594 = vld [vmem:[#allocation11 + $0xc40] sm:$0xff]
    %v2595 = vld [vmem:[#allocation11 + $0xc48] sm:$0xff]
    %v2596 = vld [vmem:[#allocation11 + $0xc50] sm:$0xff]
    %v2597 = vld [vmem:[#allocation11 + $0xc58] sm:$0xff]
    %v2598 = vld [vmem:[#allocation11 + $0xc60] sm:$0xff]
    %v2599 = vld [vmem:[#allocation11 + $0xc68] sm:$0xff]
    %v2600 = vld [vmem:[#allocation11 + $0xc70] sm:$0xff]
    %v2601 = vld [vmem:[#allocation11 + $0xc78] sm:$0xff]
    %v2602 = vld [vmem:[#allocation11 + $0xc80] sm:$0xff]
    %v2603 = vld [vmem:[#allocation11 + $0xc88] sm:$0xff]
    %v2604 = vld [vmem:[#allocation11 + $0xc90] sm:$0xff]
    %v2605 = vld [vmem:[#allocation11 + $0xc98] sm:$0xff]
    %v2606 = vld [vmem:[#allocation11 + $0xca0] sm:$0xff]
    %v2607 = vld [vmem:[#allocation11 + $0xca8] sm:$0xff]
    %v2608 = vld [vmem:[#allocation11 + $0xcb0] sm:$0xff]
    %v2609 = vld [vmem:[#allocation11 + $0xcb8] sm:$0xff]
    %v2610 = vld [vmem:[#allocation11 + $0xcc0] sm:$0xff]
    %v2611 = vld [vmem:[#allocation11 + $0xcc8] sm:$0xff]
    %v2612 = vld [vmem:[#allocation11 + $0xcd0] sm:$0xff]
    %v2613 = vld [vmem:[#allocation11 + $0xcd8] sm:$0xff]
    %v2614 = vld [vmem:[#allocation11 + $0xce0] sm:$0xff]
    %v2615 = vld [vmem:[#allocation11 + $0xce8] sm:$0xff]
    %v2616 = vld [vmem:[#allocation11 + $0xcf0] sm:$0xff]
    %v2617 = vld [vmem:[#allocation11 + $0xcf8] sm:$0xff]
    %v2618 = vld [vmem:[#allocation11 + $0xd00] sm:$0xff]
    %v2619 = vld [vmem:[#allocation11 + $0xd08] sm:$0xff]
    %v2620 = vld [vmem:[#allocation11 + $0xd10] sm:$0xff]
    %v2621 = vld [vmem:[#allocation11 + $0xd18] sm:$0xff]
    %v2622 = vld [vmem:[#allocation11 + $0xd20] sm:$0xff]
    %v2623 = vld [vmem:[#allocation11 + $0xd28] sm:$0xff]
    %v2624 = vld [vmem:[#allocation11 + $0xd30] sm:$0xff]
    %v2625 = vld [vmem:[#allocation11 + $0xd38] sm:$0xff]
    %v2626 = vld [vmem:[#allocation11 + $0xd40] sm:$0xff]
    %v2627 = vld [vmem:[#allocation11 + $0xd48] sm:$0xff]
    %v2628 = vld [vmem:[#allocation11 + $0xd50] sm:$0xff]
    %v2629 = vld [vmem:[#allocation11 + $0xd58] sm:$0xff]
    %v2630 = vld [vmem:[#allocation11 + $0xd60] sm:$0xff]
    %v2631 = vld [vmem:[#allocation11 + $0xd68] sm:$0xff]
    %v2632 = vld [vmem:[#allocation11 + $0xd70] sm:$0xff]
    %v2633 = vld [vmem:[#allocation11 + $0xd78] sm:$0xff]
    %v2634 = vld [vmem:[#allocation11 + $0xd80] sm:$0xff]
    %v2635 = vld [vmem:[#allocation11 + $0xd88] sm:$0xff]
    %v2636 = vld [vmem:[#allocation11 + $0xd90] sm:$0xff]
    %v2637 = vld [vmem:[#allocation11 + $0xd98] sm:$0xff]
    %v2638 = vld [vmem:[#allocation11 + $0xda0] sm:$0xff]
    %v2639 = vld [vmem:[#allocation11 + $0xda8] sm:$0xff]
    %v2640 = vld [vmem:[#allocation11 + $0xdb0] sm:$0xff]
    %v2641 = vld [vmem:[#allocation11 + $0xdb8] sm:$0xff]
    %v2642 = vld [vmem:[#allocation11 + $0xdc0] sm:$0xff]
    %v2643 = vld [vmem:[#allocation11 + $0xdc8] sm:$0xff]
    %v2644 = vld [vmem:[#allocation11 + $0xdd0] sm:$0xff]
    %v2645 = vld [vmem:[#allocation11 + $0xdd8] sm:$0xff]
    %v2646 = vld [vmem:[#allocation11 + $0xde0] sm:$0xff]
    %v2647 = vld [vmem:[#allocation11 + $0xde8] sm:$0xff]
    %v2648 = vld [vmem:[#allocation11 + $0xdf0] sm:$0xff]
    %v2649 = vld [vmem:[#allocation11 + $0xdf8] sm:$0xff]
    %v2650 = vld [vmem:[#allocation11 + $0xe00] sm:$0xff]
    %v2651 = vld [vmem:[#allocation11 + $0xe08] sm:$0xff]
    %v2652 = vld [vmem:[#allocation11 + $0xe10] sm:$0xff]
    %v2653 = vld [vmem:[#allocation11 + $0xe18] sm:$0xff]
    %v2654 = vld [vmem:[#allocation11 + $0xe20] sm:$0xff]
    %v2655 = vld [vmem:[#allocation11 + $0xe28] sm:$0xff]
    %v2656 = vld [vmem:[#allocation11 + $0xe30] sm:$0xff]
    %v2657 = vld [vmem:[#allocation11 + $0xe38] sm:$0xff]
    %v2658 = vld [vmem:[#allocation11 + $0xe40] sm:$0xff]
    %v2659 = vld [vmem:[#allocation11 + $0xe48] sm:$0xff]
    %v2660 = vld [vmem:[#allocation11 + $0xe50] sm:$0xff]
    %v2661 = vld [vmem:[#allocation11 + $0xe58] sm:$0xff]
    %v2662 = vld [vmem:[#allocation11 + $0xe60] sm:$0xff]
    %v2663 = vld [vmem:[#allocation11 + $0xe68] sm:$0xff]
    %v2664 = vld [vmem:[#allocation11 + $0xe70] sm:$0xff]
    %v2665 = vld [vmem:[#allocation11 + $0xe78] sm:$0xff]
    %v2666 = vld [vmem:[#allocation11 + $0xe80] sm:$0xff]
    %v2667 = vld [vmem:[#allocation11 + $0xe88] sm:$0xff]
    %v2668 = vld [vmem:[#allocation11 + $0xe90] sm:$0xff]
    %v2669 = vld [vmem:[#allocation11 + $0xe98] sm:$0xff]
    %v2670 = vld [vmem:[#allocation11 + $0xea0] sm:$0xff]
    %v2671 = vld [vmem:[#allocation11 + $0xea8] sm:$0xff]
    %v2672 = vld [vmem:[#allocation11 + $0xeb0] sm:$0xff]
    %v2673 = vld [vmem:[#allocation11 + $0xeb8] sm:$0xff]
    %v2674 = vld [vmem:[#allocation11 + $0xec0] sm:$0xff]
    %v2675 = vld [vmem:[#allocation11 + $0xec8] sm:$0xff]
    %v2676 = vld [vmem:[#allocation11 + $0xed0] sm:$0xff]
    %v2677 = vld [vmem:[#allocation11 + $0xed8] sm:$0xff]
    %v2678 = vld [vmem:[#allocation11 + $0xee0] sm:$0xff]
    %v2679 = vld [vmem:[#allocation11 + $0xee8] sm:$0xff]
    %v2680 = vld [vmem:[#allocation11 + $0xef0] sm:$0xff]
    %v2681 = vld [vmem:[#allocation11 + $0xef8] sm:$0xff]
    %v2682 = vld [vmem:[#allocation11 + $0xf00] sm:$0xff]
    %v2683 = vld [vmem:[#allocation11 + $0xf08] sm:$0xff]
    %v2684 = vld [vmem:[#allocation11 + $0xf10] sm:$0xff]
    %v2685 = vld [vmem:[#allocation11 + $0xf18] sm:$0xff]
    %v2686 = vld [vmem:[#allocation11 + $0xf20] sm:$0xff]
    %v2687 = vld [vmem:[#allocation11 + $0xf28] sm:$0xff]
    %v2688 = vld [vmem:[#allocation11 + $0xf30] sm:$0xff]
    %v2689 = vld [vmem:[#allocation11 + $0xf38] sm:$0xff]
    %v2690 = vld [vmem:[#allocation11 + $0xf40] sm:$0xff]
    %v2691 = vld [vmem:[#allocation11 + $0xf48] sm:$0xff]
    %v2692 = vld [vmem:[#allocation11 + $0xf50] sm:$0xff]
    %v2693 = vld [vmem:[#allocation11 + $0xf58] sm:$0xff]
    %v2694 = vld [vmem:[#allocation11 + $0xf60] sm:$0xff]
    %v2695 = vld [vmem:[#allocation11 + $0xf68] sm:$0xff]
    %v2696 = vld [vmem:[#allocation11 + $0xf70] sm:$0xff]
    %v2697 = vld [vmem:[#allocation11 + $0xf78] sm:$0xff]
    %v2698 = vld [vmem:[#allocation11 + $0xf80] sm:$0xff]
    %v2699 = vld [vmem:[#allocation11 + $0xf88] sm:$0xff]
    %v2700 = vld [vmem:[#allocation11 + $0xf90] sm:$0xff]
    %v2701 = vld [vmem:[#allocation11 + $0xf98] sm:$0xff]
    %v2702 = vld [vmem:[#allocation11 + $0xfa0] sm:$0xff]
    %v2703 = vld [vmem:[#allocation11 + $0xfa8] sm:$0xff]
    %v2704 = vld [vmem:[#allocation11 + $0xfb0] sm:$0xff]
    %v2705 = vld [vmem:[#allocation11 + $0xfb8] sm:$0xff]
    %v2706 = vld [vmem:[#allocation11 + $0xfc0] sm:$0xff]
    %v2707 = vld [vmem:[#allocation11 + $0xfc8] sm:$0xff]
    %v2708 = vld [vmem:[#allocation11 + $0xfd0] sm:$0xff]
    %v2709 = vld [vmem:[#allocation11 + $0xfd8] sm:$0xff]
    %v2710 = vld [vmem:[#allocation11 + $0xfe0] sm:$0xff]
    %v2711 = vld [vmem:[#allocation11 + $0xfe8] sm:$0xff]
    %v2712 = vld [vmem:[#allocation11 + $0xff0] sm:$0xff]
    %v2713 = vld [vmem:[#allocation11 + $0xff8] sm:$0xff]
    %v2714 = vld [vmem:[#allocation11 + $0x1000] sm:$0xff]
    %v2715 = vld [vmem:[#allocation11 + $0x1008] sm:$0xff]
    %v2716 = vld [vmem:[#allocation11 + $0x1010] sm:$0xff]
    %v2717 = vld [vmem:[#allocation11 + $0x1018] sm:$0xff]
    %v2718 = vld [vmem:[#allocation11 + $0x1020] sm:$0xff]
    %v2719 = vld [vmem:[#allocation11 + $0x1028] sm:$0xff]
    %v2720 = vld [vmem:[#allocation11 + $0x1030] sm:$0xff]
    %v2721 = vld [vmem:[#allocation11 + $0x1038] sm:$0xff]
    %v2722 = vld [vmem:[#allocation11 + $0x1040] sm:$0xff]
    %v2723 = vld [vmem:[#allocation11 + $0x1048] sm:$0xff]
    %v2724 = vld [vmem:[#allocation11 + $0x1050] sm:$0xff]
    %v2725 = vld [vmem:[#allocation11 + $0x1058] sm:$0xff]
    %v2726 = vld [vmem:[#allocation11 + $0x1060] sm:$0xff]
    %v2727 = vld [vmem:[#allocation11 + $0x1068] sm:$0xff]
    %v2728 = vld [vmem:[#allocation11 + $0x1070] sm:$0xff]
    %v2729 = vld [vmem:[#allocation11 + $0x1078] sm:$0xff]
    %v2730 = vld [vmem:[#allocation11 + $0x1080] sm:$0xff]
    %v2731 = vld [vmem:[#allocation11 + $0x1088] sm:$0xff]
    %v2732 = vld [vmem:[#allocation11 + $0x1090] sm:$0xff]
    %v2733 = vld [vmem:[#allocation11 + $0x1098] sm:$0xff]
    %v2734 = vld [vmem:[#allocation11 + $0x10a0] sm:$0xff]
    %v2735 = vld [vmem:[#allocation11 + $0x10a8] sm:$0xff]
    %v2736 = vld [vmem:[#allocation11 + $0x10b0] sm:$0xff]
    %v2737 = vld [vmem:[#allocation11 + $0x10b8] sm:$0xff]
    %v2738 = vld [vmem:[#allocation11 + $0x10c0] sm:$0xff]
    %v2739 = vld [vmem:[#allocation11 + $0x10c8] sm:$0xff]
    %v2740 = vld [vmem:[#allocation11 + $0x10d0] sm:$0xff]
    %v2741 = vld [vmem:[#allocation11 + $0x10d8] sm:$0xff]
    %v2742 = vld [vmem:[#allocation11 + $0x10e0] sm:$0xff]
    %v2743 = vld [vmem:[#allocation11 + $0x10e8] sm:$0xff]
    %v2744 = vld [vmem:[#allocation11 + $0x10f0] sm:$0xff]
    %v2745 = vld [vmem:[#allocation11 + $0x10f8] sm:$0xff]
    %v2746 = vld [vmem:[#allocation11 + $0x1100] sm:$0xff]
    %v2747 = vld [vmem:[#allocation11 + $0x1108] sm:$0xff]
    %v2748 = vld [vmem:[#allocation11 + $0x1110] sm:$0xff]
    %v2749 = vld [vmem:[#allocation11 + $0x1118] sm:$0xff]
    %v2750 = vld [vmem:[#allocation11 + $0x1120] sm:$0xff]
    %v2751 = vld [vmem:[#allocation11 + $0x1128] sm:$0xff]
    %v2752 = vld [vmem:[#allocation11 + $0x1130] sm:$0xff]
    %v2753 = vld [vmem:[#allocation11 + $0x1138] sm:$0xff]
    %v2754 = vld [vmem:[#allocation11 + $0x1140] sm:$0xff]
    %v2755 = vld [vmem:[#allocation11 + $0x1148] sm:$0xff]
    %v2756 = vld [vmem:[#allocation11 + $0x1150] sm:$0xff]
    %v2757 = vld [vmem:[#allocation11 + $0x1158] sm:$0xff]
    %v2758 = vld [vmem:[#allocation11 + $0x1160] sm:$0xff]
    %v2759 = vld [vmem:[#allocation11 + $0x1168] sm:$0xff]
    %v2760 = vld [vmem:[#allocation11 + $0x1170] sm:$0xff]
    %v2761 = vld [vmem:[#allocation11 + $0x1178] sm:$0xff]
    %v2762 = vld [vmem:[#allocation11 + $0x1180] sm:$0xff]
    %v2763 = vld [vmem:[#allocation11 + $0x1188] sm:$0xff]
    %v2764 = vld [vmem:[#allocation11 + $0x1190] sm:$0xff]
    %v2765 = vld [vmem:[#allocation11 + $0x1198] sm:$0xff]
    %v2766 = vld [vmem:[#allocation11 + $0x11a0] sm:$0xff]
    %v2767 = vld [vmem:[#allocation11 + $0x11a8] sm:$0xff]
    %v2768 = vld [vmem:[#allocation11 + $0x11b0] sm:$0xff]
    %v2769 = vld [vmem:[#allocation11 + $0x11b8] sm:$0xff]
    %v2770 = vld [vmem:[#allocation11 + $0x11c0] sm:$0xff]
    %v2771 = vld [vmem:[#allocation11 + $0x11c8] sm:$0xff]
    %v2772 = vld [vmem:[#allocation11 + $0x11d0] sm:$0xff]
    %v2773 = vld [vmem:[#allocation11 + $0x11d8] sm:$0xff]
    %v2774 = vld [vmem:[#allocation11 + $0x11e0] sm:$0xff]
    %v2775 = vld [vmem:[#allocation11 + $0x11e8] sm:$0xff]
    %v2776 = vld [vmem:[#allocation11 + $0x11f0] sm:$0xff]
    %v2777 = vld [vmem:[#allocation11 + $0x11f8] sm:$0xff]
    %v2778 = vld [vmem:[#allocation11 + $0x1200] sm:$0xff]
    %v2779 = vld [vmem:[#allocation11 + $0x1208] sm:$0xff]
    %v2780 = vld [vmem:[#allocation11 + $0x1210] sm:$0xff]
    %v2781 = vld [vmem:[#allocation11 + $0x1218] sm:$0xff]
    %v2782 = vld [vmem:[#allocation11 + $0x1220] sm:$0xff]
    %v2783 = vld [vmem:[#allocation11 + $0x1228] sm:$0xff]
    %v2784 = vld [vmem:[#allocation11 + $0x1230] sm:$0xff]
    %v2785 = vld [vmem:[#allocation11 + $0x1238] sm:$0xff]
    %v2786 = vld [vmem:[#allocation11 + $0x1240] sm:$0xff]
    %v2787 = vld [vmem:[#allocation11 + $0x1248] sm:$0xff]
    %v2788 = vld [vmem:[#allocation11 + $0x1250] sm:$0xff]
    %v2789 = vld [vmem:[#allocation11 + $0x1258] sm:$0xff]
    %v2790 = vld [vmem:[#allocation11 + $0x1260] sm:$0xff]
    %v2791 = vld [vmem:[#allocation11 + $0x1268] sm:$0xff]
    %v2792 = vld [vmem:[#allocation11 + $0x1270] sm:$0xff]
    %v2793 = vld [vmem:[#allocation11 + $0x1278] sm:$0xff]
    %v2794 = vld [vmem:[#allocation11 + $0x1280] sm:$0xff]
    %v2795 = vld [vmem:[#allocation11 + $0x1288] sm:$0xff]
    %v2796 = vld [vmem:[#allocation11 + $0x1290] sm:$0xff]
    %v2797 = vld [vmem:[#allocation11 + $0x1298] sm:$0xff]
    %v2798 = vld [vmem:[#allocation11 + $0x12a0] sm:$0xff]
    %v2799 = vld [vmem:[#allocation11 + $0x12a8] sm:$0xff]
    %v2800 = vld [vmem:[#allocation11 + $0x12b0] sm:$0xff]
    %v2801 = vld [vmem:[#allocation11 + $0x12b8] sm:$0xff]
    %v2802 = vld [vmem:[#allocation11 + $0x12c0] sm:$0xff]
    %v2803 = vld [vmem:[#allocation11 + $0x12c8] sm:$0xff]
    %v2804 = vld [vmem:[#allocation11 + $0x12d0] sm:$0xff]
    %v2805 = vld [vmem:[#allocation11 + $0x12d8] sm:$0xff]
    %v2806 = vld [vmem:[#allocation11 + $0x12e0] sm:$0xff]
    %v2807 = vld [vmem:[#allocation11 + $0x12e8] sm:$0xff]
    %v2808 = vld [vmem:[#allocation11 + $0x12f0] sm:$0xff]
    %v2809 = vld [vmem:[#allocation11 + $0x12f8] sm:$0xff]
    %v2810 = vld [vmem:[#allocation11 + $0x1300] sm:$0xff]
    %v2811 = vld [vmem:[#allocation11 + $0x1308] sm:$0xff]
    %v2812 = vld [vmem:[#allocation11 + $0x1310] sm:$0xff]
    %v2813 = vld [vmem:[#allocation11 + $0x1318] sm:$0xff]
    %v2814 = vld [vmem:[#allocation11 + $0x1320] sm:$0xff]
    %v2815 = vld [vmem:[#allocation11 + $0x1328] sm:$0xff]
    %v2816 = vld [vmem:[#allocation11 + $0x1330] sm:$0xff]
    %v2817 = vld [vmem:[#allocation11 + $0x1338] sm:$0xff]
    %v2818 = vld [vmem:[#allocation11 + $0x1340] sm:$0xff]
    %v2819 = vld [vmem:[#allocation11 + $0x1348] sm:$0xff]
    %v2820 = vld [vmem:[#allocation11 + $0x1350] sm:$0xff]
    %v2821 = vld [vmem:[#allocation11 + $0x1358] sm:$0xff]
    %v2822 = vld [vmem:[#allocation11 + $0x1360] sm:$0xff]
    %v2823 = vld [vmem:[#allocation11 + $0x1368] sm:$0xff]
    %v2824 = vld [vmem:[#allocation11 + $0x1370] sm:$0xff]
    %v2825 = vld [vmem:[#allocation11 + $0x1378] sm:$0xff]
    %v2826 = vld [vmem:[#allocation11 + $0x1380] sm:$0xff]
    %v2827 = vld [vmem:[#allocation11 + $0x1388] sm:$0xff]
    %v2828 = vld [vmem:[#allocation11 + $0x1390] sm:$0xff]
    %v2829 = vld [vmem:[#allocation11 + $0x1398] sm:$0xff]
    %v2830 = vld [vmem:[#allocation11 + $0x13a0] sm:$0xff]
    %v2831 = vld [vmem:[#allocation11 + $0x13a8] sm:$0xff]
    %v2832 = vld [vmem:[#allocation11 + $0x13b0] sm:$0xff]
    %v2833 = vld [vmem:[#allocation11 + $0x13b8] sm:$0xff]
    %v2834 = vld [vmem:[#allocation11 + $0x13c0] sm:$0xff]
    %v2835 = vld [vmem:[#allocation11 + $0x13c8] sm:$0xff]
    %v2836 = vld [vmem:[#allocation11 + $0x13d0] sm:$0xff]
    %v2837 = vld [vmem:[#allocation11 + $0x13d8] sm:$0xff]
    %v2838 = vld [vmem:[#allocation11 + $0x13e0] sm:$0xff]
    %v2839 = vld [vmem:[#allocation11 + $0x13e8] sm:$0xff]
    %v2840 = vld [vmem:[#allocation11 + $0x13f0] sm:$0xff]
    %v2841 = vld [vmem:[#allocation11 + $0x13f8] sm:$0xff]
    %v2842 = vld [vmem:[#allocation11 + $0x1400] sm:$0xff]
    %v2843 = vld [vmem:[#allocation11 + $0x1408] sm:$0xff]
    %v2844 = vld [vmem:[#allocation11 + $0x1410] sm:$0xff]
    %v2845 = vld [vmem:[#allocation11 + $0x1418] sm:$0xff]
    %v2846 = vld [vmem:[#allocation11 + $0x1420] sm:$0xff]
    %v2847 = vld [vmem:[#allocation11 + $0x1428] sm:$0xff]
    %v2848 = vld [vmem:[#allocation11 + $0x1430] sm:$0xff]
    %v2849 = vld [vmem:[#allocation11 + $0x1438] sm:$0xff]
    %v2850 = vld [vmem:[#allocation11 + $0x1440] sm:$0xff]
    %v2851 = vld [vmem:[#allocation11 + $0x1448] sm:$0xff]
    %v2852 = vld [vmem:[#allocation11 + $0x1450] sm:$0xff]
    %v2853 = vld [vmem:[#allocation11 + $0x1458] sm:$0xff]
    %v2854 = vld [vmem:[#allocation11 + $0x1460] sm:$0xff]
    %v2855 = vld [vmem:[#allocation11 + $0x1468] sm:$0xff]
    %v2856 = vld [vmem:[#allocation11 + $0x1470] sm:$0xff]
    %v2857 = vld [vmem:[#allocation11 + $0x1478] sm:$0xff]
    %v2858 = vld [vmem:[#allocation11 + $0x1480] sm:$0xff]
    %v2859 = vld [vmem:[#allocation11 + $0x1488] sm:$0xff]
    %v2860 = vld [vmem:[#allocation11 + $0x1490] sm:$0xff]
    %v2861 = vld [vmem:[#allocation11 + $0x1498] sm:$0xff]
    %v2862 = vld [vmem:[#allocation11 + $0x14a0] sm:$0xff]
    %v2863 = vld [vmem:[#allocation11 + $0x14a8] sm:$0xff]
    %v2864 = vld [vmem:[#allocation11 + $0x14b0] sm:$0xff]
    %v2865 = vld [vmem:[#allocation11 + $0x14b8] sm:$0xff]
    %v2866 = vld [vmem:[#allocation11 + $0x14c0] sm:$0xff]
    %v2867 = vld [vmem:[#allocation11 + $0x14c8] sm:$0xff]
    %v2868 = vld [vmem:[#allocation11 + $0x14d0] sm:$0xff]
    %v2869 = vld [vmem:[#allocation11 + $0x14d8] sm:$0xff]
    %v2870 = vld [vmem:[#allocation11 + $0x14e0] sm:$0xff]
    %v2871 = vld [vmem:[#allocation11 + $0x14e8] sm:$0xff]
    %v2872 = vld [vmem:[#allocation11 + $0x14f0] sm:$0xff]
    %v2873 = vld [vmem:[#allocation11 + $0x14f8] sm:$0xff]
    %v2874 = vld [vmem:[#allocation11 + $0x1500] sm:$0xff]
    %v2875 = vld [vmem:[#allocation11 + $0x1508] sm:$0xff]
    %v2876 = vld [vmem:[#allocation11 + $0x1510] sm:$0xff]
    %v2877 = vld [vmem:[#allocation11 + $0x1518] sm:$0xff]
    %v2878 = vld [vmem:[#allocation11 + $0x1520] sm:$0xff]
    %v2879 = vld [vmem:[#allocation11 + $0x1528] sm:$0xff]
    %v2880 = vld [vmem:[#allocation11 + $0x1530] sm:$0xff]
    %v2881 = vld [vmem:[#allocation11 + $0x1538] sm:$0xff]
    %v2882 = vld [vmem:[#allocation11 + $0x1540] sm:$0xff]
    %v2883 = vld [vmem:[#allocation11 + $0x1548] sm:$0xff]
    %v2884 = vld [vmem:[#allocation11 + $0x1550] sm:$0xff]
    %v2885 = vld [vmem:[#allocation11 + $0x1558] sm:$0xff]
    %v2886 = vld [vmem:[#allocation11 + $0x1560] sm:$0xff]
    %v2887 = vld [vmem:[#allocation11 + $0x1568] sm:$0xff]
    %v2888 = vld [vmem:[#allocation11 + $0x1570] sm:$0xff]
    %v2889 = vld [vmem:[#allocation11 + $0x1578] sm:$0xff]
    %v2890 = vld [vmem:[#allocation11 + $0x1580] sm:$0xff]
    %v2891 = vld [vmem:[#allocation11 + $0x1588] sm:$0xff]
    %v2892 = vld [vmem:[#allocation11 + $0x1590] sm:$0xff]
    %v2893 = vld [vmem:[#allocation11 + $0x1598] sm:$0xff]
    %v2894 = vld [vmem:[#allocation11 + $0x15a0] sm:$0xff]
    %v2895 = vld [vmem:[#allocation11 + $0x15a8] sm:$0xff]
    %v2896 = vld [vmem:[#allocation11 + $0x15b0] sm:$0xff]
    %v2897 = vld [vmem:[#allocation11 + $0x15b8] sm:$0xff]
    %v2898 = vld [vmem:[#allocation11 + $0x15c0] sm:$0xff]
    %v2899 = vld [vmem:[#allocation11 + $0x15c8] sm:$0xff]
    %v2900 = vld [vmem:[#allocation11 + $0x15d0] sm:$0xff]
    %v2901 = vld [vmem:[#allocation11 + $0x15d8] sm:$0xff]
    %v2902 = vld [vmem:[#allocation11 + $0x15e0] sm:$0xff]
    %v2903 = vld [vmem:[#allocation11 + $0x15e8] sm:$0xff]
    %v2904 = vld [vmem:[#allocation11 + $0x15f0] sm:$0xff]
    %v2905 = vld [vmem:[#allocation11 + $0x15f8] sm:$0xff]
    %v2906 = vld [vmem:[#allocation11 + $0x1600] sm:$0xff]
    %v2907 = vld [vmem:[#allocation11 + $0x1608] sm:$0xff]
    %v2908 = vld [vmem:[#allocation11 + $0x1610] sm:$0xff]
    %v2909 = vld [vmem:[#allocation11 + $0x1618] sm:$0xff]
    %v2910 = vld [vmem:[#allocation11 + $0x1620] sm:$0xff]
    %v2911 = vld [vmem:[#allocation11 + $0x1628] sm:$0xff]
    %v2912 = vld [vmem:[#allocation11 + $0x1630] sm:$0xff]
    %v2913 = vld [vmem:[#allocation11 + $0x1638] sm:$0xff]
    %v2914 = vld [vmem:[#allocation11 + $0x1640] sm:$0xff]
    %v2915 = vld [vmem:[#allocation11 + $0x1648] sm:$0xff]
    %v2916 = vld [vmem:[#allocation11 + $0x1650] sm:$0xff]
    %v2917 = vld [vmem:[#allocation11 + $0x1658] sm:$0xff]
    %v2918 = vld [vmem:[#allocation11 + $0x1660] sm:$0xff]
    %v2919 = vld [vmem:[#allocation11 + $0x1668] sm:$0xff]
    %v2920 = vld [vmem:[#allocation11 + $0x1670] sm:$0xff]
    %v2921 = vld [vmem:[#allocation11 + $0x1678] sm:$0xff]
    %v2922 = vld [vmem:[#allocation11 + $0x1680] sm:$0xff]
    %v2923 = vld [vmem:[#allocation11 + $0x1688] sm:$0xff]
    %v2924 = vld [vmem:[#allocation11 + $0x1690] sm:$0xff]
    %v2925 = vld [vmem:[#allocation11 + $0x1698] sm:$0xff]
    %v2926 = vld [vmem:[#allocation11 + $0x16a0] sm:$0xff]
    %v2927 = vld [vmem:[#allocation11 + $0x16a8] sm:$0xff]
    %v2928 = vld [vmem:[#allocation11 + $0x16b0] sm:$0xff]
    %v2929 = vld [vmem:[#allocation11 + $0x16b8] sm:$0xff]
    %v2930 = vld [vmem:[#allocation11 + $0x16c0] sm:$0xff]
    %v2931 = vld [vmem:[#allocation11 + $0x16c8] sm:$0xff]
    %v2932 = vld [vmem:[#allocation11 + $0x16d0] sm:$0xff]
    %v2933 = vld [vmem:[#allocation11 + $0x16d8] sm:$0xff]
    %v2934 = vld [vmem:[#allocation11 + $0x16e0] sm:$0xff]
    %v2935 = vld [vmem:[#allocation11 + $0x16e8] sm:$0xff]
    %v2936 = vld [vmem:[#allocation11 + $0x16f0] sm:$0xff]
    %v2937 = vld [vmem:[#allocation11 + $0x16f8] sm:$0xff]
    %v2938 = vld [vmem:[#allocation11 + $0x1700] sm:$0xff]
    %v2939 = vld [vmem:[#allocation11 + $0x1708] sm:$0xff]
    %v2940 = vld [vmem:[#allocation11 + $0x1710] sm:$0xff]
    %v2941 = vld [vmem:[#allocation11 + $0x1718] sm:$0xff]
    %v2942 = vld [vmem:[#allocation11 + $0x1720] sm:$0xff]
    %v2943 = vld [vmem:[#allocation11 + $0x1728] sm:$0xff]
    %v2944 = vld [vmem:[#allocation11 + $0x1730] sm:$0xff]
    %v2945 = vld [vmem:[#allocation11 + $0x1738] sm:$0xff]
    %v2946 = vld [vmem:[#allocation11 + $0x1740] sm:$0xff]
    %v2947 = vld [vmem:[#allocation11 + $0x1748] sm:$0xff]
    %v2948 = vld [vmem:[#allocation11 + $0x1750] sm:$0xff]
    %v2949 = vld [vmem:[#allocation11 + $0x1758] sm:$0xff]
    %v2950 = vld [vmem:[#allocation11 + $0x1760] sm:$0xff]
    %v2951 = vld [vmem:[#allocation11 + $0x1768] sm:$0xff]
    %v2952 = vld [vmem:[#allocation11 + $0x1770] sm:$0xff]
    %v2953 = vld [vmem:[#allocation11 + $0x1778] sm:$0xff]
    %v2954 = vld [vmem:[#allocation11 + $0x1780] sm:$0xff]
    %v2955 = vld [vmem:[#allocation11 + $0x1788] sm:$0xff]
    %v2956 = vld [vmem:[#allocation11 + $0x1790] sm:$0xff]
    %v2957 = vld [vmem:[#allocation11 + $0x1798] sm:$0xff]
    %v2958 = vld [vmem:[#allocation11 + $0x17a0] sm:$0xff]
    %v2959 = vld [vmem:[#allocation11 + $0x17a8] sm:$0xff]
    %v2960 = vld [vmem:[#allocation11 + $0x17b0] sm:$0xff]
    %v2961 = vld [vmem:[#allocation11 + $0x17b8] sm:$0xff]
    %v2962 = vld [vmem:[#allocation11 + $0x17c0] sm:$0xff]
    %v2963 = vld [vmem:[#allocation11 + $0x17c8] sm:$0xff]
    %v2964 = vld [vmem:[#allocation11 + $0x17d0] sm:$0xff]
    %v2965 = vld [vmem:[#allocation11 + $0x17d8] sm:$0xff]
    %v2966 = vld [vmem:[#allocation11 + $0x17e0] sm:$0xff]
    %v2967 = vld [vmem:[#allocation11 + $0x17e8] sm:$0xff]
    %v2968 = vld [vmem:[#allocation11 + $0x17f0] sm:$0xff]
    %v2969 = vld [vmem:[#allocation11 + $0x17f8] sm:$0xff]
    %v2970 = vld [vmem:[#allocation11 + $0x1800] sm:$0xff]
    %v2971 = vld [vmem:[#allocation11 + $0x1808] sm:$0xff]
    %v2972 = vld [vmem:[#allocation11 + $0x1810] sm:$0xff]
    %v2973 = vld [vmem:[#allocation11 + $0x1818] sm:$0xff]
    %v2974 = vld [vmem:[#allocation11 + $0x1820] sm:$0xff]
    %v2975 = vld [vmem:[#allocation11 + $0x1828] sm:$0xff]
    %v2976 = vld [vmem:[#allocation11 + $0x1830] sm:$0xff]
    %v2977 = vld [vmem:[#allocation11 + $0x1838] sm:$0xff]
    %v2978 = vld [vmem:[#allocation11 + $0x1840] sm:$0xff]
    %v2979 = vld [vmem:[#allocation11 + $0x1848] sm:$0xff]
    %v2980 = vld [vmem:[#allocation11 + $0x1850] sm:$0xff]
    %v2981 = vld [vmem:[#allocation11 + $0x1858] sm:$0xff]
    %v2982 = vld [vmem:[#allocation11 + $0x1860] sm:$0xff]
    %v2983 = vld [vmem:[#allocation11 + $0x1868] sm:$0xff]
    %v2984 = vld [vmem:[#allocation11 + $0x1870] sm:$0xff]
    %v2985 = vld [vmem:[#allocation11 + $0x1878] sm:$0xff]
    %v2986 = vld [vmem:[#allocation11 + $0x1880] sm:$0xff]
    %v2987 = vld [vmem:[#allocation11 + $0x1888] sm:$0xff]
    %v2988 = vld [vmem:[#allocation11 + $0x1890] sm:$0xff]
    %v2989 = vld [vmem:[#allocation11 + $0x1898] sm:$0xff]
    %v2990 = vld [vmem:[#allocation11 + $0x18a0] sm:$0xff]
    %v2991 = vld [vmem:[#allocation11 + $0x18a8] sm:$0xff]
    %v2992 = vld [vmem:[#allocation11 + $0x18b0] sm:$0xff]
    %v2993 = vld [vmem:[#allocation11 + $0x18b8] sm:$0xff]
    %v2994 = vld [vmem:[#allocation11 + $0x18c0] sm:$0xff]
    %v2995 = vld [vmem:[#allocation11 + $0x18c8] sm:$0xff]
    %v2996 = vld [vmem:[#allocation11 + $0x18d0] sm:$0xff]
    %v2997 = vld [vmem:[#allocation11 + $0x18d8] sm:$0xff]
    %v2998 = vld [vmem:[#allocation11 + $0x18e0] sm:$0xff]
    %v2999 = vld [vmem:[#allocation11 + $0x18e8] sm:$0xff]
    %v3000 = vld [vmem:[#allocation11 + $0x18f0] sm:$0xff]
    %v3001 = vld [vmem:[#allocation11 + $0x18f8] sm:$0xff]
    %v3002 = vld [vmem:[#allocation11 + $0x1900] sm:$0xff]
    %v3003 = vld [vmem:[#allocation11 + $0x1908] sm:$0xff]
    %v3004 = vld [vmem:[#allocation11 + $0x1910] sm:$0xff]
    %v3005 = vld [vmem:[#allocation11 + $0x1918] sm:$0xff]
    %v3006 = vld [vmem:[#allocation11 + $0x1920] sm:$0xff]
    %v3007 = vld [vmem:[#allocation11 + $0x1928] sm:$0xff]
    %v3008 = vld [vmem:[#allocation11 + $0x1930] sm:$0xff]
    %v3009 = vld [vmem:[#allocation11 + $0x1938] sm:$0xff]
    %v3010 = vld [vmem:[#allocation11 + $0x1940] sm:$0xff]
    %v3011 = vld [vmem:[#allocation11 + $0x1948] sm:$0xff]
    %v3012 = vld [vmem:[#allocation11 + $0x1950] sm:$0xff]
    %v3013 = vld [vmem:[#allocation11 + $0x1958] sm:$0xff]
    %v3014 = vld [vmem:[#allocation11 + $0x1960] sm:$0xff]
    %v3015 = vld [vmem:[#allocation11 + $0x1968] sm:$0xff]
    %v3016 = vld [vmem:[#allocation11 + $0x1970] sm:$0xff]
    %v3017 = vld [vmem:[#allocation11 + $0x1978] sm:$0xff]
    %v3018 = vld [vmem:[#allocation11 + $0x1980] sm:$0xff]
    %v3019 = vld [vmem:[#allocation11 + $0x1988] sm:$0xff]
    %v3020 = vld [vmem:[#allocation11 + $0x1990] sm:$0xff]
    %v3021 = vld [vmem:[#allocation11 + $0x1998] sm:$0xff]
    %v3022 = vld [vmem:[#allocation11 + $0x19a0] sm:$0xff]
    %v3023 = vld [vmem:[#allocation11 + $0x19a8] sm:$0xff]
    %v3024 = vld [vmem:[#allocation11 + $0x19b0] sm:$0xff]
    %v3025 = vld [vmem:[#allocation11 + $0x19b8] sm:$0xff]
    %v3026 = vld [vmem:[#allocation11 + $0x19c0] sm:$0xff]
    %v3027 = vld [vmem:[#allocation11 + $0x19c8] sm:$0xff]
    %v3028 = vld [vmem:[#allocation11 + $0x19d0] sm:$0xff]
    %v3029 = vld [vmem:[#allocation11 + $0x19d8] sm:$0xff]
    %v3030 = vld [vmem:[#allocation11 + $0x19e0] sm:$0xff]
    %v3031 = vld [vmem:[#allocation11 + $0x19e8] sm:$0xff]
    %v3032 = vld [vmem:[#allocation11 + $0x19f0] sm:$0xff]
    %v3033 = vld [vmem:[#allocation11 + $0x19f8] sm:$0xff]
    %v3034 = vld [vmem:[#allocation11 + $0x1a00] sm:$0xff]
    %v3035 = vld [vmem:[#allocation11 + $0x1a08] sm:$0xff]
    %v3036 = vld [vmem:[#allocation11 + $0x1a10] sm:$0xff]
    %v3037 = vld [vmem:[#allocation11 + $0x1a18] sm:$0xff]
    %v3038 = vld [vmem:[#allocation11 + $0x1a20] sm:$0xff]
    %v3039 = vld [vmem:[#allocation11 + $0x1a28] sm:$0xff]
    %v3040 = vld [vmem:[#allocation11 + $0x1a30] sm:$0xff]
    %v3041 = vld [vmem:[#allocation11 + $0x1a38] sm:$0xff]
    %v3042 = vld [vmem:[#allocation11 + $0x1a40] sm:$0xff]
    %v3043 = vld [vmem:[#allocation11 + $0x1a48] sm:$0xff]
    %v3044 = vld [vmem:[#allocation11 + $0x1a50] sm:$0xff]
    %v3045 = vld [vmem:[#allocation11 + $0x1a58] sm:$0xff]
    %v3046 = vld [vmem:[#allocation11 + $0x1a60] sm:$0xff]
    %v3047 = vld [vmem:[#allocation11 + $0x1a68] sm:$0xff]
    %v3048 = vld [vmem:[#allocation11 + $0x1a70] sm:$0xff]
    %v3049 = vld [vmem:[#allocation11 + $0x1a78] sm:$0xff]
    %v3050 = vld [vmem:[#allocation11 + $0x1a80] sm:$0xff]
    %v3051 = vld [vmem:[#allocation11 + $0x1a88] sm:$0xff]
    %v3052 = vld [vmem:[#allocation11 + $0x1a90] sm:$0xff]
    %v3053 = vld [vmem:[#allocation11 + $0x1a98] sm:$0xff]
    %v3054 = vld [vmem:[#allocation11 + $0x1aa0] sm:$0xff]
    %v3055 = vld [vmem:[#allocation11 + $0x1aa8] sm:$0xff]
    %v3056 = vld [vmem:[#allocation11 + $0x1ab0] sm:$0xff]
    %v3057 = vld [vmem:[#allocation11 + $0x1ab8] sm:$0xff]
    %v3058 = vld [vmem:[#allocation11 + $0x1ac0] sm:$0xff]
    %v3059 = vld [vmem:[#allocation11 + $0x1ac8] sm:$0xff]
    %v3060 = vld [vmem:[#allocation11 + $0x1ad0] sm:$0xff]
    %v3061 = vld [vmem:[#allocation11 + $0x1ad8] sm:$0xff]
    %v3062 = vld [vmem:[#allocation11 + $0x1ae0] sm:$0xff]
    %v3063 = vld [vmem:[#allocation11 + $0x1ae8] sm:$0xff]
    %v3064 = vld [vmem:[#allocation11 + $0x1af0] sm:$0xff]
    %v3065 = vld [vmem:[#allocation11 + $0x1af8] sm:$0xff]
    %v3066 = vld [vmem:[#allocation11 + $0x1b00] sm:$0xff]
    %v3067 = vld [vmem:[#allocation11 + $0x1b08] sm:$0xff]
    %v3068 = vld [vmem:[#allocation11 + $0x1b10] sm:$0xff]
    %v3069 = vld [vmem:[#allocation11 + $0x1b18] sm:$0xff]
    %v3070 = vld [vmem:[#allocation11 + $0x1b20] sm:$0xff]
    %v3071 = vld [vmem:[#allocation11 + $0x1b28] sm:$0xff]
    %v3072 = vld [vmem:[#allocation11 + $0x1b30] sm:$0xff]
    %v3073 = vld [vmem:[#allocation11 + $0x1b38] sm:$0xff]
    %v3074 = vld [vmem:[#allocation11 + $0x1b40] sm:$0xff]
    %v3075 = vld [vmem:[#allocation11 + $0x1b48] sm:$0xff]
    %v3076 = vld [vmem:[#allocation11 + $0x1b50] sm:$0xff]
    %v3077 = vld [vmem:[#allocation11 + $0x1b58] sm:$0xff]
    %v3078 = vld [vmem:[#allocation11 + $0x1b60] sm:$0xff]
    %v3079 = vld [vmem:[#allocation11 + $0x1b68] sm:$0xff]
    %v3080 = vld [vmem:[#allocation11 + $0x1b70] sm:$0xff]
    %v3081 = vld [vmem:[#allocation11 + $0x1b78] sm:$0xff]
    %v3082 = vld [vmem:[#allocation11 + $0x1b80] sm:$0xff]
    %v3083 = vld [vmem:[#allocation11 + $0x1b88] sm:$0xff]
    %v3084 = vld [vmem:[#allocation11 + $0x1b90] sm:$0xff]
    %v3085 = vld [vmem:[#allocation11 + $0x1b98] sm:$0xff]
    %v3086 = vld [vmem:[#allocation11 + $0x1ba0] sm:$0xff]
    %v3087 = vld [vmem:[#allocation11 + $0x1ba8] sm:$0xff]
    %v3088 = vld [vmem:[#allocation11 + $0x1bb0] sm:$0xff]
    %v3089 = vld [vmem:[#allocation11 + $0x1bb8] sm:$0xff]
    %v3090 = vld [vmem:[#allocation11 + $0x1bc0] sm:$0xff]
    %v3091 = vld [vmem:[#allocation11 + $0x1bc8] sm:$0xff]
    %v3092 = vld [vmem:[#allocation11 + $0x1bd0] sm:$0xff]
    %v3093 = vld [vmem:[#allocation11 + $0x1bd8] sm:$0xff]
    %v3094 = vld [vmem:[#allocation11 + $0x1be0] sm:$0xff]
    %v3095 = vld [vmem:[#allocation11 + $0x1be8] sm:$0xff]
    %v3096 = vld [vmem:[#allocation11 + $0x1bf0] sm:$0xff]
    %v3097 = vld [vmem:[#allocation11 + $0x1bf8] sm:$0xff]
    %v3098 = vld [vmem:[#allocation11 + $0x1c00] sm:$0xff]
    %v3099 = vld [vmem:[#allocation11 + $0x1c08] sm:$0xff]
    %v3100 = vld [vmem:[#allocation11 + $0x1c10] sm:$0xff]
    %v3101 = vld [vmem:[#allocation11 + $0x1c18] sm:$0xff]
    %v3102 = vld [vmem:[#allocation11 + $0x1c20] sm:$0xff]
    %v3103 = vld [vmem:[#allocation11 + $0x1c28] sm:$0xff]
    %v3104 = vld [vmem:[#allocation11 + $0x1c30] sm:$0xff]
    %v3105 = vld [vmem:[#allocation11 + $0x1c38] sm:$0xff]
    %v3106 = vld [vmem:[#allocation11 + $0x1c40] sm:$0xff]
    %v3107 = vld [vmem:[#allocation11 + $0x1c48] sm:$0xff]
    %v3108 = vld [vmem:[#allocation11 + $0x1c50] sm:$0xff]
    %v3109 = vld [vmem:[#allocation11 + $0x1c58] sm:$0xff]
    %v3110 = vld [vmem:[#allocation11 + $0x1c60] sm:$0xff]
    %v3111 = vld [vmem:[#allocation11 + $0x1c68] sm:$0xff]
    %v3112 = vld [vmem:[#allocation11 + $0x1c70] sm:$0xff]
    %v3113 = vld [vmem:[#allocation11 + $0x1c78] sm:$0xff]
    %v3114 = vld [vmem:[#allocation11 + $0x1c80] sm:$0xff]
    %v3115 = vld [vmem:[#allocation11 + $0x1c88] sm:$0xff]
    %v3116 = vld [vmem:[#allocation11 + $0x1c90] sm:$0xff]
    %v3117 = vld [vmem:[#allocation11 + $0x1c98] sm:$0xff]
    %v3118 = vld [vmem:[#allocation11 + $0x1ca0] sm:$0xff]
    %v3119 = vld [vmem:[#allocation11 + $0x1ca8] sm:$0xff]
    %v3120 = vld [vmem:[#allocation11 + $0x1cb0] sm:$0xff]
    %v3121 = vld [vmem:[#allocation11 + $0x1cb8] sm:$0xff]
    %v3122 = vld [vmem:[#allocation11 + $0x1cc0] sm:$0xff]
    %v3123 = vld [vmem:[#allocation11 + $0x1cc8] sm:$0xff]
    %v3124 = vld [vmem:[#allocation11 + $0x1cd0] sm:$0xff]
    %v3125 = vld [vmem:[#allocation11 + $0x1cd8] sm:$0xff]
    %v3126 = vld [vmem:[#allocation11 + $0x1ce0] sm:$0xff]
    %v3127 = vld [vmem:[#allocation11 + $0x1ce8] sm:$0xff]
    %v3128 = vld [vmem:[#allocation11 + $0x1cf0] sm:$0xff]
    %v3129 = vld [vmem:[#allocation11 + $0x1cf8] sm:$0xff]
    %v3130 = vld [vmem:[#allocation11 + $0x1d00] sm:$0xff]
    %v3131 = vld [vmem:[#allocation11 + $0x1d08] sm:$0xff]
    %v3132 = vld [vmem:[#allocation11 + $0x1d10] sm:$0xff]
    %v3133 = vld [vmem:[#allocation11 + $0x1d18] sm:$0xff]
    %v3134 = vld [vmem:[#allocation11 + $0x1d20] sm:$0xff]
    %v3135 = vld [vmem:[#allocation11 + $0x1d28] sm:$0xff]
    %v3136 = vld [vmem:[#allocation11 + $0x1d30] sm:$0xff]
    %v3137 = vld [vmem:[#allocation11 + $0x1d38] sm:$0xff]
    %v3138 = vld [vmem:[#allocation11 + $0x1d40] sm:$0xff]
    %v3139 = vld [vmem:[#allocation11 + $0x1d48] sm:$0xff]
    %v3140 = vld [vmem:[#allocation11 + $0x1d50] sm:$0xff]
    %v3141 = vld [vmem:[#allocation11 + $0x1d58] sm:$0xff]
    %v3142 = vld [vmem:[#allocation11 + $0x1d60] sm:$0xff]
    %v3143 = vld [vmem:[#allocation11 + $0x1d68] sm:$0xff]
    %v3144 = vld [vmem:[#allocation11 + $0x1d70] sm:$0xff]
    %v3145 = vld [vmem:[#allocation11 + $0x1d78] sm:$0xff]
    %v3146 = vld [vmem:[#allocation11 + $0x1d80] sm:$0xff]
    %v3147 = vld [vmem:[#allocation11 + $0x1d88] sm:$0xff]
    %v3148 = vld [vmem:[#allocation11 + $0x1d90] sm:$0xff]
    %v3149 = vld [vmem:[#allocation11 + $0x1d98] sm:$0xff]
    %v3150 = vld [vmem:[#allocation11 + $0x1da0] sm:$0xff]
    %v3151 = vld [vmem:[#allocation11 + $0x1da8] sm:$0xff]
    %v3152 = vld [vmem:[#allocation11 + $0x1db0] sm:$0xff]
    %v3153 = vld [vmem:[#allocation11 + $0x1db8] sm:$0xff]
    %v3154 = vld [vmem:[#allocation11 + $0x1dc0] sm:$0xff]
    %v3155 = vld [vmem:[#allocation11 + $0x1dc8] sm:$0xff]
    %v3156 = vld [vmem:[#allocation11 + $0x1dd0] sm:$0xff]
    %v3157 = vld [vmem:[#allocation11 + $0x1dd8] sm:$0xff]
    %v3158 = vld [vmem:[#allocation11 + $0x1de0] sm:$0xff]
    %v3159 = vld [vmem:[#allocation11 + $0x1de8] sm:$0xff]
    %v3160 = vld [vmem:[#allocation11 + $0x1df0] sm:$0xff]
    %v3161 = vld [vmem:[#allocation11 + $0x1df8] sm:$0xff]
    %v3162 = vld [vmem:[#allocation11 + $0x1e00] sm:$0xff]
    %v3163 = vld [vmem:[#allocation11 + $0x1e08] sm:$0xff]
    %v3164 = vld [vmem:[#allocation11 + $0x1e10] sm:$0xff]
    %v3165 = vld [vmem:[#allocation11 + $0x1e18] sm:$0xff]
    %v3166 = vld [vmem:[#allocation11 + $0x1e20] sm:$0xff]
    %v3167 = vld [vmem:[#allocation11 + $0x1e28] sm:$0xff]
    %v3168 = vld [vmem:[#allocation11 + $0x1e30] sm:$0xff]
    %v3169 = vld [vmem:[#allocation11 + $0x1e38] sm:$0xff]
    %v3170 = vld [vmem:[#allocation11 + $0x1e40] sm:$0xff]
    %v3171 = vld [vmem:[#allocation11 + $0x1e48] sm:$0xff]
    %v3172 = vld [vmem:[#allocation11 + $0x1e50] sm:$0xff]
    %v3173 = vld [vmem:[#allocation11 + $0x1e58] sm:$0xff]
    %v3174 = vld [vmem:[#allocation11 + $0x1e60] sm:$0xff]
    %v3175 = vld [vmem:[#allocation11 + $0x1e68] sm:$0xff]
    %v3176 = vld [vmem:[#allocation11 + $0x1e70] sm:$0xff]
    %v3177 = vld [vmem:[#allocation11 + $0x1e78] sm:$0xff]
    %v3178 = vld [vmem:[#allocation11 + $0x1e80] sm:$0xff]
    %v3179 = vld [vmem:[#allocation11 + $0x1e88] sm:$0xff]
    %v3180 = vld [vmem:[#allocation11 + $0x1e90] sm:$0xff]
    %v3181 = vld [vmem:[#allocation11 + $0x1e98] sm:$0xff]
    %v3182 = vld [vmem:[#allocation11 + $0x1ea0] sm:$0xff]
    %v3183 = vld [vmem:[#allocation11 + $0x1ea8] sm:$0xff]
    %v3184 = vld [vmem:[#allocation11 + $0x1eb0] sm:$0xff]
    %v3185 = vld [vmem:[#allocation11 + $0x1eb8] sm:$0xff]
    %v3186 = vld [vmem:[#allocation11 + $0x1ec0] sm:$0xff]
    %v3187 = vld [vmem:[#allocation11 + $0x1ec8] sm:$0xff]
    %v3188 = vld [vmem:[#allocation11 + $0x1ed0] sm:$0xff]
    %v3189 = vld [vmem:[#allocation11 + $0x1ed8] sm:$0xff]
    %v3190 = vld [vmem:[#allocation11 + $0x1ee0] sm:$0xff]
    %v3191 = vld [vmem:[#allocation11 + $0x1ee8] sm:$0xff]
    %v3192 = vld [vmem:[#allocation11 + $0x1ef0] sm:$0xff]
    %v3193 = vld [vmem:[#allocation11 + $0x1ef8] sm:$0xff]
    %v3194 = vld [vmem:[#allocation11 + $0x1f00] sm:$0xff]
    %v3195 = vld [vmem:[#allocation11 + $0x1f08] sm:$0xff]
    %v3196 = vld [vmem:[#allocation11 + $0x1f10] sm:$0xff]
    %v3197 = vld [vmem:[#allocation11 + $0x1f18] sm:$0xff]
    %v3198 = vld [vmem:[#allocation11 + $0x1f20] sm:$0xff]
    %v3199 = vld [vmem:[#allocation11 + $0x1f28] sm:$0xff]
    %v3200 = vld [vmem:[#allocation11 + $0x1f30] sm:$0xff]
    %v3201 = vld [vmem:[#allocation11 + $0x1f38] sm:$0xff]
    %v3202 = vld [vmem:[#allocation11 + $0x1f40] sm:$0xff]
    %v3203 = vld [vmem:[#allocation11 + $0x1f48] sm:$0xff]
    %v3204 = vld [vmem:[#allocation11 + $0x1f50] sm:$0xff]
    %v3205 = vld [vmem:[#allocation11 + $0x1f58] sm:$0xff]
    %v3206 = vld [vmem:[#allocation11 + $0x1f60] sm:$0xff]
    %v3207 = vld [vmem:[#allocation11 + $0x1f68] sm:$0xff]
    %v3208 = vld [vmem:[#allocation11 + $0x1f70] sm:$0xff]
    %v3209 = vld [vmem:[#allocation11 + $0x1f78] sm:$0xff]
    %v3210 = vld [vmem:[#allocation11 + $0x1f80] sm:$0xff]
    %v3211 = vld [vmem:[#allocation11 + $0x1f88] sm:$0xff]
    %v3212 = vld [vmem:[#allocation11 + $0x1f90] sm:$0xff]
    %v3213 = vld [vmem:[#allocation11 + $0x1f98] sm:$0xff]
    %v3214 = vld [vmem:[#allocation11 + $0x1fa0] sm:$0xff]
    %v3215 = vld [vmem:[#allocation11 + $0x1fa8] sm:$0xff]
    %v3216 = vld [vmem:[#allocation11 + $0x1fb0] sm:$0xff]
    %v3217 = vld [vmem:[#allocation11 + $0x1fb8] sm:$0xff]
    %v3218 = vld [vmem:[#allocation11 + $0x1fc0] sm:$0xff]
    %v3219 = vld [vmem:[#allocation11 + $0x1fc8] sm:$0xff]
    %v3220 = vld [vmem:[#allocation11 + $0x1fd0] sm:$0xff]
    %v3221 = vld [vmem:[#allocation11 + $0x1fd8] sm:$0xff]
    %v3222 = vld [vmem:[#allocation11 + $0x1fe0] sm:$0xff]
    %v3223 = vld [vmem:[#allocation11 + $0x1fe8] sm:$0xff]
    %v3224 = vld [vmem:[#allocation11 + $0x1ff0] sm:$0xff]
    %v3225 = vld [vmem:[#allocation11 + $0x1ff8] sm:$0xff]
    %v3226 = vld [vmem:[#allocation13] sm:$0xff]
    %v3227 = vld [vmem:[#allocation13 + $0x8] sm:$0xff]
    %v3230 = vlaneseq
    %v3231 = vshrl.u32 %v3230, 7
    %v3232 = vsub.s32 0, %v3231
    %v3233 = vrot.slane %v3226, %v3232
    %v3234 = vlaneseq
    %v3235 = vshrl.u32 %v3234, 7
    %v3236 = vsub.s32 1, %v3235
    %v3237 = vrot.slane %v3226, %v3236
    %v3238 = vlaneseq
    %v3239 = vshrl.u32 %v3238, 7
    %v3240 = vsub.s32 2, %v3239
    %v3241 = vrot.slane %v3226, %v3240
    %v3242 = vlaneseq
    %v3243 = vshrl.u32 %v3242, 7
    %v3244 = vsub.s32 3, %v3243
    %v3245 = vrot.slane %v3226, %v3244
    %v3246 = vlaneseq
    %v3247 = vshrl.u32 %v3246, 7
    %v3248 = vsub.s32 4, %v3247
    %v3249 = vrot.slane %v3226, %v3248
    %v3250 = vlaneseq
    %v3251 = vshrl.u32 %v3250, 7
    %v3252 = vsub.s32 5, %v3251
    %v3253 = vrot.slane %v3226, %v3252
    %v3254 = vlaneseq
    %v3255 = vshrl.u32 %v3254, 7
    %v3256 = vsub.s32 6, %v3255
    %v3257 = vrot.slane %v3226, %v3256
    %v3258 = vlaneseq
    %v3259 = vshrl.u32 %v3258, 7
    %v3260 = vsub.s32 7, %v3259
    %v3261 = vrot.slane %v3226, %v3260
    %v3262 = vlaneseq
    %v3263 = vshrl.u32 %v3262, 7
    %v3264 = vsub.s32 0, %v3263
    %v3265 = vrot.slane %v3227, %v3264
    %v3266 = vlaneseq
    %v3267 = vshrl.u32 %v3266, 7
    %v3268 = vsub.s32 1, %v3267
    %v3269 = vrot.slane %v3227, %v3268
    %v3270 = vlaneseq
    %v3271 = vshrl.u32 %v3270, 7
    %v3272 = vsub.s32 2, %v3271
    %v3273 = vrot.slane %v3227, %v3272
    %v3274 = vlaneseq
    %v3275 = vshrl.u32 %v3274, 7
    %v3276 = vsub.s32 3, %v3275
    %v3277 = vrot.slane %v3227, %v3276
    %v3278 = vlaneseq
    %v3279 = vshrl.u32 %v3278, 7
    %v3280 = vsub.s32 4, %v3279
    %v3281 = vrot.slane %v3227, %v3280
    %v3282 = vlaneseq
    %v3283 = vshrl.u32 %v3282, 7
    %v3284 = vsub.s32 5, %v3283
    %v3285 = vrot.slane %v3227, %v3284
    %v3286 = vlaneseq
    %v3287 = vshrl.u32 %v3286, 7
    %v3288 = vsub.s32 6, %v3287
    %v3289 = vrot.slane %v3227, %v3288
    %v3290 = vlaneseq
    %v3291 = vshrl.u32 %v3290, 7
    %v3292 = vsub.s32 7, %v3291
    %v3293 = vrot.slane %v3227, %v3292
    %v4334 = vunpack.c.l.b16 %v2202
    %v4335 = vunpack.c.h.b16 %v2202
    %v4336 = vunpack.c.l.b16 %v2203
    %v4337 = vunpack.c.h.b16 %v2203
    %v4338 = vunpack.c.l.b16 %v2204
    %v4339 = vunpack.c.h.b16 %v2204
    %v4340 = vunpack.c.l.b16 %v2205
    %v4341 = vunpack.c.h.b16 %v2205
    %v4342 = vunpack.c.l.b16 %v2206
    %v4343 = vunpack.c.h.b16 %v2206
    %v4344 = vunpack.c.l.b16 %v2207
    %v4345 = vunpack.c.h.b16 %v2207
    %v4346 = vunpack.c.l.b16 %v2208
    %v4347 = vunpack.c.h.b16 %v2208
    %v4348 = vunpack.c.l.b16 %v2209
    %v4349 = vunpack.c.h.b16 %v2209
    %v4350 = vunpack.c.l.b16 %v2210
    %v4351 = vunpack.c.h.b16 %v2210
    %v4352 = vunpack.c.l.b16 %v2211
    %v4353 = vunpack.c.h.b16 %v2211
    %v4354 = vunpack.c.l.b16 %v2212
    %v4355 = vunpack.c.h.b16 %v2212
    %v4356 = vunpack.c.l.b16 %v2213
    %v4357 = vunpack.c.h.b16 %v2213
    %v4358 = vunpack.c.l.b16 %v2214
    %v4359 = vunpack.c.h.b16 %v2214
    %v4360 = vunpack.c.l.b16 %v2215
    %v4361 = vunpack.c.h.b16 %v2215
    %v4362 = vunpack.c.l.b16 %v2216
    %v4363 = vunpack.c.h.b16 %v2216
    %v4364 = vunpack.c.l.b16 %v2217
    %v4365 = vunpack.c.h.b16 %v2217
    %v4366 = vunpack.c.l.b16 %v2218
    %v4367 = vunpack.c.h.b16 %v2218
    %v4368 = vunpack.c.l.b16 %v2219
    %v4369 = vunpack.c.h.b16 %v2219
    %v4370 = vunpack.c.l.b16 %v2220
    %v4371 = vunpack.c.h.b16 %v2220
    %v4372 = vunpack.c.l.b16 %v2221
    %v4373 = vunpack.c.h.b16 %v2221
    %v4374 = vunpack.c.l.b16 %v2222
    %v4375 = vunpack.c.h.b16 %v2222
    %v4376 = vunpack.c.l.b16 %v2223
    %v4377 = vunpack.c.h.b16 %v2223
    %v4378 = vunpack.c.l.b16 %v2224
    %v4379 = vunpack.c.h.b16 %v2224
    %v4380 = vunpack.c.l.b16 %v2225
    %v4381 = vunpack.c.h.b16 %v2225
    %v4382 = vunpack.c.l.b16 %v2226
    %v4383 = vunpack.c.h.b16 %v2226
    %v4384 = vunpack.c.l.b16 %v2227
    %v4385 = vunpack.c.h.b16 %v2227
    %v4386 = vunpack.c.l.b16 %v2228
    %v4387 = vunpack.c.h.b16 %v2228
    %v4388 = vunpack.c.l.b16 %v2229
    %v4389 = vunpack.c.h.b16 %v2229
    %v4390 = vunpack.c.l.b16 %v2230
    %v4391 = vunpack.c.h.b16 %v2230
    %v4392 = vunpack.c.l.b16 %v2231
    %v4393 = vunpack.c.h.b16 %v2231
    %v4394 = vunpack.c.l.b16 %v2232
    %v4395 = vunpack.c.h.b16 %v2232
    %v4396 = vunpack.c.l.b16 %v2233
    %v4397 = vunpack.c.h.b16 %v2233
    %v4398 = vunpack.c.l.b16 %v2234
    %v4399 = vunpack.c.h.b16 %v2234
    %v4400 = vunpack.c.l.b16 %v2235
    %v4401 = vunpack.c.h.b16 %v2235
    %v4402 = vunpack.c.l.b16 %v2236
    %v4403 = vunpack.c.h.b16 %v2236
    %v4404 = vunpack.c.l.b16 %v2237
    %v4405 = vunpack.c.h.b16 %v2237
    %v4406 = vunpack.c.l.b16 %v2238
    %v4407 = vunpack.c.h.b16 %v2238
    %v4408 = vunpack.c.l.b16 %v2239
    %v4409 = vunpack.c.h.b16 %v2239
    %v4410 = vunpack.c.l.b16 %v2240
    %v4411 = vunpack.c.h.b16 %v2240
    %v4412 = vunpack.c.l.b16 %v2241
    %v4413 = vunpack.c.h.b16 %v2241
    %v4414 = vunpack.c.l.b16 %v2242
    %v4415 = vunpack.c.h.b16 %v2242
    %v4416 = vunpack.c.l.b16 %v2243
    %v4417 = vunpack.c.h.b16 %v2243
    %v4418 = vunpack.c.l.b16 %v2244
    %v4419 = vunpack.c.h.b16 %v2244
    %v4420 = vunpack.c.l.b16 %v2245
    %v4421 = vunpack.c.h.b16 %v2245
    %v4422 = vunpack.c.l.b16 %v2246
    %v4423 = vunpack.c.h.b16 %v2246
    %v4424 = vunpack.c.l.b16 %v2247
    %v4425 = vunpack.c.h.b16 %v2247
    %v4426 = vunpack.c.l.b16 %v2248
    %v4427 = vunpack.c.h.b16 %v2248
    %v4428 = vunpack.c.l.b16 %v2249
    %v4429 = vunpack.c.h.b16 %v2249
    %v4430 = vunpack.c.l.b16 %v2250
    %v4431 = vunpack.c.h.b16 %v2250
    %v4432 = vunpack.c.l.b16 %v2251
    %v4433 = vunpack.c.h.b16 %v2251
    %v4434 = vunpack.c.l.b16 %v2252
    %v4435 = vunpack.c.h.b16 %v2252
    %v4436 = vunpack.c.l.b16 %v2253
    %v4437 = vunpack.c.h.b16 %v2253
    %v4438 = vunpack.c.l.b16 %v2254
    %v4439 = vunpack.c.h.b16 %v2254
    %v4440 = vunpack.c.l.b16 %v2255
    %v4441 = vunpack.c.h.b16 %v2255
    %v4442 = vunpack.c.l.b16 %v2256
    %v4443 = vunpack.c.h.b16 %v2256
    %v4444 = vunpack.c.l.b16 %v2257
    %v4445 = vunpack.c.h.b16 %v2257
    %v4446 = vunpack.c.l.b16 %v2258
    %v4447 = vunpack.c.h.b16 %v2258
    %v4448 = vunpack.c.l.b16 %v2259
    %v4449 = vunpack.c.h.b16 %v2259
    %v4450 = vunpack.c.l.b16 %v2260
    %v4451 = vunpack.c.h.b16 %v2260
    %v4452 = vunpack.c.l.b16 %v2261
    %v4453 = vunpack.c.h.b16 %v2261
    %v4454 = vunpack.c.l.b16 %v2262
    %v4455 = vunpack.c.h.b16 %v2262
    %v4456 = vunpack.c.l.b16 %v2263
    %v4457 = vunpack.c.h.b16 %v2263
    %v4458 = vunpack.c.l.b16 %v2264
    %v4459 = vunpack.c.h.b16 %v2264
    %v4460 = vunpack.c.l.b16 %v2265
    %v4461 = vunpack.c.h.b16 %v2265
    %v4462 = vunpack.c.l.b16 %v2266
    %v4463 = vunpack.c.h.b16 %v2266
    %v4464 = vunpack.c.l.b16 %v2267
    %v4465 = vunpack.c.h.b16 %v2267
    %v4466 = vunpack.c.l.b16 %v2268
    %v4467 = vunpack.c.h.b16 %v2268
    %v4468 = vunpack.c.l.b16 %v2269
    %v4469 = vunpack.c.h.b16 %v2269
    %v4470 = vunpack.c.l.b16 %v2270
    %v4471 = vunpack.c.h.b16 %v2270
    %v4472 = vunpack.c.l.b16 %v2271
    %v4473 = vunpack.c.h.b16 %v2271
    %v4474 = vunpack.c.l.b16 %v2272
    %v4475 = vunpack.c.h.b16 %v2272
    %v4476 = vunpack.c.l.b16 %v2273
    %v4477 = vunpack.c.h.b16 %v2273
    %v4478 = vunpack.c.l.b16 %v2274
    %v4479 = vunpack.c.h.b16 %v2274
    %v4480 = vunpack.c.l.b16 %v2275
    %v4481 = vunpack.c.h.b16 %v2275
    %v4482 = vunpack.c.l.b16 %v2276
    %v4483 = vunpack.c.h.b16 %v2276
    %v4484 = vunpack.c.l.b16 %v2277
    %v4485 = vunpack.c.h.b16 %v2277
    %v4486 = vunpack.c.l.b16 %v2278
    %v4487 = vunpack.c.h.b16 %v2278
    %v4488 = vunpack.c.l.b16 %v2279
    %v4489 = vunpack.c.h.b16 %v2279
    %v4490 = vunpack.c.l.b16 %v2280
    %v4491 = vunpack.c.h.b16 %v2280
    %v4492 = vunpack.c.l.b16 %v2281
    %v4493 = vunpack.c.h.b16 %v2281
    %v4494 = vunpack.c.l.b16 %v2282
    %v4495 = vunpack.c.h.b16 %v2282
    %v4496 = vunpack.c.l.b16 %v2283
    %v4497 = vunpack.c.h.b16 %v2283
    %v4498 = vunpack.c.l.b16 %v2284
    %v4499 = vunpack.c.h.b16 %v2284
    %v4500 = vunpack.c.l.b16 %v2285
    %v4501 = vunpack.c.h.b16 %v2285
    %v4502 = vunpack.c.l.b16 %v2286
    %v4503 = vunpack.c.h.b16 %v2286
    %v4504 = vunpack.c.l.b16 %v2287
    %v4505 = vunpack.c.h.b16 %v2287
    %v4506 = vunpack.c.l.b16 %v2288
    %v4507 = vunpack.c.h.b16 %v2288
    %v4508 = vunpack.c.l.b16 %v2289
    %v4509 = vunpack.c.h.b16 %v2289
    %v4510 = vunpack.c.l.b16 %v2290
    %v4511 = vunpack.c.h.b16 %v2290
    %v4512 = vunpack.c.l.b16 %v2291
    %v4513 = vunpack.c.h.b16 %v2291
    %v4514 = vunpack.c.l.b16 %v2292
    %v4515 = vunpack.c.h.b16 %v2292
    %v4516 = vunpack.c.l.b16 %v2293
    %v4517 = vunpack.c.h.b16 %v2293
    %v4518 = vunpack.c.l.b16 %v2294
    %v4519 = vunpack.c.h.b16 %v2294
    %v4520 = vunpack.c.l.b16 %v2295
    %v4521 = vunpack.c.h.b16 %v2295
    %v4522 = vunpack.c.l.b16 %v2296
    %v4523 = vunpack.c.h.b16 %v2296
    %v4524 = vunpack.c.l.b16 %v2297
    %v4525 = vunpack.c.h.b16 %v2297
    %v4526 = vunpack.c.l.b16 %v2298
    %v4527 = vunpack.c.h.b16 %v2298
    %v4528 = vunpack.c.l.b16 %v2299
    %v4529 = vunpack.c.h.b16 %v2299
    %v4530 = vunpack.c.l.b16 %v2300
    %v4531 = vunpack.c.h.b16 %v2300
    %v4532 = vunpack.c.l.b16 %v2301
    %v4533 = vunpack.c.h.b16 %v2301
    %v4534 = vunpack.c.l.b16 %v2302
    %v4535 = vunpack.c.h.b16 %v2302
    %v4536 = vunpack.c.l.b16 %v2303
    %v4537 = vunpack.c.h.b16 %v2303
    %v4538 = vunpack.c.l.b16 %v2304
    %v4539 = vunpack.c.h.b16 %v2304
    %v4540 = vunpack.c.l.b16 %v2305
    %v4541 = vunpack.c.h.b16 %v2305
    %v4542 = vunpack.c.l.b16 %v2306
    %v4543 = vunpack.c.h.b16 %v2306
    %v4544 = vunpack.c.l.b16 %v2307
    %v4545 = vunpack.c.h.b16 %v2307
    %v4546 = vunpack.c.l.b16 %v2308
    %v4547 = vunpack.c.h.b16 %v2308
    %v4548 = vunpack.c.l.b16 %v2309
    %v4549 = vunpack.c.h.b16 %v2309
    %v4550 = vunpack.c.l.b16 %v2310
    %v4551 = vunpack.c.h.b16 %v2310
    %v4552 = vunpack.c.l.b16 %v2311
    %v4553 = vunpack.c.h.b16 %v2311
    %v4554 = vunpack.c.l.b16 %v2312
    %v4555 = vunpack.c.h.b16 %v2312
    %v4556 = vunpack.c.l.b16 %v2313
    %v4557 = vunpack.c.h.b16 %v2313
    %v4558 = vunpack.c.l.b16 %v2314
    %v4559 = vunpack.c.h.b16 %v2314
    %v4560 = vunpack.c.l.b16 %v2315
    %v4561 = vunpack.c.h.b16 %v2315
    %v4562 = vunpack.c.l.b16 %v2316
    %v4563 = vunpack.c.h.b16 %v2316
    %v4564 = vunpack.c.l.b16 %v2317
    %v4565 = vunpack.c.h.b16 %v2317
    %v4566 = vunpack.c.l.b16 %v2318
    %v4567 = vunpack.c.h.b16 %v2318
    %v4568 = vunpack.c.l.b16 %v2319
    %v4569 = vunpack.c.h.b16 %v2319
    %v4570 = vunpack.c.l.b16 %v2320
    %v4571 = vunpack.c.h.b16 %v2320
    %v4572 = vunpack.c.l.b16 %v2321
    %v4573 = vunpack.c.h.b16 %v2321
    %v4574 = vunpack.c.l.b16 %v2322
    %v4575 = vunpack.c.h.b16 %v2322
    %v4576 = vunpack.c.l.b16 %v2323
    %v4577 = vunpack.c.h.b16 %v2323
    %v4578 = vunpack.c.l.b16 %v2324
    %v4579 = vunpack.c.h.b16 %v2324
    %v4580 = vunpack.c.l.b16 %v2325
    %v4581 = vunpack.c.h.b16 %v2325
    %v4582 = vunpack.c.l.b16 %v2326
    %v4583 = vunpack.c.h.b16 %v2326
    %v4584 = vunpack.c.l.b16 %v2327
    %v4585 = vunpack.c.h.b16 %v2327
    %v4586 = vunpack.c.l.b16 %v2328
    %v4587 = vunpack.c.h.b16 %v2328
    %v4588 = vunpack.c.l.b16 %v2329
    %v4589 = vunpack.c.h.b16 %v2329
    %v4590 = vunpack.c.l.b16 %v2330
    %v4591 = vunpack.c.h.b16 %v2330
    %v4592 = vunpack.c.l.b16 %v2331
    %v4593 = vunpack.c.h.b16 %v2331
    %v4594 = vunpack.c.l.b16 %v2332
    %v4595 = vunpack.c.h.b16 %v2332
    %v4596 = vunpack.c.l.b16 %v2333
    %v4597 = vunpack.c.h.b16 %v2333
    %v4598 = vunpack.c.l.b16 %v2334
    %v4599 = vunpack.c.h.b16 %v2334
    %v4600 = vunpack.c.l.b16 %v2335
    %v4601 = vunpack.c.h.b16 %v2335
    %v4602 = vunpack.c.l.b16 %v2336
    %v4603 = vunpack.c.h.b16 %v2336
    %v4604 = vunpack.c.l.b16 %v2337
    %v4605 = vunpack.c.h.b16 %v2337
    %v4606 = vunpack.c.l.b16 %v2338
    %v4607 = vunpack.c.h.b16 %v2338
    %v4608 = vunpack.c.l.b16 %v2339
    %v4609 = vunpack.c.h.b16 %v2339
    %v4610 = vunpack.c.l.b16 %v2340
    %v4611 = vunpack.c.h.b16 %v2340
    %v4612 = vunpack.c.l.b16 %v2341
    %v4613 = vunpack.c.h.b16 %v2341
    %v4614 = vunpack.c.l.b16 %v2342
    %v4615 = vunpack.c.h.b16 %v2342
    %v4616 = vunpack.c.l.b16 %v2343
    %v4617 = vunpack.c.h.b16 %v2343
    %v4618 = vunpack.c.l.b16 %v2344
    %v4619 = vunpack.c.h.b16 %v2344
    %v4620 = vunpack.c.l.b16 %v2345
    %v4621 = vunpack.c.h.b16 %v2345
    %v4622 = vunpack.c.l.b16 %v2346
    %v4623 = vunpack.c.h.b16 %v2346
    %v4624 = vunpack.c.l.b16 %v2347
    %v4625 = vunpack.c.h.b16 %v2347
    %v4626 = vunpack.c.l.b16 %v2348
    %v4627 = vunpack.c.h.b16 %v2348
    %v4628 = vunpack.c.l.b16 %v2349
    %v4629 = vunpack.c.h.b16 %v2349
    %v4630 = vunpack.c.l.b16 %v2350
    %v4631 = vunpack.c.h.b16 %v2350
    %v4632 = vunpack.c.l.b16 %v2351
    %v4633 = vunpack.c.h.b16 %v2351
    %v4634 = vunpack.c.l.b16 %v2352
    %v4635 = vunpack.c.h.b16 %v2352
    %v4636 = vunpack.c.l.b16 %v2353
    %v4637 = vunpack.c.h.b16 %v2353
    %v4638 = vunpack.c.l.b16 %v2354
    %v4639 = vunpack.c.h.b16 %v2354
    %v4640 = vunpack.c.l.b16 %v2355
    %v4641 = vunpack.c.h.b16 %v2355
    %v4642 = vunpack.c.l.b16 %v2356
    %v4643 = vunpack.c.h.b16 %v2356
    %v4644 = vunpack.c.l.b16 %v2357
    %v4645 = vunpack.c.h.b16 %v2357
    %v4646 = vunpack.c.l.b16 %v2358
    %v4647 = vunpack.c.h.b16 %v2358
    %v4648 = vunpack.c.l.b16 %v2359
    %v4649 = vunpack.c.h.b16 %v2359
    %v4650 = vunpack.c.l.b16 %v2360
    %v4651 = vunpack.c.h.b16 %v2360
    %v4652 = vunpack.c.l.b16 %v2361
    %v4653 = vunpack.c.h.b16 %v2361
    %v4654 = vunpack.c.l.b16 %v2362
    %v4655 = vunpack.c.h.b16 %v2362
    %v4656 = vunpack.c.l.b16 %v2363
    %v4657 = vunpack.c.h.b16 %v2363
    %v4658 = vunpack.c.l.b16 %v2364
    %v4659 = vunpack.c.h.b16 %v2364
    %v4660 = vunpack.c.l.b16 %v2365
    %v4661 = vunpack.c.h.b16 %v2365
    %v4662 = vunpack.c.l.b16 %v2366
    %v4663 = vunpack.c.h.b16 %v2366
    %v4664 = vunpack.c.l.b16 %v2367
    %v4665 = vunpack.c.h.b16 %v2367
    %v4666 = vunpack.c.l.b16 %v2368
    %v4667 = vunpack.c.h.b16 %v2368
    %v4668 = vunpack.c.l.b16 %v2369
    %v4669 = vunpack.c.h.b16 %v2369
    %v4670 = vunpack.c.l.b16 %v2370
    %v4671 = vunpack.c.h.b16 %v2370
    %v4672 = vunpack.c.l.b16 %v2371
    %v4673 = vunpack.c.h.b16 %v2371
    %v4674 = vunpack.c.l.b16 %v2372
    %v4675 = vunpack.c.h.b16 %v2372
    %v4676 = vunpack.c.l.b16 %v2373
    %v4677 = vunpack.c.h.b16 %v2373
    %v4678 = vunpack.c.l.b16 %v2374
    %v4679 = vunpack.c.h.b16 %v2374
    %v4680 = vunpack.c.l.b16 %v2375
    %v4681 = vunpack.c.h.b16 %v2375
    %v4682 = vunpack.c.l.b16 %v2376
    %v4683 = vunpack.c.h.b16 %v2376
    %v4684 = vunpack.c.l.b16 %v2377
    %v4685 = vunpack.c.h.b16 %v2377
    %v4686 = vunpack.c.l.b16 %v2378
    %v4687 = vunpack.c.h.b16 %v2378
    %v4688 = vunpack.c.l.b16 %v2379
    %v4689 = vunpack.c.h.b16 %v2379
    %v4690 = vunpack.c.l.b16 %v2380
    %v4691 = vunpack.c.h.b16 %v2380
    %v4692 = vunpack.c.l.b16 %v2381
    %v4693 = vunpack.c.h.b16 %v2381
    %v4694 = vunpack.c.l.b16 %v2382
    %v4695 = vunpack.c.h.b16 %v2382
    %v4696 = vunpack.c.l.b16 %v2383
    %v4697 = vunpack.c.h.b16 %v2383
    %v4698 = vunpack.c.l.b16 %v2384
    %v4699 = vunpack.c.h.b16 %v2384
    %v4700 = vunpack.c.l.b16 %v2385
    %v4701 = vunpack.c.h.b16 %v2385
    %v4702 = vunpack.c.l.b16 %v2386
    %v4703 = vunpack.c.h.b16 %v2386
    %v4704 = vunpack.c.l.b16 %v2387
    %v4705 = vunpack.c.h.b16 %v2387
    %v4706 = vunpack.c.l.b16 %v2388
    %v4707 = vunpack.c.h.b16 %v2388
    %v4708 = vunpack.c.l.b16 %v2389
    %v4709 = vunpack.c.h.b16 %v2389
    %v4710 = vunpack.c.l.b16 %v2390
    %v4711 = vunpack.c.h.b16 %v2390
    %v4712 = vunpack.c.l.b16 %v2391
    %v4713 = vunpack.c.h.b16 %v2391
    %v4714 = vunpack.c.l.b16 %v2392
    %v4715 = vunpack.c.h.b16 %v2392
    %v4716 = vunpack.c.l.b16 %v2393
    %v4717 = vunpack.c.h.b16 %v2393
    %v4718 = vunpack.c.l.b16 %v2394
    %v4719 = vunpack.c.h.b16 %v2394
    %v4720 = vunpack.c.l.b16 %v2395
    %v4721 = vunpack.c.h.b16 %v2395
    %v4722 = vunpack.c.l.b16 %v2396
    %v4723 = vunpack.c.h.b16 %v2396
    %v4724 = vunpack.c.l.b16 %v2397
    %v4725 = vunpack.c.h.b16 %v2397
    %v4726 = vunpack.c.l.b16 %v2398
    %v4727 = vunpack.c.h.b16 %v2398
    %v4728 = vunpack.c.l.b16 %v2399
    %v4729 = vunpack.c.h.b16 %v2399
    %v4730 = vunpack.c.l.b16 %v2400
    %v4731 = vunpack.c.h.b16 %v2400
    %v4732 = vunpack.c.l.b16 %v2401
    %v4733 = vunpack.c.h.b16 %v2401
    %v4734 = vunpack.c.l.b16 %v2402
    %v4735 = vunpack.c.h.b16 %v2402
    %v4736 = vunpack.c.l.b16 %v2403
    %v4737 = vunpack.c.h.b16 %v2403
    %v4738 = vunpack.c.l.b16 %v2404
    %v4739 = vunpack.c.h.b16 %v2404
    %v4740 = vunpack.c.l.b16 %v2405
    %v4741 = vunpack.c.h.b16 %v2405
    %v4742 = vunpack.c.l.b16 %v2406
    %v4743 = vunpack.c.h.b16 %v2406
    %v4744 = vunpack.c.l.b16 %v2407
    %v4745 = vunpack.c.h.b16 %v2407
    %v4746 = vunpack.c.l.b16 %v2408
    %v4747 = vunpack.c.h.b16 %v2408
    %v4748 = vunpack.c.l.b16 %v2409
    %v4749 = vunpack.c.h.b16 %v2409
    %v4750 = vunpack.c.l.b16 %v2410
    %v4751 = vunpack.c.h.b16 %v2410
    %v4752 = vunpack.c.l.b16 %v2411
    %v4753 = vunpack.c.h.b16 %v2411
    %v4754 = vunpack.c.l.b16 %v2412
    %v4755 = vunpack.c.h.b16 %v2412
    %v4756 = vunpack.c.l.b16 %v2413
    %v4757 = vunpack.c.h.b16 %v2413
    %v4758 = vunpack.c.l.b16 %v2414
    %v4759 = vunpack.c.h.b16 %v2414
    %v4760 = vunpack.c.l.b16 %v2415
    %v4761 = vunpack.c.h.b16 %v2415
    %v4762 = vunpack.c.l.b16 %v2416
    %v4763 = vunpack.c.h.b16 %v2416
    %v4764 = vunpack.c.l.b16 %v2417
    %v4765 = vunpack.c.h.b16 %v2417
    %v4766 = vunpack.c.l.b16 %v2418
    %v4767 = vunpack.c.h.b16 %v2418
    %v4768 = vunpack.c.l.b16 %v2419
    %v4769 = vunpack.c.h.b16 %v2419
    %v4770 = vunpack.c.l.b16 %v2420
    %v4771 = vunpack.c.h.b16 %v2420
    %v4772 = vunpack.c.l.b16 %v2421
    %v4773 = vunpack.c.h.b16 %v2421
    %v4774 = vunpack.c.l.b16 %v2422
    %v4775 = vunpack.c.h.b16 %v2422
    %v4776 = vunpack.c.l.b16 %v2423
    %v4777 = vunpack.c.h.b16 %v2423
    %v4778 = vunpack.c.l.b16 %v2424
    %v4779 = vunpack.c.h.b16 %v2424
    %v4780 = vunpack.c.l.b16 %v2425
    %v4781 = vunpack.c.h.b16 %v2425
    %v4782 = vunpack.c.l.b16 %v2426
    %v4783 = vunpack.c.h.b16 %v2426
    %v4784 = vunpack.c.l.b16 %v2427
    %v4785 = vunpack.c.h.b16 %v2427
    %v4786 = vunpack.c.l.b16 %v2428
    %v4787 = vunpack.c.h.b16 %v2428
    %v4788 = vunpack.c.l.b16 %v2429
    %v4789 = vunpack.c.h.b16 %v2429
    %v4790 = vunpack.c.l.b16 %v2430
    %v4791 = vunpack.c.h.b16 %v2430
    %v4792 = vunpack.c.l.b16 %v2431
    %v4793 = vunpack.c.h.b16 %v2431
    %v4794 = vunpack.c.l.b16 %v2432
    %v4795 = vunpack.c.h.b16 %v2432
    %v4796 = vunpack.c.l.b16 %v2433
    %v4797 = vunpack.c.h.b16 %v2433
    %v4798 = vunpack.c.l.b16 %v2434
    %v4799 = vunpack.c.h.b16 %v2434
    %v4800 = vunpack.c.l.b16 %v2435
    %v4801 = vunpack.c.h.b16 %v2435
    %v4802 = vunpack.c.l.b16 %v2436
    %v4803 = vunpack.c.h.b16 %v2436
    %v4804 = vunpack.c.l.b16 %v2437
    %v4805 = vunpack.c.h.b16 %v2437
    %v4806 = vunpack.c.l.b16 %v2438
    %v4807 = vunpack.c.h.b16 %v2438
    %v4808 = vunpack.c.l.b16 %v2439
    %v4809 = vunpack.c.h.b16 %v2439
    %v4810 = vunpack.c.l.b16 %v2440
    %v4811 = vunpack.c.h.b16 %v2440
    %v4812 = vunpack.c.l.b16 %v2441
    %v4813 = vunpack.c.h.b16 %v2441
    %v4814 = vunpack.c.l.b16 %v2442
    %v4815 = vunpack.c.h.b16 %v2442
    %v4816 = vunpack.c.l.b16 %v2443
    %v4817 = vunpack.c.h.b16 %v2443
    %v4818 = vunpack.c.l.b16 %v2444
    %v4819 = vunpack.c.h.b16 %v2444
    %v4820 = vunpack.c.l.b16 %v2445
    %v4821 = vunpack.c.h.b16 %v2445
    %v4822 = vunpack.c.l.b16 %v2446
    %v4823 = vunpack.c.h.b16 %v2446
    %v4824 = vunpack.c.l.b16 %v2447
    %v4825 = vunpack.c.h.b16 %v2447
    %v4826 = vunpack.c.l.b16 %v2448
    %v4827 = vunpack.c.h.b16 %v2448
    %v4828 = vunpack.c.l.b16 %v2449
    %v4829 = vunpack.c.h.b16 %v2449
    %v4830 = vunpack.c.l.b16 %v2450
    %v4831 = vunpack.c.h.b16 %v2450
    %v4832 = vunpack.c.l.b16 %v2451
    %v4833 = vunpack.c.h.b16 %v2451
    %v4834 = vunpack.c.l.b16 %v2452
    %v4835 = vunpack.c.h.b16 %v2452
    %v4836 = vunpack.c.l.b16 %v2453
    %v4837 = vunpack.c.h.b16 %v2453
    %v4838 = vunpack.c.l.b16 %v2454
    %v4839 = vunpack.c.h.b16 %v2454
    %v4840 = vunpack.c.l.b16 %v2455
    %v4841 = vunpack.c.h.b16 %v2455
    %v4842 = vunpack.c.l.b16 %v2456
    %v4843 = vunpack.c.h.b16 %v2456
    %v4844 = vunpack.c.l.b16 %v2457
    %v4845 = vunpack.c.h.b16 %v2457
    %v4846 = vunpack.c.l.b16 %v2458
    %v4847 = vunpack.c.h.b16 %v2458
    %v4848 = vunpack.c.l.b16 %v2459
    %v4849 = vunpack.c.h.b16 %v2459
    %v4850 = vunpack.c.l.b16 %v2460
    %v4851 = vunpack.c.h.b16 %v2460
    %v4852 = vunpack.c.l.b16 %v2461
    %v4853 = vunpack.c.h.b16 %v2461
    %v4854 = vunpack.c.l.b16 %v2462
    %v4855 = vunpack.c.h.b16 %v2462
    %v4856 = vunpack.c.l.b16 %v2463
    %v4857 = vunpack.c.h.b16 %v2463
    %v4858 = vunpack.c.l.b16 %v2464
    %v4859 = vunpack.c.h.b16 %v2464
    %v4860 = vunpack.c.l.b16 %v2465
    %v4861 = vunpack.c.h.b16 %v2465
    %v4862 = vunpack.c.l.b16 %v2466
    %v4863 = vunpack.c.h.b16 %v2466
    %v4864 = vunpack.c.l.b16 %v2467
    %v4865 = vunpack.c.h.b16 %v2467
    %v4866 = vunpack.c.l.b16 %v2468
    %v4867 = vunpack.c.h.b16 %v2468
    %v4868 = vunpack.c.l.b16 %v2469
    %v4869 = vunpack.c.h.b16 %v2469
    %v4870 = vunpack.c.l.b16 %v2470
    %v4871 = vunpack.c.h.b16 %v2470
    %v4872 = vunpack.c.l.b16 %v2471
    %v4873 = vunpack.c.h.b16 %v2471
    %v4874 = vunpack.c.l.b16 %v2472
    %v4875 = vunpack.c.h.b16 %v2472
    %v4876 = vunpack.c.l.b16 %v2473
    %v4877 = vunpack.c.h.b16 %v2473
    %v4878 = vunpack.c.l.b16 %v2474
    %v4879 = vunpack.c.h.b16 %v2474
    %v4880 = vunpack.c.l.b16 %v2475
    %v4881 = vunpack.c.h.b16 %v2475
    %v4882 = vunpack.c.l.b16 %v2476
    %v4883 = vunpack.c.h.b16 %v2476
    %v4884 = vunpack.c.l.b16 %v2477
    %v4885 = vunpack.c.h.b16 %v2477
    %v4886 = vunpack.c.l.b16 %v2478
    %v4887 = vunpack.c.h.b16 %v2478
    %v4888 = vunpack.c.l.b16 %v2479
    %v4889 = vunpack.c.h.b16 %v2479
    %v4890 = vunpack.c.l.b16 %v2480
    %v4891 = vunpack.c.h.b16 %v2480
    %v4892 = vunpack.c.l.b16 %v2481
    %v4893 = vunpack.c.h.b16 %v2481
    %v4894 = vunpack.c.l.b16 %v2482
    %v4895 = vunpack.c.h.b16 %v2482
    %v4896 = vunpack.c.l.b16 %v2483
    %v4897 = vunpack.c.h.b16 %v2483
    %v4898 = vunpack.c.l.b16 %v2484
    %v4899 = vunpack.c.h.b16 %v2484
    %v4900 = vunpack.c.l.b16 %v2485
    %v4901 = vunpack.c.h.b16 %v2485
    %v4902 = vunpack.c.l.b16 %v2486
    %v4903 = vunpack.c.h.b16 %v2486
    %v4904 = vunpack.c.l.b16 %v2487
    %v4905 = vunpack.c.h.b16 %v2487
    %v4906 = vunpack.c.l.b16 %v2488
    %v4907 = vunpack.c.h.b16 %v2488
    %v4908 = vunpack.c.l.b16 %v2489
    %v4909 = vunpack.c.h.b16 %v2489
    %v4910 = vunpack.c.l.b16 %v2490
    %v4911 = vunpack.c.h.b16 %v2490
    %v4912 = vunpack.c.l.b16 %v2491
    %v4913 = vunpack.c.h.b16 %v2491
    %v4914 = vunpack.c.l.b16 %v2492
    %v4915 = vunpack.c.h.b16 %v2492
    %v4916 = vunpack.c.l.b16 %v2493
    %v4917 = vunpack.c.h.b16 %v2493
    %v4918 = vunpack.c.l.b16 %v2494
    %v4919 = vunpack.c.h.b16 %v2494
    %v4920 = vunpack.c.l.b16 %v2495
    %v4921 = vunpack.c.h.b16 %v2495
    %v4922 = vunpack.c.l.b16 %v2496
    %v4923 = vunpack.c.h.b16 %v2496
    %v4924 = vunpack.c.l.b16 %v2497
    %v4925 = vunpack.c.h.b16 %v2497
    %v4926 = vunpack.c.l.b16 %v2498
    %v4927 = vunpack.c.h.b16 %v2498
    %v4928 = vunpack.c.l.b16 %v2499
    %v4929 = vunpack.c.h.b16 %v2499
    %v4930 = vunpack.c.l.b16 %v2500
    %v4931 = vunpack.c.h.b16 %v2500
    %v4932 = vunpack.c.l.b16 %v2501
    %v4933 = vunpack.c.h.b16 %v2501
    %v4934 = vunpack.c.l.b16 %v2502
    %v4935 = vunpack.c.h.b16 %v2502
    %v4936 = vunpack.c.l.b16 %v2503
    %v4937 = vunpack.c.h.b16 %v2503
    %v4938 = vunpack.c.l.b16 %v2504
    %v4939 = vunpack.c.h.b16 %v2504
    %v4940 = vunpack.c.l.b16 %v2505
    %v4941 = vunpack.c.h.b16 %v2505
    %v4942 = vunpack.c.l.b16 %v2506
    %v4943 = vunpack.c.h.b16 %v2506
    %v4944 = vunpack.c.l.b16 %v2507
    %v4945 = vunpack.c.h.b16 %v2507
    %v4946 = vunpack.c.l.b16 %v2508
    %v4947 = vunpack.c.h.b16 %v2508
    %v4948 = vunpack.c.l.b16 %v2509
    %v4949 = vunpack.c.h.b16 %v2509
    %v4950 = vunpack.c.l.b16 %v2510
    %v4951 = vunpack.c.h.b16 %v2510
    %v4952 = vunpack.c.l.b16 %v2511
    %v4953 = vunpack.c.h.b16 %v2511
    %v4954 = vunpack.c.l.b16 %v2512
    %v4955 = vunpack.c.h.b16 %v2512
    %v4956 = vunpack.c.l.b16 %v2513
    %v4957 = vunpack.c.h.b16 %v2513
    %v4958 = vunpack.c.l.b16 %v2514
    %v4959 = vunpack.c.h.b16 %v2514
    %v4960 = vunpack.c.l.b16 %v2515
    %v4961 = vunpack.c.h.b16 %v2515
    %v4962 = vunpack.c.l.b16 %v2516
    %v4963 = vunpack.c.h.b16 %v2516
    %v4964 = vunpack.c.l.b16 %v2517
    %v4965 = vunpack.c.h.b16 %v2517
    %v4966 = vunpack.c.l.b16 %v2518
    %v4967 = vunpack.c.h.b16 %v2518
    %v4968 = vunpack.c.l.b16 %v2519
    %v4969 = vunpack.c.h.b16 %v2519
    %v4970 = vunpack.c.l.b16 %v2520
    %v4971 = vunpack.c.h.b16 %v2520
    %v4972 = vunpack.c.l.b16 %v2521
    %v4973 = vunpack.c.h.b16 %v2521
    %v4974 = vunpack.c.l.b16 %v2522
    %v4975 = vunpack.c.h.b16 %v2522
    %v4976 = vunpack.c.l.b16 %v2523
    %v4977 = vunpack.c.h.b16 %v2523
    %v4978 = vunpack.c.l.b16 %v2524
    %v4979 = vunpack.c.h.b16 %v2524
    %v4980 = vunpack.c.l.b16 %v2525
    %v4981 = vunpack.c.h.b16 %v2525
    %v4982 = vunpack.c.l.b16 %v2526
    %v4983 = vunpack.c.h.b16 %v2526
    %v4984 = vunpack.c.l.b16 %v2527
    %v4985 = vunpack.c.h.b16 %v2527
    %v4986 = vunpack.c.l.b16 %v2528
    %v4987 = vunpack.c.h.b16 %v2528
    %v4988 = vunpack.c.l.b16 %v2529
    %v4989 = vunpack.c.h.b16 %v2529
    %v4990 = vunpack.c.l.b16 %v2530
    %v4991 = vunpack.c.h.b16 %v2530
    %v4992 = vunpack.c.l.b16 %v2531
    %v4993 = vunpack.c.h.b16 %v2531
    %v4994 = vunpack.c.l.b16 %v2532
    %v4995 = vunpack.c.h.b16 %v2532
    %v4996 = vunpack.c.l.b16 %v2533
    %v4997 = vunpack.c.h.b16 %v2533
    %v4998 = vunpack.c.l.b16 %v2534
    %v4999 = vunpack.c.h.b16 %v2534
    %v5000 = vunpack.c.l.b16 %v2535
    %v5001 = vunpack.c.h.b16 %v2535
    %v5002 = vunpack.c.l.b16 %v2536
    %v5003 = vunpack.c.h.b16 %v2536
    %v5004 = vunpack.c.l.b16 %v2537
    %v5005 = vunpack.c.h.b16 %v2537
    %v5006 = vunpack.c.l.b16 %v2538
    %v5007 = vunpack.c.h.b16 %v2538
    %v5008 = vunpack.c.l.b16 %v2539
    %v5009 = vunpack.c.h.b16 %v2539
    %v5010 = vunpack.c.l.b16 %v2540
    %v5011 = vunpack.c.h.b16 %v2540
    %v5012 = vunpack.c.l.b16 %v2541
    %v5013 = vunpack.c.h.b16 %v2541
    %v5014 = vunpack.c.l.b16 %v2542
    %v5015 = vunpack.c.h.b16 %v2542
    %v5016 = vunpack.c.l.b16 %v2543
    %v5017 = vunpack.c.h.b16 %v2543
    %v5018 = vunpack.c.l.b16 %v2544
    %v5019 = vunpack.c.h.b16 %v2544
    %v5020 = vunpack.c.l.b16 %v2545
    %v5021 = vunpack.c.h.b16 %v2545
    %v5022 = vunpack.c.l.b16 %v2546
    %v5023 = vunpack.c.h.b16 %v2546
    %v5024 = vunpack.c.l.b16 %v2547
    %v5025 = vunpack.c.h.b16 %v2547
    %v5026 = vunpack.c.l.b16 %v2548
    %v5027 = vunpack.c.h.b16 %v2548
    %v5028 = vunpack.c.l.b16 %v2549
    %v5029 = vunpack.c.h.b16 %v2549
    %v5030 = vunpack.c.l.b16 %v2550
    %v5031 = vunpack.c.h.b16 %v2550
    %v5032 = vunpack.c.l.b16 %v2551
    %v5033 = vunpack.c.h.b16 %v2551
    %v5034 = vunpack.c.l.b16 %v2552
    %v5035 = vunpack.c.h.b16 %v2552
    %v5036 = vunpack.c.l.b16 %v2553
    %v5037 = vunpack.c.h.b16 %v2553
    %v5038 = vunpack.c.l.b16 %v2554
    %v5039 = vunpack.c.h.b16 %v2554
    %v5040 = vunpack.c.l.b16 %v2555
    %v5041 = vunpack.c.h.b16 %v2555
    %v5042 = vunpack.c.l.b16 %v2556
    %v5043 = vunpack.c.h.b16 %v2556
    %v5044 = vunpack.c.l.b16 %v2557
    %v5045 = vunpack.c.h.b16 %v2557
    %v5046 = vunpack.c.l.b16 %v2558
    %v5047 = vunpack.c.h.b16 %v2558
    %v5048 = vunpack.c.l.b16 %v2559
    %v5049 = vunpack.c.h.b16 %v2559
    %v5050 = vunpack.c.l.b16 %v2560
    %v5051 = vunpack.c.h.b16 %v2560
    %v5052 = vunpack.c.l.b16 %v2561
    %v5053 = vunpack.c.h.b16 %v2561
    %v5054 = vunpack.c.l.b16 %v2562
    %v5055 = vunpack.c.h.b16 %v2562
    %v5056 = vunpack.c.l.b16 %v2563
    %v5057 = vunpack.c.h.b16 %v2563
    %v5058 = vunpack.c.l.b16 %v2564
    %v5059 = vunpack.c.h.b16 %v2564
    %v5060 = vunpack.c.l.b16 %v2565
    %v5061 = vunpack.c.h.b16 %v2565
    %v5062 = vunpack.c.l.b16 %v2566
    %v5063 = vunpack.c.h.b16 %v2566
    %v5064 = vunpack.c.l.b16 %v2567
    %v5065 = vunpack.c.h.b16 %v2567
    %v5066 = vunpack.c.l.b16 %v2568
    %v5067 = vunpack.c.h.b16 %v2568
    %v5068 = vunpack.c.l.b16 %v2569
    %v5069 = vunpack.c.h.b16 %v2569
    %v5070 = vunpack.c.l.b16 %v2570
    %v5071 = vunpack.c.h.b16 %v2570
    %v5072 = vunpack.c.l.b16 %v2571
    %v5073 = vunpack.c.h.b16 %v2571
    %v5074 = vunpack.c.l.b16 %v2572
    %v5075 = vunpack.c.h.b16 %v2572
    %v5076 = vunpack.c.l.b16 %v2573
    %v5077 = vunpack.c.h.b16 %v2573
    %v5078 = vunpack.c.l.b16 %v2574
    %v5079 = vunpack.c.h.b16 %v2574
    %v5080 = vunpack.c.l.b16 %v2575
    %v5081 = vunpack.c.h.b16 %v2575
    %v5082 = vunpack.c.l.b16 %v2576
    %v5083 = vunpack.c.h.b16 %v2576
    %v5084 = vunpack.c.l.b16 %v2577
    %v5085 = vunpack.c.h.b16 %v2577
    %v5086 = vunpack.c.l.b16 %v2578
    %v5087 = vunpack.c.h.b16 %v2578
    %v5088 = vunpack.c.l.b16 %v2579
    %v5089 = vunpack.c.h.b16 %v2579
    %v5090 = vunpack.c.l.b16 %v2580
    %v5091 = vunpack.c.h.b16 %v2580
    %v5092 = vunpack.c.l.b16 %v2581
    %v5093 = vunpack.c.h.b16 %v2581
    %v5094 = vunpack.c.l.b16 %v2582
    %v5095 = vunpack.c.h.b16 %v2582
    %v5096 = vunpack.c.l.b16 %v2583
    %v5097 = vunpack.c.h.b16 %v2583
    %v5098 = vunpack.c.l.b16 %v2584
    %v5099 = vunpack.c.h.b16 %v2584
    %v5100 = vunpack.c.l.b16 %v2585
    %v5101 = vunpack.c.h.b16 %v2585
    %v5102 = vunpack.c.l.b16 %v2586
    %v5103 = vunpack.c.h.b16 %v2586
    %v5104 = vunpack.c.l.b16 %v2587
    %v5105 = vunpack.c.h.b16 %v2587
    %v5106 = vunpack.c.l.b16 %v2588
    %v5107 = vunpack.c.h.b16 %v2588
    %v5108 = vunpack.c.l.b16 %v2589
    %v5109 = vunpack.c.h.b16 %v2589
    %v5110 = vunpack.c.l.b16 %v2590
    %v5111 = vunpack.c.h.b16 %v2590
    %v5112 = vunpack.c.l.b16 %v2591
    %v5113 = vunpack.c.h.b16 %v2591
    %v5114 = vunpack.c.l.b16 %v2592
    %v5115 = vunpack.c.h.b16 %v2592
    %v5116 = vunpack.c.l.b16 %v2593
    %v5117 = vunpack.c.h.b16 %v2593
    %v5118 = vunpack.c.l.b16 %v2594
    %v5119 = vunpack.c.h.b16 %v2594
    %v5120 = vunpack.c.l.b16 %v2595
    %v5121 = vunpack.c.h.b16 %v2595
    %v5122 = vunpack.c.l.b16 %v2596
    %v5123 = vunpack.c.h.b16 %v2596
    %v5124 = vunpack.c.l.b16 %v2597
    %v5125 = vunpack.c.h.b16 %v2597
    %v5126 = vunpack.c.l.b16 %v2598
    %v5127 = vunpack.c.h.b16 %v2598
    %v5128 = vunpack.c.l.b16 %v2599
    %v5129 = vunpack.c.h.b16 %v2599
    %v5130 = vunpack.c.l.b16 %v2600
    %v5131 = vunpack.c.h.b16 %v2600
    %v5132 = vunpack.c.l.b16 %v2601
    %v5133 = vunpack.c.h.b16 %v2601
    %v5134 = vunpack.c.l.b16 %v2602
    %v5135 = vunpack.c.h.b16 %v2602
    %v5136 = vunpack.c.l.b16 %v2603
    %v5137 = vunpack.c.h.b16 %v2603
    %v5138 = vunpack.c.l.b16 %v2604
    %v5139 = vunpack.c.h.b16 %v2604
    %v5140 = vunpack.c.l.b16 %v2605
    %v5141 = vunpack.c.h.b16 %v2605
    %v5142 = vunpack.c.l.b16 %v2606
    %v5143 = vunpack.c.h.b16 %v2606
    %v5144 = vunpack.c.l.b16 %v2607
    %v5145 = vunpack.c.h.b16 %v2607
    %v5146 = vunpack.c.l.b16 %v2608
    %v5147 = vunpack.c.h.b16 %v2608
    %v5148 = vunpack.c.l.b16 %v2609
    %v5149 = vunpack.c.h.b16 %v2609
    %v5150 = vunpack.c.l.b16 %v2610
    %v5151 = vunpack.c.h.b16 %v2610
    %v5152 = vunpack.c.l.b16 %v2611
    %v5153 = vunpack.c.h.b16 %v2611
    %v5154 = vunpack.c.l.b16 %v2612
    %v5155 = vunpack.c.h.b16 %v2612
    %v5156 = vunpack.c.l.b16 %v2613
    %v5157 = vunpack.c.h.b16 %v2613
    %v5158 = vunpack.c.l.b16 %v2614
    %v5159 = vunpack.c.h.b16 %v2614
    %v5160 = vunpack.c.l.b16 %v2615
    %v5161 = vunpack.c.h.b16 %v2615
    %v5162 = vunpack.c.l.b16 %v2616
    %v5163 = vunpack.c.h.b16 %v2616
    %v5164 = vunpack.c.l.b16 %v2617
    %v5165 = vunpack.c.h.b16 %v2617
    %v5166 = vunpack.c.l.b16 %v2618
    %v5167 = vunpack.c.h.b16 %v2618
    %v5168 = vunpack.c.l.b16 %v2619
    %v5169 = vunpack.c.h.b16 %v2619
    %v5170 = vunpack.c.l.b16 %v2620
    %v5171 = vunpack.c.h.b16 %v2620
    %v5172 = vunpack.c.l.b16 %v2621
    %v5173 = vunpack.c.h.b16 %v2621
    %v5174 = vunpack.c.l.b16 %v2622
    %v5175 = vunpack.c.h.b16 %v2622
    %v5176 = vunpack.c.l.b16 %v2623
    %v5177 = vunpack.c.h.b16 %v2623
    %v5178 = vunpack.c.l.b16 %v2624
    %v5179 = vunpack.c.h.b16 %v2624
    %v5180 = vunpack.c.l.b16 %v2625
    %v5181 = vunpack.c.h.b16 %v2625
    %v5182 = vunpack.c.l.b16 %v2626
    %v5183 = vunpack.c.h.b16 %v2626
    %v5184 = vunpack.c.l.b16 %v2627
    %v5185 = vunpack.c.h.b16 %v2627
    %v5186 = vunpack.c.l.b16 %v2628
    %v5187 = vunpack.c.h.b16 %v2628
    %v5188 = vunpack.c.l.b16 %v2629
    %v5189 = vunpack.c.h.b16 %v2629
    %v5190 = vunpack.c.l.b16 %v2630
    %v5191 = vunpack.c.h.b16 %v2630
    %v5192 = vunpack.c.l.b16 %v2631
    %v5193 = vunpack.c.h.b16 %v2631
    %v5194 = vunpack.c.l.b16 %v2632
    %v5195 = vunpack.c.h.b16 %v2632
    %v5196 = vunpack.c.l.b16 %v2633
    %v5197 = vunpack.c.h.b16 %v2633
    %v5198 = vunpack.c.l.b16 %v2634
    %v5199 = vunpack.c.h.b16 %v2634
    %v5200 = vunpack.c.l.b16 %v2635
    %v5201 = vunpack.c.h.b16 %v2635
    %v5202 = vunpack.c.l.b16 %v2636
    %v5203 = vunpack.c.h.b16 %v2636
    %v5204 = vunpack.c.l.b16 %v2637
    %v5205 = vunpack.c.h.b16 %v2637
    %v5206 = vunpack.c.l.b16 %v2638
    %v5207 = vunpack.c.h.b16 %v2638
    %v5208 = vunpack.c.l.b16 %v2639
    %v5209 = vunpack.c.h.b16 %v2639
    %v5210 = vunpack.c.l.b16 %v2640
    %v5211 = vunpack.c.h.b16 %v2640
    %v5212 = vunpack.c.l.b16 %v2641
    %v5213 = vunpack.c.h.b16 %v2641
    %v5214 = vunpack.c.l.b16 %v2642
    %v5215 = vunpack.c.h.b16 %v2642
    %v5216 = vunpack.c.l.b16 %v2643
    %v5217 = vunpack.c.h.b16 %v2643
    %v5218 = vunpack.c.l.b16 %v2644
    %v5219 = vunpack.c.h.b16 %v2644
    %v5220 = vunpack.c.l.b16 %v2645
    %v5221 = vunpack.c.h.b16 %v2645
    %v5222 = vunpack.c.l.b16 %v2646
    %v5223 = vunpack.c.h.b16 %v2646
    %v5224 = vunpack.c.l.b16 %v2647
    %v5225 = vunpack.c.h.b16 %v2647
    %v5226 = vunpack.c.l.b16 %v2648
    %v5227 = vunpack.c.h.b16 %v2648
    %v5228 = vunpack.c.l.b16 %v2649
    %v5229 = vunpack.c.h.b16 %v2649
    %v5230 = vunpack.c.l.b16 %v2650
    %v5231 = vunpack.c.h.b16 %v2650
    %v5232 = vunpack.c.l.b16 %v2651
    %v5233 = vunpack.c.h.b16 %v2651
    %v5234 = vunpack.c.l.b16 %v2652
    %v5235 = vunpack.c.h.b16 %v2652
    %v5236 = vunpack.c.l.b16 %v2653
    %v5237 = vunpack.c.h.b16 %v2653
    %v5238 = vunpack.c.l.b16 %v2654
    %v5239 = vunpack.c.h.b16 %v2654
    %v5240 = vunpack.c.l.b16 %v2655
    %v5241 = vunpack.c.h.b16 %v2655
    %v5242 = vunpack.c.l.b16 %v2656
    %v5243 = vunpack.c.h.b16 %v2656
    %v5244 = vunpack.c.l.b16 %v2657
    %v5245 = vunpack.c.h.b16 %v2657
    %v5246 = vunpack.c.l.b16 %v2658
    %v5247 = vunpack.c.h.b16 %v2658
    %v5248 = vunpack.c.l.b16 %v2659
    %v5249 = vunpack.c.h.b16 %v2659
    %v5250 = vunpack.c.l.b16 %v2660
    %v5251 = vunpack.c.h.b16 %v2660
    %v5252 = vunpack.c.l.b16 %v2661
    %v5253 = vunpack.c.h.b16 %v2661
    %v5254 = vunpack.c.l.b16 %v2662
    %v5255 = vunpack.c.h.b16 %v2662
    %v5256 = vunpack.c.l.b16 %v2663
    %v5257 = vunpack.c.h.b16 %v2663
    %v5258 = vunpack.c.l.b16 %v2664
    %v5259 = vunpack.c.h.b16 %v2664
    %v5260 = vunpack.c.l.b16 %v2665
    %v5261 = vunpack.c.h.b16 %v2665
    %v5262 = vunpack.c.l.b16 %v2666
    %v5263 = vunpack.c.h.b16 %v2666
    %v5264 = vunpack.c.l.b16 %v2667
    %v5265 = vunpack.c.h.b16 %v2667
    %v5266 = vunpack.c.l.b16 %v2668
    %v5267 = vunpack.c.h.b16 %v2668
    %v5268 = vunpack.c.l.b16 %v2669
    %v5269 = vunpack.c.h.b16 %v2669
    %v5270 = vunpack.c.l.b16 %v2670
    %v5271 = vunpack.c.h.b16 %v2670
    %v5272 = vunpack.c.l.b16 %v2671
    %v5273 = vunpack.c.h.b16 %v2671
    %v5274 = vunpack.c.l.b16 %v2672
    %v5275 = vunpack.c.h.b16 %v2672
    %v5276 = vunpack.c.l.b16 %v2673
    %v5277 = vunpack.c.h.b16 %v2673
    %v5278 = vunpack.c.l.b16 %v2674
    %v5279 = vunpack.c.h.b16 %v2674
    %v5280 = vunpack.c.l.b16 %v2675
    %v5281 = vunpack.c.h.b16 %v2675
    %v5282 = vunpack.c.l.b16 %v2676
    %v5283 = vunpack.c.h.b16 %v2676
    %v5284 = vunpack.c.l.b16 %v2677
    %v5285 = vunpack.c.h.b16 %v2677
    %v5286 = vunpack.c.l.b16 %v2678
    %v5287 = vunpack.c.h.b16 %v2678
    %v5288 = vunpack.c.l.b16 %v2679
    %v5289 = vunpack.c.h.b16 %v2679
    %v5290 = vunpack.c.l.b16 %v2680
    %v5291 = vunpack.c.h.b16 %v2680
    %v5292 = vunpack.c.l.b16 %v2681
    %v5293 = vunpack.c.h.b16 %v2681
    %v5294 = vunpack.c.l.b16 %v2682
    %v5295 = vunpack.c.h.b16 %v2682
    %v5296 = vunpack.c.l.b16 %v2683
    %v5297 = vunpack.c.h.b16 %v2683
    %v5298 = vunpack.c.l.b16 %v2684
    %v5299 = vunpack.c.h.b16 %v2684
    %v5300 = vunpack.c.l.b16 %v2685
    %v5301 = vunpack.c.h.b16 %v2685
    %v5302 = vunpack.c.l.b16 %v2686
    %v5303 = vunpack.c.h.b16 %v2686
    %v5304 = vunpack.c.l.b16 %v2687
    %v5305 = vunpack.c.h.b16 %v2687
    %v5306 = vunpack.c.l.b16 %v2688
    %v5307 = vunpack.c.h.b16 %v2688
    %v5308 = vunpack.c.l.b16 %v2689
    %v5309 = vunpack.c.h.b16 %v2689
    %v5310 = vunpack.c.l.b16 %v2690
    %v5311 = vunpack.c.h.b16 %v2690
    %v5312 = vunpack.c.l.b16 %v2691
    %v5313 = vunpack.c.h.b16 %v2691
    %v5314 = vunpack.c.l.b16 %v2692
    %v5315 = vunpack.c.h.b16 %v2692
    %v5316 = vunpack.c.l.b16 %v2693
    %v5317 = vunpack.c.h.b16 %v2693
    %v5318 = vunpack.c.l.b16 %v2694
    %v5319 = vunpack.c.h.b16 %v2694
    %v5320 = vunpack.c.l.b16 %v2695
    %v5321 = vunpack.c.h.b16 %v2695
    %v5322 = vunpack.c.l.b16 %v2696
    %v5323 = vunpack.c.h.b16 %v2696
    %v5324 = vunpack.c.l.b16 %v2697
    %v5325 = vunpack.c.h.b16 %v2697
    %v5326 = vunpack.c.l.b16 %v2698
    %v5327 = vunpack.c.h.b16 %v2698
    %v5328 = vunpack.c.l.b16 %v2699
    %v5329 = vunpack.c.h.b16 %v2699
    %v5330 = vunpack.c.l.b16 %v2700
    %v5331 = vunpack.c.h.b16 %v2700
    %v5332 = vunpack.c.l.b16 %v2701
    %v5333 = vunpack.c.h.b16 %v2701
    %v5334 = vunpack.c.l.b16 %v2702
    %v5335 = vunpack.c.h.b16 %v2702
    %v5336 = vunpack.c.l.b16 %v2703
    %v5337 = vunpack.c.h.b16 %v2703
    %v5338 = vunpack.c.l.b16 %v2704
    %v5339 = vunpack.c.h.b16 %v2704
    %v5340 = vunpack.c.l.b16 %v2705
    %v5341 = vunpack.c.h.b16 %v2705
    %v5342 = vunpack.c.l.b16 %v2706
    %v5343 = vunpack.c.h.b16 %v2706
    %v5344 = vunpack.c.l.b16 %v2707
    %v5345 = vunpack.c.h.b16 %v2707
    %v5346 = vunpack.c.l.b16 %v2708
    %v5347 = vunpack.c.h.b16 %v2708
    %v5348 = vunpack.c.l.b16 %v2709
    %v5349 = vunpack.c.h.b16 %v2709
    %v5350 = vunpack.c.l.b16 %v2710
    %v5351 = vunpack.c.h.b16 %v2710
    %v5352 = vunpack.c.l.b16 %v2711
    %v5353 = vunpack.c.h.b16 %v2711
    %v5354 = vunpack.c.l.b16 %v2712
    %v5355 = vunpack.c.h.b16 %v2712
    %v5356 = vunpack.c.l.b16 %v2713
    %v5357 = vunpack.c.h.b16 %v2713
    %v5358 = vunpack.c.l.b16 %v2714
    %v5359 = vunpack.c.h.b16 %v2714
    %v5360 = vunpack.c.l.b16 %v2715
    %v5361 = vunpack.c.h.b16 %v2715
    %v5362 = vunpack.c.l.b16 %v2716
    %v5363 = vunpack.c.h.b16 %v2716
    %v5364 = vunpack.c.l.b16 %v2717
    %v5365 = vunpack.c.h.b16 %v2717
    %v5366 = vunpack.c.l.b16 %v2718
    %v5367 = vunpack.c.h.b16 %v2718
    %v5368 = vunpack.c.l.b16 %v2719
    %v5369 = vunpack.c.h.b16 %v2719
    %v5370 = vunpack.c.l.b16 %v2720
    %v5371 = vunpack.c.h.b16 %v2720
    %v5372 = vunpack.c.l.b16 %v2721
    %v5373 = vunpack.c.h.b16 %v2721
    %v5374 = vunpack.c.l.b16 %v2722
    %v5375 = vunpack.c.h.b16 %v2722
    %v5376 = vunpack.c.l.b16 %v2723
    %v5377 = vunpack.c.h.b16 %v2723
    %v5378 = vunpack.c.l.b16 %v2724
    %v5379 = vunpack.c.h.b16 %v2724
    %v5380 = vunpack.c.l.b16 %v2725
    %v5381 = vunpack.c.h.b16 %v2725
    %v5382 = vunpack.c.l.b16 %v2726
    %v5383 = vunpack.c.h.b16 %v2726
    %v5384 = vunpack.c.l.b16 %v2727
    %v5385 = vunpack.c.h.b16 %v2727
    %v5386 = vunpack.c.l.b16 %v2728
    %v5387 = vunpack.c.h.b16 %v2728
    %v5388 = vunpack.c.l.b16 %v2729
    %v5389 = vunpack.c.h.b16 %v2729
    %v5390 = vunpack.c.l.b16 %v2730
    %v5391 = vunpack.c.h.b16 %v2730
    %v5392 = vunpack.c.l.b16 %v2731
    %v5393 = vunpack.c.h.b16 %v2731
    %v5394 = vunpack.c.l.b16 %v2732
    %v5395 = vunpack.c.h.b16 %v2732
    %v5396 = vunpack.c.l.b16 %v2733
    %v5397 = vunpack.c.h.b16 %v2733
    %v5398 = vunpack.c.l.b16 %v2734
    %v5399 = vunpack.c.h.b16 %v2734
    %v5400 = vunpack.c.l.b16 %v2735
    %v5401 = vunpack.c.h.b16 %v2735
    %v5402 = vunpack.c.l.b16 %v2736
    %v5403 = vunpack.c.h.b16 %v2736
    %v5404 = vunpack.c.l.b16 %v2737
    %v5405 = vunpack.c.h.b16 %v2737
    %v5406 = vunpack.c.l.b16 %v2738
    %v5407 = vunpack.c.h.b16 %v2738
    %v5408 = vunpack.c.l.b16 %v2739
    %v5409 = vunpack.c.h.b16 %v2739
    %v5410 = vunpack.c.l.b16 %v2740
    %v5411 = vunpack.c.h.b16 %v2740
    %v5412 = vunpack.c.l.b16 %v2741
    %v5413 = vunpack.c.h.b16 %v2741
    %v5414 = vunpack.c.l.b16 %v2742
    %v5415 = vunpack.c.h.b16 %v2742
    %v5416 = vunpack.c.l.b16 %v2743
    %v5417 = vunpack.c.h.b16 %v2743
    %v5418 = vunpack.c.l.b16 %v2744
    %v5419 = vunpack.c.h.b16 %v2744
    %v5420 = vunpack.c.l.b16 %v2745
    %v5421 = vunpack.c.h.b16 %v2745
    %v5422 = vunpack.c.l.b16 %v2746
    %v5423 = vunpack.c.h.b16 %v2746
    %v5424 = vunpack.c.l.b16 %v2747
    %v5425 = vunpack.c.h.b16 %v2747
    %v5426 = vunpack.c.l.b16 %v2748
    %v5427 = vunpack.c.h.b16 %v2748
    %v5428 = vunpack.c.l.b16 %v2749
    %v5429 = vunpack.c.h.b16 %v2749
    %v5430 = vunpack.c.l.b16 %v2750
    %v5431 = vunpack.c.h.b16 %v2750
    %v5432 = vunpack.c.l.b16 %v2751
    %v5433 = vunpack.c.h.b16 %v2751
    %v5434 = vunpack.c.l.b16 %v2752
    %v5435 = vunpack.c.h.b16 %v2752
    %v5436 = vunpack.c.l.b16 %v2753
    %v5437 = vunpack.c.h.b16 %v2753
    %v5438 = vunpack.c.l.b16 %v2754
    %v5439 = vunpack.c.h.b16 %v2754
    %v5440 = vunpack.c.l.b16 %v2755
    %v5441 = vunpack.c.h.b16 %v2755
    %v5442 = vunpack.c.l.b16 %v2756
    %v5443 = vunpack.c.h.b16 %v2756
    %v5444 = vunpack.c.l.b16 %v2757
    %v5445 = vunpack.c.h.b16 %v2757
    %v5446 = vunpack.c.l.b16 %v2758
    %v5447 = vunpack.c.h.b16 %v2758
    %v5448 = vunpack.c.l.b16 %v2759
    %v5449 = vunpack.c.h.b16 %v2759
    %v5450 = vunpack.c.l.b16 %v2760
    %v5451 = vunpack.c.h.b16 %v2760
    %v5452 = vunpack.c.l.b16 %v2761
    %v5453 = vunpack.c.h.b16 %v2761
    %v5454 = vunpack.c.l.b16 %v2762
    %v5455 = vunpack.c.h.b16 %v2762
    %v5456 = vunpack.c.l.b16 %v2763
    %v5457 = vunpack.c.h.b16 %v2763
    %v5458 = vunpack.c.l.b16 %v2764
    %v5459 = vunpack.c.h.b16 %v2764
    %v5460 = vunpack.c.l.b16 %v2765
    %v5461 = vunpack.c.h.b16 %v2765
    %v5462 = vunpack.c.l.b16 %v2766
    %v5463 = vunpack.c.h.b16 %v2766
    %v5464 = vunpack.c.l.b16 %v2767
    %v5465 = vunpack.c.h.b16 %v2767
    %v5466 = vunpack.c.l.b16 %v2768
    %v5467 = vunpack.c.h.b16 %v2768
    %v5468 = vunpack.c.l.b16 %v2769
    %v5469 = vunpack.c.h.b16 %v2769
    %v5470 = vunpack.c.l.b16 %v2770
    %v5471 = vunpack.c.h.b16 %v2770
    %v5472 = vunpack.c.l.b16 %v2771
    %v5473 = vunpack.c.h.b16 %v2771
    %v5474 = vunpack.c.l.b16 %v2772
    %v5475 = vunpack.c.h.b16 %v2772
    %v5476 = vunpack.c.l.b16 %v2773
    %v5477 = vunpack.c.h.b16 %v2773
    %v5478 = vunpack.c.l.b16 %v2774
    %v5479 = vunpack.c.h.b16 %v2774
    %v5480 = vunpack.c.l.b16 %v2775
    %v5481 = vunpack.c.h.b16 %v2775
    %v5482 = vunpack.c.l.b16 %v2776
    %v5483 = vunpack.c.h.b16 %v2776
    %v5484 = vunpack.c.l.b16 %v2777
    %v5485 = vunpack.c.h.b16 %v2777
    %v5486 = vunpack.c.l.b16 %v2778
    %v5487 = vunpack.c.h.b16 %v2778
    %v5488 = vunpack.c.l.b16 %v2779
    %v5489 = vunpack.c.h.b16 %v2779
    %v5490 = vunpack.c.l.b16 %v2780
    %v5491 = vunpack.c.h.b16 %v2780
    %v5492 = vunpack.c.l.b16 %v2781
    %v5493 = vunpack.c.h.b16 %v2781
    %v5494 = vunpack.c.l.b16 %v2782
    %v5495 = vunpack.c.h.b16 %v2782
    %v5496 = vunpack.c.l.b16 %v2783
    %v5497 = vunpack.c.h.b16 %v2783
    %v5498 = vunpack.c.l.b16 %v2784
    %v5499 = vunpack.c.h.b16 %v2784
    %v5500 = vunpack.c.l.b16 %v2785
    %v5501 = vunpack.c.h.b16 %v2785
    %v5502 = vunpack.c.l.b16 %v2786
    %v5503 = vunpack.c.h.b16 %v2786
    %v5504 = vunpack.c.l.b16 %v2787
    %v5505 = vunpack.c.h.b16 %v2787
    %v5506 = vunpack.c.l.b16 %v2788
    %v5507 = vunpack.c.h.b16 %v2788
    %v5508 = vunpack.c.l.b16 %v2789
    %v5509 = vunpack.c.h.b16 %v2789
    %v5510 = vunpack.c.l.b16 %v2790
    %v5511 = vunpack.c.h.b16 %v2790
    %v5512 = vunpack.c.l.b16 %v2791
    %v5513 = vunpack.c.h.b16 %v2791
    %v5514 = vunpack.c.l.b16 %v2792
    %v5515 = vunpack.c.h.b16 %v2792
    %v5516 = vunpack.c.l.b16 %v2793
    %v5517 = vunpack.c.h.b16 %v2793
    %v5518 = vunpack.c.l.b16 %v2794
    %v5519 = vunpack.c.h.b16 %v2794
    %v5520 = vunpack.c.l.b16 %v2795
    %v5521 = vunpack.c.h.b16 %v2795
    %v5522 = vunpack.c.l.b16 %v2796
    %v5523 = vunpack.c.h.b16 %v2796
    %v5524 = vunpack.c.l.b16 %v2797
    %v5525 = vunpack.c.h.b16 %v2797
    %v5526 = vunpack.c.l.b16 %v2798
    %v5527 = vunpack.c.h.b16 %v2798
    %v5528 = vunpack.c.l.b16 %v2799
    %v5529 = vunpack.c.h.b16 %v2799
    %v5530 = vunpack.c.l.b16 %v2800
    %v5531 = vunpack.c.h.b16 %v2800
    %v5532 = vunpack.c.l.b16 %v2801
    %v5533 = vunpack.c.h.b16 %v2801
    %v5534 = vunpack.c.l.b16 %v2802
    %v5535 = vunpack.c.h.b16 %v2802
    %v5536 = vunpack.c.l.b16 %v2803
    %v5537 = vunpack.c.h.b16 %v2803
    %v5538 = vunpack.c.l.b16 %v2804
    %v5539 = vunpack.c.h.b16 %v2804
    %v5540 = vunpack.c.l.b16 %v2805
    %v5541 = vunpack.c.h.b16 %v2805
    %v5542 = vunpack.c.l.b16 %v2806
    %v5543 = vunpack.c.h.b16 %v2806
    %v5544 = vunpack.c.l.b16 %v2807
    %v5545 = vunpack.c.h.b16 %v2807
    %v5546 = vunpack.c.l.b16 %v2808
    %v5547 = vunpack.c.h.b16 %v2808
    %v5548 = vunpack.c.l.b16 %v2809
    %v5549 = vunpack.c.h.b16 %v2809
    %v5550 = vunpack.c.l.b16 %v2810
    %v5551 = vunpack.c.h.b16 %v2810
    %v5552 = vunpack.c.l.b16 %v2811
    %v5553 = vunpack.c.h.b16 %v2811
    %v5554 = vunpack.c.l.b16 %v2812
    %v5555 = vunpack.c.h.b16 %v2812
    %v5556 = vunpack.c.l.b16 %v2813
    %v5557 = vunpack.c.h.b16 %v2813
    %v5558 = vunpack.c.l.b16 %v2814
    %v5559 = vunpack.c.h.b16 %v2814
    %v5560 = vunpack.c.l.b16 %v2815
    %v5561 = vunpack.c.h.b16 %v2815
    %v5562 = vunpack.c.l.b16 %v2816
    %v5563 = vunpack.c.h.b16 %v2816
    %v5564 = vunpack.c.l.b16 %v2817
    %v5565 = vunpack.c.h.b16 %v2817
    %v5566 = vunpack.c.l.b16 %v2818
    %v5567 = vunpack.c.h.b16 %v2818
    %v5568 = vunpack.c.l.b16 %v2819
    %v5569 = vunpack.c.h.b16 %v2819
    %v5570 = vunpack.c.l.b16 %v2820
    %v5571 = vunpack.c.h.b16 %v2820
    %v5572 = vunpack.c.l.b16 %v2821
    %v5573 = vunpack.c.h.b16 %v2821
    %v5574 = vunpack.c.l.b16 %v2822
    %v5575 = vunpack.c.h.b16 %v2822
    %v5576 = vunpack.c.l.b16 %v2823
    %v5577 = vunpack.c.h.b16 %v2823
    %v5578 = vunpack.c.l.b16 %v2824
    %v5579 = vunpack.c.h.b16 %v2824
    %v5580 = vunpack.c.l.b16 %v2825
    %v5581 = vunpack.c.h.b16 %v2825
    %v5582 = vunpack.c.l.b16 %v2826
    %v5583 = vunpack.c.h.b16 %v2826
    %v5584 = vunpack.c.l.b16 %v2827
    %v5585 = vunpack.c.h.b16 %v2827
    %v5586 = vunpack.c.l.b16 %v2828
    %v5587 = vunpack.c.h.b16 %v2828
    %v5588 = vunpack.c.l.b16 %v2829
    %v5589 = vunpack.c.h.b16 %v2829
    %v5590 = vunpack.c.l.b16 %v2830
    %v5591 = vunpack.c.h.b16 %v2830
    %v5592 = vunpack.c.l.b16 %v2831
    %v5593 = vunpack.c.h.b16 %v2831
    %v5594 = vunpack.c.l.b16 %v2832
    %v5595 = vunpack.c.h.b16 %v2832
    %v5596 = vunpack.c.l.b16 %v2833
    %v5597 = vunpack.c.h.b16 %v2833
    %v5598 = vunpack.c.l.b16 %v2834
    %v5599 = vunpack.c.h.b16 %v2834
    %v5600 = vunpack.c.l.b16 %v2835
    %v5601 = vunpack.c.h.b16 %v2835
    %v5602 = vunpack.c.l.b16 %v2836
    %v5603 = vunpack.c.h.b16 %v2836
    %v5604 = vunpack.c.l.b16 %v2837
    %v5605 = vunpack.c.h.b16 %v2837
    %v5606 = vunpack.c.l.b16 %v2838
    %v5607 = vunpack.c.h.b16 %v2838
    %v5608 = vunpack.c.l.b16 %v2839
    %v5609 = vunpack.c.h.b16 %v2839
    %v5610 = vunpack.c.l.b16 %v2840
    %v5611 = vunpack.c.h.b16 %v2840
    %v5612 = vunpack.c.l.b16 %v2841
    %v5613 = vunpack.c.h.b16 %v2841
    %v5614 = vunpack.c.l.b16 %v2842
    %v5615 = vunpack.c.h.b16 %v2842
    %v5616 = vunpack.c.l.b16 %v2843
    %v5617 = vunpack.c.h.b16 %v2843
    %v5618 = vunpack.c.l.b16 %v2844
    %v5619 = vunpack.c.h.b16 %v2844
    %v5620 = vunpack.c.l.b16 %v2845
    %v5621 = vunpack.c.h.b16 %v2845
    %v5622 = vunpack.c.l.b16 %v2846
    %v5623 = vunpack.c.h.b16 %v2846
    %v5624 = vunpack.c.l.b16 %v2847
    %v5625 = vunpack.c.h.b16 %v2847
    %v5626 = vunpack.c.l.b16 %v2848
    %v5627 = vunpack.c.h.b16 %v2848
    %v5628 = vunpack.c.l.b16 %v2849
    %v5629 = vunpack.c.h.b16 %v2849
    %v5630 = vunpack.c.l.b16 %v2850
    %v5631 = vunpack.c.h.b16 %v2850
    %v5632 = vunpack.c.l.b16 %v2851
    %v5633 = vunpack.c.h.b16 %v2851
    %v5634 = vunpack.c.l.b16 %v2852
    %v5635 = vunpack.c.h.b16 %v2852
    %v5636 = vunpack.c.l.b16 %v2853
    %v5637 = vunpack.c.h.b16 %v2853
    %v5638 = vunpack.c.l.b16 %v2854
    %v5639 = vunpack.c.h.b16 %v2854
    %v5640 = vunpack.c.l.b16 %v2855
    %v5641 = vunpack.c.h.b16 %v2855
    %v5642 = vunpack.c.l.b16 %v2856
    %v5643 = vunpack.c.h.b16 %v2856
    %v5644 = vunpack.c.l.b16 %v2857
    %v5645 = vunpack.c.h.b16 %v2857
    %v5646 = vunpack.c.l.b16 %v2858
    %v5647 = vunpack.c.h.b16 %v2858
    %v5648 = vunpack.c.l.b16 %v2859
    %v5649 = vunpack.c.h.b16 %v2859
    %v5650 = vunpack.c.l.b16 %v2860
    %v5651 = vunpack.c.h.b16 %v2860
    %v5652 = vunpack.c.l.b16 %v2861
    %v5653 = vunpack.c.h.b16 %v2861
    %v5654 = vunpack.c.l.b16 %v2862
    %v5655 = vunpack.c.h.b16 %v2862
    %v5656 = vunpack.c.l.b16 %v2863
    %v5657 = vunpack.c.h.b16 %v2863
    %v5658 = vunpack.c.l.b16 %v2864
    %v5659 = vunpack.c.h.b16 %v2864
    %v5660 = vunpack.c.l.b16 %v2865
    %v5661 = vunpack.c.h.b16 %v2865
    %v5662 = vunpack.c.l.b16 %v2866
    %v5663 = vunpack.c.h.b16 %v2866
    %v5664 = vunpack.c.l.b16 %v2867
    %v5665 = vunpack.c.h.b16 %v2867
    %v5666 = vunpack.c.l.b16 %v2868
    %v5667 = vunpack.c.h.b16 %v2868
    %v5668 = vunpack.c.l.b16 %v2869
    %v5669 = vunpack.c.h.b16 %v2869
    %v5670 = vunpack.c.l.b16 %v2870
    %v5671 = vunpack.c.h.b16 %v2870
    %v5672 = vunpack.c.l.b16 %v2871
    %v5673 = vunpack.c.h.b16 %v2871
    %v5674 = vunpack.c.l.b16 %v2872
    %v5675 = vunpack.c.h.b16 %v2872
    %v5676 = vunpack.c.l.b16 %v2873
    %v5677 = vunpack.c.h.b16 %v2873
    %v5678 = vunpack.c.l.b16 %v2874
    %v5679 = vunpack.c.h.b16 %v2874
    %v5680 = vunpack.c.l.b16 %v2875
    %v5681 = vunpack.c.h.b16 %v2875
    %v5682 = vunpack.c.l.b16 %v2876
    %v5683 = vunpack.c.h.b16 %v2876
    %v5684 = vunpack.c.l.b16 %v2877
    %v5685 = vunpack.c.h.b16 %v2877
    %v5686 = vunpack.c.l.b16 %v2878
    %v5687 = vunpack.c.h.b16 %v2878
    %v5688 = vunpack.c.l.b16 %v2879
    %v5689 = vunpack.c.h.b16 %v2879
    %v5690 = vunpack.c.l.b16 %v2880
    %v5691 = vunpack.c.h.b16 %v2880
    %v5692 = vunpack.c.l.b16 %v2881
    %v5693 = vunpack.c.h.b16 %v2881
    %v5694 = vunpack.c.l.b16 %v2882
    %v5695 = vunpack.c.h.b16 %v2882
    %v5696 = vunpack.c.l.b16 %v2883
    %v5697 = vunpack.c.h.b16 %v2883
    %v5698 = vunpack.c.l.b16 %v2884
    %v5699 = vunpack.c.h.b16 %v2884
    %v5700 = vunpack.c.l.b16 %v2885
    %v5701 = vunpack.c.h.b16 %v2885
    %v5702 = vunpack.c.l.b16 %v2886
    %v5703 = vunpack.c.h.b16 %v2886
    %v5704 = vunpack.c.l.b16 %v2887
    %v5705 = vunpack.c.h.b16 %v2887
    %v5706 = vunpack.c.l.b16 %v2888
    %v5707 = vunpack.c.h.b16 %v2888
    %v5708 = vunpack.c.l.b16 %v2889
    %v5709 = vunpack.c.h.b16 %v2889
    %v5710 = vunpack.c.l.b16 %v2890
    %v5711 = vunpack.c.h.b16 %v2890
    %v5712 = vunpack.c.l.b16 %v2891
    %v5713 = vunpack.c.h.b16 %v2891
    %v5714 = vunpack.c.l.b16 %v2892
    %v5715 = vunpack.c.h.b16 %v2892
    %v5716 = vunpack.c.l.b16 %v2893
    %v5717 = vunpack.c.h.b16 %v2893
    %v5718 = vunpack.c.l.b16 %v2894
    %v5719 = vunpack.c.h.b16 %v2894
    %v5720 = vunpack.c.l.b16 %v2895
    %v5721 = vunpack.c.h.b16 %v2895
    %v5722 = vunpack.c.l.b16 %v2896
    %v5723 = vunpack.c.h.b16 %v2896
    %v5724 = vunpack.c.l.b16 %v2897
    %v5725 = vunpack.c.h.b16 %v2897
    %v5726 = vunpack.c.l.b16 %v2898
    %v5727 = vunpack.c.h.b16 %v2898
    %v5728 = vunpack.c.l.b16 %v2899
    %v5729 = vunpack.c.h.b16 %v2899
    %v5730 = vunpack.c.l.b16 %v2900
    %v5731 = vunpack.c.h.b16 %v2900
    %v5732 = vunpack.c.l.b16 %v2901
    %v5733 = vunpack.c.h.b16 %v2901
    %v5734 = vunpack.c.l.b16 %v2902
    %v5735 = vunpack.c.h.b16 %v2902
    %v5736 = vunpack.c.l.b16 %v2903
    %v5737 = vunpack.c.h.b16 %v2903
    %v5738 = vunpack.c.l.b16 %v2904
    %v5739 = vunpack.c.h.b16 %v2904
    %v5740 = vunpack.c.l.b16 %v2905
    %v5741 = vunpack.c.h.b16 %v2905
    %v5742 = vunpack.c.l.b16 %v2906
    %v5743 = vunpack.c.h.b16 %v2906
    %v5744 = vunpack.c.l.b16 %v2907
    %v5745 = vunpack.c.h.b16 %v2907
    %v5746 = vunpack.c.l.b16 %v2908
    %v5747 = vunpack.c.h.b16 %v2908
    %v5748 = vunpack.c.l.b16 %v2909
    %v5749 = vunpack.c.h.b16 %v2909
    %v5750 = vunpack.c.l.b16 %v2910
    %v5751 = vunpack.c.h.b16 %v2910
    %v5752 = vunpack.c.l.b16 %v2911
    %v5753 = vunpack.c.h.b16 %v2911
    %v5754 = vunpack.c.l.b16 %v2912
    %v5755 = vunpack.c.h.b16 %v2912
    %v5756 = vunpack.c.l.b16 %v2913
    %v5757 = vunpack.c.h.b16 %v2913
    %v5758 = vunpack.c.l.b16 %v2914
    %v5759 = vunpack.c.h.b16 %v2914
    %v5760 = vunpack.c.l.b16 %v2915
    %v5761 = vunpack.c.h.b16 %v2915
    %v5762 = vunpack.c.l.b16 %v2916
    %v5763 = vunpack.c.h.b16 %v2916
    %v5764 = vunpack.c.l.b16 %v2917
    %v5765 = vunpack.c.h.b16 %v2917
    %v5766 = vunpack.c.l.b16 %v2918
    %v5767 = vunpack.c.h.b16 %v2918
    %v5768 = vunpack.c.l.b16 %v2919
    %v5769 = vunpack.c.h.b16 %v2919
    %v5770 = vunpack.c.l.b16 %v2920
    %v5771 = vunpack.c.h.b16 %v2920
    %v5772 = vunpack.c.l.b16 %v2921
    %v5773 = vunpack.c.h.b16 %v2921
    %v5774 = vunpack.c.l.b16 %v2922
    %v5775 = vunpack.c.h.b16 %v2922
    %v5776 = vunpack.c.l.b16 %v2923
    %v5777 = vunpack.c.h.b16 %v2923
    %v5778 = vunpack.c.l.b16 %v2924
    %v5779 = vunpack.c.h.b16 %v2924
    %v5780 = vunpack.c.l.b16 %v2925
    %v5781 = vunpack.c.h.b16 %v2925
    %v5782 = vunpack.c.l.b16 %v2926
    %v5783 = vunpack.c.h.b16 %v2926
    %v5784 = vunpack.c.l.b16 %v2927
    %v5785 = vunpack.c.h.b16 %v2927
    %v5786 = vunpack.c.l.b16 %v2928
    %v5787 = vunpack.c.h.b16 %v2928
    %v5788 = vunpack.c.l.b16 %v2929
    %v5789 = vunpack.c.h.b16 %v2929
    %v5790 = vunpack.c.l.b16 %v2930
    %v5791 = vunpack.c.h.b16 %v2930
    %v5792 = vunpack.c.l.b16 %v2931
    %v5793 = vunpack.c.h.b16 %v2931
    %v5794 = vunpack.c.l.b16 %v2932
    %v5795 = vunpack.c.h.b16 %v2932
    %v5796 = vunpack.c.l.b16 %v2933
    %v5797 = vunpack.c.h.b16 %v2933
    %v5798 = vunpack.c.l.b16 %v2934
    %v5799 = vunpack.c.h.b16 %v2934
    %v5800 = vunpack.c.l.b16 %v2935
    %v5801 = vunpack.c.h.b16 %v2935
    %v5802 = vunpack.c.l.b16 %v2936
    %v5803 = vunpack.c.h.b16 %v2936
    %v5804 = vunpack.c.l.b16 %v2937
    %v5805 = vunpack.c.h.b16 %v2937
    %v5806 = vunpack.c.l.b16 %v2938
    %v5807 = vunpack.c.h.b16 %v2938
    %v5808 = vunpack.c.l.b16 %v2939
    %v5809 = vunpack.c.h.b16 %v2939
    %v5810 = vunpack.c.l.b16 %v2940
    %v5811 = vunpack.c.h.b16 %v2940
    %v5812 = vunpack.c.l.b16 %v2941
    %v5813 = vunpack.c.h.b16 %v2941
    %v5814 = vunpack.c.l.b16 %v2942
    %v5815 = vunpack.c.h.b16 %v2942
    %v5816 = vunpack.c.l.b16 %v2943
    %v5817 = vunpack.c.h.b16 %v2943
    %v5818 = vunpack.c.l.b16 %v2944
    %v5819 = vunpack.c.h.b16 %v2944
    %v5820 = vunpack.c.l.b16 %v2945
    %v5821 = vunpack.c.h.b16 %v2945
    %v5822 = vunpack.c.l.b16 %v2946
    %v5823 = vunpack.c.h.b16 %v2946
    %v5824 = vunpack.c.l.b16 %v2947
    %v5825 = vunpack.c.h.b16 %v2947
    %v5826 = vunpack.c.l.b16 %v2948
    %v5827 = vunpack.c.h.b16 %v2948
    %v5828 = vunpack.c.l.b16 %v2949
    %v5829 = vunpack.c.h.b16 %v2949
    %v5830 = vunpack.c.l.b16 %v2950
    %v5831 = vunpack.c.h.b16 %v2950
    %v5832 = vunpack.c.l.b16 %v2951
    %v5833 = vunpack.c.h.b16 %v2951
    %v5834 = vunpack.c.l.b16 %v2952
    %v5835 = vunpack.c.h.b16 %v2952
    %v5836 = vunpack.c.l.b16 %v2953
    %v5837 = vunpack.c.h.b16 %v2953
    %v5838 = vunpack.c.l.b16 %v2954
    %v5839 = vunpack.c.h.b16 %v2954
    %v5840 = vunpack.c.l.b16 %v2955
    %v5841 = vunpack.c.h.b16 %v2955
    %v5842 = vunpack.c.l.b16 %v2956
    %v5843 = vunpack.c.h.b16 %v2956
    %v5844 = vunpack.c.l.b16 %v2957
    %v5845 = vunpack.c.h.b16 %v2957
    %v5846 = vunpack.c.l.b16 %v2958
    %v5847 = vunpack.c.h.b16 %v2958
    %v5848 = vunpack.c.l.b16 %v2959
    %v5849 = vunpack.c.h.b16 %v2959
    %v5850 = vunpack.c.l.b16 %v2960
    %v5851 = vunpack.c.h.b16 %v2960
    %v5852 = vunpack.c.l.b16 %v2961
    %v5853 = vunpack.c.h.b16 %v2961
    %v5854 = vunpack.c.l.b16 %v2962
    %v5855 = vunpack.c.h.b16 %v2962
    %v5856 = vunpack.c.l.b16 %v2963
    %v5857 = vunpack.c.h.b16 %v2963
    %v5858 = vunpack.c.l.b16 %v2964
    %v5859 = vunpack.c.h.b16 %v2964
    %v5860 = vunpack.c.l.b16 %v2965
    %v5861 = vunpack.c.h.b16 %v2965
    %v5862 = vunpack.c.l.b16 %v2966
    %v5863 = vunpack.c.h.b16 %v2966
    %v5864 = vunpack.c.l.b16 %v2967
    %v5865 = vunpack.c.h.b16 %v2967
    %v5866 = vunpack.c.l.b16 %v2968
    %v5867 = vunpack.c.h.b16 %v2968
    %v5868 = vunpack.c.l.b16 %v2969
    %v5869 = vunpack.c.h.b16 %v2969
    %v5870 = vunpack.c.l.b16 %v2970
    %v5871 = vunpack.c.h.b16 %v2970
    %v5872 = vunpack.c.l.b16 %v2971
    %v5873 = vunpack.c.h.b16 %v2971
    %v5874 = vunpack.c.l.b16 %v2972
    %v5875 = vunpack.c.h.b16 %v2972
    %v5876 = vunpack.c.l.b16 %v2973
    %v5877 = vunpack.c.h.b16 %v2973
    %v5878 = vunpack.c.l.b16 %v2974
    %v5879 = vunpack.c.h.b16 %v2974
    %v5880 = vunpack.c.l.b16 %v2975
    %v5881 = vunpack.c.h.b16 %v2975
    %v5882 = vunpack.c.l.b16 %v2976
    %v5883 = vunpack.c.h.b16 %v2976
    %v5884 = vunpack.c.l.b16 %v2977
    %v5885 = vunpack.c.h.b16 %v2977
    %v5886 = vunpack.c.l.b16 %v2978
    %v5887 = vunpack.c.h.b16 %v2978
    %v5888 = vunpack.c.l.b16 %v2979
    %v5889 = vunpack.c.h.b16 %v2979
    %v5890 = vunpack.c.l.b16 %v2980
    %v5891 = vunpack.c.h.b16 %v2980
    %v5892 = vunpack.c.l.b16 %v2981
    %v5893 = vunpack.c.h.b16 %v2981
    %v5894 = vunpack.c.l.b16 %v2982
    %v5895 = vunpack.c.h.b16 %v2982
    %v5896 = vunpack.c.l.b16 %v2983
    %v5897 = vunpack.c.h.b16 %v2983
    %v5898 = vunpack.c.l.b16 %v2984
    %v5899 = vunpack.c.h.b16 %v2984
    %v5900 = vunpack.c.l.b16 %v2985
    %v5901 = vunpack.c.h.b16 %v2985
    %v5902 = vunpack.c.l.b16 %v2986
    %v5903 = vunpack.c.h.b16 %v2986
    %v5904 = vunpack.c.l.b16 %v2987
    %v5905 = vunpack.c.h.b16 %v2987
    %v5906 = vunpack.c.l.b16 %v2988
    %v5907 = vunpack.c.h.b16 %v2988
    %v5908 = vunpack.c.l.b16 %v2989
    %v5909 = vunpack.c.h.b16 %v2989
    %v5910 = vunpack.c.l.b16 %v2990
    %v5911 = vunpack.c.h.b16 %v2990
    %v5912 = vunpack.c.l.b16 %v2991
    %v5913 = vunpack.c.h.b16 %v2991
    %v5914 = vunpack.c.l.b16 %v2992
    %v5915 = vunpack.c.h.b16 %v2992
    %v5916 = vunpack.c.l.b16 %v2993
    %v5917 = vunpack.c.h.b16 %v2993
    %v5918 = vunpack.c.l.b16 %v2994
    %v5919 = vunpack.c.h.b16 %v2994
    %v5920 = vunpack.c.l.b16 %v2995
    %v5921 = vunpack.c.h.b16 %v2995
    %v5922 = vunpack.c.l.b16 %v2996
    %v5923 = vunpack.c.h.b16 %v2996
    %v5924 = vunpack.c.l.b16 %v2997
    %v5925 = vunpack.c.h.b16 %v2997
    %v5926 = vunpack.c.l.b16 %v2998
    %v5927 = vunpack.c.h.b16 %v2998
    %v5928 = vunpack.c.l.b16 %v2999
    %v5929 = vunpack.c.h.b16 %v2999
    %v5930 = vunpack.c.l.b16 %v3000
    %v5931 = vunpack.c.h.b16 %v3000
    %v5932 = vunpack.c.l.b16 %v3001
    %v5933 = vunpack.c.h.b16 %v3001
    %v5934 = vunpack.c.l.b16 %v3002
    %v5935 = vunpack.c.h.b16 %v3002
    %v5936 = vunpack.c.l.b16 %v3003
    %v5937 = vunpack.c.h.b16 %v3003
    %v5938 = vunpack.c.l.b16 %v3004
    %v5939 = vunpack.c.h.b16 %v3004
    %v5940 = vunpack.c.l.b16 %v3005
    %v5941 = vunpack.c.h.b16 %v3005
    %v5942 = vunpack.c.l.b16 %v3006
    %v5943 = vunpack.c.h.b16 %v3006
    %v5944 = vunpack.c.l.b16 %v3007
    %v5945 = vunpack.c.h.b16 %v3007
    %v5946 = vunpack.c.l.b16 %v3008
    %v5947 = vunpack.c.h.b16 %v3008
    %v5948 = vunpack.c.l.b16 %v3009
    %v5949 = vunpack.c.h.b16 %v3009
    %v5950 = vunpack.c.l.b16 %v3010
    %v5951 = vunpack.c.h.b16 %v3010
    %v5952 = vunpack.c.l.b16 %v3011
    %v5953 = vunpack.c.h.b16 %v3011
    %v5954 = vunpack.c.l.b16 %v3012
    %v5955 = vunpack.c.h.b16 %v3012
    %v5956 = vunpack.c.l.b16 %v3013
    %v5957 = vunpack.c.h.b16 %v3013
    %v5958 = vunpack.c.l.b16 %v3014
    %v5959 = vunpack.c.h.b16 %v3014
    %v5960 = vunpack.c.l.b16 %v3015
    %v5961 = vunpack.c.h.b16 %v3015
    %v5962 = vunpack.c.l.b16 %v3016
    %v5963 = vunpack.c.h.b16 %v3016
    %v5964 = vunpack.c.l.b16 %v3017
    %v5965 = vunpack.c.h.b16 %v3017
    %v5966 = vunpack.c.l.b16 %v3018
    %v5967 = vunpack.c.h.b16 %v3018
    %v5968 = vunpack.c.l.b16 %v3019
    %v5969 = vunpack.c.h.b16 %v3019
    %v5970 = vunpack.c.l.b16 %v3020
    %v5971 = vunpack.c.h.b16 %v3020
    %v5972 = vunpack.c.l.b16 %v3021
    %v5973 = vunpack.c.h.b16 %v3021
    %v5974 = vunpack.c.l.b16 %v3022
    %v5975 = vunpack.c.h.b16 %v3022
    %v5976 = vunpack.c.l.b16 %v3023
    %v5977 = vunpack.c.h.b16 %v3023
    %v5978 = vunpack.c.l.b16 %v3024
    %v5979 = vunpack.c.h.b16 %v3024
    %v5980 = vunpack.c.l.b16 %v3025
    %v5981 = vunpack.c.h.b16 %v3025
    %v5982 = vunpack.c.l.b16 %v3026
    %v5983 = vunpack.c.h.b16 %v3026
    %v5984 = vunpack.c.l.b16 %v3027
    %v5985 = vunpack.c.h.b16 %v3027
    %v5986 = vunpack.c.l.b16 %v3028
    %v5987 = vunpack.c.h.b16 %v3028
    %v5988 = vunpack.c.l.b16 %v3029
    %v5989 = vunpack.c.h.b16 %v3029
    %v5990 = vunpack.c.l.b16 %v3030
    %v5991 = vunpack.c.h.b16 %v3030
    %v5992 = vunpack.c.l.b16 %v3031
    %v5993 = vunpack.c.h.b16 %v3031
    %v5994 = vunpack.c.l.b16 %v3032
    %v5995 = vunpack.c.h.b16 %v3032
    %v5996 = vunpack.c.l.b16 %v3033
    %v5997 = vunpack.c.h.b16 %v3033
    %v5998 = vunpack.c.l.b16 %v3034
    %v5999 = vunpack.c.h.b16 %v3034
    %v6000 = vunpack.c.l.b16 %v3035
    %v6001 = vunpack.c.h.b16 %v3035
    %v6002 = vunpack.c.l.b16 %v3036
    %v6003 = vunpack.c.h.b16 %v3036
    %v6004 = vunpack.c.l.b16 %v3037
    %v6005 = vunpack.c.h.b16 %v3037
    %v6006 = vunpack.c.l.b16 %v3038
    %v6007 = vunpack.c.h.b16 %v3038
    %v6008 = vunpack.c.l.b16 %v3039
    %v6009 = vunpack.c.h.b16 %v3039
    %v6010 = vunpack.c.l.b16 %v3040
    %v6011 = vunpack.c.h.b16 %v3040
    %v6012 = vunpack.c.l.b16 %v3041
    %v6013 = vunpack.c.h.b16 %v3041
    %v6014 = vunpack.c.l.b16 %v3042
    %v6015 = vunpack.c.h.b16 %v3042
    %v6016 = vunpack.c.l.b16 %v3043
    %v6017 = vunpack.c.h.b16 %v3043
    %v6018 = vunpack.c.l.b16 %v3044
    %v6019 = vunpack.c.h.b16 %v3044
    %v6020 = vunpack.c.l.b16 %v3045
    %v6021 = vunpack.c.h.b16 %v3045
    %v6022 = vunpack.c.l.b16 %v3046
    %v6023 = vunpack.c.h.b16 %v3046
    %v6024 = vunpack.c.l.b16 %v3047
    %v6025 = vunpack.c.h.b16 %v3047
    %v6026 = vunpack.c.l.b16 %v3048
    %v6027 = vunpack.c.h.b16 %v3048
    %v6028 = vunpack.c.l.b16 %v3049
    %v6029 = vunpack.c.h.b16 %v3049
    %v6030 = vunpack.c.l.b16 %v3050
    %v6031 = vunpack.c.h.b16 %v3050
    %v6032 = vunpack.c.l.b16 %v3051
    %v6033 = vunpack.c.h.b16 %v3051
    %v6034 = vunpack.c.l.b16 %v3052
    %v6035 = vunpack.c.h.b16 %v3052
    %v6036 = vunpack.c.l.b16 %v3053
    %v6037 = vunpack.c.h.b16 %v3053
    %v6038 = vunpack.c.l.b16 %v3054
    %v6039 = vunpack.c.h.b16 %v3054
    %v6040 = vunpack.c.l.b16 %v3055
    %v6041 = vunpack.c.h.b16 %v3055
    %v6042 = vunpack.c.l.b16 %v3056
    %v6043 = vunpack.c.h.b16 %v3056
    %v6044 = vunpack.c.l.b16 %v3057
    %v6045 = vunpack.c.h.b16 %v3057
    %v6046 = vunpack.c.l.b16 %v3058
    %v6047 = vunpack.c.h.b16 %v3058
    %v6048 = vunpack.c.l.b16 %v3059
    %v6049 = vunpack.c.h.b16 %v3059
    %v6050 = vunpack.c.l.b16 %v3060
    %v6051 = vunpack.c.h.b16 %v3060
    %v6052 = vunpack.c.l.b16 %v3061
    %v6053 = vunpack.c.h.b16 %v3061
    %v6054 = vunpack.c.l.b16 %v3062
    %v6055 = vunpack.c.h.b16 %v3062
    %v6056 = vunpack.c.l.b16 %v3063
    %v6057 = vunpack.c.h.b16 %v3063
    %v6058 = vunpack.c.l.b16 %v3064
    %v6059 = vunpack.c.h.b16 %v3064
    %v6060 = vunpack.c.l.b16 %v3065
    %v6061 = vunpack.c.h.b16 %v3065
    %v6062 = vunpack.c.l.b16 %v3066
    %v6063 = vunpack.c.h.b16 %v3066
    %v6064 = vunpack.c.l.b16 %v3067
    %v6065 = vunpack.c.h.b16 %v3067
    %v6066 = vunpack.c.l.b16 %v3068
    %v6067 = vunpack.c.h.b16 %v3068
    %v6068 = vunpack.c.l.b16 %v3069
    %v6069 = vunpack.c.h.b16 %v3069
    %v6070 = vunpack.c.l.b16 %v3070
    %v6071 = vunpack.c.h.b16 %v3070
    %v6072 = vunpack.c.l.b16 %v3071
    %v6073 = vunpack.c.h.b16 %v3071
    %v6074 = vunpack.c.l.b16 %v3072
    %v6075 = vunpack.c.h.b16 %v3072
    %v6076 = vunpack.c.l.b16 %v3073
    %v6077 = vunpack.c.h.b16 %v3073
    %v6078 = vunpack.c.l.b16 %v3074
    %v6079 = vunpack.c.h.b16 %v3074
    %v6080 = vunpack.c.l.b16 %v3075
    %v6081 = vunpack.c.h.b16 %v3075
    %v6082 = vunpack.c.l.b16 %v3076
    %v6083 = vunpack.c.h.b16 %v3076
    %v6084 = vunpack.c.l.b16 %v3077
    %v6085 = vunpack.c.h.b16 %v3077
    %v6086 = vunpack.c.l.b16 %v3078
    %v6087 = vunpack.c.h.b16 %v3078
    %v6088 = vunpack.c.l.b16 %v3079
    %v6089 = vunpack.c.h.b16 %v3079
    %v6090 = vunpack.c.l.b16 %v3080
    %v6091 = vunpack.c.h.b16 %v3080
    %v6092 = vunpack.c.l.b16 %v3081
    %v6093 = vunpack.c.h.b16 %v3081
    %v6094 = vunpack.c.l.b16 %v3082
    %v6095 = vunpack.c.h.b16 %v3082
    %v6096 = vunpack.c.l.b16 %v3083
    %v6097 = vunpack.c.h.b16 %v3083
    %v6098 = vunpack.c.l.b16 %v3084
    %v6099 = vunpack.c.h.b16 %v3084
    %v6100 = vunpack.c.l.b16 %v3085
    %v6101 = vunpack.c.h.b16 %v3085
    %v6102 = vunpack.c.l.b16 %v3086
    %v6103 = vunpack.c.h.b16 %v3086
    %v6104 = vunpack.c.l.b16 %v3087
    %v6105 = vunpack.c.h.b16 %v3087
    %v6106 = vunpack.c.l.b16 %v3088
    %v6107 = vunpack.c.h.b16 %v3088
    %v6108 = vunpack.c.l.b16 %v3089
    %v6109 = vunpack.c.h.b16 %v3089
    %v6110 = vunpack.c.l.b16 %v3090
    %v6111 = vunpack.c.h.b16 %v3090
    %v6112 = vunpack.c.l.b16 %v3091
    %v6113 = vunpack.c.h.b16 %v3091
    %v6114 = vunpack.c.l.b16 %v3092
    %v6115 = vunpack.c.h.b16 %v3092
    %v6116 = vunpack.c.l.b16 %v3093
    %v6117 = vunpack.c.h.b16 %v3093
    %v6118 = vunpack.c.l.b16 %v3094
    %v6119 = vunpack.c.h.b16 %v3094
    %v6120 = vunpack.c.l.b16 %v3095
    %v6121 = vunpack.c.h.b16 %v3095
    %v6122 = vunpack.c.l.b16 %v3096
    %v6123 = vunpack.c.h.b16 %v3096
    %v6124 = vunpack.c.l.b16 %v3097
    %v6125 = vunpack.c.h.b16 %v3097
    %v6126 = vunpack.c.l.b16 %v3098
    %v6127 = vunpack.c.h.b16 %v3098
    %v6128 = vunpack.c.l.b16 %v3099
    %v6129 = vunpack.c.h.b16 %v3099
    %v6130 = vunpack.c.l.b16 %v3100
    %v6131 = vunpack.c.h.b16 %v3100
    %v6132 = vunpack.c.l.b16 %v3101
    %v6133 = vunpack.c.h.b16 %v3101
    %v6134 = vunpack.c.l.b16 %v3102
    %v6135 = vunpack.c.h.b16 %v3102
    %v6136 = vunpack.c.l.b16 %v3103
    %v6137 = vunpack.c.h.b16 %v3103
    %v6138 = vunpack.c.l.b16 %v3104
    %v6139 = vunpack.c.h.b16 %v3104
    %v6140 = vunpack.c.l.b16 %v3105
    %v6141 = vunpack.c.h.b16 %v3105
    %v6142 = vunpack.c.l.b16 %v3106
    %v6143 = vunpack.c.h.b16 %v3106
    %v6144 = vunpack.c.l.b16 %v3107
    %v6145 = vunpack.c.h.b16 %v3107
    %v6146 = vunpack.c.l.b16 %v3108
    %v6147 = vunpack.c.h.b16 %v3108
    %v6148 = vunpack.c.l.b16 %v3109
    %v6149 = vunpack.c.h.b16 %v3109
    %v6150 = vunpack.c.l.b16 %v3110
    %v6151 = vunpack.c.h.b16 %v3110
    %v6152 = vunpack.c.l.b16 %v3111
    %v6153 = vunpack.c.h.b16 %v3111
    %v6154 = vunpack.c.l.b16 %v3112
    %v6155 = vunpack.c.h.b16 %v3112
    %v6156 = vunpack.c.l.b16 %v3113
    %v6157 = vunpack.c.h.b16 %v3113
    %v6158 = vunpack.c.l.b16 %v3114
    %v6159 = vunpack.c.h.b16 %v3114
    %v6160 = vunpack.c.l.b16 %v3115
    %v6161 = vunpack.c.h.b16 %v3115
    %v6162 = vunpack.c.l.b16 %v3116
    %v6163 = vunpack.c.h.b16 %v3116
    %v6164 = vunpack.c.l.b16 %v3117
    %v6165 = vunpack.c.h.b16 %v3117
    %v6166 = vunpack.c.l.b16 %v3118
    %v6167 = vunpack.c.h.b16 %v3118
    %v6168 = vunpack.c.l.b16 %v3119
    %v6169 = vunpack.c.h.b16 %v3119
    %v6170 = vunpack.c.l.b16 %v3120
    %v6171 = vunpack.c.h.b16 %v3120
    %v6172 = vunpack.c.l.b16 %v3121
    %v6173 = vunpack.c.h.b16 %v3121
    %v6174 = vunpack.c.l.b16 %v3122
    %v6175 = vunpack.c.h.b16 %v3122
    %v6176 = vunpack.c.l.b16 %v3123
    %v6177 = vunpack.c.h.b16 %v3123
    %v6178 = vunpack.c.l.b16 %v3124
    %v6179 = vunpack.c.h.b16 %v3124
    %v6180 = vunpack.c.l.b16 %v3125
    %v6181 = vunpack.c.h.b16 %v3125
    %v6182 = vunpack.c.l.b16 %v3126
    %v6183 = vunpack.c.h.b16 %v3126
    %v6184 = vunpack.c.l.b16 %v3127
    %v6185 = vunpack.c.h.b16 %v3127
    %v6186 = vunpack.c.l.b16 %v3128
    %v6187 = vunpack.c.h.b16 %v3128
    %v6188 = vunpack.c.l.b16 %v3129
    %v6189 = vunpack.c.h.b16 %v3129
    %v6190 = vunpack.c.l.b16 %v3130
    %v6191 = vunpack.c.h.b16 %v3130
    %v6192 = vunpack.c.l.b16 %v3131
    %v6193 = vunpack.c.h.b16 %v3131
    %v6194 = vunpack.c.l.b16 %v3132
    %v6195 = vunpack.c.h.b16 %v3132
    %v6196 = vunpack.c.l.b16 %v3133
    %v6197 = vunpack.c.h.b16 %v3133
    %v6198 = vunpack.c.l.b16 %v3134
    %v6199 = vunpack.c.h.b16 %v3134
    %v6200 = vunpack.c.l.b16 %v3135
    %v6201 = vunpack.c.h.b16 %v3135
    %v6202 = vunpack.c.l.b16 %v3136
    %v6203 = vunpack.c.h.b16 %v3136
    %v6204 = vunpack.c.l.b16 %v3137
    %v6205 = vunpack.c.h.b16 %v3137
    %v6206 = vunpack.c.l.b16 %v3138
    %v6207 = vunpack.c.h.b16 %v3138
    %v6208 = vunpack.c.l.b16 %v3139
    %v6209 = vunpack.c.h.b16 %v3139
    %v6210 = vunpack.c.l.b16 %v3140
    %v6211 = vunpack.c.h.b16 %v3140
    %v6212 = vunpack.c.l.b16 %v3141
    %v6213 = vunpack.c.h.b16 %v3141
    %v6214 = vunpack.c.l.b16 %v3142
    %v6215 = vunpack.c.h.b16 %v3142
    %v6216 = vunpack.c.l.b16 %v3143
    %v6217 = vunpack.c.h.b16 %v3143
    %v6218 = vunpack.c.l.b16 %v3144
    %v6219 = vunpack.c.h.b16 %v3144
    %v6220 = vunpack.c.l.b16 %v3145
    %v6221 = vunpack.c.h.b16 %v3145
    %v6222 = vunpack.c.l.b16 %v3146
    %v6223 = vunpack.c.h.b16 %v3146
    %v6224 = vunpack.c.l.b16 %v3147
    %v6225 = vunpack.c.h.b16 %v3147
    %v6226 = vunpack.c.l.b16 %v3148
    %v6227 = vunpack.c.h.b16 %v3148
    %v6228 = vunpack.c.l.b16 %v3149
    %v6229 = vunpack.c.h.b16 %v3149
    %v6230 = vunpack.c.l.b16 %v3150
    %v6231 = vunpack.c.h.b16 %v3150
    %v6232 = vunpack.c.l.b16 %v3151
    %v6233 = vunpack.c.h.b16 %v3151
    %v6234 = vunpack.c.l.b16 %v3152
    %v6235 = vunpack.c.h.b16 %v3152
    %v6236 = vunpack.c.l.b16 %v3153
    %v6237 = vunpack.c.h.b16 %v3153
    %v6238 = vunpack.c.l.b16 %v3154
    %v6239 = vunpack.c.h.b16 %v3154
    %v6240 = vunpack.c.l.b16 %v3155
    %v6241 = vunpack.c.h.b16 %v3155
    %v6242 = vunpack.c.l.b16 %v3156
    %v6243 = vunpack.c.h.b16 %v3156
    %v6244 = vunpack.c.l.b16 %v3157
    %v6245 = vunpack.c.h.b16 %v3157
    %v6246 = vunpack.c.l.b16 %v3158
    %v6247 = vunpack.c.h.b16 %v3158
    %v6248 = vunpack.c.l.b16 %v3159
    %v6249 = vunpack.c.h.b16 %v3159
    %v6250 = vunpack.c.l.b16 %v3160
    %v6251 = vunpack.c.h.b16 %v3160
    %v6252 = vunpack.c.l.b16 %v3161
    %v6253 = vunpack.c.h.b16 %v3161
    %v6254 = vunpack.c.l.b16 %v3162
    %v6255 = vunpack.c.h.b16 %v3162
    %v6256 = vunpack.c.l.b16 %v3163
    %v6257 = vunpack.c.h.b16 %v3163
    %v6258 = vunpack.c.l.b16 %v3164
    %v6259 = vunpack.c.h.b16 %v3164
    %v6260 = vunpack.c.l.b16 %v3165
    %v6261 = vunpack.c.h.b16 %v3165
    %v6262 = vunpack.c.l.b16 %v3166
    %v6263 = vunpack.c.h.b16 %v3166
    %v6264 = vunpack.c.l.b16 %v3167
    %v6265 = vunpack.c.h.b16 %v3167
    %v6266 = vunpack.c.l.b16 %v3168
    %v6267 = vunpack.c.h.b16 %v3168
    %v6268 = vunpack.c.l.b16 %v3169
    %v6269 = vunpack.c.h.b16 %v3169
    %v6270 = vunpack.c.l.b16 %v3170
    %v6271 = vunpack.c.h.b16 %v3170
    %v6272 = vunpack.c.l.b16 %v3171
    %v6273 = vunpack.c.h.b16 %v3171
    %v6274 = vunpack.c.l.b16 %v3172
    %v6275 = vunpack.c.h.b16 %v3172
    %v6276 = vunpack.c.l.b16 %v3173
    %v6277 = vunpack.c.h.b16 %v3173
    %v6278 = vunpack.c.l.b16 %v3174
    %v6279 = vunpack.c.h.b16 %v3174
    %v6280 = vunpack.c.l.b16 %v3175
    %v6281 = vunpack.c.h.b16 %v3175
    %v6282 = vunpack.c.l.b16 %v3176
    %v6283 = vunpack.c.h.b16 %v3176
    %v6284 = vunpack.c.l.b16 %v3177
    %v6285 = vunpack.c.h.b16 %v3177
    %v6286 = vunpack.c.l.b16 %v3178
    %v6287 = vunpack.c.h.b16 %v3178
    %v6288 = vunpack.c.l.b16 %v3179
    %v6289 = vunpack.c.h.b16 %v3179
    %v6290 = vunpack.c.l.b16 %v3180
    %v6291 = vunpack.c.h.b16 %v3180
    %v6292 = vunpack.c.l.b16 %v3181
    %v6293 = vunpack.c.h.b16 %v3181
    %v6294 = vunpack.c.l.b16 %v3182
    %v6295 = vunpack.c.h.b16 %v3182
    %v6296 = vunpack.c.l.b16 %v3183
    %v6297 = vunpack.c.h.b16 %v3183
    %v6298 = vunpack.c.l.b16 %v3184
    %v6299 = vunpack.c.h.b16 %v3184
    %v6300 = vunpack.c.l.b16 %v3185
    %v6301 = vunpack.c.h.b16 %v3185
    %v6302 = vunpack.c.l.b16 %v3186
    %v6303 = vunpack.c.h.b16 %v3186
    %v6304 = vunpack.c.l.b16 %v3187
    %v6305 = vunpack.c.h.b16 %v3187
    %v6306 = vunpack.c.l.b16 %v3188
    %v6307 = vunpack.c.h.b16 %v3188
    %v6308 = vunpack.c.l.b16 %v3189
    %v6309 = vunpack.c.h.b16 %v3189
    %v6310 = vunpack.c.l.b16 %v3190
    %v6311 = vunpack.c.h.b16 %v3190
    %v6312 = vunpack.c.l.b16 %v3191
    %v6313 = vunpack.c.h.b16 %v3191
    %v6314 = vunpack.c.l.b16 %v3192
    %v6315 = vunpack.c.h.b16 %v3192
    %v6316 = vunpack.c.l.b16 %v3193
    %v6317 = vunpack.c.h.b16 %v3193
    %v6318 = vunpack.c.l.b16 %v3194
    %v6319 = vunpack.c.h.b16 %v3194
    %v6320 = vunpack.c.l.b16 %v3195
    %v6321 = vunpack.c.h.b16 %v3195
    %v6322 = vunpack.c.l.b16 %v3196
    %v6323 = vunpack.c.h.b16 %v3196
    %v6324 = vunpack.c.l.b16 %v3197
    %v6325 = vunpack.c.h.b16 %v3197
    %v6326 = vunpack.c.l.b16 %v3198
    %v6327 = vunpack.c.h.b16 %v3198
    %v6328 = vunpack.c.l.b16 %v3199
    %v6329 = vunpack.c.h.b16 %v3199
    %v6330 = vunpack.c.l.b16 %v3200
    %v6331 = vunpack.c.h.b16 %v3200
    %v6332 = vunpack.c.l.b16 %v3201
    %v6333 = vunpack.c.h.b16 %v3201
    %v6334 = vunpack.c.l.b16 %v3202
    %v6335 = vunpack.c.h.b16 %v3202
    %v6336 = vunpack.c.l.b16 %v3203
    %v6337 = vunpack.c.h.b16 %v3203
    %v6338 = vunpack.c.l.b16 %v3204
    %v6339 = vunpack.c.h.b16 %v3204
    %v6340 = vunpack.c.l.b16 %v3205
    %v6341 = vunpack.c.h.b16 %v3205
    %v6342 = vunpack.c.l.b16 %v3206
    %v6343 = vunpack.c.h.b16 %v3206
    %v6344 = vunpack.c.l.b16 %v3207
    %v6345 = vunpack.c.h.b16 %v3207
    %v6346 = vunpack.c.l.b16 %v3208
    %v6347 = vunpack.c.h.b16 %v3208
    %v6348 = vunpack.c.l.b16 %v3209
    %v6349 = vunpack.c.h.b16 %v3209
    %v6350 = vunpack.c.l.b16 %v3210
    %v6351 = vunpack.c.h.b16 %v3210
    %v6352 = vunpack.c.l.b16 %v3211
    %v6353 = vunpack.c.h.b16 %v3211
    %v6354 = vunpack.c.l.b16 %v3212
    %v6355 = vunpack.c.h.b16 %v3212
    %v6356 = vunpack.c.l.b16 %v3213
    %v6357 = vunpack.c.h.b16 %v3213
    %v6358 = vunpack.c.l.b16 %v3214
    %v6359 = vunpack.c.h.b16 %v3214
    %v6360 = vunpack.c.l.b16 %v3215
    %v6361 = vunpack.c.h.b16 %v3215
    %v6362 = vunpack.c.l.b16 %v3216
    %v6363 = vunpack.c.h.b16 %v3216
    %v6364 = vunpack.c.l.b16 %v3217
    %v6365 = vunpack.c.h.b16 %v3217
    %v6366 = vunpack.c.l.b16 %v3218
    %v6367 = vunpack.c.h.b16 %v3218
    %v6368 = vunpack.c.l.b16 %v3219
    %v6369 = vunpack.c.h.b16 %v3219
    %v6370 = vunpack.c.l.b16 %v3220
    %v6371 = vunpack.c.h.b16 %v3220
    %v6372 = vunpack.c.l.b16 %v3221
    %v6373 = vunpack.c.h.b16 %v3221
    %v6374 = vunpack.c.l.b16 %v3222
    %v6375 = vunpack.c.h.b16 %v3222
    %v6376 = vunpack.c.l.b16 %v3223
    %v6377 = vunpack.c.h.b16 %v3223
    %v6378 = vunpack.c.l.b16 %v3224
    %v6379 = vunpack.c.h.b16 %v3224
    %v6380 = vunpack.c.l.b16 %v3225
    %v6381 = vunpack.c.h.b16 %v3225
    %v6382 = vpack.c.b16 %v4350, %v4334
    %v6383 = vpack.c.b16 %v4351, %v4335
    %v6384 = vpack.c.b16 %v4352, %v4336
    %v6385 = vpack.c.b16 %v4353, %v4337
    %v6386 = vpack.c.b16 %v4354, %v4338
    %v6387 = vpack.c.b16 %v4355, %v4339
    %v6388 = vpack.c.b16 %v4356, %v4340
    %v6389 = vpack.c.b16 %v4357, %v4341
    %v6390 = vpack.c.b16 %v4358, %v4342
    %v6391 = vpack.c.b16 %v4359, %v4343
    %v6392 = vpack.c.b16 %v4360, %v4344
    %v6393 = vpack.c.b16 %v4361, %v4345
    %v6394 = vpack.c.b16 %v4362, %v4346
    %v6395 = vpack.c.b16 %v4363, %v4347
    %v6396 = vpack.c.b16 %v4364, %v4348
    %v6397 = vpack.c.b16 %v4365, %v4349
    %v6398 = vpack.c.b16 %v4382, %v4366
    %v6399 = vpack.c.b16 %v4383, %v4367
    %v6400 = vpack.c.b16 %v4384, %v4368
    %v6401 = vpack.c.b16 %v4385, %v4369
    %v6402 = vpack.c.b16 %v4386, %v4370
    %v6403 = vpack.c.b16 %v4387, %v4371
    %v6404 = vpack.c.b16 %v4388, %v4372
    %v6405 = vpack.c.b16 %v4389, %v4373
    %v6406 = vpack.c.b16 %v4390, %v4374
    %v6407 = vpack.c.b16 %v4391, %v4375
    %v6408 = vpack.c.b16 %v4392, %v4376
    %v6409 = vpack.c.b16 %v4393, %v4377
    %v6410 = vpack.c.b16 %v4394, %v4378
    %v6411 = vpack.c.b16 %v4395, %v4379
    %v6412 = vpack.c.b16 %v4396, %v4380
    %v6413 = vpack.c.b16 %v4397, %v4381
    %v6414 = vpack.c.b16 %v4414, %v4398
    %v6415 = vpack.c.b16 %v4415, %v4399
    %v6416 = vpack.c.b16 %v4416, %v4400
    %v6417 = vpack.c.b16 %v4417, %v4401
    %v6418 = vpack.c.b16 %v4418, %v4402
    %v6419 = vpack.c.b16 %v4419, %v4403
    %v6420 = vpack.c.b16 %v4420, %v4404
    %v6421 = vpack.c.b16 %v4421, %v4405
    %v6422 = vpack.c.b16 %v4422, %v4406
    %v6423 = vpack.c.b16 %v4423, %v4407
    %v6424 = vpack.c.b16 %v4424, %v4408
    %v6425 = vpack.c.b16 %v4425, %v4409
    %v6426 = vpack.c.b16 %v4426, %v4410
    %v6427 = vpack.c.b16 %v4427, %v4411
    %v6428 = vpack.c.b16 %v4428, %v4412
    %v6429 = vpack.c.b16 %v4429, %v4413
    %v6430 = vpack.c.b16 %v4446, %v4430
    %v6431 = vpack.c.b16 %v4447, %v4431
    %v6432 = vpack.c.b16 %v4448, %v4432
    %v6433 = vpack.c.b16 %v4449, %v4433
    %v6434 = vpack.c.b16 %v4450, %v4434
    %v6435 = vpack.c.b16 %v4451, %v4435
    %v6436 = vpack.c.b16 %v4452, %v4436
    %v6437 = vpack.c.b16 %v4453, %v4437
    %v6438 = vpack.c.b16 %v4454, %v4438
    %v6439 = vpack.c.b16 %v4455, %v4439
    %v6440 = vpack.c.b16 %v4456, %v4440
    %v6441 = vpack.c.b16 %v4457, %v4441
    %v6442 = vpack.c.b16 %v4458, %v4442
    %v6443 = vpack.c.b16 %v4459, %v4443
    %v6444 = vpack.c.b16 %v4460, %v4444
    %v6445 = vpack.c.b16 %v4461, %v4445
    %v6446 = vpack.c.b16 %v4478, %v4462
    %v6447 = vpack.c.b16 %v4479, %v4463
    %v6448 = vpack.c.b16 %v4480, %v4464
    %v6449 = vpack.c.b16 %v4481, %v4465
    %v6450 = vpack.c.b16 %v4482, %v4466
    %v6451 = vpack.c.b16 %v4483, %v4467
    %v6452 = vpack.c.b16 %v4484, %v4468
    %v6453 = vpack.c.b16 %v4485, %v4469
    %v6454 = vpack.c.b16 %v4486, %v4470
    %v6455 = vpack.c.b16 %v4487, %v4471
    %v6456 = vpack.c.b16 %v4488, %v4472
    %v6457 = vpack.c.b16 %v4489, %v4473
    %v6458 = vpack.c.b16 %v4490, %v4474
    %v6459 = vpack.c.b16 %v4491, %v4475
    %v6460 = vpack.c.b16 %v4492, %v4476
    %v6461 = vpack.c.b16 %v4493, %v4477
    %v6462 = vpack.c.b16 %v4510, %v4494
    %v6463 = vpack.c.b16 %v4511, %v4495
    %v6464 = vpack.c.b16 %v4512, %v4496
    %v6465 = vpack.c.b16 %v4513, %v4497
    %v6466 = vpack.c.b16 %v4514, %v4498
    %v6467 = vpack.c.b16 %v4515, %v4499
    %v6468 = vpack.c.b16 %v4516, %v4500
    %v6469 = vpack.c.b16 %v4517, %v4501
    %v6470 = vpack.c.b16 %v4518, %v4502
    %v6471 = vpack.c.b16 %v4519, %v4503
    %v6472 = vpack.c.b16 %v4520, %v4504
    %v6473 = vpack.c.b16 %v4521, %v4505
    %v6474 = vpack.c.b16 %v4522, %v4506
    %v6475 = vpack.c.b16 %v4523, %v4507
    %v6476 = vpack.c.b16 %v4524, %v4508
    %v6477 = vpack.c.b16 %v4525, %v4509
    %v6478 = vpack.c.b16 %v4542, %v4526
    %v6479 = vpack.c.b16 %v4543, %v4527
    %v6480 = vpack.c.b16 %v4544, %v4528
    %v6481 = vpack.c.b16 %v4545, %v4529
    %v6482 = vpack.c.b16 %v4546, %v4530
    %v6483 = vpack.c.b16 %v4547, %v4531
    %v6484 = vpack.c.b16 %v4548, %v4532
    %v6485 = vpack.c.b16 %v4549, %v4533
    %v6486 = vpack.c.b16 %v4550, %v4534
    %v6487 = vpack.c.b16 %v4551, %v4535
    %v6488 = vpack.c.b16 %v4552, %v4536
    %v6489 = vpack.c.b16 %v4553, %v4537
    %v6490 = vpack.c.b16 %v4554, %v4538
    %v6491 = vpack.c.b16 %v4555, %v4539
    %v6492 = vpack.c.b16 %v4556, %v4540
    %v6493 = vpack.c.b16 %v4557, %v4541
    %v6494 = vpack.c.b16 %v4574, %v4558
    %v6495 = vpack.c.b16 %v4575, %v4559
    %v6496 = vpack.c.b16 %v4576, %v4560
    %v6497 = vpack.c.b16 %v4577, %v4561
    %v6498 = vpack.c.b16 %v4578, %v4562
    %v6499 = vpack.c.b16 %v4579, %v4563
    %v6500 = vpack.c.b16 %v4580, %v4564
    %v6501 = vpack.c.b16 %v4581, %v4565
    %v6502 = vpack.c.b16 %v4582, %v4566
    %v6503 = vpack.c.b16 %v4583, %v4567
    %v6504 = vpack.c.b16 %v4584, %v4568
    %v6505 = vpack.c.b16 %v4585, %v4569
    %v6506 = vpack.c.b16 %v4586, %v4570
    %v6507 = vpack.c.b16 %v4587, %v4571
    %v6508 = vpack.c.b16 %v4588, %v4572
    %v6509 = vpack.c.b16 %v4589, %v4573
    %v6510 = vpack.c.b16 %v4606, %v4590
    %v6511 = vpack.c.b16 %v4607, %v4591
    %v6512 = vpack.c.b16 %v4608, %v4592
    %v6513 = vpack.c.b16 %v4609, %v4593
    %v6514 = vpack.c.b16 %v4610, %v4594
    %v6515 = vpack.c.b16 %v4611, %v4595
    %v6516 = vpack.c.b16 %v4612, %v4596
    %v6517 = vpack.c.b16 %v4613, %v4597
    %v6518 = vpack.c.b16 %v4614, %v4598
    %v6519 = vpack.c.b16 %v4615, %v4599
    %v6520 = vpack.c.b16 %v4616, %v4600
    %v6521 = vpack.c.b16 %v4617, %v4601
    %v6522 = vpack.c.b16 %v4618, %v4602
    %v6523 = vpack.c.b16 %v4619, %v4603
    %v6524 = vpack.c.b16 %v4620, %v4604
    %v6525 = vpack.c.b16 %v4621, %v4605
    %v6526 = vpack.c.b16 %v4638, %v4622
    %v6527 = vpack.c.b16 %v4639, %v4623
    %v6528 = vpack.c.b16 %v4640, %v4624
    %v6529 = vpack.c.b16 %v4641, %v4625
    %v6530 = vpack.c.b16 %v4642, %v4626
    %v6531 = vpack.c.b16 %v4643, %v4627
    %v6532 = vpack.c.b16 %v4644, %v4628
    %v6533 = vpack.c.b16 %v4645, %v4629
    %v6534 = vpack.c.b16 %v4646, %v4630
    %v6535 = vpack.c.b16 %v4647, %v4631
    %v6536 = vpack.c.b16 %v4648, %v4632
    %v6537 = vpack.c.b16 %v4649, %v4633
    %v6538 = vpack.c.b16 %v4650, %v4634
    %v6539 = vpack.c.b16 %v4651, %v4635
    %v6540 = vpack.c.b16 %v4652, %v4636
    %v6541 = vpack.c.b16 %v4653, %v4637
    %v6542 = vpack.c.b16 %v4670, %v4654
    %v6543 = vpack.c.b16 %v4671, %v4655
    %v6544 = vpack.c.b16 %v4672, %v4656
    %v6545 = vpack.c.b16 %v4673, %v4657
    %v6546 = vpack.c.b16 %v4674, %v4658
    %v6547 = vpack.c.b16 %v4675, %v4659
    %v6548 = vpack.c.b16 %v4676, %v4660
    %v6549 = vpack.c.b16 %v4677, %v4661
    %v6550 = vpack.c.b16 %v4678, %v4662
    %v6551 = vpack.c.b16 %v4679, %v4663
    %v6552 = vpack.c.b16 %v4680, %v4664
    %v6553 = vpack.c.b16 %v4681, %v4665
    %v6554 = vpack.c.b16 %v4682, %v4666
    %v6555 = vpack.c.b16 %v4683, %v4667
    %v6556 = vpack.c.b16 %v4684, %v4668
    %v6557 = vpack.c.b16 %v4685, %v4669
    %v6558 = vpack.c.b16 %v4702, %v4686
    %v6559 = vpack.c.b16 %v4703, %v4687
    %v6560 = vpack.c.b16 %v4704, %v4688
    %v6561 = vpack.c.b16 %v4705, %v4689
    %v6562 = vpack.c.b16 %v4706, %v4690
    %v6563 = vpack.c.b16 %v4707, %v4691
    %v6564 = vpack.c.b16 %v4708, %v4692
    %v6565 = vpack.c.b16 %v4709, %v4693
    %v6566 = vpack.c.b16 %v4710, %v4694
    %v6567 = vpack.c.b16 %v4711, %v4695
    %v6568 = vpack.c.b16 %v4712, %v4696
    %v6569 = vpack.c.b16 %v4713, %v4697
    %v6570 = vpack.c.b16 %v4714, %v4698
    %v6571 = vpack.c.b16 %v4715, %v4699
    %v6572 = vpack.c.b16 %v4716, %v4700
    %v6573 = vpack.c.b16 %v4717, %v4701
    %v6574 = vpack.c.b16 %v4734, %v4718
    %v6575 = vpack.c.b16 %v4735, %v4719
    %v6576 = vpack.c.b16 %v4736, %v4720
    %v6577 = vpack.c.b16 %v4737, %v4721
    %v6578 = vpack.c.b16 %v4738, %v4722
    %v6579 = vpack.c.b16 %v4739, %v4723
    %v6580 = vpack.c.b16 %v4740, %v4724
    %v6581 = vpack.c.b16 %v4741, %v4725
    %v6582 = vpack.c.b16 %v4742, %v4726
    %v6583 = vpack.c.b16 %v4743, %v4727
    %v6584 = vpack.c.b16 %v4744, %v4728
    %v6585 = vpack.c.b16 %v4745, %v4729
    %v6586 = vpack.c.b16 %v4746, %v4730
    %v6587 = vpack.c.b16 %v4747, %v4731
    %v6588 = vpack.c.b16 %v4748, %v4732
    %v6589 = vpack.c.b16 %v4749, %v4733
    %v6590 = vpack.c.b16 %v4766, %v4750
    %v6591 = vpack.c.b16 %v4767, %v4751
    %v6592 = vpack.c.b16 %v4768, %v4752
    %v6593 = vpack.c.b16 %v4769, %v4753
    %v6594 = vpack.c.b16 %v4770, %v4754
    %v6595 = vpack.c.b16 %v4771, %v4755
    %v6596 = vpack.c.b16 %v4772, %v4756
    %v6597 = vpack.c.b16 %v4773, %v4757
    %v6598 = vpack.c.b16 %v4774, %v4758
    %v6599 = vpack.c.b16 %v4775, %v4759
    %v6600 = vpack.c.b16 %v4776, %v4760
    %v6601 = vpack.c.b16 %v4777, %v4761
    %v6602 = vpack.c.b16 %v4778, %v4762
    %v6603 = vpack.c.b16 %v4779, %v4763
    %v6604 = vpack.c.b16 %v4780, %v4764
    %v6605 = vpack.c.b16 %v4781, %v4765
    %v6606 = vpack.c.b16 %v4798, %v4782
    %v6607 = vpack.c.b16 %v4799, %v4783
    %v6608 = vpack.c.b16 %v4800, %v4784
    %v6609 = vpack.c.b16 %v4801, %v4785
    %v6610 = vpack.c.b16 %v4802, %v4786
    %v6611 = vpack.c.b16 %v4803, %v4787
    %v6612 = vpack.c.b16 %v4804, %v4788
    %v6613 = vpack.c.b16 %v4805, %v4789
    %v6614 = vpack.c.b16 %v4806, %v4790
    %v6615 = vpack.c.b16 %v4807, %v4791
    %v6616 = vpack.c.b16 %v4808, %v4792
    %v6617 = vpack.c.b16 %v4809, %v4793
    %v6618 = vpack.c.b16 %v4810, %v4794
    %v6619 = vpack.c.b16 %v4811, %v4795
    %v6620 = vpack.c.b16 %v4812, %v4796
    %v6621 = vpack.c.b16 %v4813, %v4797
    %v6622 = vpack.c.b16 %v4830, %v4814
    %v6623 = vpack.c.b16 %v4831, %v4815
    %v6624 = vpack.c.b16 %v4832, %v4816
    %v6625 = vpack.c.b16 %v4833, %v4817
    %v6626 = vpack.c.b16 %v4834, %v4818
    %v6627 = vpack.c.b16 %v4835, %v4819
    %v6628 = vpack.c.b16 %v4836, %v4820
    %v6629 = vpack.c.b16 %v4837, %v4821
    %v6630 = vpack.c.b16 %v4838, %v4822
    %v6631 = vpack.c.b16 %v4839, %v4823
    %v6632 = vpack.c.b16 %v4840, %v4824
    %v6633 = vpack.c.b16 %v4841, %v4825
    %v6634 = vpack.c.b16 %v4842, %v4826
    %v6635 = vpack.c.b16 %v4843, %v4827
    %v6636 = vpack.c.b16 %v4844, %v4828
    %v6637 = vpack.c.b16 %v4845, %v4829
    %v6638 = vpack.c.b16 %v4862, %v4846
    %v6639 = vpack.c.b16 %v4863, %v4847
    %v6640 = vpack.c.b16 %v4864, %v4848
    %v6641 = vpack.c.b16 %v4865, %v4849
    %v6642 = vpack.c.b16 %v4866, %v4850
    %v6643 = vpack.c.b16 %v4867, %v4851
    %v6644 = vpack.c.b16 %v4868, %v4852
    %v6645 = vpack.c.b16 %v4869, %v4853
    %v6646 = vpack.c.b16 %v4870, %v4854
    %v6647 = vpack.c.b16 %v4871, %v4855
    %v6648 = vpack.c.b16 %v4872, %v4856
    %v6649 = vpack.c.b16 %v4873, %v4857
    %v6650 = vpack.c.b16 %v4874, %v4858
    %v6651 = vpack.c.b16 %v4875, %v4859
    %v6652 = vpack.c.b16 %v4876, %v4860
    %v6653 = vpack.c.b16 %v4877, %v4861
    %v6654 = vpack.c.b16 %v4894, %v4878
    %v6655 = vpack.c.b16 %v4895, %v4879
    %v6656 = vpack.c.b16 %v4896, %v4880
    %v6657 = vpack.c.b16 %v4897, %v4881
    %v6658 = vpack.c.b16 %v4898, %v4882
    %v6659 = vpack.c.b16 %v4899, %v4883
    %v6660 = vpack.c.b16 %v4900, %v4884
    %v6661 = vpack.c.b16 %v4901, %v4885
    %v6662 = vpack.c.b16 %v4902, %v4886
    %v6663 = vpack.c.b16 %v4903, %v4887
    %v6664 = vpack.c.b16 %v4904, %v4888
    %v6665 = vpack.c.b16 %v4905, %v4889
    %v6666 = vpack.c.b16 %v4906, %v4890
    %v6667 = vpack.c.b16 %v4907, %v4891
    %v6668 = vpack.c.b16 %v4908, %v4892
    %v6669 = vpack.c.b16 %v4909, %v4893
    %v6670 = vpack.c.b16 %v4926, %v4910
    %v6671 = vpack.c.b16 %v4927, %v4911
    %v6672 = vpack.c.b16 %v4928, %v4912
    %v6673 = vpack.c.b16 %v4929, %v4913
    %v6674 = vpack.c.b16 %v4930, %v4914
    %v6675 = vpack.c.b16 %v4931, %v4915
    %v6676 = vpack.c.b16 %v4932, %v4916
    %v6677 = vpack.c.b16 %v4933, %v4917
    %v6678 = vpack.c.b16 %v4934, %v4918
    %v6679 = vpack.c.b16 %v4935, %v4919
    %v6680 = vpack.c.b16 %v4936, %v4920
    %v6681 = vpack.c.b16 %v4937, %v4921
    %v6682 = vpack.c.b16 %v4938, %v4922
    %v6683 = vpack.c.b16 %v4939, %v4923
    %v6684 = vpack.c.b16 %v4940, %v4924
    %v6685 = vpack.c.b16 %v4941, %v4925
    %v6686 = vpack.c.b16 %v4958, %v4942
    %v6687 = vpack.c.b16 %v4959, %v4943
    %v6688 = vpack.c.b16 %v4960, %v4944
    %v6689 = vpack.c.b16 %v4961, %v4945
    %v6690 = vpack.c.b16 %v4962, %v4946
    %v6691 = vpack.c.b16 %v4963, %v4947
    %v6692 = vpack.c.b16 %v4964, %v4948
    %v6693 = vpack.c.b16 %v4965, %v4949
    %v6694 = vpack.c.b16 %v4966, %v4950
    %v6695 = vpack.c.b16 %v4967, %v4951
    %v6696 = vpack.c.b16 %v4968, %v4952
    %v6697 = vpack.c.b16 %v4969, %v4953
    %v6698 = vpack.c.b16 %v4970, %v4954
    %v6699 = vpack.c.b16 %v4971, %v4955
    %v6700 = vpack.c.b16 %v4972, %v4956
    %v6701 = vpack.c.b16 %v4973, %v4957
    %v6702 = vpack.c.b16 %v4990, %v4974
    %v6703 = vpack.c.b16 %v4991, %v4975
    %v6704 = vpack.c.b16 %v4992, %v4976
    %v6705 = vpack.c.b16 %v4993, %v4977
    %v6706 = vpack.c.b16 %v4994, %v4978
    %v6707 = vpack.c.b16 %v4995, %v4979
    %v6708 = vpack.c.b16 %v4996, %v4980
    %v6709 = vpack.c.b16 %v4997, %v4981
    %v6710 = vpack.c.b16 %v4998, %v4982
    %v6711 = vpack.c.b16 %v4999, %v4983
    %v6712 = vpack.c.b16 %v5000, %v4984
    %v6713 = vpack.c.b16 %v5001, %v4985
    %v6714 = vpack.c.b16 %v5002, %v4986
    %v6715 = vpack.c.b16 %v5003, %v4987
    %v6716 = vpack.c.b16 %v5004, %v4988
    %v6717 = vpack.c.b16 %v5005, %v4989
    %v6718 = vpack.c.b16 %v5022, %v5006
    %v6719 = vpack.c.b16 %v5023, %v5007
    %v6720 = vpack.c.b16 %v5024, %v5008
    %v6721 = vpack.c.b16 %v5025, %v5009
    %v6722 = vpack.c.b16 %v5026, %v5010
    %v6723 = vpack.c.b16 %v5027, %v5011
    %v6724 = vpack.c.b16 %v5028, %v5012
    %v6725 = vpack.c.b16 %v5029, %v5013
    %v6726 = vpack.c.b16 %v5030, %v5014
    %v6727 = vpack.c.b16 %v5031, %v5015
    %v6728 = vpack.c.b16 %v5032, %v5016
    %v6729 = vpack.c.b16 %v5033, %v5017
    %v6730 = vpack.c.b16 %v5034, %v5018
    %v6731 = vpack.c.b16 %v5035, %v5019
    %v6732 = vpack.c.b16 %v5036, %v5020
    %v6733 = vpack.c.b16 %v5037, %v5021
    %v6734 = vpack.c.b16 %v5054, %v5038
    %v6735 = vpack.c.b16 %v5055, %v5039
    %v6736 = vpack.c.b16 %v5056, %v5040
    %v6737 = vpack.c.b16 %v5057, %v5041
    %v6738 = vpack.c.b16 %v5058, %v5042
    %v6739 = vpack.c.b16 %v5059, %v5043
    %v6740 = vpack.c.b16 %v5060, %v5044
    %v6741 = vpack.c.b16 %v5061, %v5045
    %v6742 = vpack.c.b16 %v5062, %v5046
    %v6743 = vpack.c.b16 %v5063, %v5047
    %v6744 = vpack.c.b16 %v5064, %v5048
    %v6745 = vpack.c.b16 %v5065, %v5049
    %v6746 = vpack.c.b16 %v5066, %v5050
    %v6747 = vpack.c.b16 %v5067, %v5051
    %v6748 = vpack.c.b16 %v5068, %v5052
    %v6749 = vpack.c.b16 %v5069, %v5053
    %v6750 = vpack.c.b16 %v5086, %v5070
    %v6751 = vpack.c.b16 %v5087, %v5071
    %v6752 = vpack.c.b16 %v5088, %v5072
    %v6753 = vpack.c.b16 %v5089, %v5073
    %v6754 = vpack.c.b16 %v5090, %v5074
    %v6755 = vpack.c.b16 %v5091, %v5075
    %v6756 = vpack.c.b16 %v5092, %v5076
    %v6757 = vpack.c.b16 %v5093, %v5077
    %v6758 = vpack.c.b16 %v5094, %v5078
    %v6759 = vpack.c.b16 %v5095, %v5079
    %v6760 = vpack.c.b16 %v5096, %v5080
    %v6761 = vpack.c.b16 %v5097, %v5081
    %v6762 = vpack.c.b16 %v5098, %v5082
    %v6763 = vpack.c.b16 %v5099, %v5083
    %v6764 = vpack.c.b16 %v5100, %v5084
    %v6765 = vpack.c.b16 %v5101, %v5085
    %v6766 = vpack.c.b16 %v5118, %v5102
    %v6767 = vpack.c.b16 %v5119, %v5103
    %v6768 = vpack.c.b16 %v5120, %v5104
    %v6769 = vpack.c.b16 %v5121, %v5105
    %v6770 = vpack.c.b16 %v5122, %v5106
    %v6771 = vpack.c.b16 %v5123, %v5107
    %v6772 = vpack.c.b16 %v5124, %v5108
    %v6773 = vpack.c.b16 %v5125, %v5109
    %v6774 = vpack.c.b16 %v5126, %v5110
    %v6775 = vpack.c.b16 %v5127, %v5111
    %v6776 = vpack.c.b16 %v5128, %v5112
    %v6777 = vpack.c.b16 %v5129, %v5113
    %v6778 = vpack.c.b16 %v5130, %v5114
    %v6779 = vpack.c.b16 %v5131, %v5115
    %v6780 = vpack.c.b16 %v5132, %v5116
    %v6781 = vpack.c.b16 %v5133, %v5117
    %v6782 = vpack.c.b16 %v5150, %v5134
    %v6783 = vpack.c.b16 %v5151, %v5135
    %v6784 = vpack.c.b16 %v5152, %v5136
    %v6785 = vpack.c.b16 %v5153, %v5137
    %v6786 = vpack.c.b16 %v5154, %v5138
    %v6787 = vpack.c.b16 %v5155, %v5139
    %v6788 = vpack.c.b16 %v5156, %v5140
    %v6789 = vpack.c.b16 %v5157, %v5141
    %v6790 = vpack.c.b16 %v5158, %v5142
    %v6791 = vpack.c.b16 %v5159, %v5143
    %v6792 = vpack.c.b16 %v5160, %v5144
    %v6793 = vpack.c.b16 %v5161, %v5145
    %v6794 = vpack.c.b16 %v5162, %v5146
    %v6795 = vpack.c.b16 %v5163, %v5147
    %v6796 = vpack.c.b16 %v5164, %v5148
    %v6797 = vpack.c.b16 %v5165, %v5149
    %v6798 = vpack.c.b16 %v5182, %v5166
    %v6799 = vpack.c.b16 %v5183, %v5167
    %v6800 = vpack.c.b16 %v5184, %v5168
    %v6801 = vpack.c.b16 %v5185, %v5169
    %v6802 = vpack.c.b16 %v5186, %v5170
    %v6803 = vpack.c.b16 %v5187, %v5171
    %v6804 = vpack.c.b16 %v5188, %v5172
    %v6805 = vpack.c.b16 %v5189, %v5173
    %v6806 = vpack.c.b16 %v5190, %v5174
    %v6807 = vpack.c.b16 %v5191, %v5175
    %v6808 = vpack.c.b16 %v5192, %v5176
    %v6809 = vpack.c.b16 %v5193, %v5177
    %v6810 = vpack.c.b16 %v5194, %v5178
    %v6811 = vpack.c.b16 %v5195, %v5179
    %v6812 = vpack.c.b16 %v5196, %v5180
    %v6813 = vpack.c.b16 %v5197, %v5181
    %v6814 = vpack.c.b16 %v5214, %v5198
    %v6815 = vpack.c.b16 %v5215, %v5199
    %v6816 = vpack.c.b16 %v5216, %v5200
    %v6817 = vpack.c.b16 %v5217, %v5201
    %v6818 = vpack.c.b16 %v5218, %v5202
    %v6819 = vpack.c.b16 %v5219, %v5203
    %v6820 = vpack.c.b16 %v5220, %v5204
    %v6821 = vpack.c.b16 %v5221, %v5205
    %v6822 = vpack.c.b16 %v5222, %v5206
    %v6823 = vpack.c.b16 %v5223, %v5207
    %v6824 = vpack.c.b16 %v5224, %v5208
    %v6825 = vpack.c.b16 %v5225, %v5209
    %v6826 = vpack.c.b16 %v5226, %v5210
    %v6827 = vpack.c.b16 %v5227, %v5211
    %v6828 = vpack.c.b16 %v5228, %v5212
    %v6829 = vpack.c.b16 %v5229, %v5213
    %v6830 = vpack.c.b16 %v5246, %v5230
    %v6831 = vpack.c.b16 %v5247, %v5231
    %v6832 = vpack.c.b16 %v5248, %v5232
    %v6833 = vpack.c.b16 %v5249, %v5233
    %v6834 = vpack.c.b16 %v5250, %v5234
    %v6835 = vpack.c.b16 %v5251, %v5235
    %v6836 = vpack.c.b16 %v5252, %v5236
    %v6837 = vpack.c.b16 %v5253, %v5237
    %v6838 = vpack.c.b16 %v5254, %v5238
    %v6839 = vpack.c.b16 %v5255, %v5239
    %v6840 = vpack.c.b16 %v5256, %v5240
    %v6841 = vpack.c.b16 %v5257, %v5241
    %v6842 = vpack.c.b16 %v5258, %v5242
    %v6843 = vpack.c.b16 %v5259, %v5243
    %v6844 = vpack.c.b16 %v5260, %v5244
    %v6845 = vpack.c.b16 %v5261, %v5245
    %v6846 = vpack.c.b16 %v5278, %v5262
    %v6847 = vpack.c.b16 %v5279, %v5263
    %v6848 = vpack.c.b16 %v5280, %v5264
    %v6849 = vpack.c.b16 %v5281, %v5265
    %v6850 = vpack.c.b16 %v5282, %v5266
    %v6851 = vpack.c.b16 %v5283, %v5267
    %v6852 = vpack.c.b16 %v5284, %v5268
    %v6853 = vpack.c.b16 %v5285, %v5269
    %v6854 = vpack.c.b16 %v5286, %v5270
    %v6855 = vpack.c.b16 %v5287, %v5271
    %v6856 = vpack.c.b16 %v5288, %v5272
    %v6857 = vpack.c.b16 %v5289, %v5273
    %v6858 = vpack.c.b16 %v5290, %v5274
    %v6859 = vpack.c.b16 %v5291, %v5275
    %v6860 = vpack.c.b16 %v5292, %v5276
    %v6861 = vpack.c.b16 %v5293, %v5277
    %v6862 = vpack.c.b16 %v5310, %v5294
    %v6863 = vpack.c.b16 %v5311, %v5295
    %v6864 = vpack.c.b16 %v5312, %v5296
    %v6865 = vpack.c.b16 %v5313, %v5297
    %v6866 = vpack.c.b16 %v5314, %v5298
    %v6867 = vpack.c.b16 %v5315, %v5299
    %v6868 = vpack.c.b16 %v5316, %v5300
    %v6869 = vpack.c.b16 %v5317, %v5301
    %v6870 = vpack.c.b16 %v5318, %v5302
    %v6871 = vpack.c.b16 %v5319, %v5303
    %v6872 = vpack.c.b16 %v5320, %v5304
    %v6873 = vpack.c.b16 %v5321, %v5305
    %v6874 = vpack.c.b16 %v5322, %v5306
    %v6875 = vpack.c.b16 %v5323, %v5307
    %v6876 = vpack.c.b16 %v5324, %v5308
    %v6877 = vpack.c.b16 %v5325, %v5309
    %v6878 = vpack.c.b16 %v5342, %v5326
    %v6879 = vpack.c.b16 %v5343, %v5327
    %v6880 = vpack.c.b16 %v5344, %v5328
    %v6881 = vpack.c.b16 %v5345, %v5329
    %v6882 = vpack.c.b16 %v5346, %v5330
    %v6883 = vpack.c.b16 %v5347, %v5331
    %v6884 = vpack.c.b16 %v5348, %v5332
    %v6885 = vpack.c.b16 %v5349, %v5333
    %v6886 = vpack.c.b16 %v5350, %v5334
    %v6887 = vpack.c.b16 %v5351, %v5335
    %v6888 = vpack.c.b16 %v5352, %v5336
    %v6889 = vpack.c.b16 %v5353, %v5337
    %v6890 = vpack.c.b16 %v5354, %v5338
    %v6891 = vpack.c.b16 %v5355, %v5339
    %v6892 = vpack.c.b16 %v5356, %v5340
    %v6893 = vpack.c.b16 %v5357, %v5341
    %v6894 = vpack.c.b16 %v5374, %v5358
    %v6895 = vpack.c.b16 %v5375, %v5359
    %v6896 = vpack.c.b16 %v5376, %v5360
    %v6897 = vpack.c.b16 %v5377, %v5361
    %v6898 = vpack.c.b16 %v5378, %v5362
    %v6899 = vpack.c.b16 %v5379, %v5363
    %v6900 = vpack.c.b16 %v5380, %v5364
    %v6901 = vpack.c.b16 %v5381, %v5365
    %v6902 = vpack.c.b16 %v5382, %v5366
    %v6903 = vpack.c.b16 %v5383, %v5367
    %v6904 = vpack.c.b16 %v5384, %v5368
    %v6905 = vpack.c.b16 %v5385, %v5369
    %v6906 = vpack.c.b16 %v5386, %v5370
    %v6907 = vpack.c.b16 %v5387, %v5371
    %v6908 = vpack.c.b16 %v5388, %v5372
    %v6909 = vpack.c.b16 %v5389, %v5373
    %v6910 = vpack.c.b16 %v5406, %v5390
    %v6911 = vpack.c.b16 %v5407, %v5391
    %v6912 = vpack.c.b16 %v5408, %v5392
    %v6913 = vpack.c.b16 %v5409, %v5393
    %v6914 = vpack.c.b16 %v5410, %v5394
    %v6915 = vpack.c.b16 %v5411, %v5395
    %v6916 = vpack.c.b16 %v5412, %v5396
    %v6917 = vpack.c.b16 %v5413, %v5397
    %v6918 = vpack.c.b16 %v5414, %v5398
    %v6919 = vpack.c.b16 %v5415, %v5399
    %v6920 = vpack.c.b16 %v5416, %v5400
    %v6921 = vpack.c.b16 %v5417, %v5401
    %v6922 = vpack.c.b16 %v5418, %v5402
    %v6923 = vpack.c.b16 %v5419, %v5403
    %v6924 = vpack.c.b16 %v5420, %v5404
    %v6925 = vpack.c.b16 %v5421, %v5405
    %v6926 = vpack.c.b16 %v5438, %v5422
    %v6927 = vpack.c.b16 %v5439, %v5423
    %v6928 = vpack.c.b16 %v5440, %v5424
    %v6929 = vpack.c.b16 %v5441, %v5425
    %v6930 = vpack.c.b16 %v5442, %v5426
    %v6931 = vpack.c.b16 %v5443, %v5427
    %v6932 = vpack.c.b16 %v5444, %v5428
    %v6933 = vpack.c.b16 %v5445, %v5429
    %v6934 = vpack.c.b16 %v5446, %v5430
    %v6935 = vpack.c.b16 %v5447, %v5431
    %v6936 = vpack.c.b16 %v5448, %v5432
    %v6937 = vpack.c.b16 %v5449, %v5433
    %v6938 = vpack.c.b16 %v5450, %v5434
    %v6939 = vpack.c.b16 %v5451, %v5435
    %v6940 = vpack.c.b16 %v5452, %v5436
    %v6941 = vpack.c.b16 %v5453, %v5437
    %v6942 = vpack.c.b16 %v5470, %v5454
    %v6943 = vpack.c.b16 %v5471, %v5455
    %v6944 = vpack.c.b16 %v5472, %v5456
    %v6945 = vpack.c.b16 %v5473, %v5457
    %v6946 = vpack.c.b16 %v5474, %v5458
    %v6947 = vpack.c.b16 %v5475, %v5459
    %v6948 = vpack.c.b16 %v5476, %v5460
    %v6949 = vpack.c.b16 %v5477, %v5461
    %v6950 = vpack.c.b16 %v5478, %v5462
    %v6951 = vpack.c.b16 %v5479, %v5463
    %v6952 = vpack.c.b16 %v5480, %v5464
    %v6953 = vpack.c.b16 %v5481, %v5465
    %v6954 = vpack.c.b16 %v5482, %v5466
    %v6955 = vpack.c.b16 %v5483, %v5467
    %v6956 = vpack.c.b16 %v5484, %v5468
    %v6957 = vpack.c.b16 %v5485, %v5469
    %v6958 = vpack.c.b16 %v5502, %v5486
    %v6959 = vpack.c.b16 %v5503, %v5487
    %v6960 = vpack.c.b16 %v5504, %v5488
    %v6961 = vpack.c.b16 %v5505, %v5489
    %v6962 = vpack.c.b16 %v5506, %v5490
    %v6963 = vpack.c.b16 %v5507, %v5491
    %v6964 = vpack.c.b16 %v5508, %v5492
    %v6965 = vpack.c.b16 %v5509, %v5493
    %v6966 = vpack.c.b16 %v5510, %v5494
    %v6967 = vpack.c.b16 %v5511, %v5495
    %v6968 = vpack.c.b16 %v5512, %v5496
    %v6969 = vpack.c.b16 %v5513, %v5497
    %v6970 = vpack.c.b16 %v5514, %v5498
    %v6971 = vpack.c.b16 %v5515, %v5499
    %v6972 = vpack.c.b16 %v5516, %v5500
    %v6973 = vpack.c.b16 %v5517, %v5501
    %v6974 = vpack.c.b16 %v5534, %v5518
    %v6975 = vpack.c.b16 %v5535, %v5519
    %v6976 = vpack.c.b16 %v5536, %v5520
    %v6977 = vpack.c.b16 %v5537, %v5521
    %v6978 = vpack.c.b16 %v5538, %v5522
    %v6979 = vpack.c.b16 %v5539, %v5523
    %v6980 = vpack.c.b16 %v5540, %v5524
    %v6981 = vpack.c.b16 %v5541, %v5525
    %v6982 = vpack.c.b16 %v5542, %v5526
    %v6983 = vpack.c.b16 %v5543, %v5527
    %v6984 = vpack.c.b16 %v5544, %v5528
    %v6985 = vpack.c.b16 %v5545, %v5529
    %v6986 = vpack.c.b16 %v5546, %v5530
    %v6987 = vpack.c.b16 %v5547, %v5531
    %v6988 = vpack.c.b16 %v5548, %v5532
    %v6989 = vpack.c.b16 %v5549, %v5533
    %v6990 = vpack.c.b16 %v5566, %v5550
    %v6991 = vpack.c.b16 %v5567, %v5551
    %v6992 = vpack.c.b16 %v5568, %v5552
    %v6993 = vpack.c.b16 %v5569, %v5553
    %v6994 = vpack.c.b16 %v5570, %v5554
    %v6995 = vpack.c.b16 %v5571, %v5555
    %v6996 = vpack.c.b16 %v5572, %v5556
    %v6997 = vpack.c.b16 %v5573, %v5557
    %v6998 = vpack.c.b16 %v5574, %v5558
    %v6999 = vpack.c.b16 %v5575, %v5559
    %v7000 = vpack.c.b16 %v5576, %v5560
    %v7001 = vpack.c.b16 %v5577, %v5561
    %v7002 = vpack.c.b16 %v5578, %v5562
    %v7003 = vpack.c.b16 %v5579, %v5563
    %v7004 = vpack.c.b16 %v5580, %v5564
    %v7005 = vpack.c.b16 %v5581, %v5565
    %v7006 = vpack.c.b16 %v5598, %v5582
    %v7007 = vpack.c.b16 %v5599, %v5583
    %v7008 = vpack.c.b16 %v5600, %v5584
    %v7009 = vpack.c.b16 %v5601, %v5585
    %v7010 = vpack.c.b16 %v5602, %v5586
    %v7011 = vpack.c.b16 %v5603, %v5587
    %v7012 = vpack.c.b16 %v5604, %v5588
    %v7013 = vpack.c.b16 %v5605, %v5589
    %v7014 = vpack.c.b16 %v5606, %v5590
    %v7015 = vpack.c.b16 %v5607, %v5591
    %v7016 = vpack.c.b16 %v5608, %v5592
    %v7017 = vpack.c.b16 %v5609, %v5593
    %v7018 = vpack.c.b16 %v5610, %v5594
    %v7019 = vpack.c.b16 %v5611, %v5595
    %v7020 = vpack.c.b16 %v5612, %v5596
    %v7021 = vpack.c.b16 %v5613, %v5597
    %v7022 = vpack.c.b16 %v5630, %v5614
    %v7023 = vpack.c.b16 %v5631, %v5615
    %v7024 = vpack.c.b16 %v5632, %v5616
    %v7025 = vpack.c.b16 %v5633, %v5617
    %v7026 = vpack.c.b16 %v5634, %v5618
    %v7027 = vpack.c.b16 %v5635, %v5619
    %v7028 = vpack.c.b16 %v5636, %v5620
    %v7029 = vpack.c.b16 %v5637, %v5621
    %v7030 = vpack.c.b16 %v5638, %v5622
    %v7031 = vpack.c.b16 %v5639, %v5623
    %v7032 = vpack.c.b16 %v5640, %v5624
    %v7033 = vpack.c.b16 %v5641, %v5625
    %v7034 = vpack.c.b16 %v5642, %v5626
    %v7035 = vpack.c.b16 %v5643, %v5627
    %v7036 = vpack.c.b16 %v5644, %v5628
    %v7037 = vpack.c.b16 %v5645, %v5629
    %v7038 = vpack.c.b16 %v5662, %v5646
    %v7039 = vpack.c.b16 %v5663, %v5647
    %v7040 = vpack.c.b16 %v5664, %v5648
    %v7041 = vpack.c.b16 %v5665, %v5649
    %v7042 = vpack.c.b16 %v5666, %v5650
    %v7043 = vpack.c.b16 %v5667, %v5651
    %v7044 = vpack.c.b16 %v5668, %v5652
    %v7045 = vpack.c.b16 %v5669, %v5653
    %v7046 = vpack.c.b16 %v5670, %v5654
    %v7047 = vpack.c.b16 %v5671, %v5655
    %v7048 = vpack.c.b16 %v5672, %v5656
    %v7049 = vpack.c.b16 %v5673, %v5657
    %v7050 = vpack.c.b16 %v5674, %v5658
    %v7051 = vpack.c.b16 %v5675, %v5659
    %v7052 = vpack.c.b16 %v5676, %v5660
    %v7053 = vpack.c.b16 %v5677, %v5661
    %v7054 = vpack.c.b16 %v5694, %v5678
    %v7055 = vpack.c.b16 %v5695, %v5679
    %v7056 = vpack.c.b16 %v5696, %v5680
    %v7057 = vpack.c.b16 %v5697, %v5681
    %v7058 = vpack.c.b16 %v5698, %v5682
    %v7059 = vpack.c.b16 %v5699, %v5683
    %v7060 = vpack.c.b16 %v5700, %v5684
    %v7061 = vpack.c.b16 %v5701, %v5685
    %v7062 = vpack.c.b16 %v5702, %v5686
    %v7063 = vpack.c.b16 %v5703, %v5687
    %v7064 = vpack.c.b16 %v5704, %v5688
    %v7065 = vpack.c.b16 %v5705, %v5689
    %v7066 = vpack.c.b16 %v5706, %v5690
    %v7067 = vpack.c.b16 %v5707, %v5691
    %v7068 = vpack.c.b16 %v5708, %v5692
    %v7069 = vpack.c.b16 %v5709, %v5693
    %v7070 = vpack.c.b16 %v5726, %v5710
    %v7071 = vpack.c.b16 %v5727, %v5711
    %v7072 = vpack.c.b16 %v5728, %v5712
    %v7073 = vpack.c.b16 %v5729, %v5713
    %v7074 = vpack.c.b16 %v5730, %v5714
    %v7075 = vpack.c.b16 %v5731, %v5715
    %v7076 = vpack.c.b16 %v5732, %v5716
    %v7077 = vpack.c.b16 %v5733, %v5717
    %v7078 = vpack.c.b16 %v5734, %v5718
    %v7079 = vpack.c.b16 %v5735, %v5719
    %v7080 = vpack.c.b16 %v5736, %v5720
    %v7081 = vpack.c.b16 %v5737, %v5721
    %v7082 = vpack.c.b16 %v5738, %v5722
    %v7083 = vpack.c.b16 %v5739, %v5723
    %v7084 = vpack.c.b16 %v5740, %v5724
    %v7085 = vpack.c.b16 %v5741, %v5725
    %v7086 = vpack.c.b16 %v5758, %v5742
    %v7087 = vpack.c.b16 %v5759, %v5743
    %v7088 = vpack.c.b16 %v5760, %v5744
    %v7089 = vpack.c.b16 %v5761, %v5745
    %v7090 = vpack.c.b16 %v5762, %v5746
    %v7091 = vpack.c.b16 %v5763, %v5747
    %v7092 = vpack.c.b16 %v5764, %v5748
    %v7093 = vpack.c.b16 %v5765, %v5749
    %v7094 = vpack.c.b16 %v5766, %v5750
    %v7095 = vpack.c.b16 %v5767, %v5751
    %v7096 = vpack.c.b16 %v5768, %v5752
    %v7097 = vpack.c.b16 %v5769, %v5753
    %v7098 = vpack.c.b16 %v5770, %v5754
    %v7099 = vpack.c.b16 %v5771, %v5755
    %v7100 = vpack.c.b16 %v5772, %v5756
    %v7101 = vpack.c.b16 %v5773, %v5757
    %v7102 = vpack.c.b16 %v5790, %v5774
    %v7103 = vpack.c.b16 %v5791, %v5775
    %v7104 = vpack.c.b16 %v5792, %v5776
    %v7105 = vpack.c.b16 %v5793, %v5777
    %v7106 = vpack.c.b16 %v5794, %v5778
    %v7107 = vpack.c.b16 %v5795, %v5779
    %v7108 = vpack.c.b16 %v5796, %v5780
    %v7109 = vpack.c.b16 %v5797, %v5781
    %v7110 = vpack.c.b16 %v5798, %v5782
    %v7111 = vpack.c.b16 %v5799, %v5783
    %v7112 = vpack.c.b16 %v5800, %v5784
    %v7113 = vpack.c.b16 %v5801, %v5785
    %v7114 = vpack.c.b16 %v5802, %v5786
    %v7115 = vpack.c.b16 %v5803, %v5787
    %v7116 = vpack.c.b16 %v5804, %v5788
    %v7117 = vpack.c.b16 %v5805, %v5789
    %v7118 = vpack.c.b16 %v5822, %v5806
    %v7119 = vpack.c.b16 %v5823, %v5807
    %v7120 = vpack.c.b16 %v5824, %v5808
    %v7121 = vpack.c.b16 %v5825, %v5809
    %v7122 = vpack.c.b16 %v5826, %v5810
    %v7123 = vpack.c.b16 %v5827, %v5811
    %v7124 = vpack.c.b16 %v5828, %v5812
    %v7125 = vpack.c.b16 %v5829, %v5813
    %v7126 = vpack.c.b16 %v5830, %v5814
    %v7127 = vpack.c.b16 %v5831, %v5815
    %v7128 = vpack.c.b16 %v5832, %v5816
    %v7129 = vpack.c.b16 %v5833, %v5817
    %v7130 = vpack.c.b16 %v5834, %v5818
    %v7131 = vpack.c.b16 %v5835, %v5819
    %v7132 = vpack.c.b16 %v5836, %v5820
    %v7133 = vpack.c.b16 %v5837, %v5821
    %v7134 = vpack.c.b16 %v5854, %v5838
    %v7135 = vpack.c.b16 %v5855, %v5839
    %v7136 = vpack.c.b16 %v5856, %v5840
    %v7137 = vpack.c.b16 %v5857, %v5841
    %v7138 = vpack.c.b16 %v5858, %v5842
    %v7139 = vpack.c.b16 %v5859, %v5843
    %v7140 = vpack.c.b16 %v5860, %v5844
    %v7141 = vpack.c.b16 %v5861, %v5845
    %v7142 = vpack.c.b16 %v5862, %v5846
    %v7143 = vpack.c.b16 %v5863, %v5847
    %v7144 = vpack.c.b16 %v5864, %v5848
    %v7145 = vpack.c.b16 %v5865, %v5849
    %v7146 = vpack.c.b16 %v5866, %v5850
    %v7147 = vpack.c.b16 %v5867, %v5851
    %v7148 = vpack.c.b16 %v5868, %v5852
    %v7149 = vpack.c.b16 %v5869, %v5853
    %v7150 = vpack.c.b16 %v5886, %v5870
    %v7151 = vpack.c.b16 %v5887, %v5871
    %v7152 = vpack.c.b16 %v5888, %v5872
    %v7153 = vpack.c.b16 %v5889, %v5873
    %v7154 = vpack.c.b16 %v5890, %v5874
    %v7155 = vpack.c.b16 %v5891, %v5875
    %v7156 = vpack.c.b16 %v5892, %v5876
    %v7157 = vpack.c.b16 %v5893, %v5877
    %v7158 = vpack.c.b16 %v5894, %v5878
    %v7159 = vpack.c.b16 %v5895, %v5879
    %v7160 = vpack.c.b16 %v5896, %v5880
    %v7161 = vpack.c.b16 %v5897, %v5881
    %v7162 = vpack.c.b16 %v5898, %v5882
    %v7163 = vpack.c.b16 %v5899, %v5883
    %v7164 = vpack.c.b16 %v5900, %v5884
    %v7165 = vpack.c.b16 %v5901, %v5885
    %v7166 = vpack.c.b16 %v5918, %v5902
    %v7167 = vpack.c.b16 %v5919, %v5903
    %v7168 = vpack.c.b16 %v5920, %v5904
    %v7169 = vpack.c.b16 %v5921, %v5905
    %v7170 = vpack.c.b16 %v5922, %v5906
    %v7171 = vpack.c.b16 %v5923, %v5907
    %v7172 = vpack.c.b16 %v5924, %v5908
    %v7173 = vpack.c.b16 %v5925, %v5909
    %v7174 = vpack.c.b16 %v5926, %v5910
    %v7175 = vpack.c.b16 %v5927, %v5911
    %v7176 = vpack.c.b16 %v5928, %v5912
    %v7177 = vpack.c.b16 %v5929, %v5913
    %v7178 = vpack.c.b16 %v5930, %v5914
    %v7179 = vpack.c.b16 %v5931, %v5915
    %v7180 = vpack.c.b16 %v5932, %v5916
    %v7181 = vpack.c.b16 %v5933, %v5917
    %v7182 = vpack.c.b16 %v5950, %v5934
    %v7183 = vpack.c.b16 %v5951, %v5935
    %v7184 = vpack.c.b16 %v5952, %v5936
    %v7185 = vpack.c.b16 %v5953, %v5937
    %v7186 = vpack.c.b16 %v5954, %v5938
    %v7187 = vpack.c.b16 %v5955, %v5939
    %v7188 = vpack.c.b16 %v5956, %v5940
    %v7189 = vpack.c.b16 %v5957, %v5941
    %v7190 = vpack.c.b16 %v5958, %v5942
    %v7191 = vpack.c.b16 %v5959, %v5943
    %v7192 = vpack.c.b16 %v5960, %v5944
    %v7193 = vpack.c.b16 %v5961, %v5945
    %v7194 = vpack.c.b16 %v5962, %v5946
    %v7195 = vpack.c.b16 %v5963, %v5947
    %v7196 = vpack.c.b16 %v5964, %v5948
    %v7197 = vpack.c.b16 %v5965, %v5949
    %v7198 = vpack.c.b16 %v5982, %v5966
    %v7199 = vpack.c.b16 %v5983, %v5967
    %v7200 = vpack.c.b16 %v5984, %v5968
    %v7201 = vpack.c.b16 %v5985, %v5969
    %v7202 = vpack.c.b16 %v5986, %v5970
    %v7203 = vpack.c.b16 %v5987, %v5971
    %v7204 = vpack.c.b16 %v5988, %v5972
    %v7205 = vpack.c.b16 %v5989, %v5973
    %v7206 = vpack.c.b16 %v5990, %v5974
    %v7207 = vpack.c.b16 %v5991, %v5975
    %v7208 = vpack.c.b16 %v5992, %v5976
    %v7209 = vpack.c.b16 %v5993, %v5977
    %v7210 = vpack.c.b16 %v5994, %v5978
    %v7211 = vpack.c.b16 %v5995, %v5979
    %v7212 = vpack.c.b16 %v5996, %v5980
    %v7213 = vpack.c.b16 %v5997, %v5981
    %v7214 = vpack.c.b16 %v6014, %v5998
    %v7215 = vpack.c.b16 %v6015, %v5999
    %v7216 = vpack.c.b16 %v6016, %v6000
    %v7217 = vpack.c.b16 %v6017, %v6001
    %v7218 = vpack.c.b16 %v6018, %v6002
    %v7219 = vpack.c.b16 %v6019, %v6003
    %v7220 = vpack.c.b16 %v6020, %v6004
    %v7221 = vpack.c.b16 %v6021, %v6005
    %v7222 = vpack.c.b16 %v6022, %v6006
    %v7223 = vpack.c.b16 %v6023, %v6007
    %v7224 = vpack.c.b16 %v6024, %v6008
    %v7225 = vpack.c.b16 %v6025, %v6009
    %v7226 = vpack.c.b16 %v6026, %v6010
    %v7227 = vpack.c.b16 %v6027, %v6011
    %v7228 = vpack.c.b16 %v6028, %v6012
    %v7229 = vpack.c.b16 %v6029, %v6013
    %v7230 = vpack.c.b16 %v6046, %v6030
    %v7231 = vpack.c.b16 %v6047, %v6031
    %v7232 = vpack.c.b16 %v6048, %v6032
    %v7233 = vpack.c.b16 %v6049, %v6033
    %v7234 = vpack.c.b16 %v6050, %v6034
    %v7235 = vpack.c.b16 %v6051, %v6035
    %v7236 = vpack.c.b16 %v6052, %v6036
    %v7237 = vpack.c.b16 %v6053, %v6037
    %v7238 = vpack.c.b16 %v6054, %v6038
    %v7239 = vpack.c.b16 %v6055, %v6039
    %v7240 = vpack.c.b16 %v6056, %v6040
    %v7241 = vpack.c.b16 %v6057, %v6041
    %v7242 = vpack.c.b16 %v6058, %v6042
    %v7243 = vpack.c.b16 %v6059, %v6043
    %v7244 = vpack.c.b16 %v6060, %v6044
    %v7245 = vpack.c.b16 %v6061, %v6045
    %v7246 = vpack.c.b16 %v6078, %v6062
    %v7247 = vpack.c.b16 %v6079, %v6063
    %v7248 = vpack.c.b16 %v6080, %v6064
    %v7249 = vpack.c.b16 %v6081, %v6065
    %v7250 = vpack.c.b16 %v6082, %v6066
    %v7251 = vpack.c.b16 %v6083, %v6067
    %v7252 = vpack.c.b16 %v6084, %v6068
    %v7253 = vpack.c.b16 %v6085, %v6069
    %v7254 = vpack.c.b16 %v6086, %v6070
    %v7255 = vpack.c.b16 %v6087, %v6071
    %v7256 = vpack.c.b16 %v6088, %v6072
    %v7257 = vpack.c.b16 %v6089, %v6073
    %v7258 = vpack.c.b16 %v6090, %v6074
    %v7259 = vpack.c.b16 %v6091, %v6075
    %v7260 = vpack.c.b16 %v6092, %v6076
    %v7261 = vpack.c.b16 %v6093, %v6077
    %v7262 = vpack.c.b16 %v6110, %v6094
    %v7263 = vpack.c.b16 %v6111, %v6095
    %v7264 = vpack.c.b16 %v6112, %v6096
    %v7265 = vpack.c.b16 %v6113, %v6097
    %v7266 = vpack.c.b16 %v6114, %v6098
    %v7267 = vpack.c.b16 %v6115, %v6099
    %v7268 = vpack.c.b16 %v6116, %v6100
    %v7269 = vpack.c.b16 %v6117, %v6101
    %v7270 = vpack.c.b16 %v6118, %v6102
    %v7271 = vpack.c.b16 %v6119, %v6103
    %v7272 = vpack.c.b16 %v6120, %v6104
    %v7273 = vpack.c.b16 %v6121, %v6105
    %v7274 = vpack.c.b16 %v6122, %v6106
    %v7275 = vpack.c.b16 %v6123, %v6107
    %v7276 = vpack.c.b16 %v6124, %v6108
    %v7277 = vpack.c.b16 %v6125, %v6109
    %v7278 = vpack.c.b16 %v6142, %v6126
    %v7279 = vpack.c.b16 %v6143, %v6127
    %v7280 = vpack.c.b16 %v6144, %v6128
    %v7281 = vpack.c.b16 %v6145, %v6129
    %v7282 = vpack.c.b16 %v6146, %v6130
    %v7283 = vpack.c.b16 %v6147, %v6131
    %v7284 = vpack.c.b16 %v6148, %v6132
    %v7285 = vpack.c.b16 %v6149, %v6133
    %v7286 = vpack.c.b16 %v6150, %v6134
    %v7287 = vpack.c.b16 %v6151, %v6135
    %v7288 = vpack.c.b16 %v6152, %v6136
    %v7289 = vpack.c.b16 %v6153, %v6137
    %v7290 = vpack.c.b16 %v6154, %v6138
    %v7291 = vpack.c.b16 %v6155, %v6139
    %v7292 = vpack.c.b16 %v6156, %v6140
    %v7293 = vpack.c.b16 %v6157, %v6141
    %v7294 = vpack.c.b16 %v6174, %v6158
    %v7295 = vpack.c.b16 %v6175, %v6159
    %v7296 = vpack.c.b16 %v6176, %v6160
    %v7297 = vpack.c.b16 %v6177, %v6161
    %v7298 = vpack.c.b16 %v6178, %v6162
    %v7299 = vpack.c.b16 %v6179, %v6163
    %v7300 = vpack.c.b16 %v6180, %v6164
    %v7301 = vpack.c.b16 %v6181, %v6165
    %v7302 = vpack.c.b16 %v6182, %v6166
    %v7303 = vpack.c.b16 %v6183, %v6167
    %v7304 = vpack.c.b16 %v6184, %v6168
    %v7305 = vpack.c.b16 %v6185, %v6169
    %v7306 = vpack.c.b16 %v6186, %v6170
    %v7307 = vpack.c.b16 %v6187, %v6171
    %v7308 = vpack.c.b16 %v6188, %v6172
    %v7309 = vpack.c.b16 %v6189, %v6173
    %v7310 = vpack.c.b16 %v6206, %v6190
    %v7311 = vpack.c.b16 %v6207, %v6191
    %v7312 = vpack.c.b16 %v6208, %v6192
    %v7313 = vpack.c.b16 %v6209, %v6193
    %v7314 = vpack.c.b16 %v6210, %v6194
    %v7315 = vpack.c.b16 %v6211, %v6195
    %v7316 = vpack.c.b16 %v6212, %v6196
    %v7317 = vpack.c.b16 %v6213, %v6197
    %v7318 = vpack.c.b16 %v6214, %v6198
    %v7319 = vpack.c.b16 %v6215, %v6199
    %v7320 = vpack.c.b16 %v6216, %v6200
    %v7321 = vpack.c.b16 %v6217, %v6201
    %v7322 = vpack.c.b16 %v6218, %v6202
    %v7323 = vpack.c.b16 %v6219, %v6203
    %v7324 = vpack.c.b16 %v6220, %v6204
    %v7325 = vpack.c.b16 %v6221, %v6205
    %v7326 = vpack.c.b16 %v6238, %v6222
    %v7327 = vpack.c.b16 %v6239, %v6223
    %v7328 = vpack.c.b16 %v6240, %v6224
    %v7329 = vpack.c.b16 %v6241, %v6225
    %v7330 = vpack.c.b16 %v6242, %v6226
    %v7331 = vpack.c.b16 %v6243, %v6227
    %v7332 = vpack.c.b16 %v6244, %v6228
    %v7333 = vpack.c.b16 %v6245, %v6229
    %v7334 = vpack.c.b16 %v6246, %v6230
    %v7335 = vpack.c.b16 %v6247, %v6231
    %v7336 = vpack.c.b16 %v6248, %v6232
    %v7337 = vpack.c.b16 %v6249, %v6233
    %v7338 = vpack.c.b16 %v6250, %v6234
    %v7339 = vpack.c.b16 %v6251, %v6235
    %v7340 = vpack.c.b16 %v6252, %v6236
    %v7341 = vpack.c.b16 %v6253, %v6237
    %v7342 = vpack.c.b16 %v6270, %v6254
    %v7343 = vpack.c.b16 %v6271, %v6255
    %v7344 = vpack.c.b16 %v6272, %v6256
    %v7345 = vpack.c.b16 %v6273, %v6257
    %v7346 = vpack.c.b16 %v6274, %v6258
    %v7347 = vpack.c.b16 %v6275, %v6259
    %v7348 = vpack.c.b16 %v6276, %v6260
    %v7349 = vpack.c.b16 %v6277, %v6261
    %v7350 = vpack.c.b16 %v6278, %v6262
    %v7351 = vpack.c.b16 %v6279, %v6263
    %v7352 = vpack.c.b16 %v6280, %v6264
    %v7353 = vpack.c.b16 %v6281, %v6265
    %v7354 = vpack.c.b16 %v6282, %v6266
    %v7355 = vpack.c.b16 %v6283, %v6267
    %v7356 = vpack.c.b16 %v6284, %v6268
    %v7357 = vpack.c.b16 %v6285, %v6269
    %v7358 = vpack.c.b16 %v6302, %v6286
    %v7359 = vpack.c.b16 %v6303, %v6287
    %v7360 = vpack.c.b16 %v6304, %v6288
    %v7361 = vpack.c.b16 %v6305, %v6289
    %v7362 = vpack.c.b16 %v6306, %v6290
    %v7363 = vpack.c.b16 %v6307, %v6291
    %v7364 = vpack.c.b16 %v6308, %v6292
    %v7365 = vpack.c.b16 %v6309, %v6293
    %v7366 = vpack.c.b16 %v6310, %v6294
    %v7367 = vpack.c.b16 %v6311, %v6295
    %v7368 = vpack.c.b16 %v6312, %v6296
    %v7369 = vpack.c.b16 %v6313, %v6297
    %v7370 = vpack.c.b16 %v6314, %v6298
    %v7371 = vpack.c.b16 %v6315, %v6299
    %v7372 = vpack.c.b16 %v6316, %v6300
    %v7373 = vpack.c.b16 %v6317, %v6301
    %v7374 = vpack.c.b16 %v6334, %v6318
    %v7375 = vpack.c.b16 %v6335, %v6319
    %v7376 = vpack.c.b16 %v6336, %v6320
    %v7377 = vpack.c.b16 %v6337, %v6321
    %v7378 = vpack.c.b16 %v6338, %v6322
    %v7379 = vpack.c.b16 %v6339, %v6323
    %v7380 = vpack.c.b16 %v6340, %v6324
    %v7381 = vpack.c.b16 %v6341, %v6325
    %v7382 = vpack.c.b16 %v6342, %v6326
    %v7383 = vpack.c.b16 %v6343, %v6327
    %v7384 = vpack.c.b16 %v6344, %v6328
    %v7385 = vpack.c.b16 %v6345, %v6329
    %v7386 = vpack.c.b16 %v6346, %v6330
    %v7387 = vpack.c.b16 %v6347, %v6331
    %v7388 = vpack.c.b16 %v6348, %v6332
    %v7389 = vpack.c.b16 %v6349, %v6333
    %v7390 = vpack.c.b16 %v6366, %v6350
    %v7391 = vpack.c.b16 %v6367, %v6351
    %v7392 = vpack.c.b16 %v6368, %v6352
    %v7393 = vpack.c.b16 %v6369, %v6353
    %v7394 = vpack.c.b16 %v6370, %v6354
    %v7395 = vpack.c.b16 %v6371, %v6355
    %v7396 = vpack.c.b16 %v6372, %v6356
    %v7397 = vpack.c.b16 %v6373, %v6357
    %v7398 = vpack.c.b16 %v6374, %v6358
    %v7399 = vpack.c.b16 %v6375, %v6359
    %v7400 = vpack.c.b16 %v6376, %v6360
    %v7401 = vpack.c.b16 %v6377, %v6361
    %v7402 = vpack.c.b16 %v6378, %v6362
    %v7403 = vpack.c.b16 %v6379, %v6363
    %v7404 = vpack.c.b16 %v6380, %v6364
    %v7405 = vpack.c.b16 %v6381, %v6365
    %8430 = vmatprep.subr.bf16.mxu0 %v6383
    %8431 = vmatpush1.bf16.msra.mxu0 %v6382
    %8432 = vmatprep.subr.bf16.mxu0 %v6399
    %8433 = vmatpush1.bf16.msra.mxu0 %v6398
    %8434 = vmatprep.subr.bf16.mxu0 %v6415
    %8435 = vmatpush1.bf16.msra.mxu0 %v6414
    %8436 = vmatprep.subr.bf16.mxu0 %v6431
    %8437 = vmatpush1.bf16.msra.mxu0 %v6430
    %8438 = vmatprep.subr.bf16.mxu0 %v6447
    %8439 = vmatpush1.bf16.msra.mxu0 %v6446
    %8440 = vmatprep.subr.bf16.mxu0 %v6463
    %8441 = vmatpush1.bf16.msra.mxu0 %v6462
    %8442 = vmatprep.subr.bf16.mxu0 %v6479
    %8443 = vmatpush1.bf16.msra.mxu0 %v6478
    %8444 = vmatprep.subr.bf16.mxu0 %v6495
    %8445 = vmatpush1.bf16.msra.mxu0 %v6494
    %8446 = vmatprep.subr.bf16.mxu0 %v6511
    %8447 = vmatpush1.bf16.msra.mxu0 %v6510
    %8448 = vmatprep.subr.bf16.mxu0 %v6527
    %8449 = vmatpush1.bf16.msra.mxu0 %v6526
    %8450 = vmatprep.subr.bf16.mxu0 %v6543
    %8451 = vmatpush1.bf16.msra.mxu0 %v6542
    %8452 = vmatprep.subr.bf16.mxu0 %v6559
    %8453 = vmatpush1.bf16.msra.mxu0 %v6558
    %8454 = vmatprep.subr.bf16.mxu0 %v6575
    %8455 = vmatpush1.bf16.msra.mxu0 %v6574
    %8456 = vmatprep.subr.bf16.mxu0 %v6591
    %8457 = vmatpush1.bf16.msra.mxu0 %v6590
    %8458 = vmatprep.subr.bf16.mxu0 %v6607
    %8459 = vmatpush1.bf16.msra.mxu0 %v6606
    %8460 = vmatprep.subr.bf16.mxu0 %v6623
    %8461 = vmatpush1.bf16.msra.mxu0 %v6622
    %8462 = vmatprep.mubr.bf16.mxu0 %v2195
    %8463 = vmatmul.mubr.bf16.gmra.mrb[0].mxu0 %v2194
    %v8464 = vpop.f32.mrb[0].mxu0
    %v8465 = vadd.f32 %v3233, %v8464
    %v8466 = vpop.f32.mrb[0].mxu0
    %v8467 = vadd.f32 %v3237, %v8466
    %v8468 = vpop.f32.mrb[0].mxu0
    %v8469 = vpop.f32.mrb[0].mxu0
    %8470 = vdwg.mxu0
    %8471 = vmatprep.subr.bf16.mxu0 %v6639
    %8472 = vmatpush1.bf16.msra.mxu0 %v6638
    %8473 = vmatprep.subr.bf16.mxu0 %v6655
    %8474 = vmatpush1.bf16.msra.mxu0 %v6654
    %8475 = vmatprep.subr.bf16.mxu0 %v6671
    %8476 = vmatpush1.bf16.msra.mxu0 %v6670
    %8477 = vmatprep.subr.bf16.mxu0 %v6687
    %8478 = vmatpush1.bf16.msra.mxu0 %v6686
    %8479 = vmatprep.subr.bf16.mxu0 %v6703
    %8480 = vmatpush1.bf16.msra.mxu0 %v6702
    %8481 = vmatprep.subr.bf16.mxu0 %v6719
    %8482 = vmatpush1.bf16.msra.mxu0 %v6718
    %8483 = vmatprep.subr.bf16.mxu0 %v6735
    %8484 = vmatpush1.bf16.msra.mxu0 %v6734
    %8485 = vmatprep.subr.bf16.mxu0 %v6751
    %8486 = vmatpush1.bf16.msra.mxu0 %v6750
    %8487 = vmatprep.subr.bf16.mxu0 %v6767
    %8488 = vmatpush1.bf16.msra.mxu0 %v6766
    %8489 = vmatprep.subr.bf16.mxu0 %v6783
    %8490 = vmatpush1.bf16.msra.mxu0 %v6782
    %8491 = vmatprep.subr.bf16.mxu0 %v6799
    %8492 = vmatpush1.bf16.msra.mxu0 %v6798
    %8493 = vmatprep.subr.bf16.mxu0 %v6815
    %8494 = vmatpush1.bf16.msra.mxu0 %v6814
    %8495 = vmatprep.subr.bf16.mxu0 %v6831
    %8496 = vmatpush1.bf16.msra.mxu0 %v6830
    %8497 = vmatprep.subr.bf16.mxu0 %v6847
    %8498 = vmatpush1.bf16.msra.mxu0 %v6846
    %8499 = vmatprep.subr.bf16.mxu0 %v6863
    %8500 = vmatpush1.bf16.msra.mxu0 %v6862
    %8501 = vmatprep.subr.bf16.mxu0 %v6879
    %8502 = vmatpush1.bf16.msra.mxu0 %v6878
    %8503 = vmatprep.mubr.bf16.mxu0 %v2197
    %8504 = vmatmul.mubr.bf16.gmra.mrb[0].mxu0 %v2196
    %v8505 = vpop.f32.mrb[0].mxu0
    %v8506 = vadd.f32 %v8465, %v8505
    %v8507 = vpop.f32.mrb[0].mxu0
    %v8508 = vadd.f32 %v8467, %v8507
    %v8509 = vpop.f32.mrb[0].mxu0
    %v8510 = vpop.f32.mrb[0].mxu0
    %8511 = vdwg.mxu0
    %8512 = vmatprep.subr.bf16.mxu0 %v6895
    %8513 = vmatpush1.bf16.msra.mxu0 %v6894
    %8514 = vmatprep.subr.bf16.mxu0 %v6911
    %8515 = vmatpush1.bf16.msra.mxu0 %v6910
    %8516 = vmatprep.subr.bf16.mxu0 %v6927
    %8517 = vmatpush1.bf16.msra.mxu0 %v6926
    %8518 = vmatprep.subr.bf16.mxu0 %v6943
    %8519 = vmatpush1.bf16.msra.mxu0 %v6942
    %8520 = vmatprep.subr.bf16.mxu0 %v6959
    %8521 = vmatpush1.bf16.msra.mxu0 %v6958
    %8522 = vmatprep.subr.bf16.mxu0 %v6975
    %8523 = vmatpush1.bf16.msra.mxu0 %v6974
    %8524 = vmatprep.subr.bf16.mxu0 %v6991
    %8525 = vmatpush1.bf16.msra.mxu0 %v6990
    %8526 = vmatprep.subr.bf16.mxu0 %v7007
    %8527 = vmatpush1.bf16.msra.mxu0 %v7006
    %8528 = vmatprep.subr.bf16.mxu0 %v7023
    %8529 = vmatpush1.bf16.msra.mxu0 %v7022
    %8530 = vmatprep.subr.bf16.mxu0 %v7039
    %8531 = vmatpush1.bf16.msra.mxu0 %v7038
    %8532 = vmatprep.subr.bf16.mxu0 %v7055
    %8533 = vmatpush1.bf16.msra.mxu0 %v7054
    %8534 = vmatprep.subr.bf16.mxu0 %v7071
    %8535 = vmatpush1.bf16.msra.mxu0 %v7070
    %8536 = vmatprep.subr.bf16.mxu0 %v7087
    %8537 = vmatpush1.bf16.msra.mxu0 %v7086
    %8538 = vmatprep.subr.bf16.mxu0 %v7103
    %8539 = vmatpush1.bf16.msra.mxu0 %v7102
    %8540 = vmatprep.subr.bf16.mxu0 %v7119
    %8541 = vmatpush1.bf16.msra.mxu0 %v7118
    %8542 = vmatprep.subr.bf16.mxu0 %v7135
    %8543 = vmatpush1.bf16.msra.mxu0 %v7134
    %8544 = vmatprep.mubr.bf16.mxu0 %v2199
    %8545 = vmatmul.mubr.bf16.gmra.mrb[0].mxu0 %v2198
    %v8546 = vpop.f32.mrb[0].mxu0
    %v8547 = vadd.f32 %v8506, %v8546
    %v8548 = vpop.f32.mrb[0].mxu0
    %v8549 = vadd.f32 %v8508, %v8548
    %v8550 = vpop.f32.mrb[0].mxu0
    %v8551 = vpop.f32.mrb[0].mxu0
    %8552 = vdwg.mxu0
    %8553 = vmatprep.subr.bf16.mxu0 %v7151
    %8554 = vmatpush1.bf16.msra.mxu0 %v7150
    %8555 = vmatprep.subr.bf16.mxu0 %v7167
    %8556 = vmatpush1.bf16.msra.mxu0 %v7166
    %8557 = vmatprep.subr.bf16.mxu0 %v7183
    %8558 = vmatpush1.bf16.msra.mxu0 %v7182
    %8559 = vmatprep.subr.bf16.mxu0 %v7199
    %8560 = vmatpush1.bf16.msra.mxu0 %v7198
    %8561 = vmatprep.subr.bf16.mxu0 %v7215
    %8562 = vmatpush1.bf16.msra.mxu0 %v7214
    %8563 = vmatprep.subr.bf16.mxu0 %v7231
    %8564 = vmatpush1.bf16.msra.mxu0 %v7230
    %8565 = vmatprep.subr.bf16.mxu0 %v7247
    %8566 = vmatpush1.bf16.msra.mxu0 %v7246
    %8567 = vmatprep.subr.bf16.mxu0 %v7263
    %8568 = vmatpush1.bf16.msra.mxu0 %v7262
    %8569 = vmatprep.subr.bf16.mxu0 %v7279
    %8570 = vmatpush1.bf16.msra.mxu0 %v7278
    %8571 = vmatprep.subr.bf16.mxu0 %v7295
    %8572 = vmatpush1.bf16.msra.mxu0 %v7294
    %8573 = vmatprep.subr.bf16.mxu0 %v7311
    %8574 = vmatpush1.bf16.msra.mxu0 %v7310
    %8575 = vmatprep.subr.bf16.mxu0 %v7327
    %8576 = vmatpush1.bf16.msra.mxu0 %v7326
    %8577 = vmatprep.subr.bf16.mxu0 %v7343
    %8578 = vmatpush1.bf16.msra.mxu0 %v7342
    %8579 = vmatprep.subr.bf16.mxu0 %v7359
    %8580 = vmatpush1.bf16.msra.mxu0 %v7358
    %8581 = vmatprep.subr.bf16.mxu0 %v7375
    %8582 = vmatpush1.bf16.msra.mxu0 %v7374
    %8583 = vmatprep.subr.bf16.mxu0 %v7391
    %8584 = vmatpush1.bf16.msra.mxu0 %v7390
    %8585 = vmatprep.mubr.bf16.mxu0 %v2201
    %8586 = vmatmul.mubr.bf16.gmra.mrb[0].mxu0 %v2200
    %v8587 = vpop.f32.mrb[0].mxu0
    %v8588 = vadd.f32 %v8547, %v8587
    %v8589 = vpop.f32.mrb[0].mxu0
    %v8590 = vadd.f32 %v8549, %v8589
    %v8591 = vpop.f32.mrb[0].mxu0
    %v8592 = vpop.f32.mrb[0].mxu0
    %8593 = vdwg.mxu0
    %8594 = vmatprep.subr.bf16.mxu0 %v6385
    %8595 = vmatpush1.bf16.msra.mxu0 %v6384
    %8596 = vmatprep.subr.bf16.mxu0 %v6401
    %8597 = vmatpush1.bf16.msra.mxu0 %v6400
    %8598 = vmatprep.subr.bf16.mxu0 %v6417
    %8599 = vmatpush1.bf16.msra.mxu0 %v6416
    %8600 = vmatprep.subr.bf16.mxu0 %v6433
    %8601 = vmatpush1.bf16.msra.mxu0 %v6432
    %8602 = vmatprep.subr.bf16.mxu0 %v6449
    %8603 = vmatpush1.bf16.msra.mxu0 %v6448
    %8604 = vmatprep.subr.bf16.mxu0 %v6465
    %8605 = vmatpush1.bf16.msra.mxu0 %v6464
    %8606 = vmatprep.subr.bf16.mxu0 %v6481
    %8607 = vmatpush1.bf16.msra.mxu0 %v6480
    %8608 = vmatprep.subr.bf16.mxu0 %v6497
    %8609 = vmatpush1.bf16.msra.mxu0 %v6496
    %8610 = vmatprep.subr.bf16.mxu0 %v6513
    %8611 = vmatpush1.bf16.msra.mxu0 %v6512
    %8612 = vmatprep.subr.bf16.mxu0 %v6529
    %8613 = vmatpush1.bf16.msra.mxu0 %v6528
    %8614 = vmatprep.subr.bf16.mxu0 %v6545
    %8615 = vmatpush1.bf16.msra.mxu0 %v6544
    %8616 = vmatprep.subr.bf16.mxu0 %v6561
    %8617 = vmatpush1.bf16.msra.mxu0 %v6560
    %8618 = vmatprep.subr.bf16.mxu0 %v6577
    %8619 = vmatpush1.bf16.msra.mxu0 %v6576
    %8620 = vmatprep.subr.bf16.mxu0 %v6593
    %8621 = vmatpush1.bf16.msra.mxu0 %v6592
    %8622 = vmatprep.subr.bf16.mxu0 %v6609
    %8623 = vmatpush1.bf16.msra.mxu0 %v6608
    %8624 = vmatprep.subr.bf16.mxu0 %v6625
    %8625 = vmatpush1.bf16.msra.mxu0 %v6624
    %8626 = vmatprep.mubr.bf16.mxu0 %v2195
    %8627 = vmatmul.mubr.bf16.gmra.mrb[0].mxu0 %v2194
    %v8628 = vpop.f32.mrb[0].mxu0
    %v8629 = vadd.f32 %v3241, %v8628
    %v8630 = vpop.f32.mrb[0].mxu0
    %v8631 = vadd.f32 %v3245, %v8630
    %v8632 = vpop.f32.mrb[0].mxu0
    %v8633 = vpop.f32.mrb[0].mxu0
    %8634 = vdwg.mxu0
    %8635 = vmatprep.subr.bf16.mxu0 %v6641
    %8636 = vmatpush1.bf16.msra.mxu0 %v6640
    %8637 = vmatprep.subr.bf16.mxu0 %v6657
    %8638 = vmatpush1.bf16.msra.mxu0 %v6656
    %8639 = vmatprep.subr.bf16.mxu0 %v6673
    %8640 = vmatpush1.bf16.msra.mxu0 %v6672
    %8641 = vmatprep.subr.bf16.mxu0 %v6689
    %8642 = vmatpush1.bf16.msra.mxu0 %v6688
    %8643 = vmatprep.subr.bf16.mxu0 %v6705
    %8644 = vmatpush1.bf16.msra.mxu0 %v6704
    %8645 = vmatprep.subr.bf16.mxu0 %v6721
    %8646 = vmatpush1.bf16.msra.mxu0 %v6720
    %8647 = vmatprep.subr.bf16.mxu0 %v6737
    %8648 = vmatpush1.bf16.msra.mxu0 %v6736
    %8649 = vmatprep.subr.bf16.mxu0 %v6753
    %8650 = vmatpush1.bf16.msra.mxu0 %v6752
    %8651 = vmatprep.subr.bf16.mxu0 %v6769
    %8652 = vmatpush1.bf16.msra.mxu0 %v6768
    %8653 = vmatprep.subr.bf16.mxu0 %v6785
    %8654 = vmatpush1.bf16.msra.mxu0 %v6784
    %8655 = vmatprep.subr.bf16.mxu0 %v6801
    %8656 = vmatpush1.bf16.msra.mxu0 %v6800
    %8657 = vmatprep.subr.bf16.mxu0 %v6817
    %8658 = vmatpush1.bf16.msra.mxu0 %v6816
    %8659 = vmatprep.subr.bf16.mxu0 %v6833
    %8660 = vmatpush1.bf16.msra.mxu0 %v6832
    %8661 = vmatprep.subr.bf16.mxu0 %v6849
    %8662 = vmatpush1.bf16.msra.mxu0 %v6848
    %8663 = vmatprep.subr.bf16.mxu0 %v6865
    %8664 = vmatpush1.bf16.msra.mxu0 %v6864
    %8665 = vmatprep.subr.bf16.mxu0 %v6881
    %8666 = vmatpush1.bf16.msra.mxu0 %v6880
    %8667 = vmatprep.mubr.bf16.mxu0 %v2197
    %8668 = vmatmul.mubr.bf16.gmra.mrb[0].mxu0 %v2196
    %v8669 = vpop.f32.mrb[0].mxu0
    %v8670 = vadd.f32 %v8629, %v8669
    %v8671 = vpop.f32.mrb[0].mxu0
    %v8672 = vadd.f32 %v8631, %v8671
    %v8673 = vpop.f32.mrb[0].mxu0
    %v8674 = vpop.f32.mrb[0].mxu0
    %8675 = vdwg.mxu0
    %8676 = vmatprep.subr.bf16.mxu0 %v6897
    %8677 = vmatpush1.bf16.msra.mxu0 %v6896
    %8678 = vmatprep.subr.bf16.mxu0 %v6913
    %8679 = vmatpush1.bf16.msra.mxu0 %v6912
    %8680 = vmatprep.subr.bf16.mxu0 %v6929
    %8681 = vmatpush1.bf16.msra.mxu0 %v6928
    %8682 = vmatprep.subr.bf16.mxu0 %v6945
    %8683 = vmatpush1.bf16.msra.mxu0 %v6944
    %8684 = vmatprep.subr.bf16.mxu0 %v6961
    %8685 = vmatpush1.bf16.msra.mxu0 %v6960
    %8686 = vmatprep.subr.bf16.mxu0 %v6977
    %8687 = vmatpush1.bf16.msra.mxu0 %v6976
    %8688 = vmatprep.subr.bf16.mxu0 %v6993
    %8689 = vmatpush1.bf16.msra.mxu0 %v6992
    %8690 = vmatprep.subr.bf16.mxu0 %v7009
    %8691 = vmatpush1.bf16.msra.mxu0 %v7008
    %8692 = vmatprep.subr.bf16.mxu0 %v7025
    %8693 = vmatpush1.bf16.msra.mxu0 %v7024
    %8694 = vmatprep.subr.bf16.mxu0 %v7041
    %8695 = vmatpush1.bf16.msra.mxu0 %v7040
    %8696 = vmatprep.subr.bf16.mxu0 %v7057
    %8697 = vmatpush1.bf16.msra.mxu0 %v7056
    %8698 = vmatprep.subr.bf16.mxu0 %v7073
    %8699 = vmatpush1.bf16.msra.mxu0 %v7072
    %8700 = vmatprep.subr.bf16.mxu0 %v7089
    %8701 = vmatpush1.bf16.msra.mxu0 %v7088
    %8702 = vmatprep.subr.bf16.mxu0 %v7105
    %8703 = vmatpush1.bf16.msra.mxu0 %v7104
    %8704 = vmatprep.subr.bf16.mxu0 %v7121
    %8705 = vmatpush1.bf16.msra.mxu0 %v7120
    %8706 = vmatprep.subr.bf16.mxu0 %v7137
    %8707 = vmatpush1.bf16.msra.mxu0 %v7136
    %8708 = vmatprep.mubr.bf16.mxu0 %v2199
    %8709 = vmatmul.mubr.bf16.gmra.mrb[0].mxu0 %v2198
    %v8710 = vpop.f32.mrb[0].mxu0
    %v8711 = vadd.f32 %v8670, %v8710
    %v8712 = vpop.f32.mrb[0].mxu0
    %v8713 = vadd.f32 %v8672, %v8712
    %v8714 = vpop.f32.mrb[0].mxu0
    %v8715 = vpop.f32.mrb[0].mxu0
    %8716 = vdwg.mxu0
    %8717 = vmatprep.subr.bf16.mxu0 %v7153
    %8718 = vmatpush1.bf16.msra.mxu0 %v7152
    %8719 = vmatprep.subr.bf16.mxu0 %v7169
    %8720 = vmatpush1.bf16.msra.mxu0 %v7168
    %8721 = vmatprep.subr.bf16.mxu0 %v7185
    %8722 = vmatpush1.bf16.msra.mxu0 %v7184
    %8723 = vmatprep.subr.bf16.mxu0 %v7201
    %8724 = vmatpush1.bf16.msra.mxu0 %v7200
    %8725 = vmatprep.subr.bf16.mxu0 %v7217
    %8726 = vmatpush1.bf16.msra.mxu0 %v7216
    %8727 = vmatprep.subr.bf16.mxu0 %v7233
    %8728 = vmatpush1.bf16.msra.mxu0 %v7232
    %8729 = vmatprep.subr.bf16.mxu0 %v7249
    %8730 = vmatpush1.bf16.msra.mxu0 %v7248
    %8731 = vmatprep.subr.bf16.mxu0 %v7265
    %8732 = vmatpush1.bf16.msra.mxu0 %v7264
    %8733 = vmatprep.subr.bf16.mxu0 %v7281
    %8734 = vmatpush1.bf16.msra.mxu0 %v7280
    %8735 = vmatprep.subr.bf16.mxu0 %v7297
    %8736 = vmatpush1.bf16.msra.mxu0 %v7296
    %8737 = vmatprep.subr.bf16.mxu0 %v7313
    %8738 = vmatpush1.bf16.msra.mxu0 %v7312
    %8739 = vmatprep.subr.bf16.mxu0 %v7329
    %8740 = vmatpush1.bf16.msra.mxu0 %v7328
    %8741 = vmatprep.subr.bf16.mxu0 %v7345
    %8742 = vmatpush1.bf16.msra.mxu0 %v7344
    %8743 = vmatprep.subr.bf16.mxu0 %v7361
    %8744 = vmatpush1.bf16.msra.mxu0 %v7360
    %8745 = vmatprep.subr.bf16.mxu0 %v7377
    %8746 = vmatpush1.bf16.msra.mxu0 %v7376
    %8747 = vmatprep.subr.bf16.mxu0 %v7393
    %8748 = vmatpush1.bf16.msra.mxu0 %v7392
    %8749 = vmatprep.mubr.bf16.mxu0 %v2201
    %8750 = vmatmul.mubr.bf16.gmra.mrb[0].mxu0 %v2200
    %v8751 = vpop.f32.mrb[0].mxu0
    %v8752 = vadd.f32 %v8711, %v8751
    %v8753 = vpop.f32.mrb[0].mxu0
    %v8754 = vadd.f32 %v8713, %v8753
    %v8755 = vpop.f32.mrb[0].mxu0
    %v8756 = vpop.f32.mrb[0].mxu0
    %8757 = vdwg.mxu0
    %8758 = vmatprep.subr.bf16.mxu0 %v6387
    %8759 = vmatpush1.bf16.msra.mxu0 %v6386
    %8760 = vmatprep.subr.bf16.mxu0 %v6403
    %8761 = vmatpush1.bf16.msra.mxu0 %v6402
    %8762 = vmatprep.subr.bf16.mxu0 %v6419
    %8763 = vmatpush1.bf16.msra.mxu0 %v6418
    %8764 = vmatprep.subr.bf16.mxu0 %v6435
    %8765 = vmatpush1.bf16.msra.mxu0 %v6434
    %8766 = vmatprep.subr.bf16.mxu0 %v6451
    %8767 = vmatpush1.bf16.msra.mxu0 %v6450
    %8768 = vmatprep.subr.bf16.mxu0 %v6467
    %8769 = vmatpush1.bf16.msra.mxu0 %v6466
    %8770 = vmatprep.subr.bf16.mxu0 %v6483
    %8771 = vmatpush1.bf16.msra.mxu0 %v6482
    %8772 = vmatprep.subr.bf16.mxu0 %v6499
    %8773 = vmatpush1.bf16.msra.mxu0 %v6498
    %8774 = vmatprep.subr.bf16.mxu0 %v6515
    %8775 = vmatpush1.bf16.msra.mxu0 %v6514
    %8776 = vmatprep.subr.bf16.mxu0 %v6531
    %8777 = vmatpush1.bf16.msra.mxu0 %v6530
    %8778 = vmatprep.subr.bf16.mxu0 %v6547
    %8779 = vmatpush1.bf16.msra.mxu0 %v6546
    %8780 = vmatprep.subr.bf16.mxu0 %v6563
    %8781 = vmatpush1.bf16.msra.mxu0 %v6562
    %8782 = vmatprep.subr.bf16.mxu0 %v6579
    %8783 = vmatpush1.bf16.msra.mxu0 %v6578
    %8784 = vmatprep.subr.bf16.mxu0 %v6595
    %8785 = vmatpush1.bf16.msra.mxu0 %v6594
    %8786 = vmatprep.subr.bf16.mxu0 %v6611
    %8787 = vmatpush1.bf16.msra.mxu0 %v6610
    %8788 = vmatprep.subr.bf16.mxu0 %v6627
    %8789 = vmatpush1.bf16.msra.mxu0 %v6626
    %8790 = vmatprep.mubr.bf16.mxu0 %v2195
    %8791 = vmatmul.mubr.bf16.gmra.mrb[0].mxu0 %v2194
    %v8792 = vpop.f32.mrb[0].mxu0
    %v8793 = vadd.f32 %v3249, %v8792
    %v8794 = vpop.f32.mrb[0].mxu0
    %v8795 = vadd.f32 %v3253, %v8794
    %v8796 = vpop.f32.mrb[0].mxu0
    %v8797 = vpop.f32.mrb[0].mxu0
    %8798 = vdwg.mxu0
    %8799 = vmatprep.subr.bf16.mxu0 %v6643
    %8800 = vmatpush1.bf16.msra.mxu0 %v6642
    %8801 = vmatprep.subr.bf16.mxu0 %v6659
    %8802 = vmatpush1.bf16.msra.mxu0 %v6658
    %8803 = vmatprep.subr.bf16.mxu0 %v6675
    %8804 = vmatpush1.bf16.msra.mxu0 %v6674
    %8805 = vmatprep.subr.bf16.mxu0 %v6691
    %8806 = vmatpush1.bf16.msra.mxu0 %v6690
    %8807 = vmatprep.subr.bf16.mxu0 %v6707
    %8808 = vmatpush1.bf16.msra.mxu0 %v6706
    %8809 = vmatprep.subr.bf16.mxu0 %v6723
    %8810 = vmatpush1.bf16.msra.mxu0 %v6722
    %8811 = vmatprep.subr.bf16.mxu0 %v6739
    %8812 = vmatpush1.bf16.msra.mxu0 %v6738
    %8813 = vmatprep.subr.bf16.mxu0 %v6755
    %8814 = vmatpush1.bf16.msra.mxu0 %v6754
    %8815 = vmatprep.subr.bf16.mxu0 %v6771
    %8816 = vmatpush1.bf16.msra.mxu0 %v6770
    %8817 = vmatprep.subr.bf16.mxu0 %v6787
    %8818 = vmatpush1.bf16.msra.mxu0 %v6786
    %8819 = vmatprep.subr.bf16.mxu0 %v6803
    %8820 = vmatpush1.bf16.msra.mxu0 %v6802
    %8821 = vmatprep.subr.bf16.mxu0 %v6819
    %8822 = vmatpush1.bf16.msra.mxu0 %v6818
    %8823 = vmatprep.subr.bf16.mxu0 %v6835
    %8824 = vmatpush1.bf16.msra.mxu0 %v6834
    %8825 = vmatprep.subr.bf16.mxu0 %v6851
    %8826 = vmatpush1.bf16.msra.mxu0 %v6850
    %8827 = vmatprep.subr.bf16.mxu0 %v6867
    %8828 = vmatpush1.bf16.msra.mxu0 %v6866
    %8829 = vmatprep.subr.bf16.mxu0 %v6883
    %8830 = vmatpush1.bf16.msra.mxu0 %v6882
    %8831 = vmatprep.mubr.bf16.mxu0 %v2197
    %8832 = vmatmul.mubr.bf16.gmra.mrb[0].mxu0 %v2196
    %v8833 = vpop.f32.mrb[0].mxu0
    %v8834 = vadd.f32 %v8793, %v8833
    %v8835 = vpop.f32.mrb[0].mxu0
    %v8836 = vadd.f32 %v8795, %v8835
    %v8837 = vpop.f32.mrb[0].mxu0
    %v8838 = vpop.f32.mrb[0].mxu0
    %8839 = vdwg.mxu0
    %8840 = vmatprep.subr.bf16.mxu0 %v6899
    %8841 = vmatpush1.bf16.msra.mxu0 %v6898
    %8842 = vmatprep.subr.bf16.mxu0 %v6915
    %8843 = vmatpush1.bf16.msra.mxu0 %v6914
    %8844 = vmatprep.subr.bf16.mxu0 %v6931
    %8845 = vmatpush1.bf16.msra.mxu0 %v6930
    %8846 = vmatprep.subr.bf16.mxu0 %v6947
    %8847 = vmatpush1.bf16.msra.mxu0 %v6946
    %8848 = vmatprep.subr.bf16.mxu0 %v6963
    %8849 = vmatpush1.bf16.msra.mxu0 %v6962
    %8850 = vmatprep.subr.bf16.mxu0 %v6979
    %8851 = vmatpush1.bf16.msra.mxu0 %v6978
    %8852 = vmatprep.subr.bf16.mxu0 %v6995
    %8853 = vmatpush1.bf16.msra.mxu0 %v6994
    %8854 = vmatprep.subr.bf16.mxu0 %v7011
    %8855 = vmatpush1.bf16.msra.mxu0 %v7010
    %8856 = vmatprep.subr.bf16.mxu0 %v7027
    %8857 = vmatpush1.bf16.msra.mxu0 %v7026
    %8858 = vmatprep.subr.bf16.mxu0 %v7043
    %8859 = vmatpush1.bf16.msra.mxu0 %v7042
    %8860 = vmatprep.subr.bf16.mxu0 %v7059
    %8861 = vmatpush1.bf16.msra.mxu0 %v7058
    %8862 = vmatprep.subr.bf16.mxu0 %v7075
    %8863 = vmatpush1.bf16.msra.mxu0 %v7074
    %8864 = vmatprep.subr.bf16.mxu0 %v7091
    %8865 = vmatpush1.bf16.msra.mxu0 %v7090
    %8866 = vmatprep.subr.bf16.mxu0 %v7107
    %8867 = vmatpush1.bf16.msra.mxu0 %v7106
    %8868 = vmatprep.subr.bf16.mxu0 %v7123
    %8869 = vmatpush1.bf16.msra.mxu0 %v7122
    %8870 = vmatprep.subr.bf16.mxu0 %v7139
    %8871 = vmatpush1.bf16.msra.mxu0 %v7138
    %8872 = vmatprep.mubr.bf16.mxu0 %v2199
    %8873 = vmatmul.mubr.bf16.gmra.mrb[0].mxu0 %v2198
    %v8874 = vpop.f32.mrb[0].mxu0
    %v8875 = vadd.f32 %v8834, %v8874
    %v8876 = vpop.f32.mrb[0].mxu0
    %v8877 = vadd.f32 %v8836, %v8876
    %v8878 = vpop.f32.mrb[0].mxu0
    %v8879 = vpop.f32.mrb[0].mxu0
    %8880 = vdwg.mxu0
    %8881 = vmatprep.subr.bf16.mxu0 %v7155
    %8882 = vmatpush1.bf16.msra.mxu0 %v7154
    %8883 = vmatprep.subr.bf16.mxu0 %v7171
    %8884 = vmatpush1.bf16.msra.mxu0 %v7170
    %8885 = vmatprep.subr.bf16.mxu0 %v7187
    %8886 = vmatpush1.bf16.msra.mxu0 %v7186
    %8887 = vmatprep.subr.bf16.mxu0 %v7203
    %8888 = vmatpush1.bf16.msra.mxu0 %v7202
    %8889 = vmatprep.subr.bf16.mxu0 %v7219
    %8890 = vmatpush1.bf16.msra.mxu0 %v7218
    %8891 = vmatprep.subr.bf16.mxu0 %v7235
    %8892 = vmatpush1.bf16.msra.mxu0 %v7234
    %8893 = vmatprep.subr.bf16.mxu0 %v7251
    %8894 = vmatpush1.bf16.msra.mxu0 %v7250
    %8895 = vmatprep.subr.bf16.mxu0 %v7267
    %8896 = vmatpush1.bf16.msra.mxu0 %v7266
    %8897 = vmatprep.subr.bf16.mxu0 %v7283
    %8898 = vmatpush1.bf16.msra.mxu0 %v7282
    %8899 = vmatprep.subr.bf16.mxu0 %v7299
    %8900 = vmatpush1.bf16.msra.mxu0 %v7298
    %8901 = vmatprep.subr.bf16.mxu0 %v7315
    %8902 = vmatpush1.bf16.msra.mxu0 %v7314
    %8903 = vmatprep.subr.bf16.mxu0 %v7331
    %8904 = vmatpush1.bf16.msra.mxu0 %v7330
    %8905 = vmatprep.subr.bf16.mxu0 %v7347
    %8906 = vmatpush1.bf16.msra.mxu0 %v7346
    %8907 = vmatprep.subr.bf16.mxu0 %v7363
    %8908 = vmatpush1.bf16.msra.mxu0 %v7362
    %8909 = vmatprep.subr.bf16.mxu0 %v7379
    %8910 = vmatpush1.bf16.msra.mxu0 %v7378
    %8911 = vmatprep.subr.bf16.mxu0 %v7395
    %8912 = vmatpush1.bf16.msra.mxu0 %v7394
    %8913 = vmatprep.mubr.bf16.mxu0 %v2201
    %8914 = vmatmul.mubr.bf16.gmra.mrb[0].mxu0 %v2200
    %v8915 = vpop.f32.mrb[0].mxu0
    %v8916 = vadd.f32 %v8875, %v8915
    %v8917 = vpop.f32.mrb[0].mxu0
    %v8918 = vadd.f32 %v8877, %v8917
    %v8919 = vpop.f32.mrb[0].mxu0
    %v8920 = vpop.f32.mrb[0].mxu0
    %8921 = vdwg.mxu0
    %8922 = vmatprep.subr.bf16.mxu0 %v6389
    %8923 = vmatpush1.bf16.msra.mxu0 %v6388
    %8924 = vmatprep.subr.bf16.mxu0 %v6405
    %8925 = vmatpush1.bf16.msra.mxu0 %v6404
    %8926 = vmatprep.subr.bf16.mxu0 %v6421
    %8927 = vmatpush1.bf16.msra.mxu0 %v6420
    %8928 = vmatprep.subr.bf16.mxu0 %v6437
    %8929 = vmatpush1.bf16.msra.mxu0 %v6436
    %8930 = vmatprep.subr.bf16.mxu0 %v6453
    %8931 = vmatpush1.bf16.msra.mxu0 %v6452
    %8932 = vmatprep.subr.bf16.mxu0 %v6469
    %8933 = vmatpush1.bf16.msra.mxu0 %v6468
    %8934 = vmatprep.subr.bf16.mxu0 %v6485
    %8935 = vmatpush1.bf16.msra.mxu0 %v6484
    %8936 = vmatprep.subr.bf16.mxu0 %v6501
    %8937 = vmatpush1.bf16.msra.mxu0 %v6500
    %8938 = vmatprep.subr.bf16.mxu0 %v6517
    %8939 = vmatpush1.bf16.msra.mxu0 %v6516
    %8940 = vmatprep.subr.bf16.mxu0 %v6533
    %8941 = vmatpush1.bf16.msra.mxu0 %v6532
    %8942 = vmatprep.subr.bf16.mxu0 %v6549
    %8943 = vmatpush1.bf16.msra.mxu0 %v6548
    %8944 = vmatprep.subr.bf16.mxu0 %v6565
    %8945 = vmatpush1.bf16.msra.mxu0 %v6564
    %8946 = vmatprep.subr.bf16.mxu0 %v6581
    %8947 = vmatpush1.bf16.msra.mxu0 %v6580
    %8948 = vmatprep.subr.bf16.mxu0 %v6597
    %8949 = vmatpush1.bf16.msra.mxu0 %v6596
    %8950 = vmatprep.subr.bf16.mxu0 %v6613
    %8951 = vmatpush1.bf16.msra.mxu0 %v6612
    %8952 = vmatprep.subr.bf16.mxu0 %v6629
    %8953 = vmatpush1.bf16.msra.mxu0 %v6628
    %8954 = vmatprep.mubr.bf16.mxu0 %v2195
    %8955 = vmatmul.mubr.bf16.gmra.mrb[0].mxu0 %v2194
    %v8956 = vpop.f32.mrb[0].mxu0
    %v8957 = vadd.f32 %v3257, %v8956
    %v8958 = vpop.f32.mrb[0].mxu0
    %v8959 = vadd.f32 %v3261, %v8958
    %v8960 = vpop.f32.mrb[0].mxu0
    %v8961 = vpop.f32.mrb[0].mxu0
    %8962 = vdwg.mxu0
    %8963 = vmatprep.subr.bf16.mxu0 %v6645
    %8964 = vmatpush1.bf16.msra.mxu0 %v6644
    %8965 = vmatprep.subr.bf16.mxu0 %v6661
    %8966 = vmatpush1.bf16.msra.mxu0 %v6660
    %8967 = vmatprep.subr.bf16.mxu0 %v6677
    %8968 = vmatpush1.bf16.msra.mxu0 %v6676
    %8969 = vmatprep.subr.bf16.mxu0 %v6693
    %8970 = vmatpush1.bf16.msra.mxu0 %v6692
    %8971 = vmatprep.subr.bf16.mxu0 %v6709
    %8972 = vmatpush1.bf16.msra.mxu0 %v6708
    %8973 = vmatprep.subr.bf16.mxu0 %v6725
    %8974 = vmatpush1.bf16.msra.mxu0 %v6724
    %8975 = vmatprep.subr.bf16.mxu0 %v6741
    %8976 = vmatpush1.bf16.msra.mxu0 %v6740
    %8977 = vmatprep.subr.bf16.mxu0 %v6757
    %8978 = vmatpush1.bf16.msra.mxu0 %v6756
    %8979 = vmatprep.subr.bf16.mxu0 %v6773
    %8980 = vmatpush1.bf16.msra.mxu0 %v6772
    %8981 = vmatprep.subr.bf16.mxu0 %v6789
    %8982 = vmatpush1.bf16.msra.mxu0 %v6788
    %8983 = vmatprep.subr.bf16.mxu0 %v6805
    %8984 = vmatpush1.bf16.msra.mxu0 %v6804
    %8985 = vmatprep.subr.bf16.mxu0 %v6821
    %8986 = vmatpush1.bf16.msra.mxu0 %v6820
    %8987 = vmatprep.subr.bf16.mxu0 %v6837
    %8988 = vmatpush1.bf16.msra.mxu0 %v6836
    %8989 = vmatprep.subr.bf16.mxu0 %v6853
    %8990 = vmatpush1.bf16.msra.mxu0 %v6852
    %8991 = vmatprep.subr.bf16.mxu0 %v6869
    %8992 = vmatpush1.bf16.msra.mxu0 %v6868
    %8993 = vmatprep.subr.bf16.mxu0 %v6885
    %8994 = vmatpush1.bf16.msra.mxu0 %v6884
    %8995 = vmatprep.mubr.bf16.mxu0 %v2197
    %8996 = vmatmul.mubr.bf16.gmra.mrb[0].mxu0 %v2196
    %v8997 = vpop.f32.mrb[0].mxu0
    %v8998 = vadd.f32 %v8957, %v8997
    %v8999 = vpop.f32.mrb[0].mxu0
    %v9000 = vadd.f32 %v8959, %v8999
    %v9001 = vpop.f32.mrb[0].mxu0
    %v9002 = vpop.f32.mrb[0].mxu0
    %9003 = vdwg.mxu0
    %9004 = vmatprep.subr.bf16.mxu0 %v6901
    %9005 = vmatpush1.bf16.msra.mxu0 %v6900
    %9006 = vmatprep.subr.bf16.mxu0 %v6917
    %9007 = vmatpush1.bf16.msra.mxu0 %v6916
    %9008 = vmatprep.subr.bf16.mxu0 %v6933
    %9009 = vmatpush1.bf16.msra.mxu0 %v6932
    %9010 = vmatprep.subr.bf16.mxu0 %v6949
    %9011 = vmatpush1.bf16.msra.mxu0 %v6948
    %9012 = vmatprep.subr.bf16.mxu0 %v6965
    %9013 = vmatpush1.bf16.msra.mxu0 %v6964
    %9014 = vmatprep.subr.bf16.mxu0 %v6981
    %9015 = vmatpush1.bf16.msra.mxu0 %v6980
    %9016 = vmatprep.subr.bf16.mxu0 %v6997
    %9017 = vmatpush1.bf16.msra.mxu0 %v6996
    %9018 = vmatprep.subr.bf16.mxu0 %v7013
    %9019 = vmatpush1.bf16.msra.mxu0 %v7012
    %9020 = vmatprep.subr.bf16.mxu0 %v7029
    %9021 = vmatpush1.bf16.msra.mxu0 %v7028
    %9022 = vmatprep.subr.bf16.mxu0 %v7045
    %9023 = vmatpush1.bf16.msra.mxu0 %v7044
    %9024 = vmatprep.subr.bf16.mxu0 %v7061
    %9025 = vmatpush1.bf16.msra.mxu0 %v7060
    %9026 = vmatprep.subr.bf16.mxu0 %v7077
    %9027 = vmatpush1.bf16.msra.mxu0 %v7076
    %9028 = vmatprep.subr.bf16.mxu0 %v7093
    %9029 = vmatpush1.bf16.msra.mxu0 %v7092
    %9030 = vmatprep.subr.bf16.mxu0 %v7109
    %9031 = vmatpush1.bf16.msra.mxu0 %v7108
    %9032 = vmatprep.subr.bf16.mxu0 %v7125
    %9033 = vmatpush1.bf16.msra.mxu0 %v7124
    %9034 = vmatprep.subr.bf16.mxu0 %v7141
    %9035 = vmatpush1.bf16.msra.mxu0 %v7140
    %9036 = vmatprep.mubr.bf16.mxu0 %v2199
    %9037 = vmatmul.mubr.bf16.gmra.mrb[0].mxu0 %v2198
    %v9038 = vpop.f32.mrb[0].mxu0
    %v9039 = vadd.f32 %v8998, %v9038
    %v9040 = vpop.f32.mrb[0].mxu0
    %v9041 = vadd.f32 %v9000, %v9040
    %v9042 = vpop.f32.mrb[0].mxu0
    %v9043 = vpop.f32.mrb[0].mxu0
    %9044 = vdwg.mxu0
    %9045 = vmatprep.subr.bf16.mxu0 %v7157
    %9046 = vmatpush1.bf16.msra.mxu0 %v7156
    %9047 = vmatprep.subr.bf16.mxu0 %v7173
    %9048 = vmatpush1.bf16.msra.mxu0 %v7172
    %9049 = vmatprep.subr.bf16.mxu0 %v7189
    %9050 = vmatpush1.bf16.msra.mxu0 %v7188
    %9051 = vmatprep.subr.bf16.mxu0 %v7205
    %9052 = vmatpush1.bf16.msra.mxu0 %v7204
    %9053 = vmatprep.subr.bf16.mxu0 %v7221
    %9054 = vmatpush1.bf16.msra.mxu0 %v7220
    %9055 = vmatprep.subr.bf16.mxu0 %v7237
    %9056 = vmatpush1.bf16.msra.mxu0 %v7236
    %9057 = vmatprep.subr.bf16.mxu0 %v7253
    %9058 = vmatpush1.bf16.msra.mxu0 %v7252
    %9059 = vmatprep.subr.bf16.mxu0 %v7269
    %9060 = vmatpush1.bf16.msra.mxu0 %v7268
    %9061 = vmatprep.subr.bf16.mxu0 %v7285
    %9062 = vmatpush1.bf16.msra.mxu0 %v7284
    %9063 = vmatprep.subr.bf16.mxu0 %v7301
    %9064 = vmatpush1.bf16.msra.mxu0 %v7300
    %9065 = vmatprep.subr.bf16.mxu0 %v7317
    %9066 = vmatpush1.bf16.msra.mxu0 %v7316
    %9067 = vmatprep.subr.bf16.mxu0 %v7333
    %9068 = vmatpush1.bf16.msra.mxu0 %v7332
    %9069 = vmatprep.subr.bf16.mxu0 %v7349
    %9070 = vmatpush1.bf16.msra.mxu0 %v7348
    %9071 = vmatprep.subr.bf16.mxu0 %v7365
    %9072 = vmatpush1.bf16.msra.mxu0 %v7364
    %9073 = vmatprep.subr.bf16.mxu0 %v7381
    %9074 = vmatpush1.bf16.msra.mxu0 %v7380
    %9075 = vmatprep.subr.bf16.mxu0 %v7397
    %9076 = vmatpush1.bf16.msra.mxu0 %v7396
    %9077 = vmatprep.mubr.bf16.mxu0 %v2201
    %9078 = vmatmul.mubr.bf16.gmra.mrb[0].mxu0 %v2200
    %v9079 = vpop.f32.mrb[0].mxu0
    %v9080 = vadd.f32 %v9039, %v9079
    %v9081 = vpop.f32.mrb[0].mxu0
    %v9082 = vadd.f32 %v9041, %v9081
    %v9083 = vpop.f32.mrb[0].mxu0
    %v9084 = vpop.f32.mrb[0].mxu0
    %9085 = vdwg.mxu0
    %9086 = vmatprep.subr.bf16.mxu0 %v6391
    %9087 = vmatpush1.bf16.msra.mxu0 %v6390
    %9088 = vmatprep.subr.bf16.mxu0 %v6407
    %9089 = vmatpush1.bf16.msra.mxu0 %v6406
    %9090 = vmatprep.subr.bf16.mxu0 %v6423
    %9091 = vmatpush1.bf16.msra.mxu0 %v6422
    %9092 = vmatprep.subr.bf16.mxu0 %v6439
    %9093 = vmatpush1.bf16.msra.mxu0 %v6438
    %9094 = vmatprep.subr.bf16.mxu0 %v6455
    %9095 = vmatpush1.bf16.msra.mxu0 %v6454
    %9096 = vmatprep.subr.bf16.mxu0 %v6471
    %9097 = vmatpush1.bf16.msra.mxu0 %v6470
    %9098 = vmatprep.subr.bf16.mxu0 %v6487
    %9099 = vmatpush1.bf16.msra.mxu0 %v6486
    %9100 = vmatprep.subr.bf16.mxu0 %v6503
    %9101 = vmatpush1.bf16.msra.mxu0 %v6502
    %9102 = vmatprep.subr.bf16.mxu0 %v6519
    %9103 = vmatpush1.bf16.msra.mxu0 %v6518
    %9104 = vmatprep.subr.bf16.mxu0 %v6535
    %9105 = vmatpush1.bf16.msra.mxu0 %v6534
    %9106 = vmatprep.subr.bf16.mxu0 %v6551
    %9107 = vmatpush1.bf16.msra.mxu0 %v6550
    %9108 = vmatprep.subr.bf16.mxu0 %v6567
    %9109 = vmatpush1.bf16.msra.mxu0 %v6566
    %9110 = vmatprep.subr.bf16.mxu0 %v6583
    %9111 = vmatpush1.bf16.msra.mxu0 %v6582
    %9112 = vmatprep.subr.bf16.mxu0 %v6599
    %9113 = vmatpush1.bf16.msra.mxu0 %v6598
    %9114 = vmatprep.subr.bf16.mxu0 %v6615
    %9115 = vmatpush1.bf16.msra.mxu0 %v6614
    %9116 = vmatprep.subr.bf16.mxu0 %v6631
    %9117 = vmatpush1.bf16.msra.mxu0 %v6630
    %9118 = vmatprep.mubr.bf16.mxu0 %v2195
    %9119 = vmatmul.mubr.bf16.gmra.mrb[0].mxu0 %v2194
    %v9120 = vpop.f32.mrb[0].mxu0
    %v9121 = vadd.f32 %v3265, %v9120
    %v9122 = vpop.f32.mrb[0].mxu0
    %v9123 = vadd.f32 %v3269, %v9122
    %v9124 = vpop.f32.mrb[0].mxu0
    %v9125 = vpop.f32.mrb[0].mxu0
    %9126 = vdwg.mxu0
    %9127 = vmatprep.subr.bf16.mxu0 %v6647
    %9128 = vmatpush1.bf16.msra.mxu0 %v6646
    %9129 = vmatprep.subr.bf16.mxu0 %v6663
    %9130 = vmatpush1.bf16.msra.mxu0 %v6662
    %9131 = vmatprep.subr.bf16.mxu0 %v6679
    %9132 = vmatpush1.bf16.msra.mxu0 %v6678
    %9133 = vmatprep.subr.bf16.mxu0 %v6695
    %9134 = vmatpush1.bf16.msra.mxu0 %v6694
    %9135 = vmatprep.subr.bf16.mxu0 %v6711
    %9136 = vmatpush1.bf16.msra.mxu0 %v6710
    %9137 = vmatprep.subr.bf16.mxu0 %v6727
    %9138 = vmatpush1.bf16.msra.mxu0 %v6726
    %9139 = vmatprep.subr.bf16.mxu0 %v6743
    %9140 = vmatpush1.bf16.msra.mxu0 %v6742
    %9141 = vmatprep.subr.bf16.mxu0 %v6759
    %9142 = vmatpush1.bf16.msra.mxu0 %v6758
    %9143 = vmatprep.subr.bf16.mxu0 %v6775
    %9144 = vmatpush1.bf16.msra.mxu0 %v6774
    %9145 = vmatprep.subr.bf16.mxu0 %v6791
    %9146 = vmatpush1.bf16.msra.mxu0 %v6790
    %9147 = vmatprep.subr.bf16.mxu0 %v6807
    %9148 = vmatpush1.bf16.msra.mxu0 %v6806
    %9149 = vmatprep.subr.bf16.mxu0 %v6823
    %9150 = vmatpush1.bf16.msra.mxu0 %v6822
    %9151 = vmatprep.subr.bf16.mxu0 %v6839
    %9152 = vmatpush1.bf16.msra.mxu0 %v6838
    %9153 = vmatprep.subr.bf16.mxu0 %v6855
    %9154 = vmatpush1.bf16.msra.mxu0 %v6854
    %9155 = vmatprep.subr.bf16.mxu0 %v6871
    %9156 = vmatpush1.bf16.msra.mxu0 %v6870
    %9157 = vmatprep.subr.bf16.mxu0 %v6887
    %9158 = vmatpush1.bf16.msra.mxu0 %v6886
    %9159 = vmatprep.mubr.bf16.mxu0 %v2197
    %9160 = vmatmul.mubr.bf16.gmra.mrb[0].mxu0 %v2196
    %v9161 = vpop.f32.mrb[0].mxu0
    %v9162 = vadd.f32 %v9121, %v9161
    %v9163 = vpop.f32.mrb[0].mxu0
    %v9164 = vadd.f32 %v9123, %v9163
    %v9165 = vpop.f32.mrb[0].mxu0
    %v9166 = vpop.f32.mrb[0].mxu0
    %9167 = vdwg.mxu0
    %9168 = vmatprep.subr.bf16.mxu0 %v6903
    %9169 = vmatpush1.bf16.msra.mxu0 %v6902
    %9170 = vmatprep.subr.bf16.mxu0 %v6919
    %9171 = vmatpush1.bf16.msra.mxu0 %v6918
    %9172 = vmatprep.subr.bf16.mxu0 %v6935
    %9173 = vmatpush1.bf16.msra.mxu0 %v6934
    %9174 = vmatprep.subr.bf16.mxu0 %v6951
    %9175 = vmatpush1.bf16.msra.mxu0 %v6950
    %9176 = vmatprep.subr.bf16.mxu0 %v6967
    %9177 = vmatpush1.bf16.msra.mxu0 %v6966
    %9178 = vmatprep.subr.bf16.mxu0 %v6983
    %9179 = vmatpush1.bf16.msra.mxu0 %v6982
    %9180 = vmatprep.subr.bf16.mxu0 %v6999
    %9181 = vmatpush1.bf16.msra.mxu0 %v6998
    %9182 = vmatprep.subr.bf16.mxu0 %v7015
    %9183 = vmatpush1.bf16.msra.mxu0 %v7014
    %9184 = vmatprep.subr.bf16.mxu0 %v7031
    %9185 = vmatpush1.bf16.msra.mxu0 %v7030
    %9186 = vmatprep.subr.bf16.mxu0 %v7047
    %9187 = vmatpush1.bf16.msra.mxu0 %v7046
    %9188 = vmatprep.subr.bf16.mxu0 %v7063
    %9189 = vmatpush1.bf16.msra.mxu0 %v7062
    %9190 = vmatprep.subr.bf16.mxu0 %v7079
    %9191 = vmatpush1.bf16.msra.mxu0 %v7078
    %9192 = vmatprep.subr.bf16.mxu0 %v7095
    %9193 = vmatpush1.bf16.msra.mxu0 %v7094
    %9194 = vmatprep.subr.bf16.mxu0 %v7111
    %9195 = vmatpush1.bf16.msra.mxu0 %v7110
    %9196 = vmatprep.subr.bf16.mxu0 %v7127
    %9197 = vmatpush1.bf16.msra.mxu0 %v7126
    %9198 = vmatprep.subr.bf16.mxu0 %v7143
    %9199 = vmatpush1.bf16.msra.mxu0 %v7142
    %9200 = vmatprep.mubr.bf16.mxu0 %v2199
    %9201 = vmatmul.mubr.bf16.gmra.mrb[0].mxu0 %v2198
    %v9202 = vpop.f32.mrb[0].mxu0
    %v9203 = vadd.f32 %v9162, %v9202
    %v9204 = vpop.f32.mrb[0].mxu0
    %v9205 = vadd.f32 %v9164, %v9204
    %v9206 = vpop.f32.mrb[0].mxu0
    %v9207 = vpop.f32.mrb[0].mxu0
    %9208 = vdwg.mxu0
    %9209 = vmatprep.subr.bf16.mxu0 %v7159
    %9210 = vmatpush1.bf16.msra.mxu0 %v7158
    %9211 = vmatprep.subr.bf16.mxu0 %v7175
    %9212 = vmatpush1.bf16.msra.mxu0 %v7174
    %9213 = vmatprep.subr.bf16.mxu0 %v7191
    %9214 = vmatpush1.bf16.msra.mxu0 %v7190
    %9215 = vmatprep.subr.bf16.mxu0 %v7207
    %9216 = vmatpush1.bf16.msra.mxu0 %v7206
    %9217 = vmatprep.subr.bf16.mxu0 %v7223
    %9218 = vmatpush1.bf16.msra.mxu0 %v7222
    %9219 = vmatprep.subr.bf16.mxu0 %v7239
    %9220 = vmatpush1.bf16.msra.mxu0 %v7238
    %9221 = vmatprep.subr.bf16.mxu0 %v7255
    %9222 = vmatpush1.bf16.msra.mxu0 %v7254
    %9223 = vmatprep.subr.bf16.mxu0 %v7271
    %9224 = vmatpush1.bf16.msra.mxu0 %v7270
    %9225 = vmatprep.subr.bf16.mxu0 %v7287
    %9226 = vmatpush1.bf16.msra.mxu0 %v7286
    %9227 = vmatprep.subr.bf16.mxu0 %v7303
    %9228 = vmatpush1.bf16.msra.mxu0 %v7302
    %9229 = vmatprep.subr.bf16.mxu0 %v7319
    %9230 = vmatpush1.bf16.msra.mxu0 %v7318
    %9231 = vmatprep.subr.bf16.mxu0 %v7335
    %9232 = vmatpush1.bf16.msra.mxu0 %v7334
    %9233 = vmatprep.subr.bf16.mxu0 %v7351
    %9234 = vmatpush1.bf16.msra.mxu0 %v7350
    %9235 = vmatprep.subr.bf16.mxu0 %v7367
    %9236 = vmatpush1.bf16.msra.mxu0 %v7366
    %9237 = vmatprep.subr.bf16.mxu0 %v7383
    %9238 = vmatpush1.bf16.msra.mxu0 %v7382
    %9239 = vmatprep.subr.bf16.mxu0 %v7399
    %9240 = vmatpush1.bf16.msra.mxu0 %v7398
    %9241 = vmatprep.mubr.bf16.mxu0 %v2201
    %9242 = vmatmul.mubr.bf16.gmra.mrb[0].mxu0 %v2200
    %v9243 = vpop.f32.mrb[0].mxu0
    %v9244 = vadd.f32 %v9203, %v9243
    %v9245 = vpop.f32.mrb[0].mxu0
    %v9246 = vadd.f32 %v9205, %v9245
    %v9247 = vpop.f32.mrb[0].mxu0
    %v9248 = vpop.f32.mrb[0].mxu0
    %9249 = vdwg.mxu0
    %9250 = vmatprep.subr.bf16.mxu0 %v6393
    %9251 = vmatpush1.bf16.msra.mxu0 %v6392
    %9252 = vmatprep.subr.bf16.mxu0 %v6409
    %9253 = vmatpush1.bf16.msra.mxu0 %v6408
    %9254 = vmatprep.subr.bf16.mxu0 %v6425
    %9255 = vmatpush1.bf16.msra.mxu0 %v6424
    %9256 = vmatprep.subr.bf16.mxu0 %v6441
    %9257 = vmatpush1.bf16.msra.mxu0 %v6440
    %9258 = vmatprep.subr.bf16.mxu0 %v6457
    %9259 = vmatpush1.bf16.msra.mxu0 %v6456
    %9260 = vmatprep.subr.bf16.mxu0 %v6473
    %9261 = vmatpush1.bf16.msra.mxu0 %v6472
    %9262 = vmatprep.subr.bf16.mxu0 %v6489
    %9263 = vmatpush1.bf16.msra.mxu0 %v6488
    %9264 = vmatprep.subr.bf16.mxu0 %v6505
    %9265 = vmatpush1.bf16.msra.mxu0 %v6504
    %9266 = vmatprep.subr.bf16.mxu0 %v6521
    %9267 = vmatpush1.bf16.msra.mxu0 %v6520
    %9268 = vmatprep.subr.bf16.mxu0 %v6537
    %9269 = vmatpush1.bf16.msra.mxu0 %v6536
    %9270 = vmatprep.subr.bf16.mxu0 %v6553
    %9271 = vmatpush1.bf16.msra.mxu0 %v6552
    %9272 = vmatprep.subr.bf16.mxu0 %v6569
    %9273 = vmatpush1.bf16.msra.mxu0 %v6568
    %9274 = vmatprep.subr.bf16.mxu0 %v6585
    %9275 = vmatpush1.bf16.msra.mxu0 %v6584
    %9276 = vmatprep.subr.bf16.mxu0 %v6601
    %9277 = vmatpush1.bf16.msra.mxu0 %v6600
    %9278 = vmatprep.subr.bf16.mxu0 %v6617
    %9279 = vmatpush1.bf16.msra.mxu0 %v6616
    %9280 = vmatprep.subr.bf16.mxu0 %v6633
    %9281 = vmatpush1.bf16.msra.mxu0 %v6632
    %9282 = vmatprep.mubr.bf16.mxu0 %v2195
    %9283 = vmatmul.mubr.bf16.gmra.mrb[0].mxu0 %v2194
    %v9284 = vpop.f32.mrb[0].mxu0
    %v9285 = vadd.f32 %v3273, %v9284
    %v9286 = vpop.f32.mrb[0].mxu0
    %v9287 = vadd.f32 %v3277, %v9286
    %v9288 = vpop.f32.mrb[0].mxu0
    %v9289 = vpop.f32.mrb[0].mxu0
    %9290 = vdwg.mxu0
    %9291 = vmatprep.subr.bf16.mxu0 %v6649
    %9292 = vmatpush1.bf16.msra.mxu0 %v6648
    %9293 = vmatprep.subr.bf16.mxu0 %v6665
    %9294 = vmatpush1.bf16.msra.mxu0 %v6664
    %9295 = vmatprep.subr.bf16.mxu0 %v6681
    %9296 = vmatpush1.bf16.msra.mxu0 %v6680
    %9297 = vmatprep.subr.bf16.mxu0 %v6697
    %9298 = vmatpush1.bf16.msra.mxu0 %v6696
    %9299 = vmatprep.subr.bf16.mxu0 %v6713
    %9300 = vmatpush1.bf16.msra.mxu0 %v6712
    %9301 = vmatprep.subr.bf16.mxu0 %v6729
    %9302 = vmatpush1.bf16.msra.mxu0 %v6728
    %9303 = vmatprep.subr.bf16.mxu0 %v6745
    %9304 = vmatpush1.bf16.msra.mxu0 %v6744
    %9305 = vmatprep.subr.bf16.mxu0 %v6761
    %9306 = vmatpush1.bf16.msra.mxu0 %v6760
    %9307 = vmatprep.subr.bf16.mxu0 %v6777
    %9308 = vmatpush1.bf16.msra.mxu0 %v6776
    %9309 = vmatprep.subr.bf16.mxu0 %v6793
    %9310 = vmatpush1.bf16.msra.mxu0 %v6792
    %9311 = vmatprep.subr.bf16.mxu0 %v6809
    %9312 = vmatpush1.bf16.msra.mxu0 %v6808
    %9313 = vmatprep.subr.bf16.mxu0 %v6825
    %9314 = vmatpush1.bf16.msra.mxu0 %v6824
    %9315 = vmatprep.subr.bf16.mxu0 %v6841
    %9316 = vmatpush1.bf16.msra.mxu0 %v6840
    %9317 = vmatprep.subr.bf16.mxu0 %v6857
    %9318 = vmatpush1.bf16.msra.mxu0 %v6856
    %9319 = vmatprep.subr.bf16.mxu0 %v6873
    %9320 = vmatpush1.bf16.msra.mxu0 %v6872
    %9321 = vmatprep.subr.bf16.mxu0 %v6889
    %9322 = vmatpush1.bf16.msra.mxu0 %v6888
    %9323 = vmatprep.mubr.bf16.mxu0 %v2197
    %9324 = vmatmul.mubr.bf16.gmra.mrb[0].mxu0 %v2196
    %v9325 = vpop.f32.mrb[0].mxu0
    %v9326 = vadd.f32 %v9285, %v9325
    %v9327 = vpop.f32.mrb[0].mxu0
    %v9328 = vadd.f32 %v9287, %v9327
    %v9329 = vpop.f32.mrb[0].mxu0
    %v9330 = vpop.f32.mrb[0].mxu0
    %9331 = vdwg.mxu0
    %9332 = vmatprep.subr.bf16.mxu0 %v6905
    %9333 = vmatpush1.bf16.msra.mxu0 %v6904
    %9334 = vmatprep.subr.bf16.mxu0 %v6921
    %9335 = vmatpush1.bf16.msra.mxu0 %v6920
    %9336 = vmatprep.subr.bf16.mxu0 %v6937
    %9337 = vmatpush1.bf16.msra.mxu0 %v6936
    %9338 = vmatprep.subr.bf16.mxu0 %v6953
    %9339 = vmatpush1.bf16.msra.mxu0 %v6952
    %9340 = vmatprep.subr.bf16.mxu0 %v6969
    %9341 = vmatpush1.bf16.msra.mxu0 %v6968
    %9342 = vmatprep.subr.bf16.mxu0 %v6985
    %9343 = vmatpush1.bf16.msra.mxu0 %v6984
    %9344 = vmatprep.subr.bf16.mxu0 %v7001
    %9345 = vmatpush1.bf16.msra.mxu0 %v7000
    %9346 = vmatprep.subr.bf16.mxu0 %v7017
    %9347 = vmatpush1.bf16.msra.mxu0 %v7016
    %9348 = vmatprep.subr.bf16.mxu0 %v7033
    %9349 = vmatpush1.bf16.msra.mxu0 %v7032
    %9350 = vmatprep.subr.bf16.mxu0 %v7049
    %9351 = vmatpush1.bf16.msra.mxu0 %v7048
    %9352 = vmatprep.subr.bf16.mxu0 %v7065
    %9353 = vmatpush1.bf16.msra.mxu0 %v7064
    %9354 = vmatprep.subr.bf16.mxu0 %v7081
    %9355 = vmatpush1.bf16.msra.mxu0 %v7080
    %9356 = vmatprep.subr.bf16.mxu0 %v7097
    %9357 = vmatpush1.bf16.msra.mxu0 %v7096
    %9358 = vmatprep.subr.bf16.mxu0 %v7113
    %9359 = vmatpush1.bf16.msra.mxu0 %v7112
    %9360 = vmatprep.subr.bf16.mxu0 %v7129
    %9361 = vmatpush1.bf16.msra.mxu0 %v7128
    %9362 = vmatprep.subr.bf16.mxu0 %v7145
    %9363 = vmatpush1.bf16.msra.mxu0 %v7144
    %9364 = vmatprep.mubr.bf16.mxu0 %v2199
    %9365 = vmatmul.mubr.bf16.gmra.mrb[0].mxu0 %v2198
    %v9366 = vpop.f32.mrb[0].mxu0
    %v9367 = vadd.f32 %v9326, %v9366
    %v9368 = vpop.f32.mrb[0].mxu0
    %v9369 = vadd.f32 %v9328, %v9368
    %v9370 = vpop.f32.mrb[0].mxu0
    %v9371 = vpop.f32.mrb[0].mxu0
    %9372 = vdwg.mxu0
    %9373 = vmatprep.subr.bf16.mxu0 %v7161
    %9374 = vmatpush1.bf16.msra.mxu0 %v7160
    %9375 = vmatprep.subr.bf16.mxu0 %v7177
    %9376 = vmatpush1.bf16.msra.mxu0 %v7176
    %9377 = vmatprep.subr.bf16.mxu0 %v7193
    %9378 = vmatpush1.bf16.msra.mxu0 %v7192
    %9379 = vmatprep.subr.bf16.mxu0 %v7209
    %9380 = vmatpush1.bf16.msra.mxu0 %v7208
    %9381 = vmatprep.subr.bf16.mxu0 %v7225
    %9382 = vmatpush1.bf16.msra.mxu0 %v7224
    %9383 = vmatprep.subr.bf16.mxu0 %v7241
    %9384 = vmatpush1.bf16.msra.mxu0 %v7240
    %9385 = vmatprep.subr.bf16.mxu0 %v7257
    %9386 = vmatpush1.bf16.msra.mxu0 %v7256
    %9387 = vmatprep.subr.bf16.mxu0 %v7273
    %9388 = vmatpush1.bf16.msra.mxu0 %v7272
    %9389 = vmatprep.subr.bf16.mxu0 %v7289
    %9390 = vmatpush1.bf16.msra.mxu0 %v7288
    %9391 = vmatprep.subr.bf16.mxu0 %v7305
    %9392 = vmatpush1.bf16.msra.mxu0 %v7304
    %9393 = vmatprep.subr.bf16.mxu0 %v7321
    %9394 = vmatpush1.bf16.msra.mxu0 %v7320
    %9395 = vmatprep.subr.bf16.mxu0 %v7337
    %9396 = vmatpush1.bf16.msra.mxu0 %v7336
    %9397 = vmatprep.subr.bf16.mxu0 %v7353
    %9398 = vmatpush1.bf16.msra.mxu0 %v7352
    %9399 = vmatprep.subr.bf16.mxu0 %v7369
    %9400 = vmatpush1.bf16.msra.mxu0 %v7368
    %9401 = vmatprep.subr.bf16.mxu0 %v7385
    %9402 = vmatpush1.bf16.msra.mxu0 %v7384
    %9403 = vmatprep.subr.bf16.mxu0 %v7401
    %9404 = vmatpush1.bf16.msra.mxu0 %v7400
    %9405 = vmatprep.mubr.bf16.mxu0 %v2201
    %9406 = vmatmul.mubr.bf16.gmra.mrb[0].mxu0 %v2200
    %v9407 = vpop.f32.mrb[0].mxu0
    %v9408 = vadd.f32 %v9367, %v9407
    %v9409 = vpop.f32.mrb[0].mxu0
    %v9410 = vadd.f32 %v9369, %v9409
    %v9411 = vpop.f32.mrb[0].mxu0
    %v9412 = vpop.f32.mrb[0].mxu0
    %9413 = vdwg.mxu0
    %9414 = vmatprep.subr.bf16.mxu0 %v6395
    %9415 = vmatpush1.bf16.msra.mxu0 %v6394
    %9416 = vmatprep.subr.bf16.mxu0 %v6411
    %9417 = vmatpush1.bf16.msra.mxu0 %v6410
    %9418 = vmatprep.subr.bf16.mxu0 %v6427
    %9419 = vmatpush1.bf16.msra.mxu0 %v6426
    %9420 = vmatprep.subr.bf16.mxu0 %v6443
    %9421 = vmatpush1.bf16.msra.mxu0 %v6442
    %9422 = vmatprep.subr.bf16.mxu0 %v6459
    %9423 = vmatpush1.bf16.msra.mxu0 %v6458
    %9424 = vmatprep.subr.bf16.mxu0 %v6475
    %9425 = vmatpush1.bf16.msra.mxu0 %v6474
    %9426 = vmatprep.subr.bf16.mxu0 %v6491
    %9427 = vmatpush1.bf16.msra.mxu0 %v6490
    %9428 = vmatprep.subr.bf16.mxu0 %v6507
    %9429 = vmatpush1.bf16.msra.mxu0 %v6506
    %9430 = vmatprep.subr.bf16.mxu0 %v6523
    %9431 = vmatpush1.bf16.msra.mxu0 %v6522
    %9432 = vmatprep.subr.bf16.mxu0 %v6539
    %9433 = vmatpush1.bf16.msra.mxu0 %v6538
    %9434 = vmatprep.subr.bf16.mxu0 %v6555
    %9435 = vmatpush1.bf16.msra.mxu0 %v6554
    %9436 = vmatprep.subr.bf16.mxu0 %v6571
    %9437 = vmatpush1.bf16.msra.mxu0 %v6570
    %9438 = vmatprep.subr.bf16.mxu0 %v6587
    %9439 = vmatpush1.bf16.msra.mxu0 %v6586
    %9440 = vmatprep.subr.bf16.mxu0 %v6603
    %9441 = vmatpush1.bf16.msra.mxu0 %v6602
    %9442 = vmatprep.subr.bf16.mxu0 %v6619
    %9443 = vmatpush1.bf16.msra.mxu0 %v6618
    %9444 = vmatprep.subr.bf16.mxu0 %v6635
    %9445 = vmatpush1.bf16.msra.mxu0 %v6634
    %9446 = vmatprep.mubr.bf16.mxu0 %v2195
    %9447 = vmatmul.mubr.bf16.gmra.mrb[0].mxu0 %v2194
    %v9448 = vpop.f32.mrb[0].mxu0
    %v9449 = vadd.f32 %v3281, %v9448
    %v9450 = vpop.f32.mrb[0].mxu0
    %v9451 = vadd.f32 %v3285, %v9450
    %v9452 = vpop.f32.mrb[0].mxu0
    %v9453 = vpop.f32.mrb[0].mxu0
    %9454 = vdwg.mxu0
    %9455 = vmatprep.subr.bf16.mxu0 %v6651
    %9456 = vmatpush1.bf16.msra.mxu0 %v6650
    %9457 = vmatprep.subr.bf16.mxu0 %v6667
    %9458 = vmatpush1.bf16.msra.mxu0 %v6666
    %9459 = vmatprep.subr.bf16.mxu0 %v6683
    %9460 = vmatpush1.bf16.msra.mxu0 %v6682
    %9461 = vmatprep.subr.bf16.mxu0 %v6699
    %9462 = vmatpush1.bf16.msra.mxu0 %v6698
    %9463 = vmatprep.subr.bf16.mxu0 %v6715
    %9464 = vmatpush1.bf16.msra.mxu0 %v6714
    %9465 = vmatprep.subr.bf16.mxu0 %v6731
    %9466 = vmatpush1.bf16.msra.mxu0 %v6730
    %9467 = vmatprep.subr.bf16.mxu0 %v6747
    %9468 = vmatpush1.bf16.msra.mxu0 %v6746
    %9469 = vmatprep.subr.bf16.mxu0 %v6763
    %9470 = vmatpush1.bf16.msra.mxu0 %v6762
    %9471 = vmatprep.subr.bf16.mxu0 %v6779
    %9472 = vmatpush1.bf16.msra.mxu0 %v6778
    %9473 = vmatprep.subr.bf16.mxu0 %v6795
    %9474 = vmatpush1.bf16.msra.mxu0 %v6794
    %9475 = vmatprep.subr.bf16.mxu0 %v6811
    %9476 = vmatpush1.bf16.msra.mxu0 %v6810
    %9477 = vmatprep.subr.bf16.mxu0 %v6827
    %9478 = vmatpush1.bf16.msra.mxu0 %v6826
    %9479 = vmatprep.subr.bf16.mxu0 %v6843
    %9480 = vmatpush1.bf16.msra.mxu0 %v6842
    %9481 = vmatprep.subr.bf16.mxu0 %v6859
    %9482 = vmatpush1.bf16.msra.mxu0 %v6858
    %9483 = vmatprep.subr.bf16.mxu0 %v6875
    %9484 = vmatpush1.bf16.msra.mxu0 %v6874
    %9485 = vmatprep.subr.bf16.mxu0 %v6891
    %9486 = vmatpush1.bf16.msra.mxu0 %v6890
    %9487 = vmatprep.mubr.bf16.mxu0 %v2197
    %9488 = vmatmul.mubr.bf16.gmra.mrb[0].mxu0 %v2196
    %v9489 = vpop.f32.mrb[0].mxu0
    %v9490 = vadd.f32 %v9449, %v9489
    %v9491 = vpop.f32.mrb[0].mxu0
    %v9492 = vadd.f32 %v9451, %v9491
    %v9493 = vpop.f32.mrb[0].mxu0
    %v9494 = vpop.f32.mrb[0].mxu0
    %9495 = vdwg.mxu0
    %9496 = vmatprep.subr.bf16.mxu0 %v6907
    %9497 = vmatpush1.bf16.msra.mxu0 %v6906
    %9498 = vmatprep.subr.bf16.mxu0 %v6923
    %9499 = vmatpush1.bf16.msra.mxu0 %v6922
    %9500 = vmatprep.subr.bf16.mxu0 %v6939
    %9501 = vmatpush1.bf16.msra.mxu0 %v6938
    %9502 = vmatprep.subr.bf16.mxu0 %v6955
    %9503 = vmatpush1.bf16.msra.mxu0 %v6954
    %9504 = vmatprep.subr.bf16.mxu0 %v6971
    %9505 = vmatpush1.bf16.msra.mxu0 %v6970
    %9506 = vmatprep.subr.bf16.mxu0 %v6987
    %9507 = vmatpush1.bf16.msra.mxu0 %v6986
    %9508 = vmatprep.subr.bf16.mxu0 %v7003
    %9509 = vmatpush1.bf16.msra.mxu0 %v7002
    %9510 = vmatprep.subr.bf16.mxu0 %v7019
    %9511 = vmatpush1.bf16.msra.mxu0 %v7018
    %9512 = vmatprep.subr.bf16.mxu0 %v7035
    %9513 = vmatpush1.bf16.msra.mxu0 %v7034
    %9514 = vmatprep.subr.bf16.mxu0 %v7051
    %9515 = vmatpush1.bf16.msra.mxu0 %v7050
    %9516 = vmatprep.subr.bf16.mxu0 %v7067
    %9517 = vmatpush1.bf16.msra.mxu0 %v7066
    %9518 = vmatprep.subr.bf16.mxu0 %v7083
    %9519 = vmatpush1.bf16.msra.mxu0 %v7082
    %9520 = vmatprep.subr.bf16.mxu0 %v7099
    %9521 = vmatpush1.bf16.msra.mxu0 %v7098
    %9522 = vmatprep.subr.bf16.mxu0 %v7115
    %9523 = vmatpush1.bf16.msra.mxu0 %v7114
    %9524 = vmatprep.subr.bf16.mxu0 %v7131
    %9525 = vmatpush1.bf16.msra.mxu0 %v7130
    %9526 = vmatprep.subr.bf16.mxu0 %v7147
    %9527 = vmatpush1.bf16.msra.mxu0 %v7146
    %9528 = vmatprep.mubr.bf16.mxu0 %v2199
    %9529 = vmatmul.mubr.bf16.gmra.mrb[0].mxu0 %v2198
    %v9530 = vpop.f32.mrb[0].mxu0
    %v9531 = vadd.f32 %v9490, %v9530
    %v9532 = vpop.f32.mrb[0].mxu0
    %v9533 = vadd.f32 %v9492, %v9532
    %v9534 = vpop.f32.mrb[0].mxu0
    %v9535 = vpop.f32.mrb[0].mxu0
    %9536 = vdwg.mxu0
    %9537 = vmatprep.subr.bf16.mxu0 %v7163
    %9538 = vmatpush1.bf16.msra.mxu0 %v7162
    %9539 = vmatprep.subr.bf16.mxu0 %v7179
    %9540 = vmatpush1.bf16.msra.mxu0 %v7178
    %9541 = vmatprep.subr.bf16.mxu0 %v7195
    %9542 = vmatpush1.bf16.msra.mxu0 %v7194
    %9543 = vmatprep.subr.bf16.mxu0 %v7211
    %9544 = vmatpush1.bf16.msra.mxu0 %v7210
    %9545 = vmatprep.subr.bf16.mxu0 %v7227
    %9546 = vmatpush1.bf16.msra.mxu0 %v7226
    %9547 = vmatprep.subr.bf16.mxu0 %v7243
    %9548 = vmatpush1.bf16.msra.mxu0 %v7242
    %9549 = vmatprep.subr.bf16.mxu0 %v7259
    %9550 = vmatpush1.bf16.msra.mxu0 %v7258
    %9551 = vmatprep.subr.bf16.mxu0 %v7275
    %9552 = vmatpush1.bf16.msra.mxu0 %v7274
    %9553 = vmatprep.subr.bf16.mxu0 %v7291
    %9554 = vmatpush1.bf16.msra.mxu0 %v7290
    %9555 = vmatprep.subr.bf16.mxu0 %v7307
    %9556 = vmatpush1.bf16.msra.mxu0 %v7306
    %9557 = vmatprep.subr.bf16.mxu0 %v7323
    %9558 = vmatpush1.bf16.msra.mxu0 %v7322
    %9559 = vmatprep.subr.bf16.mxu0 %v7339
    %9560 = vmatpush1.bf16.msra.mxu0 %v7338
    %9561 = vmatprep.subr.bf16.mxu0 %v7355
    %9562 = vmatpush1.bf16.msra.mxu0 %v7354
    %9563 = vmatprep.subr.bf16.mxu0 %v7371
    %9564 = vmatpush1.bf16.msra.mxu0 %v7370
    %9565 = vmatprep.subr.bf16.mxu0 %v7387
    %9566 = vmatpush1.bf16.msra.mxu0 %v7386
    %9567 = vmatprep.subr.bf16.mxu0 %v7403
    %9568 = vmatpush1.bf16.msra.mxu0 %v7402
    %9569 = vmatprep.mubr.bf16.mxu0 %v2201
    %9570 = vmatmul.mubr.bf16.gmra.mrb[0].mxu0 %v2200
    %v9571 = vpop.f32.mrb[0].mxu0
    %v9572 = vadd.f32 %v9531, %v9571
    %v9573 = vpop.f32.mrb[0].mxu0
    %v9574 = vadd.f32 %v9533, %v9573
    %v9575 = vpop.f32.mrb[0].mxu0
    %v9576 = vpop.f32.mrb[0].mxu0
    %9577 = vdwg.mxu0
    %9578 = vmatprep.subr.bf16.mxu0 %v6397
    %9579 = vmatpush1.bf16.msra.mxu0 %v6396
    %9580 = vmatprep.subr.bf16.mxu0 %v6413
    %9581 = vmatpush1.bf16.msra.mxu0 %v6412
    %9582 = vmatprep.subr.bf16.mxu0 %v6429
    %9583 = vmatpush1.bf16.msra.mxu0 %v6428
    %9584 = vmatprep.subr.bf16.mxu0 %v6445
    %9585 = vmatpush1.bf16.msra.mxu0 %v6444
    %9586 = vmatprep.subr.bf16.mxu0 %v6461
    %9587 = vmatpush1.bf16.msra.mxu0 %v6460
    %9588 = vmatprep.subr.bf16.mxu0 %v6477
    %9589 = vmatpush1.bf16.msra.mxu0 %v6476
    %9590 = vmatprep.subr.bf16.mxu0 %v6493
    %9591 = vmatpush1.bf16.msra.mxu0 %v6492
    %9592 = vmatprep.subr.bf16.mxu0 %v6509
    %9593 = vmatpush1.bf16.msra.mxu0 %v6508
    %9594 = vmatprep.subr.bf16.mxu0 %v6525
    %9595 = vmatpush1.bf16.msra.mxu0 %v6524
    %9596 = vmatprep.subr.bf16.mxu0 %v6541
    %9597 = vmatpush1.bf16.msra.mxu0 %v6540
    %9598 = vmatprep.subr.bf16.mxu0 %v6557
    %9599 = vmatpush1.bf16.msra.mxu0 %v6556
    %9600 = vmatprep.subr.bf16.mxu0 %v6573
    %9601 = vmatpush1.bf16.msra.mxu0 %v6572
    %9602 = vmatprep.subr.bf16.mxu0 %v6589
    %9603 = vmatpush1.bf16.msra.mxu0 %v6588
    %9604 = vmatprep.subr.bf16.mxu0 %v6605
    %9605 = vmatpush1.bf16.msra.mxu0 %v6604
    %9606 = vmatprep.subr.bf16.mxu0 %v6621
    %9607 = vmatpush1.bf16.msra.mxu0 %v6620
    %9608 = vmatprep.subr.bf16.mxu0 %v6637
    %9609 = vmatpush1.bf16.msra.mxu0 %v6636
    %9610 = vmatprep.mubr.bf16.mxu0 %v2195
    %9611 = vmatmul.mubr.bf16.gmra.mrb[0].mxu0 %v2194
    %v9612 = vpop.f32.mrb[0].mxu0
    %v9613 = vadd.f32 %v3289, %v9612
    %v9614 = vpop.f32.mrb[0].mxu0
    %v9615 = vadd.f32 %v3293, %v9614
    %v9616 = vpop.f32.mrb[0].mxu0
    %v9617 = vpop.f32.mrb[0].mxu0
    %9618 = vdwg.mxu0
    %9619 = vmatprep.subr.bf16.mxu0 %v6653
    %9620 = vmatpush1.bf16.msra.mxu0 %v6652
    %9621 = vmatprep.subr.bf16.mxu0 %v6669
    %9622 = vmatpush1.bf16.msra.mxu0 %v6668
    %9623 = vmatprep.subr.bf16.mxu0 %v6685
    %9624 = vmatpush1.bf16.msra.mxu0 %v6684
    %9625 = vmatprep.subr.bf16.mxu0 %v6701
    %9626 = vmatpush1.bf16.msra.mxu0 %v6700
    %9627 = vmatprep.subr.bf16.mxu0 %v6717
    %9628 = vmatpush1.bf16.msra.mxu0 %v6716
    %9629 = vmatprep.subr.bf16.mxu0 %v6733
    %9630 = vmatpush1.bf16.msra.mxu0 %v6732
    %9631 = vmatprep.subr.bf16.mxu0 %v6749
    %9632 = vmatpush1.bf16.msra.mxu0 %v6748
    %9633 = vmatprep.subr.bf16.mxu0 %v6765
    %9634 = vmatpush1.bf16.msra.mxu0 %v6764
    %9635 = vmatprep.subr.bf16.mxu0 %v6781
    %9636 = vmatpush1.bf16.msra.mxu0 %v6780
    %9637 = vmatprep.subr.bf16.mxu0 %v6797
    %9638 = vmatpush1.bf16.msra.mxu0 %v6796
    %9639 = vmatprep.subr.bf16.mxu0 %v6813
    %9640 = vmatpush1.bf16.msra.mxu0 %v6812
    %9641 = vmatprep.subr.bf16.mxu0 %v6829
    %9642 = vmatpush1.bf16.msra.mxu0 %v6828
    %9643 = vmatprep.subr.bf16.mxu0 %v6845
    %9644 = vmatpush1.bf16.msra.mxu0 %v6844
    %9645 = vmatprep.subr.bf16.mxu0 %v6861
    %9646 = vmatpush1.bf16.msra.mxu0 %v6860
    %9647 = vmatprep.subr.bf16.mxu0 %v6877
    %9648 = vmatpush1.bf16.msra.mxu0 %v6876
    %9649 = vmatprep.subr.bf16.mxu0 %v6893
    %9650 = vmatpush1.bf16.msra.mxu0 %v6892
    %9651 = vmatprep.mubr.bf16.mxu0 %v2197
    %9652 = vmatmul.mubr.bf16.gmra.mrb[0].mxu0 %v2196
    %v9653 = vpop.f32.mrb[0].mxu0
    %v9654 = vadd.f32 %v9613, %v9653
    %v9655 = vpop.f32.mrb[0].mxu0
    %v9656 = vadd.f32 %v9615, %v9655
    %v9657 = vpop.f32.mrb[0].mxu0
    %v9658 = vpop.f32.mrb[0].mxu0
    %9659 = vdwg.mxu0
    %9660 = vmatprep.subr.bf16.mxu0 %v6909
    %9661 = vmatpush1.bf16.msra.mxu0 %v6908
    %9662 = vmatprep.subr.bf16.mxu0 %v6925
    %9663 = vmatpush1.bf16.msra.mxu0 %v6924
    %9664 = vmatprep.subr.bf16.mxu0 %v6941
    %9665 = vmatpush1.bf16.msra.mxu0 %v6940
    %9666 = vmatprep.subr.bf16.mxu0 %v6957
    %9667 = vmatpush1.bf16.msra.mxu0 %v6956
    %9668 = vmatprep.subr.bf16.mxu0 %v6973
    %9669 = vmatpush1.bf16.msra.mxu0 %v6972
    %9670 = vmatprep.subr.bf16.mxu0 %v6989
    %9671 = vmatpush1.bf16.msra.mxu0 %v6988
    %9672 = vmatprep.subr.bf16.mxu0 %v7005
    %9673 = vmatpush1.bf16.msra.mxu0 %v7004
    %9674 = vmatprep.subr.bf16.mxu0 %v7021
    %9675 = vmatpush1.bf16.msra.mxu0 %v7020
    %9676 = vmatprep.subr.bf16.mxu0 %v7037
    %9677 = vmatpush1.bf16.msra.mxu0 %v7036
    %9678 = vmatprep.subr.bf16.mxu0 %v7053
    %9679 = vmatpush1.bf16.msra.mxu0 %v7052
    %9680 = vmatprep.subr.bf16.mxu0 %v7069
    %9681 = vmatpush1.bf16.msra.mxu0 %v7068
    %9682 = vmatprep.subr.bf16.mxu0 %v7085
    %9683 = vmatpush1.bf16.msra.mxu0 %v7084
    %9684 = vmatprep.subr.bf16.mxu0 %v7101
    %9685 = vmatpush1.bf16.msra.mxu0 %v7100
    %9686 = vmatprep.subr.bf16.mxu0 %v7117
    %9687 = vmatpush1.bf16.msra.mxu0 %v7116
    %9688 = vmatprep.subr.bf16.mxu0 %v7133
    %9689 = vmatpush1.bf16.msra.mxu0 %v7132
    %9690 = vmatprep.subr.bf16.mxu0 %v7149
    %9691 = vmatpush1.bf16.msra.mxu0 %v7148
    %9692 = vmatprep.mubr.bf16.mxu0 %v2199
    %9693 = vmatmul.mubr.bf16.gmra.mrb[0].mxu0 %v2198
    %v9694 = vpop.f32.mrb[0].mxu0
    %v9695 = vadd.f32 %v9654, %v9694
    %v9696 = vpop.f32.mrb[0].mxu0
    %v9697 = vadd.f32 %v9656, %v9696
    %v9698 = vpop.f32.mrb[0].mxu0
    %v9699 = vpop.f32.mrb[0].mxu0
    %9700 = vdwg.mxu0
    %9701 = vmatprep.subr.bf16.mxu0 %v7165
    %9702 = vmatpush1.bf16.msra.mxu0 %v7164
    %9703 = vmatprep.subr.bf16.mxu0 %v7181
    %9704 = vmatpush1.bf16.msra.mxu0 %v7180
    %9705 = vmatprep.subr.bf16.mxu0 %v7197
    %9706 = vmatpush1.bf16.msra.mxu0 %v7196
    %9707 = vmatprep.subr.bf16.mxu0 %v7213
    %9708 = vmatpush1.bf16.msra.mxu0 %v7212
    %9709 = vmatprep.subr.bf16.mxu0 %v7229
    %9710 = vmatpush1.bf16.msra.mxu0 %v7228
    %9711 = vmatprep.subr.bf16.mxu0 %v7245
    %9712 = vmatpush1.bf16.msra.mxu0 %v7244
    %9713 = vmatprep.subr.bf16.mxu0 %v7261
    %9714 = vmatpush1.bf16.msra.mxu0 %v7260
    %9715 = vmatprep.subr.bf16.mxu0 %v7277
    %9716 = vmatpush1.bf16.msra.mxu0 %v7276
    %9717 = vmatprep.subr.bf16.mxu0 %v7293
    %9718 = vmatpush1.bf16.msra.mxu0 %v7292
    %9719 = vmatprep.subr.bf16.mxu0 %v7309
    %9720 = vmatpush1.bf16.msra.mxu0 %v7308
    %9721 = vmatprep.subr.bf16.mxu0 %v7325
    %9722 = vmatpush1.bf16.msra.mxu0 %v7324
    %9723 = vmatprep.subr.bf16.mxu0 %v7341
    %9724 = vmatpush1.bf16.msra.mxu0 %v7340
    %9725 = vmatprep.subr.bf16.mxu0 %v7357
    %9726 = vmatpush1.bf16.msra.mxu0 %v7356
    %9727 = vmatprep.subr.bf16.mxu0 %v7373
    %9728 = vmatpush1.bf16.msra.mxu0 %v7372
    %9729 = vmatprep.subr.bf16.mxu0 %v7389
    %9730 = vmatpush1.bf16.msra.mxu0 %v7388
    %9731 = vmatprep.subr.bf16.mxu0 %v7405
    %9732 = vmatpush1.bf16.msra.mxu0 %v7404
    %9733 = vmatprep.mubr.bf16.mxu0 %v2201
    %9734 = vmatmul.mubr.bf16.gmra.mrb[0].mxu0 %v2200
    %v9735 = vpop.f32.mrb[0].mxu0
    %v9736 = vadd.f32 %v9695, %v9735
    %v9737 = vpop.f32.mrb[0].mxu0
    %v9738 = vadd.f32 %v9697, %v9737
    %v9739 = vpop.f32.mrb[0].mxu0
    %v9740 = vpop.f32.mrb[0].mxu0
    %9741 = vdwg.mxu0
    %v9742 = vmax.f32 %v8588, 0.0
    %v9743 = vmax.f32 %v8590, 0.0
    %v9744 = vmax.f32 %v8752, 0.0
    %v9745 = vmax.f32 %v8754, 0.0
    %v9746 = vmax.f32 %v8916, 0.0
    %v9747 = vmax.f32 %v8918, 0.0
    %v9748 = vmax.f32 %v9080, 0.0
    %v9749 = vmax.f32 %v9082, 0.0
    %v9750 = vmax.f32 %v9244, 0.0
    %v9751 = vmax.f32 %v9246, 0.0
    %v9752 = vmax.f32 %v9408, 0.0
    %v9753 = vmax.f32 %v9410, 0.0
    %v9754 = vmax.f32 %v9572, 0.0
    %v9755 = vmax.f32 %v9574, 0.0
    %v9756 = vmax.f32 %v9736, 0.0
    %v9757 = vmax.f32 %v9738, 0.0
    %v9758 = vpack.c.bf16 %v9742, %v9742
    %v9759 = vpack.c.bf16 %v9743, %v9743
    %v9760 = vpack.c.bf16 %v9744, %v9744
    %v9761 = vpack.c.bf16 %v9745, %v9745
    %v9762 = vpack.c.bf16 %v9746, %v9746
    %v9763 = vpack.c.bf16 %v9747, %v9747
    %v9764 = vpack.c.bf16 %v9748, %v9748
    %v9765 = vpack.c.bf16 %v9749, %v9749
    %v9766 = vpack.c.bf16 %v9750, %v9750
    %v9767 = vpack.c.bf16 %v9751, %v9751
    %v9768 = vpack.c.bf16 %v9752, %v9752
    %v9769 = vpack.c.bf16 %v9753, %v9753
    %v9770 = vpack.c.bf16 %v9754, %v9754
    %v9771 = vpack.c.bf16 %v9755, %v9755
    %v9772 = vpack.c.bf16 %v9756, %v9756
    %v9773 = vpack.c.bf16 %v9757, %v9757
    %v9790 = vunpack.c.l.b16 %v9758
    %v9791 = vunpack.c.l.b16 %v9759
    %v9792 = vunpack.c.l.b16 %v9760
    %v9793 = vunpack.c.l.b16 %v9761
    %v9794 = vunpack.c.l.b16 %v9762
    %v9795 = vunpack.c.l.b16 %v9763
    %v9796 = vunpack.c.l.b16 %v9764
    %v9797 = vunpack.c.l.b16 %v9765
    %v9798 = vunpack.c.l.b16 %v9766
    %v9799 = vunpack.c.l.b16 %v9767
    %v9800 = vunpack.c.l.b16 %v9768
    %v9801 = vunpack.c.l.b16 %v9769
    %v9802 = vunpack.c.l.b16 %v9770
    %v9803 = vunpack.c.l.b16 %v9771
    %v9804 = vunpack.c.l.b16 %v9772
    %v9805 = vunpack.c.l.b16 %v9773
    %v9806 = vpack.c.b16 %v9791, %v9790
    %v9807 = vpack.c.b16 %v9793, %v9792
    %v9808 = vpack.c.b16 %v9795, %v9794
    %v9809 = vpack.c.b16 %v9797, %v9796
    %v9810 = vpack.c.b16 %v9799, %v9798
    %v9811 = vpack.c.b16 %v9801, %v9800
    %v9812 = vpack.c.b16 %v9803, %v9802
    %v9813 = vpack.c.b16 %v9805, %v9804
    %9822 = vst [vmem:[#allocation14] sm:$0xff] %v9806
    %9823 = vst [vmem:[#allocation14 + $0x8] sm:$0xff] %v9807
    %9824 = vst [vmem:[#allocation14 + $0x10] sm:$0xff] %v9808
    %9825 = vst [vmem:[#allocation14 + $0x18] sm:$0xff] %v9809
    %9826 = vst [vmem:[#allocation14 + $0x20] sm:$0xff] %v9810
    %9827 = vst [vmem:[#allocation14 + $0x28] sm:$0xff] %v9811
    %9828 = vst [vmem:[#allocation14 + $0x30] sm:$0xff] %v9812
    %9829 = vst [vmem:[#allocation14 + $0x38] sm:$0xff] %v9813
    // Predicated region
    $region58: #{tpu_custom_call.1} parent=1 // pred_check
      _
    $region59: #{tpu_custom_call.1} parent=1 // pred_check_branch
      %9831 = sbr.rel (0) target = $region61
    $region60: #{tpu_custom_call.1} parent=1 // pred_region
      %s9833 = ssub.s32 1024, 1024
      %9834 = vsyncadd [#allocation4], %s9833
      %s9836 = sshll.u32 [#allocation14], 4
      %s9837 = int_to_ptr.vmem [resolvable:$true] %s9836
      %9839 = dma.vmem_to_hbm [thread:$0]  %s9837, 1024, %s7, [#allocation4]
    $region61: #{tpu_custom_call.1} parent=1 // pred_fallthru
      _
    // Predicated region
    $region62: #{tpu_custom_call.1} parent=1 // pred_check
      _
    $region63: #{tpu_custom_call.1} parent=1 // pred_check_branch
      %9841 = sbr.rel (0) target = $region65
    $region64: #{tpu_custom_call.1} parent=1 // pred_region
      %9842 = dma.done [#allocation4], 1024
    $region65: #{tpu_custom_call.1} parent=1 // pred_fallthru
      _
    %9843 = vsyncpa [#allocation3], 1
    %9844 = vsyncpa [#allocation6], 1
    %9845 = vsyncpa [#allocation9], 1
    %9846 = vsyncpa [#allocation12], 1
    %9847 = vsyncpa [#allocation4], 1

</llo_original>
